<compile_context>
chip_gen: v7x
topology: tpu7x:2x2x1
jax: 0.10.0
libtpu: 0.0.40
codegen_flags: <defaults>
</compile_context>

<pallas_src>
import jax
import jax.numpy as jnp
from jax.experimental import pallas as pl
from jax.experimental.pallas import tpu as pltpu

LANE = 128


def _round_up(n, m):
    return ((n + m - 1) // m) * m


def convlstm_kernel(comb_ref, w_ref, b_ref, c_ref, h_out_ref, c_out_ref,
                    acc_ref):
    # comb_ref : (H+2, W+2, Cp)     bf16, 1-px SAME halo + zero channel padding
    # w_ref    : (3, 3*Cp, 4*hidp)  bf16, K index = dx*Cp + c, N = gate*hidp + n
    # b_ref    : (1, 4*hidp)        f32
    # c_ref    : (H*W, hidp)        f32  previous cell state (lane-dense slab)
    # h_out_ref, c_out_ref : (H*W, hidp) f32
    # acc_ref  : (H*W, 4*hidp)      f32 VMEM scratch (gate pre-activations)
    Hp2, Wp2, Cp = comb_ref.shape
    H, W = Hp2 - 2, Wp2 - 2
    gdim = acc_ref.shape[-1]
    hidp = gdim // 4

    # Initialize the gate accumulator with the bias (broadcast once).
    acc_ref[...] = jnp.broadcast_to(b_ref[...], (H * W, gdim))

    # 3x3 conv as 3 row-band matmuls: for each dy, the three dx taps are
    # lane-concatenated (each piece is a 128-lane multiple, so no relayout)
    # into one (H*W, 3*Cp) bf16 operand -> MXU contraction depth 3*Cp (=384)
    # and output width 4*hidp (=512), accumulated in f32 into VMEM scratch.
    for dy in range(3):
        taps = [
            comb_ref[dy:dy + H, dx:dx + W, :].reshape(H * W, Cp)
            for dx in range(3)
        ]
        lhs = jnp.concatenate(taps, axis=-1)          # (H*W, 3*Cp) bf16
        acc_ref[...] += jnp.dot(lhs, w_ref[dy],
                                preferred_element_type=jnp.float32)

    # LSTM gating, all in f32.  PyTorch split order along channels: i, f, g, o.
    i = jax.nn.sigmoid(acc_ref[:, 0 * hidp:1 * hidp])
    f = jax.nn.sigmoid(acc_ref[:, 1 * hidp:2 * hidp])
    g = jnp.tanh(acc_ref[:, 2 * hidp:3 * hidp])
    o = jax.nn.sigmoid(acc_ref[:, 3 * hidp:4 * hidp])

    c_next = f * c_ref[...] + i * g
    h_out_ref[...] = o * jnp.tanh(c_next)
    c_out_ref[...] = c_next


def conv_lstm_cell(x, h_cur, c_cur, weight, bias):
    """ConvLSTMCell.forward.  NCHW in / NCHW out (PyTorch convention).

    x      : (B, Cin, H, W)
    h_cur  : (B, hid, H, W)
    c_cur  : (B, hid, H, W)
    weight : (4*hid, Cin+hid, 3, 3)   OIHW, like nn.Conv2d
    bias   : (4*hid,)
    """
    B, Cin, H, W = x.shape
    hid = h_cur.shape[1]
    C = Cin + hid
    Cp = _round_up(C, LANE)          # lane-dense combined-channel count
    hidp = _round_up(hid, LANE)      # lane-dense hidden size
    Np = 4 * hidp

    # ---- layout conversion (single fused XLA pass over the activations) ----
    # NCHW -> NHWC, concat along channels, channel-pad to Cp, bf16 MXU operand,
    # and the 1-pixel SAME halo.
    # TODO(synk): for large images, fold the halo/concat into the kernel
    # (separate x/h inputs + boundary masking) and add an H-band grid axis with
    # a 2-row halo so per-step VMEM stays bounded (esp. v7x's 64 MiB VMEM).
    x_nhwc = jnp.transpose(x, (0, 2, 3, 1))
    h_nhwc = jnp.transpose(h_cur, (0, 2, 3, 1))
    comb = jnp.concatenate([x_nhwc, h_nhwc], axis=-1).astype(jnp.bfloat16)
    comb = jnp.pad(comb, ((0, 0), (1, 1), (1, 1), (0, Cp - C)))

    # Previous cell state as a lane-dense (B, H*W, hidp) f32 slab.
    c_nhwc = jnp.transpose(c_cur, (0, 2, 3, 1)).reshape(B, H * W, hid)
    c_flat = jnp.pad(c_nhwc, ((0, 0), (0, 0), (0, hidp - hid)))
    c_flat = c_flat.astype(jnp.float32)

    # Conv weight OIHW -> (3, 3*Cp, 4*hidp) with gate-strided padding so gate k
    # occupies output lanes [k*hidp, k*hidp + hid).
    w = jnp.transpose(weight, (2, 3, 1, 0)).reshape(3, 3, C, 4, hid)
    w = jnp.pad(w, ((0, 0), (0, 0), (0, Cp - C), (0, 0), (0, hidp - hid)))
    w = w.reshape(3, 3 * Cp, Np).astype(jnp.bfloat16)

    b = jnp.pad(bias.reshape(4, hid), ((0, 0), (0, hidp - hid)))
    b = b.reshape(1, Np).astype(jnp.float32)

    h_flat, c_flat_next = pl.pallas_call(
        convlstm_kernel,
        out_shape=(jax.ShapeDtypeStruct((B, H * W, hidp), jnp.float32),
                   jax.ShapeDtypeStruct((B, H * W, hidp), jnp.float32)),
        grid_spec=pltpu.PrefetchScalarGridSpec(
            num_scalar_prefetch=0,
            grid=(B,),
            in_specs=[
                pl.BlockSpec((None, H + 2, W + 2, Cp),
                             lambda bb: (bb, 0, 0, 0)),
                pl.BlockSpec((3, 3 * Cp, Np), lambda bb: (0, 0, 0)),
                pl.BlockSpec((1, Np), lambda bb: (0, 0)),
                pl.BlockSpec((None, H * W, hidp), lambda bb: (bb, 0, 0)),
            ],
            out_specs=[
                pl.BlockSpec((None, H * W, hidp), lambda bb: (bb, 0, 0)),
                pl.BlockSpec((None, H * W, hidp), lambda bb: (bb, 0, 0)),
            ],
            scratch_shapes=[pltpu.VMEM((H * W, Np), jnp.float32)],
        ),
        compiler_params=pltpu.CompilerParams(
            dimension_semantics=("parallel",),
            vmem_limit_bytes=64 * 1024 * 1024),
    )(comb, w, b, c_flat)

    # (B, H*W, hidp) slabs -> NCHW, dropping the channel padding.
    h_next = jnp.transpose(
        h_flat[:, :, :hid].reshape(B, H, W, hid), (0, 3, 1, 2))
    c_next = jnp.transpose(
        c_flat_next[:, :, :hid].reshape(B, H, W, hid), (0, 3, 1, 2))
    return h_next, c_next


def ref_forward(x, h_cur, c_cur, weight, bias):
    """Pure-JAX (f32) reference matching the PyTorch module semantics."""
    comb = jnp.concatenate([x, h_cur], axis=1)
    gates = jax.lax.conv_general_dilated(
        comb, weight, window_strides=(1, 1), padding="SAME",
        dimension_numbers=("NCHW", "OIHW", "NCHW"))
    gates = gates + bias[None, :, None, None]
    i, f, g, o = jnp.split(gates, 4, axis=1)
    i, f, o = jax.nn.sigmoid(i), jax.nn.sigmoid(f), jax.nn.sigmoid(o)
    g = jnp.tanh(g)
    c_next = f * c_cur + i * g
    h_next = o * jnp.tanh(c_next)
    return h_next, c_next


if __name__ == "__main__":
    B, Cin, hid, H, W = 2, 4, 8, 16, 16
    key = jax.random.PRNGKey(0)
    kx, kh, kc, kw, kb = jax.random.split(key, 5)

    x = jax.random.normal(kx, (B, Cin, H, W), jnp.float32)
    h_cur = jax.random.normal(kh, (B, hid, H, W), jnp.float32)
    c_cur = jax.random.normal(kc, (B, hid, H, W), jnp.float32)

    # Deterministic synthetic nn.Conv2d(Cin+hid, 4*hid, 3, padding=1) params.
    weight = jax.random.normal(kw, (4 * hid, Cin + hid, 3, 3), jnp.float32) * 0.1
    bias = jax.random.normal(kb, (4 * hid,), jnp.float32) * 0.1

    h_next, c_next = conv_lstm_cell(x, h_cur, c_cur, weight, bias)
    jax.block_until_ready((h_next, c_next))

    h_ref, c_ref_ = ref_forward(x, h_cur, c_cur, weight, bias)
    # bf16 MXU operands (f32 accumulation) -> loosened tolerance vs f32 ref.
    assert jnp.allclose(h_next, h_ref, atol=2e-2, rtol=2e-2)
    assert jnp.allclose(c_next, c_ref_, atol=2e-2, rtol=2e-2)

    print("KERNEL_OK")
</pallas_src>

<mosaic_0001>
module attributes {stable_mosaic.version = 11 : i64} {
  func.func @convlstm_kernel(%arg0: i32, %arg1: memref<1x18x18x128xbf16, #tpu.memory_space<vmem>>, %arg2: memref<3x384x512xbf16, #tpu.memory_space<vmem>>, %arg3: memref<1x512xf32, #tpu.memory_space<vmem>>, %arg4: memref<1x256x128xf32, #tpu.memory_space<vmem>>, %arg5: memref<1x256x128xf32, #tpu.memory_space<vmem>>, %arg6: memref<1x256x128xf32, #tpu.memory_space<vmem>>, %arg7: memref<256x512xf32, #tpu.memory_space<vmem>>) attributes {dimension_semantics = [#tpu.dimension_semantics<parallel>], iteration_bounds = array<i64: 2>, scalar_prefetch = 0 : i64, scratch_operands = 1 : i64, tpu.core_type = #tpu.core_type<tc>, window_params = [{transform_indices = @transform_0, window_bounds = array<i64: 1, 18, 18, 128>}, {pipeline_mode = #tpu.pipeline_mode<synchronous>, transform_indices = @transform_1, window_bounds = array<i64: 3, 384, 512>}, {pipeline_mode = #tpu.pipeline_mode<synchronous>, transform_indices = @transform_2, window_bounds = array<i64: 1, 512>}, {transform_indices = @transform_3, window_bounds = array<i64: 1, 256, 128>}, {transform_indices = @transform_4, window_bounds = array<i64: 1, 256, 128>}, {transform_indices = @transform_5, window_bounds = array<i64: 1, 256, 128>}]} {
    %c0 = arith.constant 0 : index
    %c0_0 = arith.constant 0 : index
    %0 = vector.load %arg3[%c0, %c0_0] : memref<1x512xf32, #tpu.memory_space<vmem>>, vector<1x512xf32>
    %1 = vector.shape_cast %0 : vector<1x512xf32> to vector<1x512xf32>
    %2 = vector.broadcast %1 : vector<1x512xf32> to vector<256x512xf32>
    %c0_1 = arith.constant 0 : index
    %c0_2 = arith.constant 0 : index
    %3 = vector.load %arg7[%c0_1, %c0_2] : memref<256x512xf32, #tpu.memory_space<vmem>>, vector<256x512xf32>
    tpu.vector_store %arg7[%c0_1, %c0_2], %2 {strides = array<i32>} : memref<256x512xf32, #tpu.memory_space<vmem>>, vector<256x512xf32>,
    %c0_3 = arith.constant 0 : index
    %c0_4 = arith.constant 0 : index
    %c0_5 = arith.constant 0 : index
    %c0_6 = arith.constant 0 : index
    %4 = vector.load %arg1[%c0_3, %c0_4, %c0_5, %c0_6] : memref<1x18x18x128xbf16, #tpu.memory_space<vmem>>, vector<1x16x16x128xbf16>
    %5 = vector.shape_cast %4 : vector<1x16x16x128xbf16> to vector<16x16x128xbf16>
    %6 = vector.shape_cast %5 : vector<16x16x128xbf16> to vector<256x128xbf16>
    %c0_7 = arith.constant 0 : index
    %c0_8 = arith.constant 0 : index
    %c1 = arith.constant 1 : index
    %c0_9 = arith.constant 0 : index
    %7 = vector.load %arg1[%c0_7, %c0_8, %c1, %c0_9] : memref<1x18x18x128xbf16, #tpu.memory_space<vmem>>, vector<1x16x16x128xbf16>
    %8 = vector.shape_cast %7 : vector<1x16x16x128xbf16> to vector<16x16x128xbf16>
    %9 = vector.shape_cast %8 : vector<16x16x128xbf16> to vector<256x128xbf16>
    %c0_10 = arith.constant 0 : index
    %c0_11 = arith.constant 0 : index
    %c2 = arith.constant 2 : index
    %c0_12 = arith.constant 0 : index
    %10 = vector.load %arg1[%c0_10, %c0_11, %c2, %c0_12] : memref<1x18x18x128xbf16, #tpu.memory_space<vmem>>, vector<1x16x16x128xbf16>
    %11 = vector.shape_cast %10 : vector<1x16x16x128xbf16> to vector<16x16x128xbf16>
    %12 = vector.shape_cast %11 : vector<16x16x128xbf16> to vector<256x128xbf16>
    %13 = tpu.concatenate %6, %9, %12 in 1 : vector<256x128xbf16>, vector<256x128xbf16>, vector<256x128xbf16> -> vector<256x384xbf16>
    %c0_13 = arith.constant 0 : index
    %c0_14 = arith.constant 0 : index
    %14 = vector.load %arg7[%c0_13, %c0_14] : memref<256x512xf32, #tpu.memory_space<vmem>>, vector<256x512xf32>
    %c0_15 = arith.constant 0 : index
    %c0_16 = arith.constant 0 : index
    %c0_17 = arith.constant 0 : index
    %15 = vector.load %arg2[%c0_15, %c0_16, %c0_17] : memref<3x384x512xbf16, #tpu.memory_space<vmem>>, vector<1x384x512xbf16>
    %16 = vector.shape_cast %15 : vector<1x384x512xbf16> to vector<384x512xbf16>
    %cst = arith.constant dense<0.000000e+00> : vector<256x512xf32>
    %17 = tpu.matmul %13, %16, %cst {dimension_numbers = #tpu.dot_dimension_numbers<[1], [0], [0], [1], [0, 0, 1, 1], [], []>} : vector<256x384xbf16>, vector<384x512xbf16>, vector<256x512xf32> -> vector<256x512xf32>
    %18 = arith.addf %14, %17 : vector<256x512xf32>
    %c0_18 = arith.constant 0 : index
    %c0_19 = arith.constant 0 : index
    %19 = vector.load %arg7[%c0_18, %c0_19] : memref<256x512xf32, #tpu.memory_space<vmem>>, vector<256x512xf32>
    tpu.vector_store %arg7[%c0_18, %c0_19], %18 {strides = array<i32>} : memref<256x512xf32, #tpu.memory_space<vmem>>, vector<256x512xf32>,
    %c0_20 = arith.constant 0 : index
    %c1_21 = arith.constant 1 : index
    %c0_22 = arith.constant 0 : index
    %c0_23 = arith.constant 0 : index
    %20 = vector.load %arg1[%c0_20, %c1_21, %c0_22, %c0_23] : memref<1x18x18x128xbf16, #tpu.memory_space<vmem>>, vector<1x16x16x128xbf16>
    %21 = vector.shape_cast %20 : vector<1x16x16x128xbf16> to vector<16x16x128xbf16>
    %22 = vector.shape_cast %21 : vector<16x16x128xbf16> to vector<256x128xbf16>
    %c0_24 = arith.constant 0 : index
    %c1_25 = arith.constant 1 : index
    %c1_26 = arith.constant 1 : index
    %c0_27 = arith.constant 0 : index
    %23 = vector.load %arg1[%c0_24, %c1_25, %c1_26, %c0_27] : memref<1x18x18x128xbf16, #tpu.memory_space<vmem>>, vector<1x16x16x128xbf16>
    %24 = vector.shape_cast %23 : vector<1x16x16x128xbf16> to vector<16x16x128xbf16>
    %25 = vector.shape_cast %24 : vector<16x16x128xbf16> to vector<256x128xbf16>
    %c0_28 = arith.constant 0 : index
    %c1_29 = arith.constant 1 : index
    %c2_30 = arith.constant 2 : index
    %c0_31 = arith.constant 0 : index
    %26 = vector.load %arg1[%c0_28, %c1_29, %c2_30, %c0_31] : memref<1x18x18x128xbf16, #tpu.memory_space<vmem>>, vector<1x16x16x128xbf16>
    %27 = vector.shape_cast %26 : vector<1x16x16x128xbf16> to vector<16x16x128xbf16>
    %28 = vector.shape_cast %27 : vector<16x16x128xbf16> to vector<256x128xbf16>
    %29 = tpu.concatenate %22, %25, %28 in 1 : vector<256x128xbf16>, vector<256x128xbf16>, vector<256x128xbf16> -> vector<256x384xbf16>
    %c0_32 = arith.constant 0 : index
    %c0_33 = arith.constant 0 : index
    %30 = vector.load %arg7[%c0_32, %c0_33] : memref<256x512xf32, #tpu.memory_space<vmem>>, vector<256x512xf32>
    %c1_34 = arith.constant 1 : index
    %c0_35 = arith.constant 0 : index
    %c0_36 = arith.constant 0 : index
    %31 = vector.load %arg2[%c1_34, %c0_35, %c0_36] : memref<3x384x512xbf16, #tpu.memory_space<vmem>>, vector<1x384x512xbf16>
    %32 = vector.shape_cast %31 : vector<1x384x512xbf16> to vector<384x512xbf16>
    %cst_37 = arith.constant dense<0.000000e+00> : vector<256x512xf32>
    %33 = tpu.matmul %29, %32, %cst_37 {dimension_numbers = #tpu.dot_dimension_numbers<[1], [0], [0], [1], [0, 0, 1, 1], [], []>} : vector<256x384xbf16>, vector<384x512xbf16>, vector<256x512xf32> -> vector<256x512xf32>
    %34 = arith.addf %30, %33 : vector<256x512xf32>
    %c0_38 = arith.constant 0 : index
    %c0_39 = arith.constant 0 : index
    %35 = vector.load %arg7[%c0_38, %c0_39] : memref<256x512xf32, #tpu.memory_space<vmem>>, vector<256x512xf32>
    tpu.vector_store %arg7[%c0_38, %c0_39], %34 {strides = array<i32>} : memref<256x512xf32, #tpu.memory_space<vmem>>, vector<256x512xf32>,
    %c0_40 = arith.constant 0 : index
    %c2_41 = arith.constant 2 : index
    %c0_42 = arith.constant 0 : index
    %c0_43 = arith.constant 0 : index
    %36 = vector.load %arg1[%c0_40, %c2_41, %c0_42, %c0_43] : memref<1x18x18x128xbf16, #tpu.memory_space<vmem>>, vector<1x16x16x128xbf16>
    %37 = vector.shape_cast %36 : vector<1x16x16x128xbf16> to vector<16x16x128xbf16>
    %38 = vector.shape_cast %37 : vector<16x16x128xbf16> to vector<256x128xbf16>
    %c0_44 = arith.constant 0 : index
    %c2_45 = arith.constant 2 : index
    %c1_46 = arith.constant 1 : index
    %c0_47 = arith.constant 0 : index
    %39 = vector.load %arg1[%c0_44, %c2_45, %c1_46, %c0_47] : memref<1x18x18x128xbf16, #tpu.memory_space<vmem>>, vector<1x16x16x128xbf16>
    %40 = vector.shape_cast %39 : vector<1x16x16x128xbf16> to vector<16x16x128xbf16>
    %41 = vector.shape_cast %40 : vector<16x16x128xbf16> to vector<256x128xbf16>
    %c0_48 = arith.constant 0 : index
    %c2_49 = arith.constant 2 : index
    %c2_50 = arith.constant 2 : index
    %c0_51 = arith.constant 0 : index
    %42 = vector.load %arg1[%c0_48, %c2_49, %c2_50, %c0_51] : memref<1x18x18x128xbf16, #tpu.memory_space<vmem>>, vector<1x16x16x128xbf16>
    %43 = vector.shape_cast %42 : vector<1x16x16x128xbf16> to vector<16x16x128xbf16>
    %44 = vector.shape_cast %43 : vector<16x16x128xbf16> to vector<256x128xbf16>
    %45 = tpu.concatenate %38, %41, %44 in 1 : vector<256x128xbf16>, vector<256x128xbf16>, vector<256x128xbf16> -> vector<256x384xbf16>
    %c0_52 = arith.constant 0 : index
    %c0_53 = arith.constant 0 : index
    %46 = vector.load %arg7[%c0_52, %c0_53] : memref<256x512xf32, #tpu.memory_space<vmem>>, vector<256x512xf32>
    %c2_54 = arith.constant 2 : index
    %c0_55 = arith.constant 0 : index
    %c0_56 = arith.constant 0 : index
    %47 = vector.load %arg2[%c2_54, %c0_55, %c0_56] : memref<3x384x512xbf16, #tpu.memory_space<vmem>>, vector<1x384x512xbf16>
    %48 = vector.shape_cast %47 : vector<1x384x512xbf16> to vector<384x512xbf16>
    %cst_57 = arith.constant dense<0.000000e+00> : vector<256x512xf32>
    %49 = tpu.matmul %45, %48, %cst_57 {dimension_numbers = #tpu.dot_dimension_numbers<[1], [0], [0], [1], [0, 0, 1, 1], [], []>} : vector<256x384xbf16>, vector<384x512xbf16>, vector<256x512xf32> -> vector<256x512xf32>
    %50 = arith.addf %46, %49 : vector<256x512xf32>
    %c0_58 = arith.constant 0 : index
    %c0_59 = arith.constant 0 : index
    %51 = vector.load %arg7[%c0_58, %c0_59] : memref<256x512xf32, #tpu.memory_space<vmem>>, vector<256x512xf32>
    tpu.vector_store %arg7[%c0_58, %c0_59], %50 {strides = array<i32>} : memref<256x512xf32, #tpu.memory_space<vmem>>, vector<256x512xf32>,
    %c0_60 = arith.constant 0 : index
    %c0_61 = arith.constant 0 : index
    %52 = vector.load %arg7[%c0_60, %c0_61] : memref<256x512xf32, #tpu.memory_space<vmem>>, vector<256x128xf32>
    %53 = arith.negf %52 : vector<256x128xf32>
    %54 = math.exp %53 : vector<256x128xf32>
    %cst_62 = arith.constant 1.000000e+00 : f32
    %55 = vector.broadcast %cst_62 : f32 to vector<256x128xf32>
    %56 = arith.addf %55, %54 : vector<256x128xf32>
    %57 = arith.divf %55, %56 : vector<256x128xf32>
    %c0_63 = arith.constant 0 : index
    %c128 = arith.constant 128 : index
    %58 = vector.load %arg7[%c0_63, %c128] : memref<256x512xf32, #tpu.memory_space<vmem>>, vector<256x128xf32>
    %59 = arith.negf %58 : vector<256x128xf32>
    %60 = math.exp %59 : vector<256x128xf32>
    %cst_64 = arith.constant 1.000000e+00 : f32
    %61 = vector.broadcast %cst_64 : f32 to vector<256x128xf32>
    %62 = arith.addf %61, %60 : vector<256x128xf32>
    %63 = arith.divf %61, %62 : vector<256x128xf32>
    %c0_65 = arith.constant 0 : index
    %c256 = arith.constant 256 : index
    %64 = vector.load %arg7[%c0_65, %c256] : memref<256x512xf32, #tpu.memory_space<vmem>>, vector<256x128xf32>
    %65 = math.tanh %64 : vector<256x128xf32>
    %c0_66 = arith.constant 0 : index
    %c384 = arith.constant 384 : index
    %66 = vector.load %arg7[%c0_66, %c384] : memref<256x512xf32, #tpu.memory_space<vmem>>, vector<256x128xf32>
    %67 = arith.negf %66 : vector<256x128xf32>
    %68 = math.exp %67 : vector<256x128xf32>
    %cst_67 = arith.constant 1.000000e+00 : f32
    %69 = vector.broadcast %cst_67 : f32 to vector<256x128xf32>
    %70 = arith.addf %69, %68 : vector<256x128xf32>
    %71 = arith.divf %69, %70 : vector<256x128xf32>
    %c0_68 = arith.constant 0 : index
    %c0_69 = arith.constant 0 : index
    %c0_70 = arith.constant 0 : index
    %72 = vector.load %arg4[%c0_68, %c0_69, %c0_70] : memref<1x256x128xf32, #tpu.memory_space<vmem>>, vector<1x256x128xf32>
    %73 = vector.shape_cast %72 : vector<1x256x128xf32> to vector<256x128xf32>
    %74 = arith.mulf %63, %73 : vector<256x128xf32>
    %75 = arith.mulf %57, %65 : vector<256x128xf32>
    %76 = arith.addf %74, %75 : vector<256x128xf32>
    %77 = math.tanh %76 : vector<256x128xf32>
    %78 = arith.mulf %71, %77 : vector<256x128xf32>
    %c0_71 = arith.constant 0 : index
    %c0_72 = arith.constant 0 : index
    %c0_73 = arith.constant 0 : index
    %79 = vector.load %arg5[%c0_71, %c0_72, %c0_73] : memref<1x256x128xf32, #tpu.memory_space<vmem>>, vector<1x256x128xf32>
    %80 = vector.shape_cast %79 : vector<1x256x128xf32> to vector<256x128xf32>
    %81 = vector.shape_cast %78 : vector<256x128xf32> to vector<1x256x128xf32>
    tpu.vector_store %arg5[%c0_71, %c0_72, %c0_73], %81 {strides = array<i32>} : memref<1x256x128xf32, #tpu.memory_space<vmem>>, vector<1x256x128xf32>,
    %c0_74 = arith.constant 0 : index
    %c0_75 = arith.constant 0 : index
    %c0_76 = arith.constant 0 : index
    %82 = vector.load %arg6[%c0_74, %c0_75, %c0_76] : memref<1x256x128xf32, #tpu.memory_space<vmem>>, vector<1x256x128xf32>
    %83 = vector.shape_cast %82 : vector<1x256x128xf32> to vector<256x128xf32>
    %84 = vector.shape_cast %76 : vector<256x128xf32> to vector<1x256x128xf32>
    tpu.vector_store %arg6[%c0_74, %c0_75, %c0_76], %84 {strides = array<i32>} : memref<1x256x128xf32, #tpu.memory_space<vmem>>, vector<1x256x128xf32>,
    return
  }
  func.func @transform_0(%arg0: i32) -> (i32, i32, i32, i32) {
    %c0_i32 = arith.constant 0 : i32
    %c0_i32_0 = arith.constant 0 : i32
    %c0_i32_1 = arith.constant 0 : i32
    %c0_i32_2 = arith.constant 0 : i32
    return %arg0, %c0_i32, %c0_i32_0, %c0_i32_1 : i32, i32, i32, i32
  }
  func.func @transform_1(%arg0: i32) -> (i32, i32, i32) {
    %c0_i32 = arith.constant 0 : i32
    %c0_i32_0 = arith.constant 0 : i32
    %c0_i32_1 = arith.constant 0 : i32
    %c0_i32_2 = arith.constant 0 : i32
    return %c0_i32, %c0_i32_0, %c0_i32_1 : i32, i32, i32
  }
  func.func @transform_2(%arg0: i32) -> (i32, i32) {
    %c0_i32 = arith.constant 0 : i32
    %c0_i32_0 = arith.constant 0 : i32
    %c0_i32_1 = arith.constant 0 : i32
    return %c0_i32, %c0_i32_0 : i32, i32
  }
  func.func @transform_3(%arg0: i32) -> (i32, i32, i32) {
    %c0_i32 = arith.constant 0 : i32
    %c0_i32_0 = arith.constant 0 : i32
    %c0_i32_1 = arith.constant 0 : i32
    return %arg0, %c0_i32, %c0_i32_0 : i32, i32, i32
  }
  func.func @transform_4(%arg0: i32) -> (i32, i32, i32) {
    %c0_i32 = arith.constant 0 : i32
    %c0_i32_0 = arith.constant 0 : i32
    %c0_i32_1 = arith.constant 0 : i32
    return %arg0, %c0_i32, %c0_i32_0 : i32, i32, i32
  }
  func.func @transform_5(%arg0: i32) -> (i32, i32, i32) {
    %c0_i32 = arith.constant 0 : i32
    %c0_i32_0 = arith.constant 0 : i32
    %c0_i32_1 = arith.constant 0 : i32
    return %arg0, %c0_i32, %c0_i32_0 : i32, i32, i32
  }
}

</mosaic_0001>

<llo_original>
// kernel: tpu_custom_call.1
$region0: #{tpu_custom_call.1}
  #allocation0 [shape = 'u32[]', space=smem, size = 0x4, offset = 0x4, fixed_abs, tag = 'smem constant byte address 0x4 - core index']
  #allocation1 [shape = 'u32[144,128]{1,0:T(1,128)}', space=vmem, size = 0x12000, scoped, tag = 'internal scratch']
  #allocation2 [shape = 'f32[256,512]{1,0:T(8,128)}', space=vmem, size = 0x80000, scoped, tag = 'scratch operand']
  %s0 = inlined_call_operand.hbm [shape: bf16[2,18,18,128], index: 0, kind: input, shape index: {}]
  %s1 = inlined_call_operand.hbm [shape: bf16[3,384,512], index: 1, kind: input, shape index: {}]
  %s2 = inlined_call_operand.hbm [shape: f32[1,512], index: 2, kind: input, shape index: {}]
  %s3 = inlined_call_operand.hbm [shape: f32[2,256,128], index: 3, kind: input, shape index: {}]
  %s4 = inlined_call_operand.hbm [shape: f32[2,256,128], index: 4, kind: output, shape index: {0}]
  %s5 = inlined_call_operand.hbm [shape: f32[2,256,128], index: 5, kind: output, shape index: {1}]
  %6 = xla_tuple %s4, %s5
  %s7 = sld [smem:[#allocation0]]
  $region73: #{tpu_custom_call.1} parent=0
    _
  %s9 = ssub.s32 1, %s7
  %s10 = scalar_select 0, %s9, %s7
  $region1: #{tpu_custom_call.1} parent=0
    #allocation3 [shape = 'u8[221184]{0}', space=vmem, size = 0x36000, scoped, tag = 'input window, operand 0']
    #allocation4 [shape = 's32[2]{0}', space=sflag, size = 0x8, scoped, tag = 'scoped memory for tpu_custom_call.1']
    #allocation5 [shape = 's32[2]{0}', space=sflag, size = 0x8, scoped, tag = 'scoped memory for tpu_custom_call.1']
    #allocation6 [shape = 'u8[1179648]{0}', space=vmem, size = 0x120000, scoped, tag = 'input window, operand 1, single buffered']
    #allocation7 [shape = 's32[1]{0}', space=sflag, size = 0x4, scoped, tag = 'scoped memory for tpu_custom_call.1']
    #allocation8 [shape = 'u8[2048]{0}', space=vmem, size = 0x800, scoped, tag = 'input window, operand 2, single buffered']
    #allocation9 [shape = 'u8[262144]{0}', space=vmem, size = 0x40000, scoped, tag = 'input window, operand 3']
    #allocation10 [shape = 's32[2]{0}', space=sflag, size = 0x8, scoped, tag = 'scoped memory for tpu_custom_call.1']
    #allocation11 [shape = 'u8[262144]{0}', space=vmem, size = 0x40000, scoped, tag = 'output window, operand 0']
    #allocation12 [shape = 'u8[262144]{0}', space=vmem, size = 0x40000, scoped, tag = 'output window, operand 1']
    #allocation13 [shape = 's32[2]{0}', space=sflag, size = 0x8, scoped, tag = 'scoped memory for tpu_custom_call.1']
    %11 = vsyncpa [#allocation4], 0
    %s12 = scalar_lea.sflag [#allocation4], 1
    %13 = vsyncpa %s12, 0
    %14 = vsyncpa [#allocation7], 0
    %15 = vsyncpa [#allocation10], 0
    %s16 = scalar_lea.sflag [#allocation10], 1
    %17 = vsyncpa %s16, 0
    %18 = vsyncpa [#allocation5], 0
    %s19 = scalar_lea.sflag [#allocation5], 1
    %20 = vsyncpa %s19, 0
    %21 = vsyncpa [#allocation13], 0
    %s22 = scalar_lea.sflag [#allocation13], 1
    %23 = vsyncpa %s22, 0
    loop: start=0, step=1, limit=4
    $region2: #{tpu_custom_call.1} parent=1 // loop_pre_header
      _
    $region3: #{tpu_custom_call.1} parent=1 // loop_header
      %s25 = sphi 0, %s29
      %p26 = scmp.ge.s32.totalorder %s25, 4
      %s35 = sphi 0, %s37
      %s38 = sphi 0, %s35
      %s39 = sphi 0, %s38
      %s55 = sphi 0, %s39
      %s59 = sphi 0, %s59
      %s61 = sphi 0, %s59
      %s62 = sphi 0, %s61
      %s76 = sphi 0, %s62
      %s80 = sphi 0, %s80
      %s82 = sphi 0, %s80
      %s83 = sphi 0, %s82
      %s97 = sphi 0, %s83
      %s103 = sphi 0, %s105
      %s106 = sphi 0, %s103
      %s107 = sphi 0, %s106
      %s123 = sphi 0, %s107
      %s129 = sphi 0, %s131
      %s132 = sphi 0, %s129
      %s133 = sphi 0, %s132
      %s149 = sphi 0, %s133
      %s155 = sphi 0, %s157
      %s158 = sphi 0, %s155
      %s159 = sphi 0, %s158
      %s175 = sphi 0, %s159
    $region4: #{tpu_custom_call.1} parent=1 // loop_header_branch
      %28 = sbr.rel (%p26) target = $region8
    $region5: #{tpu_custom_call.1} parent=1 // loop_body
      %s30 = ssub.s32 %s25, 1
      %s31 = ssub.s32 %s25, 2
      %s32 = sadd.s32 %s25, 1
      %s33 = ssub.s32 %s25, %s32
      %p34 = scmp.eq.s32.totalorder %s33, 0
      %s36 = sadd.s32 %s35, 1
      %s37 = scalar_select %p34, %s35, %s36
      %p40 = pneg %p34
      %p41 = scmp.eq.s32.totalorder %s25, 1
      %p42 = por %p40, %p41
      %p43 = scmp.ne.s32.totalorder %s35, %s38
      %p44 = scmp.eq.s32.totalorder %s25, 0
      %p45 = por %p43, %p44
      %p46 = scmp.ne.s32.totalorder %s35, %s38
      %p47 = scmp.eq.s32.totalorder %s30, 1
      %p48 = por %p46, %p47
      %p49 = scmp.ne.s32.totalorder %s38, %s39
      %p50 = scmp.eq.s32.totalorder %s30, 0
      %p51 = por %p49, %p50
      %p52 = scmp.ne.s32.totalorder %s38, %s39
      %p53 = scmp.eq.s32.totalorder %s31, 1
      %p54 = por %p52, %p53
      %p56 = scmp.ne.s32.totalorder %s39, %s55
      %p57 = scmp.eq.s32.totalorder %s31, 0
      %p58 = por %p56, %p57
      %s60 = sadd.s32 %s59, 1
      %p63 = scmp.eq.s32.totalorder %s25, 1
      %p64 = scmp.ne.s32.totalorder %s59, %s61
      %p65 = scmp.eq.s32.totalorder %s25, 0
      %p66 = por %p64, %p65
      %p67 = scmp.ne.s32.totalorder %s59, %s61
      %p68 = scmp.eq.s32.totalorder %s30, 1
      %p69 = por %p67, %p68
      %p70 = scmp.ne.s32.totalorder %s61, %s62
      %p71 = scmp.eq.s32.totalorder %s30, 0
      %p72 = por %p70, %p71
      %p73 = scmp.ne.s32.totalorder %s61, %s62
      %p74 = scmp.eq.s32.totalorder %s31, 1
      %p75 = por %p73, %p74
      %p77 = scmp.ne.s32.totalorder %s62, %s76
      %p78 = scmp.eq.s32.totalorder %s31, 0
      %p79 = por %p77, %p78
      %s81 = sadd.s32 %s80, 1
      %p84 = scmp.eq.s32.totalorder %s25, 1
      %p85 = scmp.ne.s32.totalorder %s80, %s82
      %p86 = scmp.eq.s32.totalorder %s25, 0
      %p87 = por %p85, %p86
      %p88 = scmp.ne.s32.totalorder %s80, %s82
      %p89 = scmp.eq.s32.totalorder %s30, 1
      %p90 = por %p88, %p89
      %p91 = scmp.ne.s32.totalorder %s82, %s83
      %p92 = scmp.eq.s32.totalorder %s30, 0
      %p93 = por %p91, %p92
      %p94 = scmp.ne.s32.totalorder %s82, %s83
      %p95 = scmp.eq.s32.totalorder %s31, 1
      %p96 = por %p94, %p95
      %p98 = scmp.ne.s32.totalorder %s83, %s97
      %p99 = scmp.eq.s32.totalorder %s31, 0
      %p100 = por %p98, %p99
      %s101 = ssub.s32 %s25, %s32
      %p102 = scmp.eq.s32.totalorder %s101, 0
      %s104 = sadd.s32 %s103, 1
      %s105 = scalar_select %p102, %s103, %s104
      %p108 = pneg %p102
      %p109 = scmp.eq.s32.totalorder %s25, 1
      %p110 = por %p108, %p109
      %p111 = scmp.ne.s32.totalorder %s103, %s106
      %p112 = scmp.eq.s32.totalorder %s25, 0
      %p113 = por %p111, %p112
      %p114 = scmp.ne.s32.totalorder %s103, %s106
      %p115 = scmp.eq.s32.totalorder %s30, 1
      %p116 = por %p114, %p115
      %p117 = scmp.ne.s32.totalorder %s106, %s107
      %p118 = scmp.eq.s32.totalorder %s30, 0
      %p119 = por %p117, %p118
      %p120 = scmp.ne.s32.totalorder %s106, %s107
      %p121 = scmp.eq.s32.totalorder %s31, 1
      %p122 = por %p120, %p121
      %p124 = scmp.ne.s32.totalorder %s107, %s123
      %p125 = scmp.eq.s32.totalorder %s31, 0
      %p126 = por %p124, %p125
      %s127 = ssub.s32 %s25, %s32
      %p128 = scmp.eq.s32.totalorder %s127, 0
      %s130 = sadd.s32 %s129, 1
      %s131 = scalar_select %p128, %s129, %s130
      %p134 = pneg %p128
      %p135 = scmp.eq.s32.totalorder %s25, 1
      %p136 = por %p134, %p135
      %p137 = scmp.ne.s32.totalorder %s129, %s132
      %p138 = scmp.eq.s32.totalorder %s25, 0
      %p139 = por %p137, %p138
      %p140 = scmp.ne.s32.totalorder %s129, %s132
      %p141 = scmp.eq.s32.totalorder %s30, 1
      %p142 = por %p140, %p141
      %p143 = scmp.ne.s32.totalorder %s132, %s133
      %p144 = scmp.eq.s32.totalorder %s30, 0
      %p145 = por %p143, %p144
      %p146 = scmp.ne.s32.totalorder %s132, %s133
      %p147 = scmp.eq.s32.totalorder %s31, 1
      %p148 = por %p146, %p147
      %p150 = scmp.ne.s32.totalorder %s133, %s149
      %p151 = scmp.eq.s32.totalorder %s31, 0
      %p152 = por %p150, %p151
      %s153 = ssub.s32 %s25, %s32
      %p154 = scmp.eq.s32.totalorder %s153, 0
      %s156 = sadd.s32 %s155, 1
      %s157 = scalar_select %p154, %s155, %s156
      %p160 = pneg %p154
      %p161 = scmp.eq.s32.totalorder %s25, 1
      %p162 = por %p160, %p161
      %p163 = scmp.ne.s32.totalorder %s155, %s158
      %p164 = scmp.eq.s32.totalorder %s25, 0
      %p165 = por %p163, %p164
      %p166 = scmp.ne.s32.totalorder %s155, %s158
      %p167 = scmp.eq.s32.totalorder %s30, 1
      %p168 = por %p166, %p167
      %p169 = scmp.ne.s32.totalorder %s158, %s159
      %p170 = scmp.eq.s32.totalorder %s30, 0
      %p171 = por %p169, %p170
      %p172 = scmp.ne.s32.totalorder %s158, %s159
      %p173 = scmp.eq.s32.totalorder %s31, 1
      %p174 = por %p172, %p173
      %p176 = scmp.ne.s32.totalorder %s159, %s175
      %p177 = scmp.eq.s32.totalorder %s31, 0
      %p178 = por %p176, %p177
      %p179 = scmp.le.s32.totalorder 1, %s25
      %p180 = scmp.lt.s32.totalorder %s25, 3
      %p181 = pnand %p179, %p180
      %p182 = pneg %p181
      // Predicated region
      $region9: #{tpu_custom_call.1} parent=5 // pred_check
        _
      $region10: #{tpu_custom_call.1} parent=5 // pred_check_branch
        %184 = sbr.rel (%p181) target = $region12
      $region11: #{tpu_custom_call.1} parent=5 // pred_region
        %s185 = ssub.s32 %s25, 1
        // Predicated region
        $region13: #{tpu_custom_call.1} parent=11 // pred_check
          %p186 = pneg %p72
        $region14: #{tpu_custom_call.1} parent=11 // pred_check_branch
          %188 = sbr.rel (%p186) target = $region16
        $region15: #{tpu_custom_call.1} parent=11 // pred_region
          %s190 = ssub.s32 36864, 36864
          %191 = vsyncadd [#allocation7], %s190
          %s192 = sshll.u32 [#allocation6], 4
          %s193 = int_to_ptr.vmem [resolvable:$true] %s192
          %198 = dma.hbm_to_vmem [thread:$0]  %s1, 36864, %s193, [#allocation7], 256, 256, 16
        $region16: #{tpu_custom_call.1} parent=11 // pred_fallthru
          _
        // Predicated region
        $region17: #{tpu_custom_call.1} parent=11 // pred_check
          %p199 = pneg %p93
        $region18: #{tpu_custom_call.1} parent=11 // pred_check_branch
          %201 = sbr.rel (%p199) target = $region20
        $region19: #{tpu_custom_call.1} parent=11 // pred_region
          %s203 = ssub.s32 64, 64
          %204 = vsyncadd [#allocation7], %s203
          %s206 = sshll.u32 [#allocation8], 4
          %s207 = int_to_ptr.vmem [resolvable:$true] %s206
          %209 = dma.hbm_to_vmem [thread:$0]  %s2, 64, %s207, [#allocation7]
        $region20: #{tpu_custom_call.1} parent=11 // pred_fallthru
          _
      $region12: #{tpu_custom_call.1} parent=5 // pred_fallthru
        _
      %p210 = scmp.lt.s32.totalorder %s25, 2
      // Predicated region
      $region21: #{tpu_custom_call.1} parent=5 // pred_check
        %p211 = pneg %p210
      $region22: #{tpu_custom_call.1} parent=5 // pred_check_branch
        %213 = sbr.rel (%p211) target = $region24
      $region23: #{tpu_custom_call.1} parent=5 // pred_region
        // Predicated region
        $region25: #{tpu_custom_call.1} parent=23 // pred_check
          %p214 = pneg %p45
        $region26: #{tpu_custom_call.1} parent=23 // pred_check_branch
          %216 = sbr.rel (%p214) target = $region28
        $region27: #{tpu_custom_call.1} parent=23 // pred_region
          %s217 = sand.u32 %s35, 1
          %s218 = scalar_lea.sflag [#allocation4], %s217
          %s219 = sand.u32 %s35, 1
          %s220 = smul.addr %s219, 216
          %s221 = scalar_lea.vmem [#allocation3], %s220
          %s223 = ssub.s32 3456, 3456
          %224 = vsyncadd %s218, %s223
          %s225 = smul.addr %s25, 54
          %s226 = smul.addr %s225, 64
          %s227 = scalar_lea.hbm %s0, %s226
          %s228 = sshll.u32 %s221, 4
          %s229 = int_to_ptr.vmem [resolvable:$true] %s228
          %234 = dma.hbm_to_vmem [thread:$0]  %s227, 3456, %s229, %s218, 64, 64, 4
        $region28: #{tpu_custom_call.1} parent=23 // pred_fallthru
          _
        // Predicated region
        $region29: #{tpu_custom_call.1} parent=23 // pred_check
          %p235 = pneg %p113
        $region30: #{tpu_custom_call.1} parent=23 // pred_check_branch
          %237 = sbr.rel (%p235) target = $region32
        $region31: #{tpu_custom_call.1} parent=23 // pred_region
          %s238 = sand.u32 %s103, 1
          %s239 = scalar_lea.sflag [#allocation10], %s238
          %s240 = sand.u32 %s103, 1
          %s241 = smul.addr %s240, 256
          %s242 = scalar_lea.vmem [#allocation9], %s241
          %s244 = ssub.s32 4096, 4096
          %245 = vsyncadd %s239, %s244
          %s246 = smul.addr %s25, 32
          %s247 = smul.addr %s246, 128
          %s248 = scalar_lea.hbm %s3, %s247
          %s249 = sshll.u32 %s242, 4
          %s250 = int_to_ptr.vmem [resolvable:$true] %s249
          %255 = dma.hbm_to_vmem [thread:$0]  %s248, 4096, %s250, %s239, 128, 128, 8
        $region32: #{tpu_custom_call.1} parent=23 // pred_fallthru
          _
      $region24: #{tpu_custom_call.1} parent=5 // pred_fallthru
        _
      %p256 = scmp.le.s32.totalorder 1, %s25
      %p257 = scmp.lt.s32.totalorder %s25, 3
      %p258 = pnand %p256, %p257
      %p259 = pneg %p258
      // Predicated region
      $region33: #{tpu_custom_call.1} parent=5 // pred_check
        _
      $region34: #{tpu_custom_call.1} parent=5 // pred_check_branch
        %261 = sbr.rel (%p258) target = $region36
      $region35: #{tpu_custom_call.1} parent=5 // pred_region
        %s262 = ssub.s32 %s25, 1
        %s263 = sand.u32 %s38, 1
        %s264 = scalar_lea.sflag [#allocation4], %s263
        %s265 = sand.u32 %s38, 1
        %s266 = smul.addr %s265, 216
        %s267 = scalar_lea.vmem [#allocation3], %s266
        // Predicated region
        $region37: #{tpu_custom_call.1} parent=35 // pred_check
          %p268 = pneg %p51
        $region38: #{tpu_custom_call.1} parent=35 // pred_check_branch
          %270 = sbr.rel (%p268) target = $region40
        $region39: #{tpu_custom_call.1} parent=35 // pred_region
          %271 = dma.done %s264, 3456
        $region40: #{tpu_custom_call.1} parent=35 // pred_fallthru
          _
        // Predicated region
        $region41: #{tpu_custom_call.1} parent=35 // pred_check
          %p272 = pneg %p72
        $region42: #{tpu_custom_call.1} parent=35 // pred_check_branch
          %274 = sbr.rel (%p272) target = $region44
        $region43: #{tpu_custom_call.1} parent=35 // pred_region
          %275 = dma.done [#allocation7], 36864
        $region44: #{tpu_custom_call.1} parent=35 // pred_fallthru
          _
        // Predicated region
        $region45: #{tpu_custom_call.1} parent=35 // pred_check
          %p276 = pneg %p93
        $region46: #{tpu_custom_call.1} parent=35 // pred_check_branch
          %278 = sbr.rel (%p276) target = $region48
        $region47: #{tpu_custom_call.1} parent=35 // pred_region
          %279 = dma.done [#allocation7], 64
        $region48: #{tpu_custom_call.1} parent=35 // pred_fallthru
          _
        %s280 = sand.u32 %s106, 1
        %s281 = scalar_lea.sflag [#allocation10], %s280
        %s282 = sand.u32 %s106, 1
        %s283 = smul.addr %s282, 256
        %s284 = scalar_lea.vmem [#allocation9], %s283
        // Predicated region
        $region49: #{tpu_custom_call.1} parent=35 // pred_check
          %p285 = pneg %p119
        $region50: #{tpu_custom_call.1} parent=35 // pred_check_branch
          %287 = sbr.rel (%p285) target = $region52
        $region51: #{tpu_custom_call.1} parent=35 // pred_region
          %288 = dma.done %s281, 4096
        $region52: #{tpu_custom_call.1} parent=35 // pred_fallthru
          _
        %s289 = sand.u32 %s38, 1
        %s290 = scalar_lea.sflag [#allocation4], %s289
        %s291 = sand.u32 %s38, 1
        %s292 = smul.addr %s291, 216
        %s293 = scalar_lea.vmem [#allocation3], %s292
        %p294 = pneg %p51
        %p295 = pneg %p48
        %p296 = pneg %p72
        %p297 = pneg %p69
        %p298 = pneg %p93
        %p299 = pneg %p90
        %s300 = sand.u32 %s106, 1
        %s301 = scalar_lea.sflag [#allocation10], %s300
        %s302 = sand.u32 %s106, 1
        %s303 = smul.addr %s302, 256
        %s304 = scalar_lea.vmem [#allocation9], %s303
        %p305 = pneg %p119
        %p306 = pneg %p116
        %p307 = pneg %p145
        %p308 = pneg %p142
        %s309 = sand.u32 %s132, 1
        %s310 = scalar_lea.sflag [#allocation5], %s309
        %s311 = sand.u32 %s132, 1
        %s312 = smul.addr %s311, 256
        %s313 = scalar_lea.vmem [#allocation11], %s312
        %p314 = pneg %p171
        %p315 = pneg %p168
        %s316 = sand.u32 %s158, 1
        %s317 = scalar_lea.sflag [#allocation13], %s316
        %s318 = sand.u32 %s158, 1
        %s319 = smul.addr %s318, 256
        %s320 = scalar_lea.vmem [#allocation12], %s319
        %v322 = vld [vmem:[#allocation8] sm:$0xf]
        %v324 = vlaneseq
        %v325 = vshrl.u32 %v324, 7
        %v326 = vsub.s32 0, %v325
        %v327 = vrot.slane %v322, %v326
        %v328 = vlaneseq
        %v329 = vshrl.u32 %v328, 7
        %v330 = vsub.s32 1, %v329
        %v331 = vrot.slane %v322, %v330
        %v332 = vlaneseq
        %v333 = vshrl.u32 %v332, 7
        %v334 = vsub.s32 2, %v333
        %v335 = vrot.slane %v322, %v334
        %v336 = vlaneseq
        %v337 = vshrl.u32 %v336, 7
        %v338 = vsub.s32 3, %v337
        %v339 = vrot.slane %v322, %v338
        %344 = vst [vmem:[#allocation2] sm:$0xff] %v327
        %345 = vst [vmem:[#allocation2 + $0x8] sm:$0xff] %v331
        %346 = vst [vmem:[#allocation2 + $0x10] sm:$0xff] %v335
        %347 = vst [vmem:[#allocation2 + $0x18] sm:$0xff] %v339
        %348 = vst [vmem:[#allocation2 + $0x20] sm:$0xff] %v327
        %349 = vst [vmem:[#allocation2 + $0x28] sm:$0xff] %v331
        %350 = vst [vmem:[#allocation2 + $0x30] sm:$0xff] %v335
        %351 = vst [vmem:[#allocation2 + $0x38] sm:$0xff] %v339
        %352 = vst [vmem:[#allocation2 + $0x40] sm:$0xff] %v327
        %353 = vst [vmem:[#allocation2 + $0x48] sm:$0xff] %v331
        %354 = vst [vmem:[#allocation2 + $0x50] sm:$0xff] %v335
        %355 = vst [vmem:[#allocation2 + $0x58] sm:$0xff] %v339
        %356 = vst [vmem:[#allocation2 + $0x60] sm:$0xff] %v327
        %357 = vst [vmem:[#allocation2 + $0x68] sm:$0xff] %v331
        %358 = vst [vmem:[#allocation2 + $0x70] sm:$0xff] %v335
        %359 = vst [vmem:[#allocation2 + $0x78] sm:$0xff] %v339
        %360 = vst [vmem:[#allocation2 + $0x80] sm:$0xff] %v327
        %361 = vst [vmem:[#allocation2 + $0x88] sm:$0xff] %v331
        %362 = vst [vmem:[#allocation2 + $0x90] sm:$0xff] %v335
        %363 = vst [vmem:[#allocation2 + $0x98] sm:$0xff] %v339
        %364 = vst [vmem:[#allocation2 + $0xa0] sm:$0xff] %v327
        %365 = vst [vmem:[#allocation2 + $0xa8] sm:$0xff] %v331
        %366 = vst [vmem:[#allocation2 + $0xb0] sm:$0xff] %v335
        %367 = vst [vmem:[#allocation2 + $0xb8] sm:$0xff] %v339
        %368 = vst [vmem:[#allocation2 + $0xc0] sm:$0xff] %v327
        %369 = vst [vmem:[#allocation2 + $0xc8] sm:$0xff] %v331
        %370 = vst [vmem:[#allocation2 + $0xd0] sm:$0xff] %v335
        %371 = vst [vmem:[#allocation2 + $0xd8] sm:$0xff] %v339
        %372 = vst [vmem:[#allocation2 + $0xe0] sm:$0xff] %v327
        %373 = vst [vmem:[#allocation2 + $0xe8] sm:$0xff] %v331
        %374 = vst [vmem:[#allocation2 + $0xf0] sm:$0xff] %v335
        %375 = vst [vmem:[#allocation2 + $0xf8] sm:$0xff] %v339
        %376 = vst [vmem:[#allocation2 + $0x100] sm:$0xff] %v327
        %377 = vst [vmem:[#allocation2 + $0x108] sm:$0xff] %v331
        %378 = vst [vmem:[#allocation2 + $0x110] sm:$0xff] %v335
        %379 = vst [vmem:[#allocation2 + $0x118] sm:$0xff] %v339
        %380 = vst [vmem:[#allocation2 + $0x120] sm:$0xff] %v327
        %381 = vst [vmem:[#allocation2 + $0x128] sm:$0xff] %v331
        %382 = vst [vmem:[#allocation2 + $0x130] sm:$0xff] %v335
        %383 = vst [vmem:[#allocation2 + $0x138] sm:$0xff] %v339
        %384 = vst [vmem:[#allocation2 + $0x140] sm:$0xff] %v327
        %385 = vst [vmem:[#allocation2 + $0x148] sm:$0xff] %v331
        %386 = vst [vmem:[#allocation2 + $0x150] sm:$0xff] %v335
        %387 = vst [vmem:[#allocation2 + $0x158] sm:$0xff] %v339
        %388 = vst [vmem:[#allocation2 + $0x160] sm:$0xff] %v327
        %389 = vst [vmem:[#allocation2 + $0x168] sm:$0xff] %v331
        %390 = vst [vmem:[#allocation2 + $0x170] sm:$0xff] %v335
        %391 = vst [vmem:[#allocation2 + $0x178] sm:$0xff] %v339
        %392 = vst [vmem:[#allocation2 + $0x180] sm:$0xff] %v327
        %393 = vst [vmem:[#allocation2 + $0x188] sm:$0xff] %v331
        %394 = vst [vmem:[#allocation2 + $0x190] sm:$0xff] %v335
        %395 = vst [vmem:[#allocation2 + $0x198] sm:$0xff] %v339
        %396 = vst [vmem:[#allocation2 + $0x1a0] sm:$0xff] %v327
        %397 = vst [vmem:[#allocation2 + $0x1a8] sm:$0xff] %v331
        %398 = vst [vmem:[#allocation2 + $0x1b0] sm:$0xff] %v335
        %399 = vst [vmem:[#allocation2 + $0x1b8] sm:$0xff] %v339
        %400 = vst [vmem:[#allocation2 + $0x1c0] sm:$0xff] %v327
        %401 = vst [vmem:[#allocation2 + $0x1c8] sm:$0xff] %v331
        %402 = vst [vmem:[#allocation2 + $0x1d0] sm:$0xff] %v335
        %403 = vst [vmem:[#allocation2 + $0x1d8] sm:$0xff] %v339
        %404 = vst [vmem:[#allocation2 + $0x1e0] sm:$0xff] %v327
        %405 = vst [vmem:[#allocation2 + $0x1e8] sm:$0xff] %v331
        %406 = vst [vmem:[#allocation2 + $0x1f0] sm:$0xff] %v335
        %407 = vst [vmem:[#allocation2 + $0x1f8] sm:$0xff] %v339
        %408 = vst [vmem:[#allocation2 + $0x200] sm:$0xff] %v327
        %409 = vst [vmem:[#allocation2 + $0x208] sm:$0xff] %v331
        %410 = vst [vmem:[#allocation2 + $0x210] sm:$0xff] %v335
        %411 = vst [vmem:[#allocation2 + $0x218] sm:$0xff] %v339
        %412 = vst [vmem:[#allocation2 + $0x220] sm:$0xff] %v327
        %413 = vst [vmem:[#allocation2 + $0x228] sm:$0xff] %v331
        %414 = vst [vmem:[#allocation2 + $0x230] sm:$0xff] %v335
        %415 = vst [vmem:[#allocation2 + $0x238] sm:$0xff] %v339
        %416 = vst [vmem:[#allocation2 + $0x240] sm:$0xff] %v327
        %417 = vst [vmem:[#allocation2 + $0x248] sm:$0xff] %v331
        %418 = vst [vmem:[#allocation2 + $0x250] sm:$0xff] %v335
        %419 = vst [vmem:[#allocation2 + $0x258] sm:$0xff] %v339
        %420 = vst [vmem:[#allocation2 + $0x260] sm:$0xff] %v327
        %421 = vst [vmem:[#allocation2 + $0x268] sm:$0xff] %v331
        %422 = vst [vmem:[#allocation2 + $0x270] sm:$0xff] %v335
        %423 = vst [vmem:[#allocation2 + $0x278] sm:$0xff] %v339
        %424 = vst [vmem:[#allocation2 + $0x280] sm:$0xff] %v327
        %425 = vst [vmem:[#allocation2 + $0x288] sm:$0xff] %v331
        %426 = vst [vmem:[#allocation2 + $0x290] sm:$0xff] %v335
        %427 = vst [vmem:[#allocation2 + $0x298] sm:$0xff] %v339
        %428 = vst [vmem:[#allocation2 + $0x2a0] sm:$0xff] %v327
        %429 = vst [vmem:[#allocation2 + $0x2a8] sm:$0xff] %v331
        %430 = vst [vmem:[#allocation2 + $0x2b0] sm:$0xff] %v335
        %431 = vst [vmem:[#allocation2 + $0x2b8] sm:$0xff] %v339
        %432 = vst [vmem:[#allocation2 + $0x2c0] sm:$0xff] %v327
        %433 = vst [vmem:[#allocation2 + $0x2c8] sm:$0xff] %v331
        %434 = vst [vmem:[#allocation2 + $0x2d0] sm:$0xff] %v335
        %435 = vst [vmem:[#allocation2 + $0x2d8] sm:$0xff] %v339
        %436 = vst [vmem:[#allocation2 + $0x2e0] sm:$0xff] %v327
        %437 = vst [vmem:[#allocation2 + $0x2e8] sm:$0xff] %v331
        %438 = vst [vmem:[#allocation2 + $0x2f0] sm:$0xff] %v335
        %439 = vst [vmem:[#allocation2 + $0x2f8] sm:$0xff] %v339
        %440 = vst [vmem:[#allocation2 + $0x300] sm:$0xff] %v327
        %441 = vst [vmem:[#allocation2 + $0x308] sm:$0xff] %v331
        %442 = vst [vmem:[#allocation2 + $0x310] sm:$0xff] %v335
        %443 = vst [vmem:[#allocation2 + $0x318] sm:$0xff] %v339
        %444 = vst [vmem:[#allocation2 + $0x320] sm:$0xff] %v327
        %445 = vst [vmem:[#allocation2 + $0x328] sm:$0xff] %v331
        %446 = vst [vmem:[#allocation2 + $0x330] sm:$0xff] %v335
        %447 = vst [vmem:[#allocation2 + $0x338] sm:$0xff] %v339
        %448 = vst [vmem:[#allocation2 + $0x340] sm:$0xff] %v327
        %449 = vst [vmem:[#allocation2 + $0x348] sm:$0xff] %v331
        %450 = vst [vmem:[#allocation2 + $0x350] sm:$0xff] %v335
        %451 = vst [vmem:[#allocation2 + $0x358] sm:$0xff] %v339
        %452 = vst [vmem:[#allocation2 + $0x360] sm:$0xff] %v327
        %453 = vst [vmem:[#allocation2 + $0x368] sm:$0xff] %v331
        %454 = vst [vmem:[#allocation2 + $0x370] sm:$0xff] %v335
        %455 = vst [vmem:[#allocation2 + $0x378] sm:$0xff] %v339
        %456 = vst [vmem:[#allocation2 + $0x380] sm:$0xff] %v327
        %457 = vst [vmem:[#allocation2 + $0x388] sm:$0xff] %v331
        %458 = vst [vmem:[#allocation2 + $0x390] sm:$0xff] %v335
        %459 = vst [vmem:[#allocation2 + $0x398] sm:$0xff] %v339
        %460 = vst [vmem:[#allocation2 + $0x3a0] sm:$0xff] %v327
        %461 = vst [vmem:[#allocation2 + $0x3a8] sm:$0xff] %v331
        %462 = vst [vmem:[#allocation2 + $0x3b0] sm:$0xff] %v335
        %463 = vst [vmem:[#allocation2 + $0x3b8] sm:$0xff] %v339
        %464 = vst [vmem:[#allocation2 + $0x3c0] sm:$0xff] %v327
        %465 = vst [vmem:[#allocation2 + $0x3c8] sm:$0xff] %v331
        %466 = vst [vmem:[#allocation2 + $0x3d0] sm:$0xff] %v335
        %467 = vst [vmem:[#allocation2 + $0x3d8] sm:$0xff] %v339
        %468 = vst [vmem:[#allocation2 + $0x3e0] sm:$0xff] %v327
        %469 = vst [vmem:[#allocation2 + $0x3e8] sm:$0xff] %v331
        %470 = vst [vmem:[#allocation2 + $0x3f0] sm:$0xff] %v335
        %471 = vst [vmem:[#allocation2 + $0x3f8] sm:$0xff] %v339
        %v472 = vld [vmem:[%s267] sm:$0xf]
        %v473 = vld [vmem:[%s267 + $0x4] sm:$0xf]
        %v474 = vld [vmem:[%s267 + $0xc] sm:$0xf]
        %v475 = vld [vmem:[%s267 + $0x10] sm:$0xf]
        %v476 = vld [vmem:[%s267 + $0x18] sm:$0xf]
        %v477 = vld [vmem:[%s267 + $0x1c] sm:$0xf]
        %v478 = vld [vmem:[%s267 + $0x24] sm:$0xf]
        %v479 = vld [vmem:[%s267 + $0x28] sm:$0xf]
        %v480 = vld [vmem:[%s267 + $0x30] sm:$0xf]
        %v481 = vld [vmem:[%s267 + $0x34] sm:$0xf]
        %v482 = vld [vmem:[%s267 + $0x3c] sm:$0xf]
        %v483 = vld [vmem:[%s267 + $0x40] sm:$0xf]
        %v484 = vld [vmem:[%s267 + $0x48] sm:$0xf]
        %v485 = vld [vmem:[%s267 + $0x4c] sm:$0xf]
        %v486 = vld [vmem:[%s267 + $0x54] sm:$0xf]
        %v487 = vld [vmem:[%s267 + $0x58] sm:$0xf]
        %v488 = vld [vmem:[%s267 + $0x60] sm:$0xf]
        %v489 = vld [vmem:[%s267 + $0x64] sm:$0xf]
        %v490 = vld [vmem:[%s267 + $0x6c] sm:$0xf]
        %v491 = vld [vmem:[%s267 + $0x70] sm:$0xf]
        %v492 = vld [vmem:[%s267 + $0x78] sm:$0xf]
        %v493 = vld [vmem:[%s267 + $0x7c] sm:$0xf]
        %v494 = vld [vmem:[%s267 + $0x84] sm:$0xf]
        %v495 = vld [vmem:[%s267 + $0x88] sm:$0xf]
        %v496 = vld [vmem:[%s267 + $0x90] sm:$0xf]
        %v497 = vld [vmem:[%s267 + $0x94] sm:$0xf]
        %v498 = vld [vmem:[%s267 + $0x9c] sm:$0xf]
        %v499 = vld [vmem:[%s267 + $0xa0] sm:$0xf]
        %v500 = vld [vmem:[%s267 + $0xa8] sm:$0xf]
        %v501 = vld [vmem:[%s267 + $0xac] sm:$0xf]
        %v502 = vld [vmem:[%s267 + $0xb4] sm:$0xf]
        %v503 = vld [vmem:[%s267 + $0xb8] sm:$0xf]
        %v504 = vld [vmem:[%s267 + $0x8] sm:$0x1]
        %v505 = vld [vmem:[%s267 + $0x14] sm:$0x1]
        %v506 = vld [vmem:[%s267 + $0x20] sm:$0x1]
        %v507 = vld [vmem:[%s267 + $0x2c] sm:$0x1]
        %v508 = vld [vmem:[%s267 + $0x38] sm:$0x1]
        %v509 = vld [vmem:[%s267 + $0x44] sm:$0x1]
        %v510 = vld [vmem:[%s267 + $0x50] sm:$0x1]
        %v511 = vld [vmem:[%s267 + $0x5c] sm:$0x1]
        %v512 = vld [vmem:[%s267 + $0x68] sm:$0x1]
        %v513 = vld [vmem:[%s267 + $0x74] sm:$0x1]
        %v514 = vld [vmem:[%s267 + $0x80] sm:$0x1]
        %v515 = vld [vmem:[%s267 + $0x8c] sm:$0x1]
        %v516 = vld [vmem:[%s267 + $0x98] sm:$0x1]
        %v517 = vld [vmem:[%s267 + $0xa4] sm:$0x1]
        %v518 = vld [vmem:[%s267 + $0xb0] sm:$0x1]
        %v519 = vld [vmem:[%s267 + $0xbc] sm:$0x1]
        %vm520 = vsmask.f32 3328
        %vm521 = vsmask.f32 7440
        %vm522 = vmor %vm520, %vm521
        %v524 = vshrl.u32 %v472, 16
        %v526 = vrot.slane %v524, 4
        %v527 = vshll.u32 %v472, 16
        %v529 = vrot.slane %v527, 5
        %v530 = vor.u32 %v526, %v529
        %v531 = vrot.slane %v530, 4
        %v533 = vshll.u32 %v473, 16
        %v535 = vrot.slane %v533, 5
        %v536 = vsel %vm522, %v531, %v535
        %v537 = vshrl.u32 %v473, 16
        %v539 = vrot.slane %v537, 4
        %v540 = vor.u32 %v539, %v535
        %v541 = vrot.slane %v540, 4
        %v543 = vshll.u32 %v504, 16
        %v545 = vrot.slane %v543, 5
        %v546 = vsel %vm522, %v541, %v545
        %v548 = vshrl.u32 %v474, 16
        %v550 = vrot.slane %v548, 4
        %v551 = vshll.u32 %v474, 16
        %v553 = vrot.slane %v551, 5
        %v554 = vor.u32 %v550, %v553
        %v555 = vrot.slane %v554, 4
        %v557 = vshll.u32 %v475, 16
        %v559 = vrot.slane %v557, 5
        %v560 = vsel %vm522, %v555, %v559
        %v561 = vshrl.u32 %v475, 16
        %v563 = vrot.slane %v561, 4
        %v564 = vor.u32 %v563, %v559
        %v565 = vrot.slane %v564, 4
        %v567 = vshll.u32 %v505, 16
        %v569 = vrot.slane %v567, 5
        %v570 = vsel %vm522, %v565, %v569
        %v572 = vshrl.u32 %v476, 16
        %v574 = vrot.slane %v572, 4
        %v575 = vshll.u32 %v476, 16
        %v577 = vrot.slane %v575, 5
        %v578 = vor.u32 %v574, %v577
        %v579 = vrot.slane %v578, 4
        %v581 = vshll.u32 %v477, 16
        %v583 = vrot.slane %v581, 5
        %v584 = vsel %vm522, %v579, %v583
        %v585 = vshrl.u32 %v477, 16
        %v587 = vrot.slane %v585, 4
        %v588 = vor.u32 %v587, %v583
        %v589 = vrot.slane %v588, 4
        %v591 = vshll.u32 %v506, 16
        %v593 = vrot.slane %v591, 5
        %v594 = vsel %vm522, %v589, %v593
        %v596 = vshrl.u32 %v478, 16
        %v598 = vrot.slane %v596, 4
        %v599 = vshll.u32 %v478, 16
        %v601 = vrot.slane %v599, 5
        %v602 = vor.u32 %v598, %v601
        %v603 = vrot.slane %v602, 4
        %v605 = vshll.u32 %v479, 16
        %v607 = vrot.slane %v605, 5
        %v608 = vsel %vm522, %v603, %v607
        %v609 = vshrl.u32 %v479, 16
        %v611 = vrot.slane %v609, 4
        %v612 = vor.u32 %v611, %v607
        %v613 = vrot.slane %v612, 4
        %v615 = vshll.u32 %v507, 16
        %v617 = vrot.slane %v615, 5
        %v618 = vsel %vm522, %v613, %v617
        %v620 = vshrl.u32 %v480, 16
        %v622 = vrot.slane %v620, 4
        %v623 = vshll.u32 %v480, 16
        %v625 = vrot.slane %v623, 5
        %v626 = vor.u32 %v622, %v625
        %v627 = vrot.slane %v626, 4
        %v629 = vshll.u32 %v481, 16
        %v631 = vrot.slane %v629, 5
        %v632 = vsel %vm522, %v627, %v631
        %v633 = vshrl.u32 %v481, 16
        %v635 = vrot.slane %v633, 4
        %v636 = vor.u32 %v635, %v631
        %v637 = vrot.slane %v636, 4
        %v639 = vshll.u32 %v508, 16
        %v641 = vrot.slane %v639, 5
        %v642 = vsel %vm522, %v637, %v641
        %v644 = vshrl.u32 %v482, 16
        %v646 = vrot.slane %v644, 4
        %v647 = vshll.u32 %v482, 16
        %v649 = vrot.slane %v647, 5
        %v650 = vor.u32 %v646, %v649
        %v651 = vrot.slane %v650, 4
        %v653 = vshll.u32 %v483, 16
        %v655 = vrot.slane %v653, 5
        %v656 = vsel %vm522, %v651, %v655
        %v657 = vshrl.u32 %v483, 16
        %v659 = vrot.slane %v657, 4
        %v660 = vor.u32 %v659, %v655
        %v661 = vrot.slane %v660, 4
        %v663 = vshll.u32 %v509, 16
        %v665 = vrot.slane %v663, 5
        %v666 = vsel %vm522, %v661, %v665
        %v668 = vshrl.u32 %v484, 16
        %v670 = vrot.slane %v668, 4
        %v671 = vshll.u32 %v484, 16
        %v673 = vrot.slane %v671, 5
        %v674 = vor.u32 %v670, %v673
        %v675 = vrot.slane %v674, 4
        %v677 = vshll.u32 %v485, 16
        %v679 = vrot.slane %v677, 5
        %v680 = vsel %vm522, %v675, %v679
        %v681 = vshrl.u32 %v485, 16
        %v683 = vrot.slane %v681, 4
        %v684 = vor.u32 %v683, %v679
        %v685 = vrot.slane %v684, 4
        %v687 = vshll.u32 %v510, 16
        %v689 = vrot.slane %v687, 5
        %v690 = vsel %vm522, %v685, %v689
        %v692 = vshrl.u32 %v486, 16
        %v694 = vrot.slane %v692, 4
        %v695 = vshll.u32 %v486, 16
        %v697 = vrot.slane %v695, 5
        %v698 = vor.u32 %v694, %v697
        %v699 = vrot.slane %v698, 4
        %v701 = vshll.u32 %v487, 16
        %v703 = vrot.slane %v701, 5
        %v704 = vsel %vm522, %v699, %v703
        %v705 = vshrl.u32 %v487, 16
        %v707 = vrot.slane %v705, 4
        %v708 = vor.u32 %v707, %v703
        %v709 = vrot.slane %v708, 4
        %v711 = vshll.u32 %v511, 16
        %v713 = vrot.slane %v711, 5
        %v714 = vsel %vm522, %v709, %v713
        %v716 = vshrl.u32 %v488, 16
        %v718 = vrot.slane %v716, 4
        %v719 = vshll.u32 %v488, 16
        %v721 = vrot.slane %v719, 5
        %v722 = vor.u32 %v718, %v721
        %v723 = vrot.slane %v722, 4
        %v725 = vshll.u32 %v489, 16
        %v727 = vrot.slane %v725, 5
        %v728 = vsel %vm522, %v723, %v727
        %v729 = vshrl.u32 %v489, 16
        %v731 = vrot.slane %v729, 4
        %v732 = vor.u32 %v731, %v727
        %v733 = vrot.slane %v732, 4
        %v735 = vshll.u32 %v512, 16
        %v737 = vrot.slane %v735, 5
        %v738 = vsel %vm522, %v733, %v737
        %v740 = vshrl.u32 %v490, 16
        %v742 = vrot.slane %v740, 4
        %v743 = vshll.u32 %v490, 16
        %v745 = vrot.slane %v743, 5
        %v746 = vor.u32 %v742, %v745
        %v747 = vrot.slane %v746, 4
        %v749 = vshll.u32 %v491, 16
        %v751 = vrot.slane %v749, 5
        %v752 = vsel %vm522, %v747, %v751
        %v753 = vshrl.u32 %v491, 16
        %v755 = vrot.slane %v753, 4
        %v756 = vor.u32 %v755, %v751
        %v757 = vrot.slane %v756, 4
        %v759 = vshll.u32 %v513, 16
        %v761 = vrot.slane %v759, 5
        %v762 = vsel %vm522, %v757, %v761
        %v764 = vshrl.u32 %v492, 16
        %v766 = vrot.slane %v764, 4
        %v767 = vshll.u32 %v492, 16
        %v769 = vrot.slane %v767, 5
        %v770 = vor.u32 %v766, %v769
        %v771 = vrot.slane %v770, 4
        %v773 = vshll.u32 %v493, 16
        %v775 = vrot.slane %v773, 5
        %v776 = vsel %vm522, %v771, %v775
        %v777 = vshrl.u32 %v493, 16
        %v779 = vrot.slane %v777, 4
        %v780 = vor.u32 %v779, %v775
        %v781 = vrot.slane %v780, 4
        %v783 = vshll.u32 %v514, 16
        %v785 = vrot.slane %v783, 5
        %v786 = vsel %vm522, %v781, %v785
        %v788 = vshrl.u32 %v494, 16
        %v790 = vrot.slane %v788, 4
        %v791 = vshll.u32 %v494, 16
        %v793 = vrot.slane %v791, 5
        %v794 = vor.u32 %v790, %v793
        %v795 = vrot.slane %v794, 4
        %v797 = vshll.u32 %v495, 16
        %v799 = vrot.slane %v797, 5
        %v800 = vsel %vm522, %v795, %v799
        %v801 = vshrl.u32 %v495, 16
        %v803 = vrot.slane %v801, 4
        %v804 = vor.u32 %v803, %v799
        %v805 = vrot.slane %v804, 4
        %v807 = vshll.u32 %v515, 16
        %v809 = vrot.slane %v807, 5
        %v810 = vsel %vm522, %v805, %v809
        %v812 = vshrl.u32 %v496, 16
        %v814 = vrot.slane %v812, 4
        %v815 = vshll.u32 %v496, 16
        %v817 = vrot.slane %v815, 5
        %v818 = vor.u32 %v814, %v817
        %v819 = vrot.slane %v818, 4
        %v821 = vshll.u32 %v497, 16
        %v823 = vrot.slane %v821, 5
        %v824 = vsel %vm522, %v819, %v823
        %v825 = vshrl.u32 %v497, 16
        %v827 = vrot.slane %v825, 4
        %v828 = vor.u32 %v827, %v823
        %v829 = vrot.slane %v828, 4
        %v831 = vshll.u32 %v516, 16
        %v833 = vrot.slane %v831, 5
        %v834 = vsel %vm522, %v829, %v833
        %v836 = vshrl.u32 %v498, 16
        %v838 = vrot.slane %v836, 4
        %v839 = vshll.u32 %v498, 16
        %v841 = vrot.slane %v839, 5
        %v842 = vor.u32 %v838, %v841
        %v843 = vrot.slane %v842, 4
        %v845 = vshll.u32 %v499, 16
        %v847 = vrot.slane %v845, 5
        %v848 = vsel %vm522, %v843, %v847
        %v849 = vshrl.u32 %v499, 16
        %v851 = vrot.slane %v849, 4
        %v852 = vor.u32 %v851, %v847
        %v853 = vrot.slane %v852, 4
        %v855 = vshll.u32 %v517, 16
        %v857 = vrot.slane %v855, 5
        %v858 = vsel %vm522, %v853, %v857
        %v860 = vshrl.u32 %v500, 16
        %v862 = vrot.slane %v860, 4
        %v863 = vshll.u32 %v500, 16
        %v865 = vrot.slane %v863, 5
        %v866 = vor.u32 %v862, %v865
        %v867 = vrot.slane %v866, 4
        %v869 = vshll.u32 %v501, 16
        %v871 = vrot.slane %v869, 5
        %v872 = vsel %vm522, %v867, %v871
        %v873 = vshrl.u32 %v501, 16
        %v875 = vrot.slane %v873, 4
        %v876 = vor.u32 %v875, %v871
        %v877 = vrot.slane %v876, 4
        %v879 = vshll.u32 %v518, 16
        %v881 = vrot.slane %v879, 5
        %v882 = vsel %vm522, %v877, %v881
        %v884 = vshrl.u32 %v502, 16
        %v886 = vrot.slane %v884, 4
        %v887 = vshll.u32 %v502, 16
        %v889 = vrot.slane %v887, 5
        %v890 = vor.u32 %v886, %v889
        %v891 = vrot.slane %v890, 4
        %v893 = vshll.u32 %v503, 16
        %v895 = vrot.slane %v893, 5
        %v896 = vsel %vm522, %v891, %v895
        %v897 = vshrl.u32 %v503, 16
        %v899 = vrot.slane %v897, 4
        %v900 = vor.u32 %v899, %v895
        %v901 = vrot.slane %v900, 4
        %v903 = vshll.u32 %v519, 16
        %v905 = vrot.slane %v903, 5
        %v906 = vsel %vm522, %v901, %v905
        %v907 = vld [vmem:[%s267] sm:$0xe]
        %v908 = vld [vmem:[%s267 + $0xc] sm:$0xe]
        %v909 = vld [vmem:[%s267 + $0x18] sm:$0xe]
        %v910 = vld [vmem:[%s267 + $0x24] sm:$0xe]
        %v911 = vld [vmem:[%s267 + $0x30] sm:$0xe]
        %v912 = vld [vmem:[%s267 + $0x3c] sm:$0xe]
        %v913 = vld [vmem:[%s267 + $0x48] sm:$0xe]
        %v914 = vld [vmem:[%s267 + $0x54] sm:$0xe]
        %v915 = vld [vmem:[%s267 + $0x60] sm:$0xe]
        %v916 = vld [vmem:[%s267 + $0x6c] sm:$0xe]
        %v917 = vld [vmem:[%s267 + $0x78] sm:$0xe]
        %v918 = vld [vmem:[%s267 + $0x84] sm:$0xe]
        %v919 = vld [vmem:[%s267 + $0x90] sm:$0xe]
        %v920 = vld [vmem:[%s267 + $0x9c] sm:$0xe]
        %v921 = vld [vmem:[%s267 + $0xa8] sm:$0xe]
        %v922 = vld [vmem:[%s267 + $0xb4] sm:$0xe]
        %vm971 = vcmask 1042432
        %vm972 = vcmask 1046532
        %vm973 = vmor %vm971, %vm972
        %v974 = vrot.slane %v907, 5
        %v975 = vrot.slane %v974, 4
        %v976 = vrot.slane %v473, 5
        %v977 = vsel %vm973, %v975, %v976
        %v978 = vrot.slane %v976, 4
        %v979 = vrot.slane %v504, 5
        %v980 = vsel %vm973, %v978, %v979
        %v981 = vrot.slane %v908, 5
        %v982 = vrot.slane %v981, 4
        %v983 = vrot.slane %v475, 5
        %v984 = vsel %vm973, %v982, %v983
        %v985 = vrot.slane %v983, 4
        %v986 = vrot.slane %v505, 5
        %v987 = vsel %vm973, %v985, %v986
        %v988 = vrot.slane %v909, 5
        %v989 = vrot.slane %v988, 4
        %v990 = vrot.slane %v477, 5
        %v991 = vsel %vm973, %v989, %v990
        %v992 = vrot.slane %v990, 4
        %v993 = vrot.slane %v506, 5
        %v994 = vsel %vm973, %v992, %v993
        %v995 = vrot.slane %v910, 5
        %v996 = vrot.slane %v995, 4
        %v997 = vrot.slane %v479, 5
        %v998 = vsel %vm973, %v996, %v997
        %v999 = vrot.slane %v997, 4
        %v1000 = vrot.slane %v507, 5
        %v1001 = vsel %vm973, %v999, %v1000
        %v1002 = vrot.slane %v911, 5
        %v1003 = vrot.slane %v1002, 4
        %v1004 = vrot.slane %v481, 5
        %v1005 = vsel %vm973, %v1003, %v1004
        %v1006 = vrot.slane %v1004, 4
        %v1007 = vrot.slane %v508, 5
        %v1008 = vsel %vm973, %v1006, %v1007
        %v1009 = vrot.slane %v912, 5
        %v1010 = vrot.slane %v1009, 4
        %v1011 = vrot.slane %v483, 5
        %v1012 = vsel %vm973, %v1010, %v1011
        %v1013 = vrot.slane %v1011, 4
        %v1014 = vrot.slane %v509, 5
        %v1015 = vsel %vm973, %v1013, %v1014
        %v1016 = vrot.slane %v913, 5
        %v1017 = vrot.slane %v1016, 4
        %v1018 = vrot.slane %v485, 5
        %v1019 = vsel %vm973, %v1017, %v1018
        %v1020 = vrot.slane %v1018, 4
        %v1021 = vrot.slane %v510, 5
        %v1022 = vsel %vm973, %v1020, %v1021
        %v1023 = vrot.slane %v914, 5
        %v1024 = vrot.slane %v1023, 4
        %v1025 = vrot.slane %v487, 5
        %v1026 = vsel %vm973, %v1024, %v1025
        %v1027 = vrot.slane %v1025, 4
        %v1028 = vrot.slane %v511, 5
        %v1029 = vsel %vm973, %v1027, %v1028
        %v1030 = vrot.slane %v915, 5
        %v1031 = vrot.slane %v1030, 4
        %v1032 = vrot.slane %v489, 5
        %v1033 = vsel %vm973, %v1031, %v1032
        %v1034 = vrot.slane %v1032, 4
        %v1035 = vrot.slane %v512, 5
        %v1036 = vsel %vm973, %v1034, %v1035
        %v1037 = vrot.slane %v916, 5
        %v1038 = vrot.slane %v1037, 4
        %v1039 = vrot.slane %v491, 5
        %v1040 = vsel %vm973, %v1038, %v1039
        %v1041 = vrot.slane %v1039, 4
        %v1042 = vrot.slane %v513, 5
        %v1043 = vsel %vm973, %v1041, %v1042
        %v1044 = vrot.slane %v917, 5
        %v1045 = vrot.slane %v1044, 4
        %v1046 = vrot.slane %v493, 5
        %v1047 = vsel %vm973, %v1045, %v1046
        %v1048 = vrot.slane %v1046, 4
        %v1049 = vrot.slane %v514, 5
        %v1050 = vsel %vm973, %v1048, %v1049
        %v1051 = vrot.slane %v918, 5
        %v1052 = vrot.slane %v1051, 4
        %v1053 = vrot.slane %v495, 5
        %v1054 = vsel %vm973, %v1052, %v1053
        %v1055 = vrot.slane %v1053, 4
        %v1056 = vrot.slane %v515, 5
        %v1057 = vsel %vm973, %v1055, %v1056
        %v1058 = vrot.slane %v919, 5
        %v1059 = vrot.slane %v1058, 4
        %v1060 = vrot.slane %v497, 5
        %v1061 = vsel %vm973, %v1059, %v1060
        %v1062 = vrot.slane %v1060, 4
        %v1063 = vrot.slane %v516, 5
        %v1064 = vsel %vm973, %v1062, %v1063
        %v1065 = vrot.slane %v920, 5
        %v1066 = vrot.slane %v1065, 4
        %v1067 = vrot.slane %v499, 5
        %v1068 = vsel %vm973, %v1066, %v1067
        %v1069 = vrot.slane %v1067, 4
        %v1070 = vrot.slane %v517, 5
        %v1071 = vsel %vm973, %v1069, %v1070
        %v1072 = vrot.slane %v921, 5
        %v1073 = vrot.slane %v1072, 4
        %v1074 = vrot.slane %v501, 5
        %v1075 = vsel %vm973, %v1073, %v1074
        %v1076 = vrot.slane %v1074, 4
        %v1077 = vrot.slane %v518, 5
        %v1078 = vsel %vm973, %v1076, %v1077
        %v1079 = vrot.slane %v922, 5
        %v1080 = vrot.slane %v1079, 4
        %v1081 = vrot.slane %v503, 5
        %v1082 = vsel %vm973, %v1080, %v1081
        %v1083 = vrot.slane %v1081, 4
        %v1084 = vrot.slane %v519, 5
        %v1085 = vsel %vm973, %v1083, %v1084
        %v1102 = vunpack.c.l.b16 %v472
        %v1103 = vunpack.c.l.b16 %v473
        %v1104 = vunpack.c.l.b16 %v474
        %v1105 = vunpack.c.l.b16 %v475
        %v1106 = vunpack.c.l.b16 %v476
        %v1107 = vunpack.c.l.b16 %v477
        %v1108 = vunpack.c.l.b16 %v478
        %v1109 = vunpack.c.l.b16 %v479
        %v1110 = vunpack.c.l.b16 %v480
        %v1111 = vunpack.c.l.b16 %v481
        %v1112 = vunpack.c.l.b16 %v482
        %v1113 = vunpack.c.l.b16 %v483
        %v1114 = vunpack.c.l.b16 %v484
        %v1115 = vunpack.c.l.b16 %v485
        %v1116 = vunpack.c.l.b16 %v486
        %v1117 = vunpack.c.l.b16 %v487
        %v1118 = vunpack.c.l.b16 %v488
        %v1119 = vunpack.c.l.b16 %v489
        %v1120 = vunpack.c.l.b16 %v490
        %v1121 = vunpack.c.l.b16 %v491
        %v1122 = vunpack.c.l.b16 %v492
        %v1123 = vunpack.c.l.b16 %v493
        %v1124 = vunpack.c.l.b16 %v494
        %v1125 = vunpack.c.l.b16 %v495
        %v1126 = vunpack.c.l.b16 %v496
        %v1127 = vunpack.c.l.b16 %v497
        %v1128 = vunpack.c.l.b16 %v498
        %v1129 = vunpack.c.l.b16 %v499
        %v1130 = vunpack.c.l.b16 %v500
        %v1131 = vunpack.c.l.b16 %v501
        %v1132 = vunpack.c.l.b16 %v502
        %v1133 = vunpack.c.l.b16 %v503
        %v1134 = vpack.c.b16 %v1103, %v1102
        %v1135 = vpack.c.b16 %v1105, %v1104
        %v1136 = vpack.c.b16 %v1107, %v1106
        %v1137 = vpack.c.b16 %v1109, %v1108
        %v1138 = vpack.c.b16 %v1111, %v1110
        %v1139 = vpack.c.b16 %v1113, %v1112
        %v1140 = vpack.c.b16 %v1115, %v1114
        %v1141 = vpack.c.b16 %v1117, %v1116
        %v1142 = vpack.c.b16 %v1119, %v1118
        %v1143 = vpack.c.b16 %v1121, %v1120
        %v1144 = vpack.c.b16 %v1123, %v1122
        %v1145 = vpack.c.b16 %v1125, %v1124
        %v1146 = vpack.c.b16 %v1127, %v1126
        %v1147 = vpack.c.b16 %v1129, %v1128
        %v1148 = vpack.c.b16 %v1131, %v1130
        %v1149 = vpack.c.b16 %v1133, %v1132
        %v1166 = vunpack.c.l.b16 %v536
        %v1167 = vunpack.c.l.b16 %v546
        %v1168 = vunpack.c.l.b16 %v560
        %v1169 = vunpack.c.l.b16 %v570
        %v1170 = vunpack.c.l.b16 %v584
        %v1171 = vunpack.c.l.b16 %v594
        %v1172 = vunpack.c.l.b16 %v608
        %v1173 = vunpack.c.l.b16 %v618
        %v1174 = vunpack.c.l.b16 %v632
        %v1175 = vunpack.c.l.b16 %v642
        %v1176 = vunpack.c.l.b16 %v656
        %v1177 = vunpack.c.l.b16 %v666
        %v1178 = vunpack.c.l.b16 %v680
        %v1179 = vunpack.c.l.b16 %v690
        %v1180 = vunpack.c.l.b16 %v704
        %v1181 = vunpack.c.l.b16 %v714
        %v1182 = vunpack.c.l.b16 %v728
        %v1183 = vunpack.c.l.b16 %v738
        %v1184 = vunpack.c.l.b16 %v752
        %v1185 = vunpack.c.l.b16 %v762
        %v1186 = vunpack.c.l.b16 %v776
        %v1187 = vunpack.c.l.b16 %v786
        %v1188 = vunpack.c.l.b16 %v800
        %v1189 = vunpack.c.l.b16 %v810
        %v1190 = vunpack.c.l.b16 %v824
        %v1191 = vunpack.c.l.b16 %v834
        %v1192 = vunpack.c.l.b16 %v848
        %v1193 = vunpack.c.l.b16 %v858
        %v1194 = vunpack.c.l.b16 %v872
        %v1195 = vunpack.c.l.b16 %v882
        %v1196 = vunpack.c.l.b16 %v896
        %v1197 = vunpack.c.l.b16 %v906
        %v1198 = vpack.c.b16 %v1167, %v1166
        %v1199 = vpack.c.b16 %v1169, %v1168
        %v1200 = vpack.c.b16 %v1171, %v1170
        %v1201 = vpack.c.b16 %v1173, %v1172
        %v1202 = vpack.c.b16 %v1175, %v1174
        %v1203 = vpack.c.b16 %v1177, %v1176
        %v1204 = vpack.c.b16 %v1179, %v1178
        %v1205 = vpack.c.b16 %v1181, %v1180
        %v1206 = vpack.c.b16 %v1183, %v1182
        %v1207 = vpack.c.b16 %v1185, %v1184
        %v1208 = vpack.c.b16 %v1187, %v1186
        %v1209 = vpack.c.b16 %v1189, %v1188
        %v1210 = vpack.c.b16 %v1191, %v1190
        %v1211 = vpack.c.b16 %v1193, %v1192
        %v1212 = vpack.c.b16 %v1195, %v1194
        %v1213 = vpack.c.b16 %v1197, %v1196
        %v1230 = vunpack.c.l.b16 %v977
        %v1231 = vunpack.c.l.b16 %v980
        %v1232 = vunpack.c.l.b16 %v984
        %v1233 = vunpack.c.l.b16 %v987
        %v1234 = vunpack.c.l.b16 %v991
        %v1235 = vunpack.c.l.b16 %v994
        %v1236 = vunpack.c.l.b16 %v998
        %v1237 = vunpack.c.l.b16 %v1001
        %v1238 = vunpack.c.l.b16 %v1005
        %v1239 = vunpack.c.l.b16 %v1008
        %v1240 = vunpack.c.l.b16 %v1012
        %v1241 = vunpack.c.l.b16 %v1015
        %v1242 = vunpack.c.l.b16 %v1019
        %v1243 = vunpack.c.l.b16 %v1022
        %v1244 = vunpack.c.l.b16 %v1026
        %v1245 = vunpack.c.l.b16 %v1029
        %v1246 = vunpack.c.l.b16 %v1033
        %v1247 = vunpack.c.l.b16 %v1036
        %v1248 = vunpack.c.l.b16 %v1040
        %v1249 = vunpack.c.l.b16 %v1043
        %v1250 = vunpack.c.l.b16 %v1047
        %v1251 = vunpack.c.l.b16 %v1050
        %v1252 = vunpack.c.l.b16 %v1054
        %v1253 = vunpack.c.l.b16 %v1057
        %v1254 = vunpack.c.l.b16 %v1061
        %v1255 = vunpack.c.l.b16 %v1064
        %v1256 = vunpack.c.l.b16 %v1068
        %v1257 = vunpack.c.l.b16 %v1071
        %v1258 = vunpack.c.l.b16 %v1075
        %v1259 = vunpack.c.l.b16 %v1078
        %v1260 = vunpack.c.l.b16 %v1082
        %v1261 = vunpack.c.l.b16 %v1085
        %v1262 = vpack.c.b16 %v1231, %v1230
        %v1263 = vpack.c.b16 %v1233, %v1232
        %v1264 = vpack.c.b16 %v1235, %v1234
        %v1265 = vpack.c.b16 %v1237, %v1236
        %v1266 = vpack.c.b16 %v1239, %v1238
        %v1267 = vpack.c.b16 %v1241, %v1240
        %v1268 = vpack.c.b16 %v1243, %v1242
        %v1269 = vpack.c.b16 %v1245, %v1244
        %v1270 = vpack.c.b16 %v1247, %v1246
        %v1271 = vpack.c.b16 %v1249, %v1248
        %v1272 = vpack.c.b16 %v1251, %v1250
        %v1273 = vpack.c.b16 %v1253, %v1252
        %v1274 = vpack.c.b16 %v1255, %v1254
        %v1275 = vpack.c.b16 %v1257, %v1256
        %v1276 = vpack.c.b16 %v1259, %v1258
        %v1277 = vpack.c.b16 %v1261, %v1260
        %v1294 = vld [vmem:[#allocation2] sm:$0xff]
        %v1295 = vld [vmem:[#allocation2 + $0x8] sm:$0xff]
        %v1296 = vld [vmem:[#allocation2 + $0x10] sm:$0xff]
        %v1297 = vld [vmem:[#allocation2 + $0x18] sm:$0xff]
        %v1298 = vld [vmem:[#allocation2 + $0x20] sm:$0xff]
        %v1299 = vld [vmem:[#allocation2 + $0x28] sm:$0xff]
        %v1300 = vld [vmem:[#allocation2 + $0x30] sm:$0xff]
        %v1301 = vld [vmem:[#allocation2 + $0x38] sm:$0xff]
        %v1302 = vld [vmem:[#allocation2 + $0x40] sm:$0xff]
        %v1303 = vld [vmem:[#allocation2 + $0x48] sm:$0xff]
        %v1304 = vld [vmem:[#allocation2 + $0x50] sm:$0xff]
        %v1305 = vld [vmem:[#allocation2 + $0x58] sm:$0xff]
        %v1306 = vld [vmem:[#allocation2 + $0x60] sm:$0xff]
        %v1307 = vld [vmem:[#allocation2 + $0x68] sm:$0xff]
        %v1308 = vld [vmem:[#allocation2 + $0x70] sm:$0xff]
        %v1309 = vld [vmem:[#allocation2 + $0x78] sm:$0xff]
        %v1310 = vld [vmem:[#allocation2 + $0x80] sm:$0xff]
        %v1311 = vld [vmem:[#allocation2 + $0x88] sm:$0xff]
        %v1312 = vld [vmem:[#allocation2 + $0x90] sm:$0xff]
        %v1313 = vld [vmem:[#allocation2 + $0x98] sm:$0xff]
        %v1314 = vld [vmem:[#allocation2 + $0xa0] sm:$0xff]
        %v1315 = vld [vmem:[#allocation2 + $0xa8] sm:$0xff]
        %v1316 = vld [vmem:[#allocation2 + $0xb0] sm:$0xff]
        %v1317 = vld [vmem:[#allocation2 + $0xb8] sm:$0xff]
        %v1318 = vld [vmem:[#allocation2 + $0xc0] sm:$0xff]
        %v1319 = vld [vmem:[#allocation2 + $0xc8] sm:$0xff]
        %v1320 = vld [vmem:[#allocation2 + $0xd0] sm:$0xff]
        %v1321 = vld [vmem:[#allocation2 + $0xd8] sm:$0xff]
        %v1322 = vld [vmem:[#allocation2 + $0xe0] sm:$0xff]
        %v1323 = vld [vmem:[#allocation2 + $0xe8] sm:$0xff]
        %v1324 = vld [vmem:[#allocation2 + $0xf0] sm:$0xff]
        %v1325 = vld [vmem:[#allocation2 + $0xf8] sm:$0xff]
        %v1326 = vld [vmem:[#allocation2 + $0x100] sm:$0xff]
        %v1327 = vld [vmem:[#allocation2 + $0x108] sm:$0xff]
        %v1328 = vld [vmem:[#allocation2 + $0x110] sm:$0xff]
        %v1329 = vld [vmem:[#allocation2 + $0x118] sm:$0xff]
        %v1330 = vld [vmem:[#allocation2 + $0x120] sm:$0xff]
        %v1331 = vld [vmem:[#allocation2 + $0x128] sm:$0xff]
        %v1332 = vld [vmem:[#allocation2 + $0x130] sm:$0xff]
        %v1333 = vld [vmem:[#allocation2 + $0x138] sm:$0xff]
        %v1334 = vld [vmem:[#allocation2 + $0x140] sm:$0xff]
        %v1335 = vld [vmem:[#allocation2 + $0x148] sm:$0xff]
        %v1336 = vld [vmem:[#allocation2 + $0x150] sm:$0xff]
        %v1337 = vld [vmem:[#allocation2 + $0x158] sm:$0xff]
        %v1338 = vld [vmem:[#allocation2 + $0x160] sm:$0xff]
        %v1339 = vld [vmem:[#allocation2 + $0x168] sm:$0xff]
        %v1340 = vld [vmem:[#allocation2 + $0x170] sm:$0xff]
        %v1341 = vld [vmem:[#allocation2 + $0x178] sm:$0xff]
        %v1342 = vld [vmem:[#allocation2 + $0x180] sm:$0xff]
        %v1343 = vld [vmem:[#allocation2 + $0x188] sm:$0xff]
        %v1344 = vld [vmem:[#allocation2 + $0x190] sm:$0xff]
        %v1345 = vld [vmem:[#allocation2 + $0x198] sm:$0xff]
        %v1346 = vld [vmem:[#allocation2 + $0x1a0] sm:$0xff]
        %v1347 = vld [vmem:[#allocation2 + $0x1a8] sm:$0xff]
        %v1348 = vld [vmem:[#allocation2 + $0x1b0] sm:$0xff]
        %v1349 = vld [vmem:[#allocation2 + $0x1b8] sm:$0xff]
        %v1350 = vld [vmem:[#allocation2 + $0x1c0] sm:$0xff]
        %v1351 = vld [vmem:[#allocation2 + $0x1c8] sm:$0xff]
        %v1352 = vld [vmem:[#allocation2 + $0x1d0] sm:$0xff]
        %v1353 = vld [vmem:[#allocation2 + $0x1d8] sm:$0xff]
        %v1354 = vld [vmem:[#allocation2 + $0x1e0] sm:$0xff]
        %v1355 = vld [vmem:[#allocation2 + $0x1e8] sm:$0xff]
        %v1356 = vld [vmem:[#allocation2 + $0x1f0] sm:$0xff]
        %v1357 = vld [vmem:[#allocation2 + $0x1f8] sm:$0xff]
        %v1358 = vld [vmem:[#allocation2 + $0x200] sm:$0xff]
        %v1359 = vld [vmem:[#allocation2 + $0x208] sm:$0xff]
        %v1360 = vld [vmem:[#allocation2 + $0x210] sm:$0xff]
        %v1361 = vld [vmem:[#allocation2 + $0x218] sm:$0xff]
        %v1362 = vld [vmem:[#allocation2 + $0x220] sm:$0xff]
        %v1363 = vld [vmem:[#allocation2 + $0x228] sm:$0xff]
        %v1364 = vld [vmem:[#allocation2 + $0x230] sm:$0xff]
        %v1365 = vld [vmem:[#allocation2 + $0x238] sm:$0xff]
        %v1366 = vld [vmem:[#allocation2 + $0x240] sm:$0xff]
        %v1367 = vld [vmem:[#allocation2 + $0x248] sm:$0xff]
        %v1368 = vld [vmem:[#allocation2 + $0x250] sm:$0xff]
        %v1369 = vld [vmem:[#allocation2 + $0x258] sm:$0xff]
        %v1370 = vld [vmem:[#allocation2 + $0x260] sm:$0xff]
        %v1371 = vld [vmem:[#allocation2 + $0x268] sm:$0xff]
        %v1372 = vld [vmem:[#allocation2 + $0x270] sm:$0xff]
        %v1373 = vld [vmem:[#allocation2 + $0x278] sm:$0xff]
        %v1374 = vld [vmem:[#allocation2 + $0x280] sm:$0xff]
        %v1375 = vld [vmem:[#allocation2 + $0x288] sm:$0xff]
        %v1376 = vld [vmem:[#allocation2 + $0x290] sm:$0xff]
        %v1377 = vld [vmem:[#allocation2 + $0x298] sm:$0xff]
        %v1378 = vld [vmem:[#allocation2 + $0x2a0] sm:$0xff]
        %v1379 = vld [vmem:[#allocation2 + $0x2a8] sm:$0xff]
        %v1380 = vld [vmem:[#allocation2 + $0x2b0] sm:$0xff]
        %v1381 = vld [vmem:[#allocation2 + $0x2b8] sm:$0xff]
        %v1382 = vld [vmem:[#allocation2 + $0x2c0] sm:$0xff]
        %v1383 = vld [vmem:[#allocation2 + $0x2c8] sm:$0xff]
        %v1384 = vld [vmem:[#allocation2 + $0x2d0] sm:$0xff]
        %v1385 = vld [vmem:[#allocation2 + $0x2d8] sm:$0xff]
        %v1386 = vld [vmem:[#allocation2 + $0x2e0] sm:$0xff]
        %v1387 = vld [vmem:[#allocation2 + $0x2e8] sm:$0xff]
        %v1388 = vld [vmem:[#allocation2 + $0x2f0] sm:$0xff]
        %v1389 = vld [vmem:[#allocation2 + $0x2f8] sm:$0xff]
        %v1390 = vld [vmem:[#allocation2 + $0x300] sm:$0xff]
        %v1391 = vld [vmem:[#allocation2 + $0x308] sm:$0xff]
        %v1392 = vld [vmem:[#allocation2 + $0x310] sm:$0xff]
        %v1393 = vld [vmem:[#allocation2 + $0x318] sm:$0xff]
        %v1394 = vld [vmem:[#allocation2 + $0x320] sm:$0xff]
        %v1395 = vld [vmem:[#allocation2 + $0x328] sm:$0xff]
        %v1396 = vld [vmem:[#allocation2 + $0x330] sm:$0xff]
        %v1397 = vld [vmem:[#allocation2 + $0x338] sm:$0xff]
        %v1398 = vld [vmem:[#allocation2 + $0x340] sm:$0xff]
        %v1399 = vld [vmem:[#allocation2 + $0x348] sm:$0xff]
        %v1400 = vld [vmem:[#allocation2 + $0x350] sm:$0xff]
        %v1401 = vld [vmem:[#allocation2 + $0x358] sm:$0xff]
        %v1402 = vld [vmem:[#allocation2 + $0x360] sm:$0xff]
        %v1403 = vld [vmem:[#allocation2 + $0x368] sm:$0xff]
        %v1404 = vld [vmem:[#allocation2 + $0x370] sm:$0xff]
        %v1405 = vld [vmem:[#allocation2 + $0x378] sm:$0xff]
        %v1406 = vld [vmem:[#allocation2 + $0x380] sm:$0xff]
        %v1407 = vld [vmem:[#allocation2 + $0x388] sm:$0xff]
        %v1408 = vld [vmem:[#allocation2 + $0x390] sm:$0xff]
        %v1409 = vld [vmem:[#allocation2 + $0x398] sm:$0xff]
        %v1410 = vld [vmem:[#allocation2 + $0x3a0] sm:$0xff]
        %v1411 = vld [vmem:[#allocation2 + $0x3a8] sm:$0xff]
        %v1412 = vld [vmem:[#allocation2 + $0x3b0] sm:$0xff]
        %v1413 = vld [vmem:[#allocation2 + $0x3b8] sm:$0xff]
        %v1414 = vld [vmem:[#allocation2 + $0x3c0] sm:$0xff]
        %v1415 = vld [vmem:[#allocation2 + $0x3c8] sm:$0xff]
        %v1416 = vld [vmem:[#allocation2 + $0x3d0] sm:$0xff]
        %v1417 = vld [vmem:[#allocation2 + $0x3d8] sm:$0xff]
        %v1418 = vld [vmem:[#allocation2 + $0x3e0] sm:$0xff]
        %v1419 = vld [vmem:[#allocation2 + $0x3e8] sm:$0xff]
        %v1420 = vld [vmem:[#allocation2 + $0x3f0] sm:$0xff]
        %v1421 = vld [vmem:[#allocation2 + $0x3f8] sm:$0xff]
        %v1422 = vld [vmem:[#allocation6] sm:$0xff]
        %v1423 = vld [vmem:[#allocation6 + $0x8] sm:$0xff]
        %v1424 = vld [vmem:[#allocation6 + $0x10] sm:$0xff]
        %v1425 = vld [vmem:[#allocation6 + $0x18] sm:$0xff]
        %v1426 = vld [vmem:[#allocation6 + $0x20] sm:$0xff]
        %v1427 = vld [vmem:[#allocation6 + $0x28] sm:$0xff]
        %v1428 = vld [vmem:[#allocation6 + $0x30] sm:$0xff]
        %v1429 = vld [vmem:[#allocation6 + $0x38] sm:$0xff]
        %v1430 = vld [vmem:[#allocation6 + $0x40] sm:$0xff]
        %v1431 = vld [vmem:[#allocation6 + $0x48] sm:$0xff]
        %v1432 = vld [vmem:[#allocation6 + $0x50] sm:$0xff]
        %v1433 = vld [vmem:[#allocation6 + $0x58] sm:$0xff]
        %v1434 = vld [vmem:[#allocation6 + $0x60] sm:$0xff]
        %v1435 = vld [vmem:[#allocation6 + $0x68] sm:$0xff]
        %v1436 = vld [vmem:[#allocation6 + $0x70] sm:$0xff]
        %v1437 = vld [vmem:[#allocation6 + $0x78] sm:$0xff]
        %v1438 = vld [vmem:[#allocation6 + $0x80] sm:$0xff]
        %v1439 = vld [vmem:[#allocation6 + $0x88] sm:$0xff]
        %v1440 = vld [vmem:[#allocation6 + $0x90] sm:$0xff]
        %v1441 = vld [vmem:[#allocation6 + $0x98] sm:$0xff]
        %v1442 = vld [vmem:[#allocation6 + $0xa0] sm:$0xff]
        %v1443 = vld [vmem:[#allocation6 + $0xa8] sm:$0xff]
        %v1444 = vld [vmem:[#allocation6 + $0xb0] sm:$0xff]
        %v1445 = vld [vmem:[#allocation6 + $0xb8] sm:$0xff]
        %v1446 = vld [vmem:[#allocation6 + $0xc0] sm:$0xff]
        %v1447 = vld [vmem:[#allocation6 + $0xc8] sm:$0xff]
        %v1448 = vld [vmem:[#allocation6 + $0xd0] sm:$0xff]
        %v1449 = vld [vmem:[#allocation6 + $0xd8] sm:$0xff]
        %v1450 = vld [vmem:[#allocation6 + $0xe0] sm:$0xff]
        %v1451 = vld [vmem:[#allocation6 + $0xe8] sm:$0xff]
        %v1452 = vld [vmem:[#allocation6 + $0xf0] sm:$0xff]
        %v1453 = vld [vmem:[#allocation6 + $0xf8] sm:$0xff]
        %v1454 = vld [vmem:[#allocation6 + $0x100] sm:$0xff]
        %v1455 = vld [vmem:[#allocation6 + $0x108] sm:$0xff]
        %v1456 = vld [vmem:[#allocation6 + $0x110] sm:$0xff]
        %v1457 = vld [vmem:[#allocation6 + $0x118] sm:$0xff]
        %v1458 = vld [vmem:[#allocation6 + $0x120] sm:$0xff]
        %v1459 = vld [vmem:[#allocation6 + $0x128] sm:$0xff]
        %v1460 = vld [vmem:[#allocation6 + $0x130] sm:$0xff]
        %v1461 = vld [vmem:[#allocation6 + $0x138] sm:$0xff]
        %v1462 = vld [vmem:[#allocation6 + $0x140] sm:$0xff]
        %v1463 = vld [vmem:[#allocation6 + $0x148] sm:$0xff]
        %v1464 = vld [vmem:[#allocation6 + $0x150] sm:$0xff]
        %v1465 = vld [vmem:[#allocation6 + $0x158] sm:$0xff]
        %v1466 = vld [vmem:[#allocation6 + $0x160] sm:$0xff]
        %v1467 = vld [vmem:[#allocation6 + $0x168] sm:$0xff]
        %v1468 = vld [vmem:[#allocation6 + $0x170] sm:$0xff]
        %v1469 = vld [vmem:[#allocation6 + $0x178] sm:$0xff]
        %v1470 = vld [vmem:[#allocation6 + $0x180] sm:$0xff]
        %v1471 = vld [vmem:[#allocation6 + $0x188] sm:$0xff]
        %v1472 = vld [vmem:[#allocation6 + $0x190] sm:$0xff]
        %v1473 = vld [vmem:[#allocation6 + $0x198] sm:$0xff]
        %v1474 = vld [vmem:[#allocation6 + $0x1a0] sm:$0xff]
        %v1475 = vld [vmem:[#allocation6 + $0x1a8] sm:$0xff]
        %v1476 = vld [vmem:[#allocation6 + $0x1b0] sm:$0xff]
        %v1477 = vld [vmem:[#allocation6 + $0x1b8] sm:$0xff]
        %v1478 = vld [vmem:[#allocation6 + $0x1c0] sm:$0xff]
        %v1479 = vld [vmem:[#allocation6 + $0x1c8] sm:$0xff]
        %v1480 = vld [vmem:[#allocation6 + $0x1d0] sm:$0xff]
        %v1481 = vld [vmem:[#allocation6 + $0x1d8] sm:$0xff]
        %v1482 = vld [vmem:[#allocation6 + $0x1e0] sm:$0xff]
        %v1483 = vld [vmem:[#allocation6 + $0x1e8] sm:$0xff]
        %v1484 = vld [vmem:[#allocation6 + $0x1f0] sm:$0xff]
        %v1485 = vld [vmem:[#allocation6 + $0x1f8] sm:$0xff]
        %v1486 = vld [vmem:[#allocation6 + $0x200] sm:$0xff]
        %v1487 = vld [vmem:[#allocation6 + $0x208] sm:$0xff]
        %v1488 = vld [vmem:[#allocation6 + $0x210] sm:$0xff]
        %v1489 = vld [vmem:[#allocation6 + $0x218] sm:$0xff]
        %v1490 = vld [vmem:[#allocation6 + $0x220] sm:$0xff]
        %v1491 = vld [vmem:[#allocation6 + $0x228] sm:$0xff]
        %v1492 = vld [vmem:[#allocation6 + $0x230] sm:$0xff]
        %v1493 = vld [vmem:[#allocation6 + $0x238] sm:$0xff]
        %v1494 = vld [vmem:[#allocation6 + $0x240] sm:$0xff]
        %v1495 = vld [vmem:[#allocation6 + $0x248] sm:$0xff]
        %v1496 = vld [vmem:[#allocation6 + $0x250] sm:$0xff]
        %v1497 = vld [vmem:[#allocation6 + $0x258] sm:$0xff]
        %v1498 = vld [vmem:[#allocation6 + $0x260] sm:$0xff]
        %v1499 = vld [vmem:[#allocation6 + $0x268] sm:$0xff]
        %v1500 = vld [vmem:[#allocation6 + $0x270] sm:$0xff]
        %v1501 = vld [vmem:[#allocation6 + $0x278] sm:$0xff]
        %v1502 = vld [vmem:[#allocation6 + $0x280] sm:$0xff]
        %v1503 = vld [vmem:[#allocation6 + $0x288] sm:$0xff]
        %v1504 = vld [vmem:[#allocation6 + $0x290] sm:$0xff]
        %v1505 = vld [vmem:[#allocation6 + $0x298] sm:$0xff]
        %v1506 = vld [vmem:[#allocation6 + $0x2a0] sm:$0xff]
        %v1507 = vld [vmem:[#allocation6 + $0x2a8] sm:$0xff]
        %v1508 = vld [vmem:[#allocation6 + $0x2b0] sm:$0xff]
        %v1509 = vld [vmem:[#allocation6 + $0x2b8] sm:$0xff]
        %v1510 = vld [vmem:[#allocation6 + $0x2c0] sm:$0xff]
        %v1511 = vld [vmem:[#allocation6 + $0x2c8] sm:$0xff]
        %v1512 = vld [vmem:[#allocation6 + $0x2d0] sm:$0xff]
        %v1513 = vld [vmem:[#allocation6 + $0x2d8] sm:$0xff]
        %v1514 = vld [vmem:[#allocation6 + $0x2e0] sm:$0xff]
        %v1515 = vld [vmem:[#allocation6 + $0x2e8] sm:$0xff]
        %v1516 = vld [vmem:[#allocation6 + $0x2f0] sm:$0xff]
        %v1517 = vld [vmem:[#allocation6 + $0x2f8] sm:$0xff]
        %v1614 = vunpack.c.l.b16 %v1422
        %v1615 = vunpack.c.h.b16 %v1422
        %v1616 = vunpack.c.l.b16 %v1423
        %v1617 = vunpack.c.h.b16 %v1423
        %v1618 = vunpack.c.l.b16 %v1424
        %v1619 = vunpack.c.h.b16 %v1424
        %v1620 = vunpack.c.l.b16 %v1425
        %v1621 = vunpack.c.h.b16 %v1425
        %v1622 = vunpack.c.l.b16 %v1426
        %v1623 = vunpack.c.h.b16 %v1426
        %v1624 = vunpack.c.l.b16 %v1427
        %v1625 = vunpack.c.h.b16 %v1427
        %v1626 = vunpack.c.l.b16 %v1428
        %v1627 = vunpack.c.h.b16 %v1428
        %v1628 = vunpack.c.l.b16 %v1429
        %v1629 = vunpack.c.h.b16 %v1429
        %v1630 = vunpack.c.l.b16 %v1430
        %v1631 = vunpack.c.h.b16 %v1430
        %v1632 = vunpack.c.l.b16 %v1431
        %v1633 = vunpack.c.h.b16 %v1431
        %v1634 = vunpack.c.l.b16 %v1432
        %v1635 = vunpack.c.h.b16 %v1432
        %v1636 = vunpack.c.l.b16 %v1433
        %v1637 = vunpack.c.h.b16 %v1433
        %v1638 = vunpack.c.l.b16 %v1434
        %v1639 = vunpack.c.h.b16 %v1434
        %v1640 = vunpack.c.l.b16 %v1435
        %v1641 = vunpack.c.h.b16 %v1435
        %v1642 = vunpack.c.l.b16 %v1436
        %v1643 = vunpack.c.h.b16 %v1436
        %v1644 = vunpack.c.l.b16 %v1437
        %v1645 = vunpack.c.h.b16 %v1437
        %v1646 = vunpack.c.l.b16 %v1438
        %v1647 = vunpack.c.h.b16 %v1438
        %v1648 = vunpack.c.l.b16 %v1439
        %v1649 = vunpack.c.h.b16 %v1439
        %v1650 = vunpack.c.l.b16 %v1440
        %v1651 = vunpack.c.h.b16 %v1440
        %v1652 = vunpack.c.l.b16 %v1441
        %v1653 = vunpack.c.h.b16 %v1441
        %v1654 = vunpack.c.l.b16 %v1442
        %v1655 = vunpack.c.h.b16 %v1442
        %v1656 = vunpack.c.l.b16 %v1443
        %v1657 = vunpack.c.h.b16 %v1443
        %v1658 = vunpack.c.l.b16 %v1444
        %v1659 = vunpack.c.h.b16 %v1444
        %v1660 = vunpack.c.l.b16 %v1445
        %v1661 = vunpack.c.h.b16 %v1445
        %v1662 = vunpack.c.l.b16 %v1446
        %v1663 = vunpack.c.h.b16 %v1446
        %v1664 = vunpack.c.l.b16 %v1447
        %v1665 = vunpack.c.h.b16 %v1447
        %v1666 = vunpack.c.l.b16 %v1448
        %v1667 = vunpack.c.h.b16 %v1448
        %v1668 = vunpack.c.l.b16 %v1449
        %v1669 = vunpack.c.h.b16 %v1449
        %v1670 = vunpack.c.l.b16 %v1450
        %v1671 = vunpack.c.h.b16 %v1450
        %v1672 = vunpack.c.l.b16 %v1451
        %v1673 = vunpack.c.h.b16 %v1451
        %v1674 = vunpack.c.l.b16 %v1452
        %v1675 = vunpack.c.h.b16 %v1452
        %v1676 = vunpack.c.l.b16 %v1453
        %v1677 = vunpack.c.h.b16 %v1453
        %v1678 = vunpack.c.l.b16 %v1454
        %v1679 = vunpack.c.h.b16 %v1454
        %v1680 = vunpack.c.l.b16 %v1455
        %v1681 = vunpack.c.h.b16 %v1455
        %v1682 = vunpack.c.l.b16 %v1456
        %v1683 = vunpack.c.h.b16 %v1456
        %v1684 = vunpack.c.l.b16 %v1457
        %v1685 = vunpack.c.h.b16 %v1457
        %v1686 = vunpack.c.l.b16 %v1458
        %v1687 = vunpack.c.h.b16 %v1458
        %v1688 = vunpack.c.l.b16 %v1459
        %v1689 = vunpack.c.h.b16 %v1459
        %v1690 = vunpack.c.l.b16 %v1460
        %v1691 = vunpack.c.h.b16 %v1460
        %v1692 = vunpack.c.l.b16 %v1461
        %v1693 = vunpack.c.h.b16 %v1461
        %v1694 = vunpack.c.l.b16 %v1462
        %v1695 = vunpack.c.h.b16 %v1462
        %v1696 = vunpack.c.l.b16 %v1463
        %v1697 = vunpack.c.h.b16 %v1463
        %v1698 = vunpack.c.l.b16 %v1464
        %v1699 = vunpack.c.h.b16 %v1464
        %v1700 = vunpack.c.l.b16 %v1465
        %v1701 = vunpack.c.h.b16 %v1465
        %v1702 = vunpack.c.l.b16 %v1466
        %v1703 = vunpack.c.h.b16 %v1466
        %v1704 = vunpack.c.l.b16 %v1467
        %v1705 = vunpack.c.h.b16 %v1467
        %v1706 = vunpack.c.l.b16 %v1468
        %v1707 = vunpack.c.h.b16 %v1468
        %v1708 = vunpack.c.l.b16 %v1469
        %v1709 = vunpack.c.h.b16 %v1469
        %v1710 = vunpack.c.l.b16 %v1470
        %v1711 = vunpack.c.h.b16 %v1470
        %v1712 = vunpack.c.l.b16 %v1471
        %v1713 = vunpack.c.h.b16 %v1471
        %v1714 = vunpack.c.l.b16 %v1472
        %v1715 = vunpack.c.h.b16 %v1472
        %v1716 = vunpack.c.l.b16 %v1473
        %v1717 = vunpack.c.h.b16 %v1473
        %v1718 = vunpack.c.l.b16 %v1474
        %v1719 = vunpack.c.h.b16 %v1474
        %v1720 = vunpack.c.l.b16 %v1475
        %v1721 = vunpack.c.h.b16 %v1475
        %v1722 = vunpack.c.l.b16 %v1476
        %v1723 = vunpack.c.h.b16 %v1476
        %v1724 = vunpack.c.l.b16 %v1477
        %v1725 = vunpack.c.h.b16 %v1477
        %v1726 = vunpack.c.l.b16 %v1478
        %v1727 = vunpack.c.h.b16 %v1478
        %v1728 = vunpack.c.l.b16 %v1479
        %v1729 = vunpack.c.h.b16 %v1479
        %v1730 = vunpack.c.l.b16 %v1480
        %v1731 = vunpack.c.h.b16 %v1480
        %v1732 = vunpack.c.l.b16 %v1481
        %v1733 = vunpack.c.h.b16 %v1481
        %v1734 = vunpack.c.l.b16 %v1482
        %v1735 = vunpack.c.h.b16 %v1482
        %v1736 = vunpack.c.l.b16 %v1483
        %v1737 = vunpack.c.h.b16 %v1483
        %v1738 = vunpack.c.l.b16 %v1484
        %v1739 = vunpack.c.h.b16 %v1484
        %v1740 = vunpack.c.l.b16 %v1485
        %v1741 = vunpack.c.h.b16 %v1485
        %v1742 = vunpack.c.l.b16 %v1486
        %v1743 = vunpack.c.h.b16 %v1486
        %v1744 = vunpack.c.l.b16 %v1487
        %v1745 = vunpack.c.h.b16 %v1487
        %v1746 = vunpack.c.l.b16 %v1488
        %v1747 = vunpack.c.h.b16 %v1488
        %v1748 = vunpack.c.l.b16 %v1489
        %v1749 = vunpack.c.h.b16 %v1489
        %v1750 = vunpack.c.l.b16 %v1490
        %v1751 = vunpack.c.h.b16 %v1490
        %v1752 = vunpack.c.l.b16 %v1491
        %v1753 = vunpack.c.h.b16 %v1491
        %v1754 = vunpack.c.l.b16 %v1492
        %v1755 = vunpack.c.h.b16 %v1492
        %v1756 = vunpack.c.l.b16 %v1493
        %v1757 = vunpack.c.h.b16 %v1493
        %v1758 = vunpack.c.l.b16 %v1494
        %v1759 = vunpack.c.h.b16 %v1494
        %v1760 = vunpack.c.l.b16 %v1495
        %v1761 = vunpack.c.h.b16 %v1495
        %v1762 = vunpack.c.l.b16 %v1496
        %v1763 = vunpack.c.h.b16 %v1496
        %v1764 = vunpack.c.l.b16 %v1497
        %v1765 = vunpack.c.h.b16 %v1497
        %v1766 = vunpack.c.l.b16 %v1498
        %v1767 = vunpack.c.h.b16 %v1498
        %v1768 = vunpack.c.l.b16 %v1499
        %v1769 = vunpack.c.h.b16 %v1499
        %v1770 = vunpack.c.l.b16 %v1500
        %v1771 = vunpack.c.h.b16 %v1500
        %v1772 = vunpack.c.l.b16 %v1501
        %v1773 = vunpack.c.h.b16 %v1501
        %v1774 = vunpack.c.l.b16 %v1502
        %v1775 = vunpack.c.h.b16 %v1502
        %v1776 = vunpack.c.l.b16 %v1503
        %v1777 = vunpack.c.h.b16 %v1503
        %v1778 = vunpack.c.l.b16 %v1504
        %v1779 = vunpack.c.h.b16 %v1504
        %v1780 = vunpack.c.l.b16 %v1505
        %v1781 = vunpack.c.h.b16 %v1505
        %v1782 = vunpack.c.l.b16 %v1506
        %v1783 = vunpack.c.h.b16 %v1506
        %v1784 = vunpack.c.l.b16 %v1507
        %v1785 = vunpack.c.h.b16 %v1507
        %v1786 = vunpack.c.l.b16 %v1508
        %v1787 = vunpack.c.h.b16 %v1508
        %v1788 = vunpack.c.l.b16 %v1509
        %v1789 = vunpack.c.h.b16 %v1509
        %v1790 = vunpack.c.l.b16 %v1510
        %v1791 = vunpack.c.h.b16 %v1510
        %v1792 = vunpack.c.l.b16 %v1511
        %v1793 = vunpack.c.h.b16 %v1511
        %v1794 = vunpack.c.l.b16 %v1512
        %v1795 = vunpack.c.h.b16 %v1512
        %v1796 = vunpack.c.l.b16 %v1513
        %v1797 = vunpack.c.h.b16 %v1513
        %v1798 = vunpack.c.l.b16 %v1514
        %v1799 = vunpack.c.h.b16 %v1514
        %v1800 = vunpack.c.l.b16 %v1515
        %v1801 = vunpack.c.h.b16 %v1515
        %v1802 = vunpack.c.l.b16 %v1516
        %v1803 = vunpack.c.h.b16 %v1516
        %v1804 = vunpack.c.l.b16 %v1517
        %v1805 = vunpack.c.h.b16 %v1517
        %v1806 = vpack.c.b16 %v1618, %v1614
        %v1807 = vpack.c.b16 %v1619, %v1615
        %v1808 = vpack.c.b16 %v1620, %v1616
        %v1809 = vpack.c.b16 %v1621, %v1617
        %v1810 = vpack.c.b16 %v1626, %v1622
        %v1811 = vpack.c.b16 %v1627, %v1623
        %v1812 = vpack.c.b16 %v1628, %v1624
        %v1813 = vpack.c.b16 %v1629, %v1625
        %v1814 = vpack.c.b16 %v1634, %v1630
        %v1815 = vpack.c.b16 %v1635, %v1631
        %v1816 = vpack.c.b16 %v1636, %v1632
        %v1817 = vpack.c.b16 %v1637, %v1633
        %v1818 = vpack.c.b16 %v1642, %v1638
        %v1819 = vpack.c.b16 %v1643, %v1639
        %v1820 = vpack.c.b16 %v1644, %v1640
        %v1821 = vpack.c.b16 %v1645, %v1641
        %v1822 = vpack.c.b16 %v1650, %v1646
        %v1823 = vpack.c.b16 %v1651, %v1647
        %v1824 = vpack.c.b16 %v1652, %v1648
        %v1825 = vpack.c.b16 %v1653, %v1649
        %v1826 = vpack.c.b16 %v1658, %v1654
        %v1827 = vpack.c.b16 %v1659, %v1655
        %v1828 = vpack.c.b16 %v1660, %v1656
        %v1829 = vpack.c.b16 %v1661, %v1657
        %v1830 = vpack.c.b16 %v1666, %v1662
        %v1831 = vpack.c.b16 %v1667, %v1663
        %v1832 = vpack.c.b16 %v1668, %v1664
        %v1833 = vpack.c.b16 %v1669, %v1665
        %v1834 = vpack.c.b16 %v1674, %v1670
        %v1835 = vpack.c.b16 %v1675, %v1671
        %v1836 = vpack.c.b16 %v1676, %v1672
        %v1837 = vpack.c.b16 %v1677, %v1673
        %v1838 = vpack.c.b16 %v1682, %v1678
        %v1839 = vpack.c.b16 %v1683, %v1679
        %v1840 = vpack.c.b16 %v1684, %v1680
        %v1841 = vpack.c.b16 %v1685, %v1681
        %v1842 = vpack.c.b16 %v1690, %v1686
        %v1843 = vpack.c.b16 %v1691, %v1687
        %v1844 = vpack.c.b16 %v1692, %v1688
        %v1845 = vpack.c.b16 %v1693, %v1689
        %v1846 = vpack.c.b16 %v1698, %v1694
        %v1847 = vpack.c.b16 %v1699, %v1695
        %v1848 = vpack.c.b16 %v1700, %v1696
        %v1849 = vpack.c.b16 %v1701, %v1697
        %v1850 = vpack.c.b16 %v1706, %v1702
        %v1851 = vpack.c.b16 %v1707, %v1703
        %v1852 = vpack.c.b16 %v1708, %v1704
        %v1853 = vpack.c.b16 %v1709, %v1705
        %v1854 = vpack.c.b16 %v1714, %v1710
        %v1855 = vpack.c.b16 %v1715, %v1711
        %v1856 = vpack.c.b16 %v1716, %v1712
        %v1857 = vpack.c.b16 %v1717, %v1713
        %v1858 = vpack.c.b16 %v1722, %v1718
        %v1859 = vpack.c.b16 %v1723, %v1719
        %v1860 = vpack.c.b16 %v1724, %v1720
        %v1861 = vpack.c.b16 %v1725, %v1721
        %v1862 = vpack.c.b16 %v1730, %v1726
        %v1863 = vpack.c.b16 %v1731, %v1727
        %v1864 = vpack.c.b16 %v1732, %v1728
        %v1865 = vpack.c.b16 %v1733, %v1729
        %v1866 = vpack.c.b16 %v1738, %v1734
        %v1867 = vpack.c.b16 %v1739, %v1735
        %v1868 = vpack.c.b16 %v1740, %v1736
        %v1869 = vpack.c.b16 %v1741, %v1737
        %v1870 = vpack.c.b16 %v1746, %v1742
        %v1871 = vpack.c.b16 %v1747, %v1743
        %v1872 = vpack.c.b16 %v1748, %v1744
        %v1873 = vpack.c.b16 %v1749, %v1745
        %v1874 = vpack.c.b16 %v1754, %v1750
        %v1875 = vpack.c.b16 %v1755, %v1751
        %v1876 = vpack.c.b16 %v1756, %v1752
        %v1877 = vpack.c.b16 %v1757, %v1753
        %v1878 = vpack.c.b16 %v1762, %v1758
        %v1879 = vpack.c.b16 %v1763, %v1759
        %v1880 = vpack.c.b16 %v1764, %v1760
        %v1881 = vpack.c.b16 %v1765, %v1761
        %v1882 = vpack.c.b16 %v1770, %v1766
        %v1883 = vpack.c.b16 %v1771, %v1767
        %v1884 = vpack.c.b16 %v1772, %v1768
        %v1885 = vpack.c.b16 %v1773, %v1769
        %v1886 = vpack.c.b16 %v1778, %v1774
        %v1887 = vpack.c.b16 %v1779, %v1775
        %v1888 = vpack.c.b16 %v1780, %v1776
        %v1889 = vpack.c.b16 %v1781, %v1777
        %v1890 = vpack.c.b16 %v1786, %v1782
        %v1891 = vpack.c.b16 %v1787, %v1783
        %v1892 = vpack.c.b16 %v1788, %v1784
        %v1893 = vpack.c.b16 %v1789, %v1785
        %v1894 = vpack.c.b16 %v1794, %v1790
        %v1895 = vpack.c.b16 %v1795, %v1791
        %v1896 = vpack.c.b16 %v1796, %v1792
        %v1897 = vpack.c.b16 %v1797, %v1793
        %v1898 = vpack.c.b16 %v1802, %v1798
        %v1899 = vpack.c.b16 %v1803, %v1799
        %v1900 = vpack.c.b16 %v1804, %v1800
        %v1901 = vpack.c.b16 %v1805, %v1801
        %1998 = vmatprep.subr.bf16.mxu0 %v1807
        %1999 = vmatpush1.bf16.msra.mxu0 %v1806
        %2000 = vmatprep.subr.bf16.mxu0 %v1811
        %2001 = vmatpush1.bf16.msra.mxu0 %v1810
        %2002 = vmatprep.subr.bf16.mxu0 %v1815
        %2003 = vmatpush1.bf16.msra.mxu0 %v1814
        %2004 = vmatprep.subr.bf16.mxu0 %v1819
        %2005 = vmatpush1.bf16.msra.mxu0 %v1818
        %2006 = vmatprep.subr.bf16.mxu0 %v1823
        %2007 = vmatpush1.bf16.msra.mxu0 %v1822
        %2008 = vmatprep.subr.bf16.mxu0 %v1827
        %2009 = vmatpush1.bf16.msra.mxu0 %v1826
        %2010 = vmatprep.subr.bf16.mxu0 %v1831
        %2011 = vmatpush1.bf16.msra.mxu0 %v1830
        %2012 = vmatprep.subr.bf16.mxu0 %v1835
        %2013 = vmatpush1.bf16.msra.mxu0 %v1834
        %2014 = vmatprep.subr.bf16.mxu0 %v1839
        %2015 = vmatpush1.bf16.msra.mxu0 %v1838
        %2016 = vmatprep.subr.bf16.mxu0 %v1843
        %2017 = vmatpush1.bf16.msra.mxu0 %v1842
        %2018 = vmatprep.subr.bf16.mxu0 %v1847
        %2019 = vmatpush1.bf16.msra.mxu0 %v1846
        %2020 = vmatprep.subr.bf16.mxu0 %v1851
        %2021 = vmatpush1.bf16.msra.mxu0 %v1850
        %2022 = vmatprep.subr.bf16.mxu0 %v1855
        %2023 = vmatpush1.bf16.msra.mxu0 %v1854
        %2024 = vmatprep.subr.bf16.mxu0 %v1859
        %2025 = vmatpush1.bf16.msra.mxu0 %v1858
        %2026 = vmatprep.subr.bf16.mxu0 %v1863
        %2027 = vmatpush1.bf16.msra.mxu0 %v1862
        %2028 = vmatprep.subr.bf16.mxu0 %v1867
        %2029 = vmatpush1.bf16.msra.mxu0 %v1866
        %2030 = vmatprep.mubr.bf16.mxu0 %v1198
        %2031 = vmatmul.mubr.bf16.gmra.mrb[0].mxu0 %v1134
        %v2032 = vpop.f32.mrb[0].mxu0
        %v2033 = vadd.f32 0.0, %v2032
        %v2034 = vpop.f32.mrb[0].mxu0
        %v2035 = vadd.f32 0.0, %v2034
        %v2036 = vpop.f32.mrb[0].mxu0
        %v2037 = vadd.f32 0.0, %v2036
        %v2038 = vpop.f32.mrb[0].mxu0
        %v2039 = vadd.f32 0.0, %v2038
        %2040 = vmatprep.mubr.bf16.mxu0 %v1199
        %2041 = vmatmul.mubr.bf16.gmra.mrb[0].mxu0 %v1135
        %v2042 = vpop.f32.mrb[0].mxu0
        %v2043 = vadd.f32 0.0, %v2042
        %v2044 = vpop.f32.mrb[0].mxu0
        %v2045 = vadd.f32 0.0, %v2044
        %v2046 = vpop.f32.mrb[0].mxu0
        %v2047 = vadd.f32 0.0, %v2046
        %v2048 = vpop.f32.mrb[0].mxu0
        %v2049 = vadd.f32 0.0, %v2048
        %2050 = vmatprep.mubr.bf16.mxu0 %v1200
        %2051 = vmatmul.mubr.bf16.gmra.mrb[0].mxu0 %v1136
        %v2052 = vpop.f32.mrb[0].mxu0
        %v2053 = vadd.f32 0.0, %v2052
        %v2054 = vpop.f32.mrb[0].mxu0
        %v2055 = vadd.f32 0.0, %v2054
        %v2056 = vpop.f32.mrb[0].mxu0
        %v2057 = vadd.f32 0.0, %v2056
        %v2058 = vpop.f32.mrb[0].mxu0
        %v2059 = vadd.f32 0.0, %v2058
        %2060 = vmatprep.mubr.bf16.mxu0 %v1201
        %2061 = vmatmul.mubr.bf16.gmra.mrb[0].mxu0 %v1137
        %v2062 = vpop.f32.mrb[0].mxu0
        %v2063 = vadd.f32 0.0, %v2062
        %v2064 = vpop.f32.mrb[0].mxu0
        %v2065 = vadd.f32 0.0, %v2064
        %v2066 = vpop.f32.mrb[0].mxu0
        %v2067 = vadd.f32 0.0, %v2066
        %v2068 = vpop.f32.mrb[0].mxu0
        %v2069 = vadd.f32 0.0, %v2068
        %2070 = vmatprep.mubr.bf16.mxu0 %v1202
        %2071 = vmatmul.mubr.bf16.gmra.mrb[0].mxu0 %v1138
        %v2072 = vpop.f32.mrb[0].mxu0
        %v2073 = vadd.f32 0.0, %v2072
        %v2074 = vpop.f32.mrb[0].mxu0
        %v2075 = vadd.f32 0.0, %v2074
        %v2076 = vpop.f32.mrb[0].mxu0
        %v2077 = vadd.f32 0.0, %v2076
        %v2078 = vpop.f32.mrb[0].mxu0
        %v2079 = vadd.f32 0.0, %v2078
        %2080 = vmatprep.mubr.bf16.mxu0 %v1203
        %2081 = vmatmul.mubr.bf16.gmra.mrb[0].mxu0 %v1139
        %v2082 = vpop.f32.mrb[0].mxu0
        %v2083 = vadd.f32 0.0, %v2082
        %v2084 = vpop.f32.mrb[0].mxu0
        %v2085 = vadd.f32 0.0, %v2084
        %v2086 = vpop.f32.mrb[0].mxu0
        %v2087 = vadd.f32 0.0, %v2086
        %v2088 = vpop.f32.mrb[0].mxu0
        %v2089 = vadd.f32 0.0, %v2088
        %2090 = vmatprep.mubr.bf16.mxu0 %v1204
        %2091 = vmatmul.mubr.bf16.gmra.mrb[0].mxu0 %v1140
        %v2092 = vpop.f32.mrb[0].mxu0
        %v2093 = vadd.f32 0.0, %v2092
        %v2094 = vpop.f32.mrb[0].mxu0
        %v2095 = vadd.f32 0.0, %v2094
        %v2096 = vpop.f32.mrb[0].mxu0
        %v2097 = vadd.f32 0.0, %v2096
        %v2098 = vpop.f32.mrb[0].mxu0
        %v2099 = vadd.f32 0.0, %v2098
        %2100 = vmatprep.mubr.bf16.mxu0 %v1205
        %2101 = vmatmul.mubr.bf16.gmra.mrb[0].mxu0 %v1141
        %v2102 = vpop.f32.mrb[0].mxu0
        %v2103 = vadd.f32 0.0, %v2102
        %v2104 = vpop.f32.mrb[0].mxu0
        %v2105 = vadd.f32 0.0, %v2104
        %v2106 = vpop.f32.mrb[0].mxu0
        %v2107 = vadd.f32 0.0, %v2106
        %v2108 = vpop.f32.mrb[0].mxu0
        %v2109 = vadd.f32 0.0, %v2108
        %2110 = vmatprep.mubr.bf16.mxu0 %v1206
        %2111 = vmatmul.mubr.bf16.gmra.mrb[0].mxu0 %v1142
        %v2112 = vpop.f32.mrb[0].mxu0
        %v2113 = vadd.f32 0.0, %v2112
        %v2114 = vpop.f32.mrb[0].mxu0
        %v2115 = vadd.f32 0.0, %v2114
        %v2116 = vpop.f32.mrb[0].mxu0
        %v2117 = vadd.f32 0.0, %v2116
        %v2118 = vpop.f32.mrb[0].mxu0
        %v2119 = vadd.f32 0.0, %v2118
        %2120 = vmatprep.mubr.bf16.mxu0 %v1207
        %2121 = vmatmul.mubr.bf16.gmra.mrb[0].mxu0 %v1143
        %v2122 = vpop.f32.mrb[0].mxu0
        %v2123 = vadd.f32 0.0, %v2122
        %v2124 = vpop.f32.mrb[0].mxu0
        %v2125 = vadd.f32 0.0, %v2124
        %v2126 = vpop.f32.mrb[0].mxu0
        %v2127 = vadd.f32 0.0, %v2126
        %v2128 = vpop.f32.mrb[0].mxu0
        %v2129 = vadd.f32 0.0, %v2128
        %2130 = vmatprep.mubr.bf16.mxu0 %v1208
        %2131 = vmatmul.mubr.bf16.gmra.mrb[0].mxu0 %v1144
        %v2132 = vpop.f32.mrb[0].mxu0
        %v2133 = vadd.f32 0.0, %v2132
        %v2134 = vpop.f32.mrb[0].mxu0
        %v2135 = vadd.f32 0.0, %v2134
        %v2136 = vpop.f32.mrb[0].mxu0
        %v2137 = vadd.f32 0.0, %v2136
        %v2138 = vpop.f32.mrb[0].mxu0
        %v2139 = vadd.f32 0.0, %v2138
        %2140 = vmatprep.mubr.bf16.mxu0 %v1209
        %2141 = vmatmul.mubr.bf16.gmra.mrb[0].mxu0 %v1145
        %v2142 = vpop.f32.mrb[0].mxu0
        %v2143 = vadd.f32 0.0, %v2142
        %v2144 = vpop.f32.mrb[0].mxu0
        %v2145 = vadd.f32 0.0, %v2144
        %v2146 = vpop.f32.mrb[0].mxu0
        %v2147 = vadd.f32 0.0, %v2146
        %v2148 = vpop.f32.mrb[0].mxu0
        %v2149 = vadd.f32 0.0, %v2148
        %2150 = vmatprep.mubr.bf16.mxu0 %v1210
        %2151 = vmatmul.mubr.bf16.gmra.mrb[0].mxu0 %v1146
        %v2152 = vpop.f32.mrb[0].mxu0
        %v2153 = vadd.f32 0.0, %v2152
        %v2154 = vpop.f32.mrb[0].mxu0
        %v2155 = vadd.f32 0.0, %v2154
        %v2156 = vpop.f32.mrb[0].mxu0
        %v2157 = vadd.f32 0.0, %v2156
        %v2158 = vpop.f32.mrb[0].mxu0
        %v2159 = vadd.f32 0.0, %v2158
        %2160 = vmatprep.mubr.bf16.mxu0 %v1211
        %2161 = vmatmul.mubr.bf16.gmra.mrb[0].mxu0 %v1147
        %v2162 = vpop.f32.mrb[0].mxu0
        %v2163 = vadd.f32 0.0, %v2162
        %v2164 = vpop.f32.mrb[0].mxu0
        %v2165 = vadd.f32 0.0, %v2164
        %v2166 = vpop.f32.mrb[0].mxu0
        %v2167 = vadd.f32 0.0, %v2166
        %v2168 = vpop.f32.mrb[0].mxu0
        %v2169 = vadd.f32 0.0, %v2168
        %2170 = vmatprep.mubr.bf16.mxu0 %v1212
        %2171 = vmatmul.mubr.bf16.gmra.mrb[0].mxu0 %v1148
        %v2172 = vpop.f32.mrb[0].mxu0
        %v2173 = vadd.f32 0.0, %v2172
        %v2174 = vpop.f32.mrb[0].mxu0
        %v2175 = vadd.f32 0.0, %v2174
        %v2176 = vpop.f32.mrb[0].mxu0
        %v2177 = vadd.f32 0.0, %v2176
        %v2178 = vpop.f32.mrb[0].mxu0
        %v2179 = vadd.f32 0.0, %v2178
        %2180 = vmatprep.mubr.bf16.mxu0 %v1213
        %2181 = vmatmul.mubr.bf16.gmra.mrb[0].mxu0 %v1149
        %v2182 = vpop.f32.mrb[0].mxu0
        %v2183 = vadd.f32 0.0, %v2182
        %v2184 = vpop.f32.mrb[0].mxu0
        %v2185 = vadd.f32 0.0, %v2184
        %v2186 = vpop.f32.mrb[0].mxu0
        %v2187 = vadd.f32 0.0, %v2186
        %v2188 = vpop.f32.mrb[0].mxu0
        %v2189 = vadd.f32 0.0, %v2188
        %2190 = vdwg.mxu0
        %2191 = vmatprep.subr.bf16.mxu0 %v1871
        %2192 = vmatpush1.bf16.msra.mxu0 %v1870
        %2193 = vmatprep.subr.bf16.mxu0 %v1875
        %2194 = vmatpush1.bf16.msra.mxu0 %v1874
        %2195 = vmatprep.subr.bf16.mxu0 %v1879
        %2196 = vmatpush1.bf16.msra.mxu0 %v1878
        %2197 = vmatprep.subr.bf16.mxu0 %v1883
        %2198 = vmatpush1.bf16.msra.mxu0 %v1882
        %2199 = vmatprep.subr.bf16.mxu0 %v1887
        %2200 = vmatpush1.bf16.msra.mxu0 %v1886
        %2201 = vmatprep.subr.bf16.mxu0 %v1891
        %2202 = vmatpush1.bf16.msra.mxu0 %v1890
        %2203 = vmatprep.subr.bf16.mxu0 %v1895
        %2204 = vmatpush1.bf16.msra.mxu0 %v1894
        %2205 = vmatprep.subr.bf16.mxu0 %v1899
        %2206 = vmatpush1.bf16.msra.mxu0 %v1898
        %2207 = vmatprep.subr.bf16.mxu0 0
        %2208 = vmatpush1.bf16.msra.mxu0 0
        %2209 = vmatprep.subr.bf16.mxu0 0
        %2210 = vmatpush1.bf16.msra.mxu0 0
        %2211 = vmatprep.subr.bf16.mxu0 0
        %2212 = vmatpush1.bf16.msra.mxu0 0
        %2213 = vmatprep.subr.bf16.mxu0 0
        %2214 = vmatpush1.bf16.msra.mxu0 0
        %2215 = vmatprep.subr.bf16.mxu0 0
        %2216 = vmatpush1.bf16.msra.mxu0 0
        %2217 = vmatprep.subr.bf16.mxu0 0
        %2218 = vmatpush1.bf16.msra.mxu0 0
        %2219 = vmatprep.subr.bf16.mxu0 0
        %2220 = vmatpush1.bf16.msra.mxu0 0
        %2221 = vmatprep.subr.bf16.mxu0 0
        %2222 = vmatpush1.bf16.msra.mxu0 0
        %2223 = vmatprep.mubr.bf16.mxu0 0
        %2224 = vmatmul.mubr.bf16.gmra.mrb[0].mxu0 %v1262
        %v2225 = vpop.f32.mrb[0].mxu0
        %v2226 = vadd.f32 %v2033, %v2225
        %v2227 = vpop.f32.mrb[0].mxu0
        %v2228 = vadd.f32 %v2035, %v2227
        %v2229 = vpop.f32.mrb[0].mxu0
        %v2230 = vadd.f32 %v2037, %v2229
        %v2231 = vpop.f32.mrb[0].mxu0
        %v2232 = vadd.f32 %v2039, %v2231
        %2233 = vmatprep.mubr.bf16.mxu0 0
        %2234 = vmatmul.mubr.bf16.gmra.mrb[0].mxu0 %v1263
        %v2235 = vpop.f32.mrb[0].mxu0
        %v2236 = vadd.f32 %v2043, %v2235
        %v2237 = vpop.f32.mrb[0].mxu0
        %v2238 = vadd.f32 %v2045, %v2237
        %v2239 = vpop.f32.mrb[0].mxu0
        %v2240 = vadd.f32 %v2047, %v2239
        %v2241 = vpop.f32.mrb[0].mxu0
        %v2242 = vadd.f32 %v2049, %v2241
        %2243 = vmatprep.mubr.bf16.mxu0 0
        %2244 = vmatmul.mubr.bf16.gmra.mrb[0].mxu0 %v1264
        %v2245 = vpop.f32.mrb[0].mxu0
        %v2246 = vadd.f32 %v2053, %v2245
        %v2247 = vpop.f32.mrb[0].mxu0
        %v2248 = vadd.f32 %v2055, %v2247
        %v2249 = vpop.f32.mrb[0].mxu0
        %v2250 = vadd.f32 %v2057, %v2249
        %v2251 = vpop.f32.mrb[0].mxu0
        %v2252 = vadd.f32 %v2059, %v2251
        %2253 = vmatprep.mubr.bf16.mxu0 0
        %2254 = vmatmul.mubr.bf16.gmra.mrb[0].mxu0 %v1265
        %v2255 = vpop.f32.mrb[0].mxu0
        %v2256 = vadd.f32 %v2063, %v2255
        %v2257 = vpop.f32.mrb[0].mxu0
        %v2258 = vadd.f32 %v2065, %v2257
        %v2259 = vpop.f32.mrb[0].mxu0
        %v2260 = vadd.f32 %v2067, %v2259
        %v2261 = vpop.f32.mrb[0].mxu0
        %v2262 = vadd.f32 %v2069, %v2261
        %2263 = vmatprep.mubr.bf16.mxu0 0
        %2264 = vmatmul.mubr.bf16.gmra.mrb[0].mxu0 %v1266
        %v2265 = vpop.f32.mrb[0].mxu0
        %v2266 = vadd.f32 %v2073, %v2265
        %v2267 = vpop.f32.mrb[0].mxu0
        %v2268 = vadd.f32 %v2075, %v2267
        %v2269 = vpop.f32.mrb[0].mxu0
        %v2270 = vadd.f32 %v2077, %v2269
        %v2271 = vpop.f32.mrb[0].mxu0
        %v2272 = vadd.f32 %v2079, %v2271
        %2273 = vmatprep.mubr.bf16.mxu0 0
        %2274 = vmatmul.mubr.bf16.gmra.mrb[0].mxu0 %v1267
        %v2275 = vpop.f32.mrb[0].mxu0
        %v2276 = vadd.f32 %v2083, %v2275
        %v2277 = vpop.f32.mrb[0].mxu0
        %v2278 = vadd.f32 %v2085, %v2277
        %v2279 = vpop.f32.mrb[0].mxu0
        %v2280 = vadd.f32 %v2087, %v2279
        %v2281 = vpop.f32.mrb[0].mxu0
        %v2282 = vadd.f32 %v2089, %v2281
        %2283 = vmatprep.mubr.bf16.mxu0 0
        %2284 = vmatmul.mubr.bf16.gmra.mrb[0].mxu0 %v1268
        %v2285 = vpop.f32.mrb[0].mxu0
        %v2286 = vadd.f32 %v2093, %v2285
        %v2287 = vpop.f32.mrb[0].mxu0
        %v2288 = vadd.f32 %v2095, %v2287
        %v2289 = vpop.f32.mrb[0].mxu0
        %v2290 = vadd.f32 %v2097, %v2289
        %v2291 = vpop.f32.mrb[0].mxu0
        %v2292 = vadd.f32 %v2099, %v2291
        %2293 = vmatprep.mubr.bf16.mxu0 0
        %2294 = vmatmul.mubr.bf16.gmra.mrb[0].mxu0 %v1269
        %v2295 = vpop.f32.mrb[0].mxu0
        %v2296 = vadd.f32 %v2103, %v2295
        %v2297 = vpop.f32.mrb[0].mxu0
        %v2298 = vadd.f32 %v2105, %v2297
        %v2299 = vpop.f32.mrb[0].mxu0
        %v2300 = vadd.f32 %v2107, %v2299
        %v2301 = vpop.f32.mrb[0].mxu0
        %v2302 = vadd.f32 %v2109, %v2301
        %2303 = vmatprep.mubr.bf16.mxu0 0
        %2304 = vmatmul.mubr.bf16.gmra.mrb[0].mxu0 %v1270
        %v2305 = vpop.f32.mrb[0].mxu0
        %v2306 = vadd.f32 %v2113, %v2305
        %v2307 = vpop.f32.mrb[0].mxu0
        %v2308 = vadd.f32 %v2115, %v2307
        %v2309 = vpop.f32.mrb[0].mxu0
        %v2310 = vadd.f32 %v2117, %v2309
        %v2311 = vpop.f32.mrb[0].mxu0
        %v2312 = vadd.f32 %v2119, %v2311
        %2313 = vmatprep.mubr.bf16.mxu0 0
        %2314 = vmatmul.mubr.bf16.gmra.mrb[0].mxu0 %v1271
        %v2315 = vpop.f32.mrb[0].mxu0
        %v2316 = vadd.f32 %v2123, %v2315
        %v2317 = vpop.f32.mrb[0].mxu0
        %v2318 = vadd.f32 %v2125, %v2317
        %v2319 = vpop.f32.mrb[0].mxu0
        %v2320 = vadd.f32 %v2127, %v2319
        %v2321 = vpop.f32.mrb[0].mxu0
        %v2322 = vadd.f32 %v2129, %v2321
        %2323 = vmatprep.mubr.bf16.mxu0 0
        %2324 = vmatmul.mubr.bf16.gmra.mrb[0].mxu0 %v1272
        %v2325 = vpop.f32.mrb[0].mxu0
        %v2326 = vadd.f32 %v2133, %v2325
        %v2327 = vpop.f32.mrb[0].mxu0
        %v2328 = vadd.f32 %v2135, %v2327
        %v2329 = vpop.f32.mrb[0].mxu0
        %v2330 = vadd.f32 %v2137, %v2329
        %v2331 = vpop.f32.mrb[0].mxu0
        %v2332 = vadd.f32 %v2139, %v2331
        %2333 = vmatprep.mubr.bf16.mxu0 0
        %2334 = vmatmul.mubr.bf16.gmra.mrb[0].mxu0 %v1273
        %v2335 = vpop.f32.mrb[0].mxu0
        %v2336 = vadd.f32 %v2143, %v2335
        %v2337 = vpop.f32.mrb[0].mxu0
        %v2338 = vadd.f32 %v2145, %v2337
        %v2339 = vpop.f32.mrb[0].mxu0
        %v2340 = vadd.f32 %v2147, %v2339
        %v2341 = vpop.f32.mrb[0].mxu0
        %v2342 = vadd.f32 %v2149, %v2341
        %2343 = vmatprep.mubr.bf16.mxu0 0
        %2344 = vmatmul.mubr.bf16.gmra.mrb[0].mxu0 %v1274
        %v2345 = vpop.f32.mrb[0].mxu0
        %v2346 = vadd.f32 %v2153, %v2345
        %v2347 = vpop.f32.mrb[0].mxu0
        %v2348 = vadd.f32 %v2155, %v2347
        %v2349 = vpop.f32.mrb[0].mxu0
        %v2350 = vadd.f32 %v2157, %v2349
        %v2351 = vpop.f32.mrb[0].mxu0
        %v2352 = vadd.f32 %v2159, %v2351
        %2353 = vmatprep.mubr.bf16.mxu0 0
        %2354 = vmatmul.mubr.bf16.gmra.mrb[0].mxu0 %v1275
        %v2355 = vpop.f32.mrb[0].mxu0
        %v2356 = vadd.f32 %v2163, %v2355
        %v2357 = vpop.f32.mrb[0].mxu0
        %v2358 = vadd.f32 %v2165, %v2357
        %v2359 = vpop.f32.mrb[0].mxu0
        %v2360 = vadd.f32 %v2167, %v2359
        %v2361 = vpop.f32.mrb[0].mxu0
        %v2362 = vadd.f32 %v2169, %v2361
        %2363 = vmatprep.mubr.bf16.mxu0 0
        %2364 = vmatmul.mubr.bf16.gmra.mrb[0].mxu0 %v1276
        %v2365 = vpop.f32.mrb[0].mxu0
        %v2366 = vadd.f32 %v2173, %v2365
        %v2367 = vpop.f32.mrb[0].mxu0
        %v2368 = vadd.f32 %v2175, %v2367
        %v2369 = vpop.f32.mrb[0].mxu0
        %v2370 = vadd.f32 %v2177, %v2369
        %v2371 = vpop.f32.mrb[0].mxu0
        %v2372 = vadd.f32 %v2179, %v2371
        %2373 = vmatprep.mubr.bf16.mxu0 0
        %2374 = vmatmul.mubr.bf16.gmra.mrb[0].mxu0 %v1277
        %v2375 = vpop.f32.mrb[0].mxu0
        %v2376 = vadd.f32 %v2183, %v2375
        %v2377 = vpop.f32.mrb[0].mxu0
        %v2378 = vadd.f32 %v2185, %v2377
        %v2379 = vpop.f32.mrb[0].mxu0
        %v2380 = vadd.f32 %v2187, %v2379
        %v2381 = vpop.f32.mrb[0].mxu0
        %v2382 = vadd.f32 %v2189, %v2381
        %2383 = vdwg.mxu0
        %2384 = vmatprep.subr.bf16.mxu0 %v1809
        %2385 = vmatpush1.bf16.msra.mxu0 %v1808
        %2386 = vmatprep.subr.bf16.mxu0 %v1813
        %2387 = vmatpush1.bf16.msra.mxu0 %v1812
        %2388 = vmatprep.subr.bf16.mxu0 %v1817
        %2389 = vmatpush1.bf16.msra.mxu0 %v1816
        %2390 = vmatprep.subr.bf16.mxu0 %v1821
        %2391 = vmatpush1.bf16.msra.mxu0 %v1820
        %2392 = vmatprep.subr.bf16.mxu0 %v1825
        %2393 = vmatpush1.bf16.msra.mxu0 %v1824
        %2394 = vmatprep.subr.bf16.mxu0 %v1829
        %2395 = vmatpush1.bf16.msra.mxu0 %v1828
        %2396 = vmatprep.subr.bf16.mxu0 %v1833
        %2397 = vmatpush1.bf16.msra.mxu0 %v1832
        %2398 = vmatprep.subr.bf16.mxu0 %v1837
        %2399 = vmatpush1.bf16.msra.mxu0 %v1836
        %2400 = vmatprep.subr.bf16.mxu0 %v1841
        %2401 = vmatpush1.bf16.msra.mxu0 %v1840
        %2402 = vmatprep.subr.bf16.mxu0 %v1845
        %2403 = vmatpush1.bf16.msra.mxu0 %v1844
        %2404 = vmatprep.subr.bf16.mxu0 %v1849
        %2405 = vmatpush1.bf16.msra.mxu0 %v1848
        %2406 = vmatprep.subr.bf16.mxu0 %v1853
        %2407 = vmatpush1.bf16.msra.mxu0 %v1852
        %2408 = vmatprep.subr.bf16.mxu0 %v1857
        %2409 = vmatpush1.bf16.msra.mxu0 %v1856
        %2410 = vmatprep.subr.bf16.mxu0 %v1861
        %2411 = vmatpush1.bf16.msra.mxu0 %v1860
        %2412 = vmatprep.subr.bf16.mxu0 %v1865
        %2413 = vmatpush1.bf16.msra.mxu0 %v1864
        %2414 = vmatprep.subr.bf16.mxu0 %v1869
        %2415 = vmatpush1.bf16.msra.mxu0 %v1868
        %2416 = vmatprep.mubr.bf16.mxu0 %v1198
        %2417 = vmatmul.mubr.bf16.gmra.mrb[0].mxu0 %v1134
        %v2418 = vpop.f32.mrb[0].mxu0
        %v2419 = vadd.f32 0.0, %v2418
        %v2420 = vpop.f32.mrb[0].mxu0
        %v2421 = vadd.f32 0.0, %v2420
        %v2422 = vpop.f32.mrb[0].mxu0
        %v2423 = vadd.f32 0.0, %v2422
        %v2424 = vpop.f32.mrb[0].mxu0
        %v2425 = vadd.f32 0.0, %v2424
        %2426 = vmatprep.mubr.bf16.mxu0 %v1199
        %2427 = vmatmul.mubr.bf16.gmra.mrb[0].mxu0 %v1135
        %v2428 = vpop.f32.mrb[0].mxu0
        %v2429 = vadd.f32 0.0, %v2428
        %v2430 = vpop.f32.mrb[0].mxu0
        %v2431 = vadd.f32 0.0, %v2430
        %v2432 = vpop.f32.mrb[0].mxu0
        %v2433 = vadd.f32 0.0, %v2432
        %v2434 = vpop.f32.mrb[0].mxu0
        %v2435 = vadd.f32 0.0, %v2434
        %2436 = vmatprep.mubr.bf16.mxu0 %v1200
        %2437 = vmatmul.mubr.bf16.gmra.mrb[0].mxu0 %v1136
        %v2438 = vpop.f32.mrb[0].mxu0
        %v2439 = vadd.f32 0.0, %v2438
        %v2440 = vpop.f32.mrb[0].mxu0
        %v2441 = vadd.f32 0.0, %v2440
        %v2442 = vpop.f32.mrb[0].mxu0
        %v2443 = vadd.f32 0.0, %v2442
        %v2444 = vpop.f32.mrb[0].mxu0
        %v2445 = vadd.f32 0.0, %v2444
        %2446 = vmatprep.mubr.bf16.mxu0 %v1201
        %2447 = vmatmul.mubr.bf16.gmra.mrb[0].mxu0 %v1137
        %v2448 = vpop.f32.mrb[0].mxu0
        %v2449 = vadd.f32 0.0, %v2448
        %v2450 = vpop.f32.mrb[0].mxu0
        %v2451 = vadd.f32 0.0, %v2450
        %v2452 = vpop.f32.mrb[0].mxu0
        %v2453 = vadd.f32 0.0, %v2452
        %v2454 = vpop.f32.mrb[0].mxu0
        %v2455 = vadd.f32 0.0, %v2454
        %2456 = vmatprep.mubr.bf16.mxu0 %v1202
        %2457 = vmatmul.mubr.bf16.gmra.mrb[0].mxu0 %v1138
        %v2458 = vpop.f32.mrb[0].mxu0
        %v2459 = vadd.f32 0.0, %v2458
        %v2460 = vpop.f32.mrb[0].mxu0
        %v2461 = vadd.f32 0.0, %v2460
        %v2462 = vpop.f32.mrb[0].mxu0
        %v2463 = vadd.f32 0.0, %v2462
        %v2464 = vpop.f32.mrb[0].mxu0
        %v2465 = vadd.f32 0.0, %v2464
        %2466 = vmatprep.mubr.bf16.mxu0 %v1203
        %2467 = vmatmul.mubr.bf16.gmra.mrb[0].mxu0 %v1139
        %v2468 = vpop.f32.mrb[0].mxu0
        %v2469 = vadd.f32 0.0, %v2468
        %v2470 = vpop.f32.mrb[0].mxu0
        %v2471 = vadd.f32 0.0, %v2470
        %v2472 = vpop.f32.mrb[0].mxu0
        %v2473 = vadd.f32 0.0, %v2472
        %v2474 = vpop.f32.mrb[0].mxu0
        %v2475 = vadd.f32 0.0, %v2474
        %2476 = vmatprep.mubr.bf16.mxu0 %v1204
        %2477 = vmatmul.mubr.bf16.gmra.mrb[0].mxu0 %v1140
        %v2478 = vpop.f32.mrb[0].mxu0
        %v2479 = vadd.f32 0.0, %v2478
        %v2480 = vpop.f32.mrb[0].mxu0
        %v2481 = vadd.f32 0.0, %v2480
        %v2482 = vpop.f32.mrb[0].mxu0
        %v2483 = vadd.f32 0.0, %v2482
        %v2484 = vpop.f32.mrb[0].mxu0
        %v2485 = vadd.f32 0.0, %v2484
        %2486 = vmatprep.mubr.bf16.mxu0 %v1205
        %2487 = vmatmul.mubr.bf16.gmra.mrb[0].mxu0 %v1141
        %v2488 = vpop.f32.mrb[0].mxu0
        %v2489 = vadd.f32 0.0, %v2488
        %v2490 = vpop.f32.mrb[0].mxu0
        %v2491 = vadd.f32 0.0, %v2490
        %v2492 = vpop.f32.mrb[0].mxu0
        %v2493 = vadd.f32 0.0, %v2492
        %v2494 = vpop.f32.mrb[0].mxu0
        %v2495 = vadd.f32 0.0, %v2494
        %2496 = vmatprep.mubr.bf16.mxu0 %v1206
        %2497 = vmatmul.mubr.bf16.gmra.mrb[0].mxu0 %v1142
        %v2498 = vpop.f32.mrb[0].mxu0
        %v2499 = vadd.f32 0.0, %v2498
        %v2500 = vpop.f32.mrb[0].mxu0
        %v2501 = vadd.f32 0.0, %v2500
        %v2502 = vpop.f32.mrb[0].mxu0
        %v2503 = vadd.f32 0.0, %v2502
        %v2504 = vpop.f32.mrb[0].mxu0
        %v2505 = vadd.f32 0.0, %v2504
        %2506 = vmatprep.mubr.bf16.mxu0 %v1207
        %2507 = vmatmul.mubr.bf16.gmra.mrb[0].mxu0 %v1143
        %v2508 = vpop.f32.mrb[0].mxu0
        %v2509 = vadd.f32 0.0, %v2508
        %v2510 = vpop.f32.mrb[0].mxu0
        %v2511 = vadd.f32 0.0, %v2510
        %v2512 = vpop.f32.mrb[0].mxu0
        %v2513 = vadd.f32 0.0, %v2512
        %v2514 = vpop.f32.mrb[0].mxu0
        %v2515 = vadd.f32 0.0, %v2514
        %2516 = vmatprep.mubr.bf16.mxu0 %v1208
        %2517 = vmatmul.mubr.bf16.gmra.mrb[0].mxu0 %v1144
        %v2518 = vpop.f32.mrb[0].mxu0
        %v2519 = vadd.f32 0.0, %v2518
        %v2520 = vpop.f32.mrb[0].mxu0
        %v2521 = vadd.f32 0.0, %v2520
        %v2522 = vpop.f32.mrb[0].mxu0
        %v2523 = vadd.f32 0.0, %v2522
        %v2524 = vpop.f32.mrb[0].mxu0
        %v2525 = vadd.f32 0.0, %v2524
        %2526 = vmatprep.mubr.bf16.mxu0 %v1209
        %2527 = vmatmul.mubr.bf16.gmra.mrb[0].mxu0 %v1145
        %v2528 = vpop.f32.mrb[0].mxu0
        %v2529 = vadd.f32 0.0, %v2528
        %v2530 = vpop.f32.mrb[0].mxu0
        %v2531 = vadd.f32 0.0, %v2530
        %v2532 = vpop.f32.mrb[0].mxu0
        %v2533 = vadd.f32 0.0, %v2532
        %v2534 = vpop.f32.mrb[0].mxu0
        %v2535 = vadd.f32 0.0, %v2534
        %2536 = vmatprep.mubr.bf16.mxu0 %v1210
        %2537 = vmatmul.mubr.bf16.gmra.mrb[0].mxu0 %v1146
        %v2538 = vpop.f32.mrb[0].mxu0
        %v2539 = vadd.f32 0.0, %v2538
        %v2540 = vpop.f32.mrb[0].mxu0
        %v2541 = vadd.f32 0.0, %v2540
        %v2542 = vpop.f32.mrb[0].mxu0
        %v2543 = vadd.f32 0.0, %v2542
        %v2544 = vpop.f32.mrb[0].mxu0
        %v2545 = vadd.f32 0.0, %v2544
        %2546 = vmatprep.mubr.bf16.mxu0 %v1211
        %2547 = vmatmul.mubr.bf16.gmra.mrb[0].mxu0 %v1147
        %v2548 = vpop.f32.mrb[0].mxu0
        %v2549 = vadd.f32 0.0, %v2548
        %v2550 = vpop.f32.mrb[0].mxu0
        %v2551 = vadd.f32 0.0, %v2550
        %v2552 = vpop.f32.mrb[0].mxu0
        %v2553 = vadd.f32 0.0, %v2552
        %v2554 = vpop.f32.mrb[0].mxu0
        %v2555 = vadd.f32 0.0, %v2554
        %2556 = vmatprep.mubr.bf16.mxu0 %v1212
        %2557 = vmatmul.mubr.bf16.gmra.mrb[0].mxu0 %v1148
        %v2558 = vpop.f32.mrb[0].mxu0
        %v2559 = vadd.f32 0.0, %v2558
        %v2560 = vpop.f32.mrb[0].mxu0
        %v2561 = vadd.f32 0.0, %v2560
        %v2562 = vpop.f32.mrb[0].mxu0
        %v2563 = vadd.f32 0.0, %v2562
        %v2564 = vpop.f32.mrb[0].mxu0
        %v2565 = vadd.f32 0.0, %v2564
        %2566 = vmatprep.mubr.bf16.mxu0 %v1213
        %2567 = vmatmul.mubr.bf16.gmra.mrb[0].mxu0 %v1149
        %v2568 = vpop.f32.mrb[0].mxu0
        %v2569 = vadd.f32 0.0, %v2568
        %v2570 = vpop.f32.mrb[0].mxu0
        %v2571 = vadd.f32 0.0, %v2570
        %v2572 = vpop.f32.mrb[0].mxu0
        %v2573 = vadd.f32 0.0, %v2572
        %v2574 = vpop.f32.mrb[0].mxu0
        %v2575 = vadd.f32 0.0, %v2574
        %2576 = vdwg.mxu0
        %2577 = vmatprep.subr.bf16.mxu0 %v1873
        %2578 = vmatpush1.bf16.msra.mxu0 %v1872
        %2579 = vmatprep.subr.bf16.mxu0 %v1877
        %2580 = vmatpush1.bf16.msra.mxu0 %v1876
        %2581 = vmatprep.subr.bf16.mxu0 %v1881
        %2582 = vmatpush1.bf16.msra.mxu0 %v1880
        %2583 = vmatprep.subr.bf16.mxu0 %v1885
        %2584 = vmatpush1.bf16.msra.mxu0 %v1884
        %2585 = vmatprep.subr.bf16.mxu0 %v1889
        %2586 = vmatpush1.bf16.msra.mxu0 %v1888
        %2587 = vmatprep.subr.bf16.mxu0 %v1893
        %2588 = vmatpush1.bf16.msra.mxu0 %v1892
        %2589 = vmatprep.subr.bf16.mxu0 %v1897
        %2590 = vmatpush1.bf16.msra.mxu0 %v1896
        %2591 = vmatprep.subr.bf16.mxu0 %v1901
        %2592 = vmatpush1.bf16.msra.mxu0 %v1900
        %2593 = vmatprep.subr.bf16.mxu0 0
        %2594 = vmatpush1.bf16.msra.mxu0 0
        %2595 = vmatprep.subr.bf16.mxu0 0
        %2596 = vmatpush1.bf16.msra.mxu0 0
        %2597 = vmatprep.subr.bf16.mxu0 0
        %2598 = vmatpush1.bf16.msra.mxu0 0
        %2599 = vmatprep.subr.bf16.mxu0 0
        %2600 = vmatpush1.bf16.msra.mxu0 0
        %2601 = vmatprep.subr.bf16.mxu0 0
        %2602 = vmatpush1.bf16.msra.mxu0 0
        %2603 = vmatprep.subr.bf16.mxu0 0
        %2604 = vmatpush1.bf16.msra.mxu0 0
        %2605 = vmatprep.subr.bf16.mxu0 0
        %2606 = vmatpush1.bf16.msra.mxu0 0
        %2607 = vmatprep.subr.bf16.mxu0 0
        %2608 = vmatpush1.bf16.msra.mxu0 0
        %2609 = vmatprep.mubr.bf16.mxu0 0
        %2610 = vmatmul.mubr.bf16.gmra.mrb[0].mxu0 %v1262
        %v2611 = vpop.f32.mrb[0].mxu0
        %v2612 = vadd.f32 %v2419, %v2611
        %v2613 = vpop.f32.mrb[0].mxu0
        %v2614 = vadd.f32 %v2421, %v2613
        %v2615 = vpop.f32.mrb[0].mxu0
        %v2616 = vadd.f32 %v2423, %v2615
        %v2617 = vpop.f32.mrb[0].mxu0
        %v2618 = vadd.f32 %v2425, %v2617
        %2619 = vmatprep.mubr.bf16.mxu0 0
        %2620 = vmatmul.mubr.bf16.gmra.mrb[0].mxu0 %v1263
        %v2621 = vpop.f32.mrb[0].mxu0
        %v2622 = vadd.f32 %v2429, %v2621
        %v2623 = vpop.f32.mrb[0].mxu0
        %v2624 = vadd.f32 %v2431, %v2623
        %v2625 = vpop.f32.mrb[0].mxu0
        %v2626 = vadd.f32 %v2433, %v2625
        %v2627 = vpop.f32.mrb[0].mxu0
        %v2628 = vadd.f32 %v2435, %v2627
        %2629 = vmatprep.mubr.bf16.mxu0 0
        %2630 = vmatmul.mubr.bf16.gmra.mrb[0].mxu0 %v1264
        %v2631 = vpop.f32.mrb[0].mxu0
        %v2632 = vadd.f32 %v2439, %v2631
        %v2633 = vpop.f32.mrb[0].mxu0
        %v2634 = vadd.f32 %v2441, %v2633
        %v2635 = vpop.f32.mrb[0].mxu0
        %v2636 = vadd.f32 %v2443, %v2635
        %v2637 = vpop.f32.mrb[0].mxu0
        %v2638 = vadd.f32 %v2445, %v2637
        %2639 = vmatprep.mubr.bf16.mxu0 0
        %2640 = vmatmul.mubr.bf16.gmra.mrb[0].mxu0 %v1265
        %v2641 = vpop.f32.mrb[0].mxu0
        %v2642 = vadd.f32 %v2449, %v2641
        %v2643 = vpop.f32.mrb[0].mxu0
        %v2644 = vadd.f32 %v2451, %v2643
        %v2645 = vpop.f32.mrb[0].mxu0
        %v2646 = vadd.f32 %v2453, %v2645
        %v2647 = vpop.f32.mrb[0].mxu0
        %v2648 = vadd.f32 %v2455, %v2647
        %2649 = vmatprep.mubr.bf16.mxu0 0
        %2650 = vmatmul.mubr.bf16.gmra.mrb[0].mxu0 %v1266
        %v2651 = vpop.f32.mrb[0].mxu0
        %v2652 = vadd.f32 %v2459, %v2651
        %v2653 = vpop.f32.mrb[0].mxu0
        %v2654 = vadd.f32 %v2461, %v2653
        %v2655 = vpop.f32.mrb[0].mxu0
        %v2656 = vadd.f32 %v2463, %v2655
        %v2657 = vpop.f32.mrb[0].mxu0
        %v2658 = vadd.f32 %v2465, %v2657
        %2659 = vmatprep.mubr.bf16.mxu0 0
        %2660 = vmatmul.mubr.bf16.gmra.mrb[0].mxu0 %v1267
        %v2661 = vpop.f32.mrb[0].mxu0
        %v2662 = vadd.f32 %v2469, %v2661
        %v2663 = vpop.f32.mrb[0].mxu0
        %v2664 = vadd.f32 %v2471, %v2663
        %v2665 = vpop.f32.mrb[0].mxu0
        %v2666 = vadd.f32 %v2473, %v2665
        %v2667 = vpop.f32.mrb[0].mxu0
        %v2668 = vadd.f32 %v2475, %v2667
        %2669 = vmatprep.mubr.bf16.mxu0 0
        %2670 = vmatmul.mubr.bf16.gmra.mrb[0].mxu0 %v1268
        %v2671 = vpop.f32.mrb[0].mxu0
        %v2672 = vadd.f32 %v2479, %v2671
        %v2673 = vpop.f32.mrb[0].mxu0
        %v2674 = vadd.f32 %v2481, %v2673
        %v2675 = vpop.f32.mrb[0].mxu0
        %v2676 = vadd.f32 %v2483, %v2675
        %v2677 = vpop.f32.mrb[0].mxu0
        %v2678 = vadd.f32 %v2485, %v2677
        %2679 = vmatprep.mubr.bf16.mxu0 0
        %2680 = vmatmul.mubr.bf16.gmra.mrb[0].mxu0 %v1269
        %v2681 = vpop.f32.mrb[0].mxu0
        %v2682 = vadd.f32 %v2489, %v2681
        %v2683 = vpop.f32.mrb[0].mxu0
        %v2684 = vadd.f32 %v2491, %v2683
        %v2685 = vpop.f32.mrb[0].mxu0
        %v2686 = vadd.f32 %v2493, %v2685
        %v2687 = vpop.f32.mrb[0].mxu0
        %v2688 = vadd.f32 %v2495, %v2687
        %2689 = vmatprep.mubr.bf16.mxu0 0
        %2690 = vmatmul.mubr.bf16.gmra.mrb[0].mxu0 %v1270
        %v2691 = vpop.f32.mrb[0].mxu0
        %v2692 = vadd.f32 %v2499, %v2691
        %v2693 = vpop.f32.mrb[0].mxu0
        %v2694 = vadd.f32 %v2501, %v2693
        %v2695 = vpop.f32.mrb[0].mxu0
        %v2696 = vadd.f32 %v2503, %v2695
        %v2697 = vpop.f32.mrb[0].mxu0
        %v2698 = vadd.f32 %v2505, %v2697
        %2699 = vmatprep.mubr.bf16.mxu0 0
        %2700 = vmatmul.mubr.bf16.gmra.mrb[0].mxu0 %v1271
        %v2701 = vpop.f32.mrb[0].mxu0
        %v2702 = vadd.f32 %v2509, %v2701
        %v2703 = vpop.f32.mrb[0].mxu0
        %v2704 = vadd.f32 %v2511, %v2703
        %v2705 = vpop.f32.mrb[0].mxu0
        %v2706 = vadd.f32 %v2513, %v2705
        %v2707 = vpop.f32.mrb[0].mxu0
        %v2708 = vadd.f32 %v2515, %v2707
        %2709 = vmatprep.mubr.bf16.mxu0 0
        %2710 = vmatmul.mubr.bf16.gmra.mrb[0].mxu0 %v1272
        %v2711 = vpop.f32.mrb[0].mxu0
        %v2712 = vadd.f32 %v2519, %v2711
        %v2713 = vpop.f32.mrb[0].mxu0
        %v2714 = vadd.f32 %v2521, %v2713
        %v2715 = vpop.f32.mrb[0].mxu0
        %v2716 = vadd.f32 %v2523, %v2715
        %v2717 = vpop.f32.mrb[0].mxu0
        %v2718 = vadd.f32 %v2525, %v2717
        %2719 = vmatprep.mubr.bf16.mxu0 0
        %2720 = vmatmul.mubr.bf16.gmra.mrb[0].mxu0 %v1273
        %v2721 = vpop.f32.mrb[0].mxu0
        %v2722 = vadd.f32 %v2529, %v2721
        %v2723 = vpop.f32.mrb[0].mxu0
        %v2724 = vadd.f32 %v2531, %v2723
        %v2725 = vpop.f32.mrb[0].mxu0
        %v2726 = vadd.f32 %v2533, %v2725
        %v2727 = vpop.f32.mrb[0].mxu0
        %v2728 = vadd.f32 %v2535, %v2727
        %2729 = vmatprep.mubr.bf16.mxu0 0
        %2730 = vmatmul.mubr.bf16.gmra.mrb[0].mxu0 %v1274
        %v2731 = vpop.f32.mrb[0].mxu0
        %v2732 = vadd.f32 %v2539, %v2731
        %v2733 = vpop.f32.mrb[0].mxu0
        %v2734 = vadd.f32 %v2541, %v2733
        %v2735 = vpop.f32.mrb[0].mxu0
        %v2736 = vadd.f32 %v2543, %v2735
        %v2737 = vpop.f32.mrb[0].mxu0
        %v2738 = vadd.f32 %v2545, %v2737
        %2739 = vmatprep.mubr.bf16.mxu0 0
        %2740 = vmatmul.mubr.bf16.gmra.mrb[0].mxu0 %v1275
        %v2741 = vpop.f32.mrb[0].mxu0
        %v2742 = vadd.f32 %v2549, %v2741
        %v2743 = vpop.f32.mrb[0].mxu0
        %v2744 = vadd.f32 %v2551, %v2743
        %v2745 = vpop.f32.mrb[0].mxu0
        %v2746 = vadd.f32 %v2553, %v2745
        %v2747 = vpop.f32.mrb[0].mxu0
        %v2748 = vadd.f32 %v2555, %v2747
        %2749 = vmatprep.mubr.bf16.mxu0 0
        %2750 = vmatmul.mubr.bf16.gmra.mrb[0].mxu0 %v1276
        %v2751 = vpop.f32.mrb[0].mxu0
        %v2752 = vadd.f32 %v2559, %v2751
        %v2753 = vpop.f32.mrb[0].mxu0
        %v2754 = vadd.f32 %v2561, %v2753
        %v2755 = vpop.f32.mrb[0].mxu0
        %v2756 = vadd.f32 %v2563, %v2755
        %v2757 = vpop.f32.mrb[0].mxu0
        %v2758 = vadd.f32 %v2565, %v2757
        %2759 = vmatprep.mubr.bf16.mxu0 0
        %2760 = vmatmul.mubr.bf16.gmra.mrb[0].mxu0 %v1277
        %v2761 = vpop.f32.mrb[0].mxu0
        %v2762 = vadd.f32 %v2569, %v2761
        %v2763 = vpop.f32.mrb[0].mxu0
        %v2764 = vadd.f32 %v2571, %v2763
        %v2765 = vpop.f32.mrb[0].mxu0
        %v2766 = vadd.f32 %v2573, %v2765
        %v2767 = vpop.f32.mrb[0].mxu0
        %v2768 = vadd.f32 %v2575, %v2767
        %2769 = vdwg.mxu0
        %v2770 = vadd.f32 %v1294, %v2226
        %v2771 = vadd.f32 %v1295, %v2228
        %v2772 = vadd.f32 %v1296, %v2612
        %v2773 = vadd.f32 %v1297, %v2614
        %v2774 = vadd.f32 %v1298, %v2230
        %v2775 = vadd.f32 %v1299, %v2232
        %v2776 = vadd.f32 %v1300, %v2616
        %v2777 = vadd.f32 %v1301, %v2618
        %v2778 = vadd.f32 %v1302, %v2236
        %v2779 = vadd.f32 %v1303, %v2238
        %v2780 = vadd.f32 %v1304, %v2622
        %v2781 = vadd.f32 %v1305, %v2624
        %v2782 = vadd.f32 %v1306, %v2240
        %v2783 = vadd.f32 %v1307, %v2242
        %v2784 = vadd.f32 %v1308, %v2626
        %v2785 = vadd.f32 %v1309, %v2628
        %v2786 = vadd.f32 %v1310, %v2246
        %v2787 = vadd.f32 %v1311, %v2248
        %v2788 = vadd.f32 %v1312, %v2632
        %v2789 = vadd.f32 %v1313, %v2634
        %v2790 = vadd.f32 %v1314, %v2250
        %v2791 = vadd.f32 %v1315, %v2252
        %v2792 = vadd.f32 %v1316, %v2636
        %v2793 = vadd.f32 %v1317, %v2638
        %v2794 = vadd.f32 %v1318, %v2256
        %v2795 = vadd.f32 %v1319, %v2258
        %v2796 = vadd.f32 %v1320, %v2642
        %v2797 = vadd.f32 %v1321, %v2644
        %v2798 = vadd.f32 %v1322, %v2260
        %v2799 = vadd.f32 %v1323, %v2262
        %v2800 = vadd.f32 %v1324, %v2646
        %v2801 = vadd.f32 %v1325, %v2648
        %v2802 = vadd.f32 %v1326, %v2266
        %v2803 = vadd.f32 %v1327, %v2268
        %v2804 = vadd.f32 %v1328, %v2652
        %v2805 = vadd.f32 %v1329, %v2654
        %v2806 = vadd.f32 %v1330, %v2270
        %v2807 = vadd.f32 %v1331, %v2272
        %v2808 = vadd.f32 %v1332, %v2656
        %v2809 = vadd.f32 %v1333, %v2658
        %v2810 = vadd.f32 %v1334, %v2276
        %v2811 = vadd.f32 %v1335, %v2278
        %v2812 = vadd.f32 %v1336, %v2662
        %v2813 = vadd.f32 %v1337, %v2664
        %v2814 = vadd.f32 %v1338, %v2280
        %v2815 = vadd.f32 %v1339, %v2282
        %v2816 = vadd.f32 %v1340, %v2666
        %v2817 = vadd.f32 %v1341, %v2668
        %v2818 = vadd.f32 %v1342, %v2286
        %v2819 = vadd.f32 %v1343, %v2288
        %v2820 = vadd.f32 %v1344, %v2672
        %v2821 = vadd.f32 %v1345, %v2674
        %v2822 = vadd.f32 %v1346, %v2290
        %v2823 = vadd.f32 %v1347, %v2292
        %v2824 = vadd.f32 %v1348, %v2676
        %v2825 = vadd.f32 %v1349, %v2678
        %v2826 = vadd.f32 %v1350, %v2296
        %v2827 = vadd.f32 %v1351, %v2298
        %v2828 = vadd.f32 %v1352, %v2682
        %v2829 = vadd.f32 %v1353, %v2684
        %v2830 = vadd.f32 %v1354, %v2300
        %v2831 = vadd.f32 %v1355, %v2302
        %v2832 = vadd.f32 %v1356, %v2686
        %v2833 = vadd.f32 %v1357, %v2688
        %v2834 = vadd.f32 %v1358, %v2306
        %v2835 = vadd.f32 %v1359, %v2308
        %v2836 = vadd.f32 %v1360, %v2692
        %v2837 = vadd.f32 %v1361, %v2694
        %v2838 = vadd.f32 %v1362, %v2310
        %v2839 = vadd.f32 %v1363, %v2312
        %v2840 = vadd.f32 %v1364, %v2696
        %v2841 = vadd.f32 %v1365, %v2698
        %v2842 = vadd.f32 %v1366, %v2316
        %v2843 = vadd.f32 %v1367, %v2318
        %v2844 = vadd.f32 %v1368, %v2702
        %v2845 = vadd.f32 %v1369, %v2704
        %v2846 = vadd.f32 %v1370, %v2320
        %v2847 = vadd.f32 %v1371, %v2322
        %v2848 = vadd.f32 %v1372, %v2706
        %v2849 = vadd.f32 %v1373, %v2708
        %v2850 = vadd.f32 %v1374, %v2326
        %v2851 = vadd.f32 %v1375, %v2328
        %v2852 = vadd.f32 %v1376, %v2712
        %v2853 = vadd.f32 %v1377, %v2714
        %v2854 = vadd.f32 %v1378, %v2330
        %v2855 = vadd.f32 %v1379, %v2332
        %v2856 = vadd.f32 %v1380, %v2716
        %v2857 = vadd.f32 %v1381, %v2718
        %v2858 = vadd.f32 %v1382, %v2336
        %v2859 = vadd.f32 %v1383, %v2338
        %v2860 = vadd.f32 %v1384, %v2722
        %v2861 = vadd.f32 %v1385, %v2724
        %v2862 = vadd.f32 %v1386, %v2340
        %v2863 = vadd.f32 %v1387, %v2342
        %v2864 = vadd.f32 %v1388, %v2726
        %v2865 = vadd.f32 %v1389, %v2728
        %v2866 = vadd.f32 %v1390, %v2346
        %v2867 = vadd.f32 %v1391, %v2348
        %v2868 = vadd.f32 %v1392, %v2732
        %v2869 = vadd.f32 %v1393, %v2734
        %v2870 = vadd.f32 %v1394, %v2350
        %v2871 = vadd.f32 %v1395, %v2352
        %v2872 = vadd.f32 %v1396, %v2736
        %v2873 = vadd.f32 %v1397, %v2738
        %v2874 = vadd.f32 %v1398, %v2356
        %v2875 = vadd.f32 %v1399, %v2358
        %v2876 = vadd.f32 %v1400, %v2742
        %v2877 = vadd.f32 %v1401, %v2744
        %v2878 = vadd.f32 %v1402, %v2360
        %v2879 = vadd.f32 %v1403, %v2362
        %v2880 = vadd.f32 %v1404, %v2746
        %v2881 = vadd.f32 %v1405, %v2748
        %v2882 = vadd.f32 %v1406, %v2366
        %v2883 = vadd.f32 %v1407, %v2368
        %v2884 = vadd.f32 %v1408, %v2752
        %v2885 = vadd.f32 %v1409, %v2754
        %v2886 = vadd.f32 %v1410, %v2370
        %v2887 = vadd.f32 %v1411, %v2372
        %v2888 = vadd.f32 %v1412, %v2756
        %v2889 = vadd.f32 %v1413, %v2758
        %v2890 = vadd.f32 %v1414, %v2376
        %v2891 = vadd.f32 %v1415, %v2378
        %v2892 = vadd.f32 %v1416, %v2762
        %v2893 = vadd.f32 %v1417, %v2764
        %v2894 = vadd.f32 %v1418, %v2380
        %v2895 = vadd.f32 %v1419, %v2382
        %v2896 = vadd.f32 %v1420, %v2766
        %v2897 = vadd.f32 %v1421, %v2768
        %2898 = vst [vmem:[#allocation2] sm:$0xff] %v2770
        %2899 = vst [vmem:[#allocation2 + $0x8] sm:$0xff] %v2771
        %2900 = vst [vmem:[#allocation2 + $0x10] sm:$0xff] %v2772
        %2901 = vst [vmem:[#allocation2 + $0x18] sm:$0xff] %v2773
        %2902 = vst [vmem:[#allocation2 + $0x20] sm:$0xff] %v2774
        %2903 = vst [vmem:[#allocation2 + $0x28] sm:$0xff] %v2775
        %2904 = vst [vmem:[#allocation2 + $0x30] sm:$0xff] %v2776
        %2905 = vst [vmem:[#allocation2 + $0x38] sm:$0xff] %v2777
        %2906 = vst [vmem:[#allocation2 + $0x40] sm:$0xff] %v2778
        %2907 = vst [vmem:[#allocation2 + $0x48] sm:$0xff] %v2779
        %2908 = vst [vmem:[#allocation2 + $0x50] sm:$0xff] %v2780
        %2909 = vst [vmem:[#allocation2 + $0x58] sm:$0xff] %v2781
        %2910 = vst [vmem:[#allocation2 + $0x60] sm:$0xff] %v2782
        %2911 = vst [vmem:[#allocation2 + $0x68] sm:$0xff] %v2783
        %2912 = vst [vmem:[#allocation2 + $0x70] sm:$0xff] %v2784
        %2913 = vst [vmem:[#allocation2 + $0x78] sm:$0xff] %v2785
        %2914 = vst [vmem:[#allocation2 + $0x80] sm:$0xff] %v2786
        %2915 = vst [vmem:[#allocation2 + $0x88] sm:$0xff] %v2787
        %2916 = vst [vmem:[#allocation2 + $0x90] sm:$0xff] %v2788
        %2917 = vst [vmem:[#allocation2 + $0x98] sm:$0xff] %v2789
        %2918 = vst [vmem:[#allocation2 + $0xa0] sm:$0xff] %v2790
        %2919 = vst [vmem:[#allocation2 + $0xa8] sm:$0xff] %v2791
        %2920 = vst [vmem:[#allocation2 + $0xb0] sm:$0xff] %v2792
        %2921 = vst [vmem:[#allocation2 + $0xb8] sm:$0xff] %v2793
        %2922 = vst [vmem:[#allocation2 + $0xc0] sm:$0xff] %v2794
        %2923 = vst [vmem:[#allocation2 + $0xc8] sm:$0xff] %v2795
        %2924 = vst [vmem:[#allocation2 + $0xd0] sm:$0xff] %v2796
        %2925 = vst [vmem:[#allocation2 + $0xd8] sm:$0xff] %v2797
        %2926 = vst [vmem:[#allocation2 + $0xe0] sm:$0xff] %v2798
        %2927 = vst [vmem:[#allocation2 + $0xe8] sm:$0xff] %v2799
        %2928 = vst [vmem:[#allocation2 + $0xf0] sm:$0xff] %v2800
        %2929 = vst [vmem:[#allocation2 + $0xf8] sm:$0xff] %v2801
        %2930 = vst [vmem:[#allocation2 + $0x100] sm:$0xff] %v2802
        %2931 = vst [vmem:[#allocation2 + $0x108] sm:$0xff] %v2803
        %2932 = vst [vmem:[#allocation2 + $0x110] sm:$0xff] %v2804
        %2933 = vst [vmem:[#allocation2 + $0x118] sm:$0xff] %v2805
        %2934 = vst [vmem:[#allocation2 + $0x120] sm:$0xff] %v2806
        %2935 = vst [vmem:[#allocation2 + $0x128] sm:$0xff] %v2807
        %2936 = vst [vmem:[#allocation2 + $0x130] sm:$0xff] %v2808
        %2937 = vst [vmem:[#allocation2 + $0x138] sm:$0xff] %v2809
        %2938 = vst [vmem:[#allocation2 + $0x140] sm:$0xff] %v2810
        %2939 = vst [vmem:[#allocation2 + $0x148] sm:$0xff] %v2811
        %2940 = vst [vmem:[#allocation2 + $0x150] sm:$0xff] %v2812
        %2941 = vst [vmem:[#allocation2 + $0x158] sm:$0xff] %v2813
        %2942 = vst [vmem:[#allocation2 + $0x160] sm:$0xff] %v2814
        %2943 = vst [vmem:[#allocation2 + $0x168] sm:$0xff] %v2815
        %2944 = vst [vmem:[#allocation2 + $0x170] sm:$0xff] %v2816
        %2945 = vst [vmem:[#allocation2 + $0x178] sm:$0xff] %v2817
        %2946 = vst [vmem:[#allocation2 + $0x180] sm:$0xff] %v2818
        %2947 = vst [vmem:[#allocation2 + $0x188] sm:$0xff] %v2819
        %2948 = vst [vmem:[#allocation2 + $0x190] sm:$0xff] %v2820
        %2949 = vst [vmem:[#allocation2 + $0x198] sm:$0xff] %v2821
        %2950 = vst [vmem:[#allocation2 + $0x1a0] sm:$0xff] %v2822
        %2951 = vst [vmem:[#allocation2 + $0x1a8] sm:$0xff] %v2823
        %2952 = vst [vmem:[#allocation2 + $0x1b0] sm:$0xff] %v2824
        %2953 = vst [vmem:[#allocation2 + $0x1b8] sm:$0xff] %v2825
        %2954 = vst [vmem:[#allocation2 + $0x1c0] sm:$0xff] %v2826
        %2955 = vst [vmem:[#allocation2 + $0x1c8] sm:$0xff] %v2827
        %2956 = vst [vmem:[#allocation2 + $0x1d0] sm:$0xff] %v2828
        %2957 = vst [vmem:[#allocation2 + $0x1d8] sm:$0xff] %v2829
        %2958 = vst [vmem:[#allocation2 + $0x1e0] sm:$0xff] %v2830
        %2959 = vst [vmem:[#allocation2 + $0x1e8] sm:$0xff] %v2831
        %2960 = vst [vmem:[#allocation2 + $0x1f0] sm:$0xff] %v2832
        %2961 = vst [vmem:[#allocation2 + $0x1f8] sm:$0xff] %v2833
        %2962 = vst [vmem:[#allocation2 + $0x200] sm:$0xff] %v2834
        %2963 = vst [vmem:[#allocation2 + $0x208] sm:$0xff] %v2835
        %2964 = vst [vmem:[#allocation2 + $0x210] sm:$0xff] %v2836
        %2965 = vst [vmem:[#allocation2 + $0x218] sm:$0xff] %v2837
        %2966 = vst [vmem:[#allocation2 + $0x220] sm:$0xff] %v2838
        %2967 = vst [vmem:[#allocation2 + $0x228] sm:$0xff] %v2839
        %2968 = vst [vmem:[#allocation2 + $0x230] sm:$0xff] %v2840
        %2969 = vst [vmem:[#allocation2 + $0x238] sm:$0xff] %v2841
        %2970 = vst [vmem:[#allocation2 + $0x240] sm:$0xff] %v2842
        %2971 = vst [vmem:[#allocation2 + $0x248] sm:$0xff] %v2843
        %2972 = vst [vmem:[#allocation2 + $0x250] sm:$0xff] %v2844
        %2973 = vst [vmem:[#allocation2 + $0x258] sm:$0xff] %v2845
        %2974 = vst [vmem:[#allocation2 + $0x260] sm:$0xff] %v2846
        %2975 = vst [vmem:[#allocation2 + $0x268] sm:$0xff] %v2847
        %2976 = vst [vmem:[#allocation2 + $0x270] sm:$0xff] %v2848
        %2977 = vst [vmem:[#allocation2 + $0x278] sm:$0xff] %v2849
        %2978 = vst [vmem:[#allocation2 + $0x280] sm:$0xff] %v2850
        %2979 = vst [vmem:[#allocation2 + $0x288] sm:$0xff] %v2851
        %2980 = vst [vmem:[#allocation2 + $0x290] sm:$0xff] %v2852
        %2981 = vst [vmem:[#allocation2 + $0x298] sm:$0xff] %v2853
        %2982 = vst [vmem:[#allocation2 + $0x2a0] sm:$0xff] %v2854
        %2983 = vst [vmem:[#allocation2 + $0x2a8] sm:$0xff] %v2855
        %2984 = vst [vmem:[#allocation2 + $0x2b0] sm:$0xff] %v2856
        %2985 = vst [vmem:[#allocation2 + $0x2b8] sm:$0xff] %v2857
        %2986 = vst [vmem:[#allocation2 + $0x2c0] sm:$0xff] %v2858
        %2987 = vst [vmem:[#allocation2 + $0x2c8] sm:$0xff] %v2859
        %2988 = vst [vmem:[#allocation2 + $0x2d0] sm:$0xff] %v2860
        %2989 = vst [vmem:[#allocation2 + $0x2d8] sm:$0xff] %v2861
        %2990 = vst [vmem:[#allocation2 + $0x2e0] sm:$0xff] %v2862
        %2991 = vst [vmem:[#allocation2 + $0x2e8] sm:$0xff] %v2863
        %2992 = vst [vmem:[#allocation2 + $0x2f0] sm:$0xff] %v2864
        %2993 = vst [vmem:[#allocation2 + $0x2f8] sm:$0xff] %v2865
        %2994 = vst [vmem:[#allocation2 + $0x300] sm:$0xff] %v2866
        %2995 = vst [vmem:[#allocation2 + $0x308] sm:$0xff] %v2867
        %2996 = vst [vmem:[#allocation2 + $0x310] sm:$0xff] %v2868
        %2997 = vst [vmem:[#allocation2 + $0x318] sm:$0xff] %v2869
        %2998 = vst [vmem:[#allocation2 + $0x320] sm:$0xff] %v2870
        %2999 = vst [vmem:[#allocation2 + $0x328] sm:$0xff] %v2871
        %3000 = vst [vmem:[#allocation2 + $0x330] sm:$0xff] %v2872
        %3001 = vst [vmem:[#allocation2 + $0x338] sm:$0xff] %v2873
        %3002 = vst [vmem:[#allocation2 + $0x340] sm:$0xff] %v2874
        %3003 = vst [vmem:[#allocation2 + $0x348] sm:$0xff] %v2875
        %3004 = vst [vmem:[#allocation2 + $0x350] sm:$0xff] %v2876
        %3005 = vst [vmem:[#allocation2 + $0x358] sm:$0xff] %v2877
        %3006 = vst [vmem:[#allocation2 + $0x360] sm:$0xff] %v2878
        %3007 = vst [vmem:[#allocation2 + $0x368] sm:$0xff] %v2879
        %3008 = vst [vmem:[#allocation2 + $0x370] sm:$0xff] %v2880
        %3009 = vst [vmem:[#allocation2 + $0x378] sm:$0xff] %v2881
        %3010 = vst [vmem:[#allocation2 + $0x380] sm:$0xff] %v2882
        %3011 = vst [vmem:[#allocation2 + $0x388] sm:$0xff] %v2883
        %3012 = vst [vmem:[#allocation2 + $0x390] sm:$0xff] %v2884
        %3013 = vst [vmem:[#allocation2 + $0x398] sm:$0xff] %v2885
        %3014 = vst [vmem:[#allocation2 + $0x3a0] sm:$0xff] %v2886
        %3015 = vst [vmem:[#allocation2 + $0x3a8] sm:$0xff] %v2887
        %3016 = vst [vmem:[#allocation2 + $0x3b0] sm:$0xff] %v2888
        %3017 = vst [vmem:[#allocation2 + $0x3b8] sm:$0xff] %v2889
        %3018 = vst [vmem:[#allocation2 + $0x3c0] sm:$0xff] %v2890
        %3019 = vst [vmem:[#allocation2 + $0x3c8] sm:$0xff] %v2891
        %3020 = vst [vmem:[#allocation2 + $0x3d0] sm:$0xff] %v2892
        %3021 = vst [vmem:[#allocation2 + $0x3d8] sm:$0xff] %v2893
        %3022 = vst [vmem:[#allocation2 + $0x3e0] sm:$0xff] %v2894
        %3023 = vst [vmem:[#allocation2 + $0x3e8] sm:$0xff] %v2895
        %3024 = vst [vmem:[#allocation2 + $0x3f0] sm:$0xff] %v2896
        %3025 = vst [vmem:[#allocation2 + $0x3f8] sm:$0xff] %v2897
        %s3026 = scalar_lea.vmem %s267, 12 [#allocation3]
        %v3027 = vld [vmem:[%s3026] sm:$0xf]
        %v3028 = vld [vmem:[%s3026 + $0x4] sm:$0xf]
        %v3029 = vld [vmem:[%s3026 + $0xc] sm:$0xf]
        %v3030 = vld [vmem:[%s3026 + $0x10] sm:$0xf]
        %v3031 = vld [vmem:[%s3026 + $0x18] sm:$0xf]
        %v3032 = vld [vmem:[%s3026 + $0x1c] sm:$0xf]
        %v3033 = vld [vmem:[%s3026 + $0x24] sm:$0xf]
        %v3034 = vld [vmem:[%s3026 + $0x28] sm:$0xf]
        %v3035 = vld [vmem:[%s3026 + $0x30] sm:$0xf]
        %v3036 = vld [vmem:[%s3026 + $0x34] sm:$0xf]
        %v3037 = vld [vmem:[%s3026 + $0x3c] sm:$0xf]
        %v3038 = vld [vmem:[%s3026 + $0x40] sm:$0xf]
        %v3039 = vld [vmem:[%s3026 + $0x48] sm:$0xf]
        %v3040 = vld [vmem:[%s3026 + $0x4c] sm:$0xf]
        %v3041 = vld [vmem:[%s3026 + $0x54] sm:$0xf]
        %v3042 = vld [vmem:[%s3026 + $0x58] sm:$0xf]
        %v3043 = vld [vmem:[%s3026 + $0x60] sm:$0xf]
        %v3044 = vld [vmem:[%s3026 + $0x64] sm:$0xf]
        %v3045 = vld [vmem:[%s3026 + $0x6c] sm:$0xf]
        %v3046 = vld [vmem:[%s3026 + $0x70] sm:$0xf]
        %v3047 = vld [vmem:[%s3026 + $0x78] sm:$0xf]
        %v3048 = vld [vmem:[%s3026 + $0x7c] sm:$0xf]
        %v3049 = vld [vmem:[%s3026 + $0x84] sm:$0xf]
        %v3050 = vld [vmem:[%s3026 + $0x88] sm:$0xf]
        %v3051 = vld [vmem:[%s3026 + $0x90] sm:$0xf]
        %v3052 = vld [vmem:[%s3026 + $0x94] sm:$0xf]
        %v3053 = vld [vmem:[%s3026 + $0x9c] sm:$0xf]
        %v3054 = vld [vmem:[%s3026 + $0xa0] sm:$0xf]
        %v3055 = vld [vmem:[%s3026 + $0xa8] sm:$0xf]
        %v3056 = vld [vmem:[%s3026 + $0xac] sm:$0xf]
        %v3057 = vld [vmem:[%s3026 + $0xb4] sm:$0xf]
        %v3058 = vld [vmem:[%s3026 + $0xb8] sm:$0xf]
        %v3059 = vld [vmem:[%s3026 + $0x8] sm:$0x1]
        %v3060 = vld [vmem:[%s3026 + $0x14] sm:$0x1]
        %v3061 = vld [vmem:[%s3026 + $0x20] sm:$0x1]
        %v3062 = vld [vmem:[%s3026 + $0x2c] sm:$0x1]
        %v3063 = vld [vmem:[%s3026 + $0x38] sm:$0x1]
        %v3064 = vld [vmem:[%s3026 + $0x44] sm:$0x1]
        %v3065 = vld [vmem:[%s3026 + $0x50] sm:$0x1]
        %v3066 = vld [vmem:[%s3026 + $0x5c] sm:$0x1]
        %v3067 = vld [vmem:[%s3026 + $0x68] sm:$0x1]
        %v3068 = vld [vmem:[%s3026 + $0x74] sm:$0x1]
        %v3069 = vld [vmem:[%s3026 + $0x80] sm:$0x1]
        %v3070 = vld [vmem:[%s3026 + $0x8c] sm:$0x1]
        %v3071 = vld [vmem:[%s3026 + $0x98] sm:$0x1]
        %v3072 = vld [vmem:[%s3026 + $0xa4] sm:$0x1]
        %v3073 = vld [vmem:[%s3026 + $0xb0] sm:$0x1]
        %v3074 = vld [vmem:[%s3026 + $0xbc] sm:$0x1]
        %v3076 = vshrl.u32 %v3027, 16
        %v3078 = vrot.slane %v3076, 4
        %v3079 = vshll.u32 %v3027, 16
        %v3081 = vrot.slane %v3079, 5
        %v3082 = vor.u32 %v3078, %v3081
        %v3083 = vrot.slane %v3082, 4
        %v3085 = vshll.u32 %v3028, 16
        %v3087 = vrot.slane %v3085, 5
        %v3088 = vsel %vm522, %v3083, %v3087
        %v3089 = vshrl.u32 %v3028, 16
        %v3091 = vrot.slane %v3089, 4
        %v3092 = vor.u32 %v3091, %v3087
        %v3093 = vrot.slane %v3092, 4
        %v3095 = vshll.u32 %v3059, 16
        %v3097 = vrot.slane %v3095, 5
        %v3098 = vsel %vm522, %v3093, %v3097
        %v3100 = vshrl.u32 %v3029, 16
        %v3102 = vrot.slane %v3100, 4
        %v3103 = vshll.u32 %v3029, 16
        %v3105 = vrot.slane %v3103, 5
        %v3106 = vor.u32 %v3102, %v3105
        %v3107 = vrot.slane %v3106, 4
        %v3109 = vshll.u32 %v3030, 16
        %v3111 = vrot.slane %v3109, 5
        %v3112 = vsel %vm522, %v3107, %v3111
        %v3113 = vshrl.u32 %v3030, 16
        %v3115 = vrot.slane %v3113, 4
        %v3116 = vor.u32 %v3115, %v3111
        %v3117 = vrot.slane %v3116, 4
        %v3119 = vshll.u32 %v3060, 16
        %v3121 = vrot.slane %v3119, 5
        %v3122 = vsel %vm522, %v3117, %v3121
        %v3124 = vshrl.u32 %v3031, 16
        %v3126 = vrot.slane %v3124, 4
        %v3127 = vshll.u32 %v3031, 16
        %v3129 = vrot.slane %v3127, 5
        %v3130 = vor.u32 %v3126, %v3129
        %v3131 = vrot.slane %v3130, 4
        %v3133 = vshll.u32 %v3032, 16
        %v3135 = vrot.slane %v3133, 5
        %v3136 = vsel %vm522, %v3131, %v3135
        %v3137 = vshrl.u32 %v3032, 16
        %v3139 = vrot.slane %v3137, 4
        %v3140 = vor.u32 %v3139, %v3135
        %v3141 = vrot.slane %v3140, 4
        %v3143 = vshll.u32 %v3061, 16
        %v3145 = vrot.slane %v3143, 5
        %v3146 = vsel %vm522, %v3141, %v3145
        %v3148 = vshrl.u32 %v3033, 16
        %v3150 = vrot.slane %v3148, 4
        %v3151 = vshll.u32 %v3033, 16
        %v3153 = vrot.slane %v3151, 5
        %v3154 = vor.u32 %v3150, %v3153
        %v3155 = vrot.slane %v3154, 4
        %v3157 = vshll.u32 %v3034, 16
        %v3159 = vrot.slane %v3157, 5
        %v3160 = vsel %vm522, %v3155, %v3159
        %v3161 = vshrl.u32 %v3034, 16
        %v3163 = vrot.slane %v3161, 4
        %v3164 = vor.u32 %v3163, %v3159
        %v3165 = vrot.slane %v3164, 4
        %v3167 = vshll.u32 %v3062, 16
        %v3169 = vrot.slane %v3167, 5
        %v3170 = vsel %vm522, %v3165, %v3169
        %v3172 = vshrl.u32 %v3035, 16
        %v3174 = vrot.slane %v3172, 4
        %v3175 = vshll.u32 %v3035, 16
        %v3177 = vrot.slane %v3175, 5
        %v3178 = vor.u32 %v3174, %v3177
        %v3179 = vrot.slane %v3178, 4
        %v3181 = vshll.u32 %v3036, 16
        %v3183 = vrot.slane %v3181, 5
        %v3184 = vsel %vm522, %v3179, %v3183
        %v3185 = vshrl.u32 %v3036, 16
        %v3187 = vrot.slane %v3185, 4
        %v3188 = vor.u32 %v3187, %v3183
        %v3189 = vrot.slane %v3188, 4
        %v3191 = vshll.u32 %v3063, 16
        %v3193 = vrot.slane %v3191, 5
        %v3194 = vsel %vm522, %v3189, %v3193
        %v3196 = vshrl.u32 %v3037, 16
        %v3198 = vrot.slane %v3196, 4
        %v3199 = vshll.u32 %v3037, 16
        %v3201 = vrot.slane %v3199, 5
        %v3202 = vor.u32 %v3198, %v3201
        %v3203 = vrot.slane %v3202, 4
        %v3205 = vshll.u32 %v3038, 16
        %v3207 = vrot.slane %v3205, 5
        %v3208 = vsel %vm522, %v3203, %v3207
        %v3209 = vshrl.u32 %v3038, 16
        %v3211 = vrot.slane %v3209, 4
        %v3212 = vor.u32 %v3211, %v3207
        %v3213 = vrot.slane %v3212, 4
        %v3215 = vshll.u32 %v3064, 16
        %v3217 = vrot.slane %v3215, 5
        %v3218 = vsel %vm522, %v3213, %v3217
        %v3220 = vshrl.u32 %v3039, 16
        %v3222 = vrot.slane %v3220, 4
        %v3223 = vshll.u32 %v3039, 16
        %v3225 = vrot.slane %v3223, 5
        %v3226 = vor.u32 %v3222, %v3225
        %v3227 = vrot.slane %v3226, 4
        %v3229 = vshll.u32 %v3040, 16
        %v3231 = vrot.slane %v3229, 5
        %v3232 = vsel %vm522, %v3227, %v3231
        %v3233 = vshrl.u32 %v3040, 16
        %v3235 = vrot.slane %v3233, 4
        %v3236 = vor.u32 %v3235, %v3231
        %v3237 = vrot.slane %v3236, 4
        %v3239 = vshll.u32 %v3065, 16
        %v3241 = vrot.slane %v3239, 5
        %v3242 = vsel %vm522, %v3237, %v3241
        %v3244 = vshrl.u32 %v3041, 16
        %v3246 = vrot.slane %v3244, 4
        %v3247 = vshll.u32 %v3041, 16
        %v3249 = vrot.slane %v3247, 5
        %v3250 = vor.u32 %v3246, %v3249
        %v3251 = vrot.slane %v3250, 4
        %v3253 = vshll.u32 %v3042, 16
        %v3255 = vrot.slane %v3253, 5
        %v3256 = vsel %vm522, %v3251, %v3255
        %v3257 = vshrl.u32 %v3042, 16
        %v3259 = vrot.slane %v3257, 4
        %v3260 = vor.u32 %v3259, %v3255
        %v3261 = vrot.slane %v3260, 4
        %v3263 = vshll.u32 %v3066, 16
        %v3265 = vrot.slane %v3263, 5
        %v3266 = vsel %vm522, %v3261, %v3265
        %v3268 = vshrl.u32 %v3043, 16
        %v3270 = vrot.slane %v3268, 4
        %v3271 = vshll.u32 %v3043, 16
        %v3273 = vrot.slane %v3271, 5
        %v3274 = vor.u32 %v3270, %v3273
        %v3275 = vrot.slane %v3274, 4
        %v3277 = vshll.u32 %v3044, 16
        %v3279 = vrot.slane %v3277, 5
        %v3280 = vsel %vm522, %v3275, %v3279
        %v3281 = vshrl.u32 %v3044, 16
        %v3283 = vrot.slane %v3281, 4
        %v3284 = vor.u32 %v3283, %v3279
        %v3285 = vrot.slane %v3284, 4
        %v3287 = vshll.u32 %v3067, 16
        %v3289 = vrot.slane %v3287, 5
        %v3290 = vsel %vm522, %v3285, %v3289
        %v3292 = vshrl.u32 %v3045, 16
        %v3294 = vrot.slane %v3292, 4
        %v3295 = vshll.u32 %v3045, 16
        %v3297 = vrot.slane %v3295, 5
        %v3298 = vor.u32 %v3294, %v3297
        %v3299 = vrot.slane %v3298, 4
        %v3301 = vshll.u32 %v3046, 16
        %v3303 = vrot.slane %v3301, 5
        %v3304 = vsel %vm522, %v3299, %v3303
        %v3305 = vshrl.u32 %v3046, 16
        %v3307 = vrot.slane %v3305, 4
        %v3308 = vor.u32 %v3307, %v3303
        %v3309 = vrot.slane %v3308, 4
        %v3311 = vshll.u32 %v3068, 16
        %v3313 = vrot.slane %v3311, 5
        %v3314 = vsel %vm522, %v3309, %v3313
        %v3316 = vshrl.u32 %v3047, 16
        %v3318 = vrot.slane %v3316, 4
        %v3319 = vshll.u32 %v3047, 16
        %v3321 = vrot.slane %v3319, 5
        %v3322 = vor.u32 %v3318, %v3321
        %v3323 = vrot.slane %v3322, 4
        %v3325 = vshll.u32 %v3048, 16
        %v3327 = vrot.slane %v3325, 5
        %v3328 = vsel %vm522, %v3323, %v3327
        %v3329 = vshrl.u32 %v3048, 16
        %v3331 = vrot.slane %v3329, 4
        %v3332 = vor.u32 %v3331, %v3327
        %v3333 = vrot.slane %v3332, 4
        %v3335 = vshll.u32 %v3069, 16
        %v3337 = vrot.slane %v3335, 5
        %v3338 = vsel %vm522, %v3333, %v3337
        %v3340 = vshrl.u32 %v3049, 16
        %v3342 = vrot.slane %v3340, 4
        %v3343 = vshll.u32 %v3049, 16
        %v3345 = vrot.slane %v3343, 5
        %v3346 = vor.u32 %v3342, %v3345
        %v3347 = vrot.slane %v3346, 4
        %v3349 = vshll.u32 %v3050, 16
        %v3351 = vrot.slane %v3349, 5
        %v3352 = vsel %vm522, %v3347, %v3351
        %v3353 = vshrl.u32 %v3050, 16
        %v3355 = vrot.slane %v3353, 4
        %v3356 = vor.u32 %v3355, %v3351
        %v3357 = vrot.slane %v3356, 4
        %v3359 = vshll.u32 %v3070, 16
        %v3361 = vrot.slane %v3359, 5
        %v3362 = vsel %vm522, %v3357, %v3361
        %v3364 = vshrl.u32 %v3051, 16
        %v3366 = vrot.slane %v3364, 4
        %v3367 = vshll.u32 %v3051, 16
        %v3369 = vrot.slane %v3367, 5
        %v3370 = vor.u32 %v3366, %v3369
        %v3371 = vrot.slane %v3370, 4
        %v3373 = vshll.u32 %v3052, 16
        %v3375 = vrot.slane %v3373, 5
        %v3376 = vsel %vm522, %v3371, %v3375
        %v3377 = vshrl.u32 %v3052, 16
        %v3379 = vrot.slane %v3377, 4
        %v3380 = vor.u32 %v3379, %v3375
        %v3381 = vrot.slane %v3380, 4
        %v3383 = vshll.u32 %v3071, 16
        %v3385 = vrot.slane %v3383, 5
        %v3386 = vsel %vm522, %v3381, %v3385
        %v3388 = vshrl.u32 %v3053, 16
        %v3390 = vrot.slane %v3388, 4
        %v3391 = vshll.u32 %v3053, 16
        %v3393 = vrot.slane %v3391, 5
        %v3394 = vor.u32 %v3390, %v3393
        %v3395 = vrot.slane %v3394, 4
        %v3397 = vshll.u32 %v3054, 16
        %v3399 = vrot.slane %v3397, 5
        %v3400 = vsel %vm522, %v3395, %v3399
        %v3401 = vshrl.u32 %v3054, 16
        %v3403 = vrot.slane %v3401, 4
        %v3404 = vor.u32 %v3403, %v3399
        %v3405 = vrot.slane %v3404, 4
        %v3407 = vshll.u32 %v3072, 16
        %v3409 = vrot.slane %v3407, 5
        %v3410 = vsel %vm522, %v3405, %v3409
        %v3412 = vshrl.u32 %v3055, 16
        %v3414 = vrot.slane %v3412, 4
        %v3415 = vshll.u32 %v3055, 16
        %v3417 = vrot.slane %v3415, 5
        %v3418 = vor.u32 %v3414, %v3417
        %v3419 = vrot.slane %v3418, 4
        %v3421 = vshll.u32 %v3056, 16
        %v3423 = vrot.slane %v3421, 5
        %v3424 = vsel %vm522, %v3419, %v3423
        %v3425 = vshrl.u32 %v3056, 16
        %v3427 = vrot.slane %v3425, 4
        %v3428 = vor.u32 %v3427, %v3423
        %v3429 = vrot.slane %v3428, 4
        %v3431 = vshll.u32 %v3073, 16
        %v3433 = vrot.slane %v3431, 5
        %v3434 = vsel %vm522, %v3429, %v3433
        %v3436 = vshrl.u32 %v3057, 16
        %v3438 = vrot.slane %v3436, 4
        %v3439 = vshll.u32 %v3057, 16
        %v3441 = vrot.slane %v3439, 5
        %v3442 = vor.u32 %v3438, %v3441
        %v3443 = vrot.slane %v3442, 4
        %v3445 = vshll.u32 %v3058, 16
        %v3447 = vrot.slane %v3445, 5
        %v3448 = vsel %vm522, %v3443, %v3447
        %v3449 = vshrl.u32 %v3058, 16
        %v3451 = vrot.slane %v3449, 4
        %v3452 = vor.u32 %v3451, %v3447
        %v3453 = vrot.slane %v3452, 4
        %v3455 = vshll.u32 %v3074, 16
        %v3457 = vrot.slane %v3455, 5
        %v3458 = vsel %vm522, %v3453, %v3457
        %v3459 = vld [vmem:[%s3026] sm:$0xe]
        %v3460 = vld [vmem:[%s3026 + $0xc] sm:$0xe]
        %v3461 = vld [vmem:[%s3026 + $0x18] sm:$0xe]
        %v3462 = vld [vmem:[%s3026 + $0x24] sm:$0xe]
        %v3463 = vld [vmem:[%s3026 + $0x30] sm:$0xe]
        %v3464 = vld [vmem:[%s3026 + $0x3c] sm:$0xe]
        %v3465 = vld [vmem:[%s3026 + $0x48] sm:$0xe]
        %v3466 = vld [vmem:[%s3026 + $0x54] sm:$0xe]
        %v3467 = vld [vmem:[%s3026 + $0x60] sm:$0xe]
        %v3468 = vld [vmem:[%s3026 + $0x6c] sm:$0xe]
        %v3469 = vld [vmem:[%s3026 + $0x78] sm:$0xe]
        %v3470 = vld [vmem:[%s3026 + $0x84] sm:$0xe]
        %v3471 = vld [vmem:[%s3026 + $0x90] sm:$0xe]
        %v3472 = vld [vmem:[%s3026 + $0x9c] sm:$0xe]
        %v3473 = vld [vmem:[%s3026 + $0xa8] sm:$0xe]
        %v3474 = vld [vmem:[%s3026 + $0xb4] sm:$0xe]
        %v3523 = vrot.slane %v3459, 5
        %v3524 = vrot.slane %v3523, 4
        %v3525 = vrot.slane %v3028, 5
        %v3526 = vsel %vm973, %v3524, %v3525
        %v3527 = vrot.slane %v3525, 4
        %v3528 = vrot.slane %v3059, 5
        %v3529 = vsel %vm973, %v3527, %v3528
        %v3530 = vrot.slane %v3460, 5
        %v3531 = vrot.slane %v3530, 4
        %v3532 = vrot.slane %v3030, 5
        %v3533 = vsel %vm973, %v3531, %v3532
        %v3534 = vrot.slane %v3532, 4
        %v3535 = vrot.slane %v3060, 5
        %v3536 = vsel %vm973, %v3534, %v3535
        %v3537 = vrot.slane %v3461, 5
        %v3538 = vrot.slane %v3537, 4
        %v3539 = vrot.slane %v3032, 5
        %v3540 = vsel %vm973, %v3538, %v3539
        %v3541 = vrot.slane %v3539, 4
        %v3542 = vrot.slane %v3061, 5
        %v3543 = vsel %vm973, %v3541, %v3542
        %v3544 = vrot.slane %v3462, 5
        %v3545 = vrot.slane %v3544, 4
        %v3546 = vrot.slane %v3034, 5
        %v3547 = vsel %vm973, %v3545, %v3546
        %v3548 = vrot.slane %v3546, 4
        %v3549 = vrot.slane %v3062, 5
        %v3550 = vsel %vm973, %v3548, %v3549
        %v3551 = vrot.slane %v3463, 5
        %v3552 = vrot.slane %v3551, 4
        %v3553 = vrot.slane %v3036, 5
        %v3554 = vsel %vm973, %v3552, %v3553
        %v3555 = vrot.slane %v3553, 4
        %v3556 = vrot.slane %v3063, 5
        %v3557 = vsel %vm973, %v3555, %v3556
        %v3558 = vrot.slane %v3464, 5
        %v3559 = vrot.slane %v3558, 4
        %v3560 = vrot.slane %v3038, 5
        %v3561 = vsel %vm973, %v3559, %v3560
        %v3562 = vrot.slane %v3560, 4
        %v3563 = vrot.slane %v3064, 5
        %v3564 = vsel %vm973, %v3562, %v3563
        %v3565 = vrot.slane %v3465, 5
        %v3566 = vrot.slane %v3565, 4
        %v3567 = vrot.slane %v3040, 5
        %v3568 = vsel %vm973, %v3566, %v3567
        %v3569 = vrot.slane %v3567, 4
        %v3570 = vrot.slane %v3065, 5
        %v3571 = vsel %vm973, %v3569, %v3570
        %v3572 = vrot.slane %v3466, 5
        %v3573 = vrot.slane %v3572, 4
        %v3574 = vrot.slane %v3042, 5
        %v3575 = vsel %vm973, %v3573, %v3574
        %v3576 = vrot.slane %v3574, 4
        %v3577 = vrot.slane %v3066, 5
        %v3578 = vsel %vm973, %v3576, %v3577
        %v3579 = vrot.slane %v3467, 5
        %v3580 = vrot.slane %v3579, 4
        %v3581 = vrot.slane %v3044, 5
        %v3582 = vsel %vm973, %v3580, %v3581
        %v3583 = vrot.slane %v3581, 4
        %v3584 = vrot.slane %v3067, 5
        %v3585 = vsel %vm973, %v3583, %v3584
        %v3586 = vrot.slane %v3468, 5
        %v3587 = vrot.slane %v3586, 4
        %v3588 = vrot.slane %v3046, 5
        %v3589 = vsel %vm973, %v3587, %v3588
        %v3590 = vrot.slane %v3588, 4
        %v3591 = vrot.slane %v3068, 5
        %v3592 = vsel %vm973, %v3590, %v3591
        %v3593 = vrot.slane %v3469, 5
        %v3594 = vrot.slane %v3593, 4
        %v3595 = vrot.slane %v3048, 5
        %v3596 = vsel %vm973, %v3594, %v3595
        %v3597 = vrot.slane %v3595, 4
        %v3598 = vrot.slane %v3069, 5
        %v3599 = vsel %vm973, %v3597, %v3598
        %v3600 = vrot.slane %v3470, 5
        %v3601 = vrot.slane %v3600, 4
        %v3602 = vrot.slane %v3050, 5
        %v3603 = vsel %vm973, %v3601, %v3602
        %v3604 = vrot.slane %v3602, 4
        %v3605 = vrot.slane %v3070, 5
        %v3606 = vsel %vm973, %v3604, %v3605
        %v3607 = vrot.slane %v3471, 5
        %v3608 = vrot.slane %v3607, 4
        %v3609 = vrot.slane %v3052, 5
        %v3610 = vsel %vm973, %v3608, %v3609
        %v3611 = vrot.slane %v3609, 4
        %v3612 = vrot.slane %v3071, 5
        %v3613 = vsel %vm973, %v3611, %v3612
        %v3614 = vrot.slane %v3472, 5
        %v3615 = vrot.slane %v3614, 4
        %v3616 = vrot.slane %v3054, 5
        %v3617 = vsel %vm973, %v3615, %v3616
        %v3618 = vrot.slane %v3616, 4
        %v3619 = vrot.slane %v3072, 5
        %v3620 = vsel %vm973, %v3618, %v3619
        %v3621 = vrot.slane %v3473, 5
        %v3622 = vrot.slane %v3621, 4
        %v3623 = vrot.slane %v3056, 5
        %v3624 = vsel %vm973, %v3622, %v3623
        %v3625 = vrot.slane %v3623, 4
        %v3626 = vrot.slane %v3073, 5
        %v3627 = vsel %vm973, %v3625, %v3626
        %v3628 = vrot.slane %v3474, 5
        %v3629 = vrot.slane %v3628, 4
        %v3630 = vrot.slane %v3058, 5
        %v3631 = vsel %vm973, %v3629, %v3630
        %v3632 = vrot.slane %v3630, 4
        %v3633 = vrot.slane %v3074, 5
        %v3634 = vsel %vm973, %v3632, %v3633
        %v3651 = vunpack.c.l.b16 %v3027
        %v3652 = vunpack.c.l.b16 %v3028
        %v3653 = vunpack.c.l.b16 %v3029
        %v3654 = vunpack.c.l.b16 %v3030
        %v3655 = vunpack.c.l.b16 %v3031
        %v3656 = vunpack.c.l.b16 %v3032
        %v3657 = vunpack.c.l.b16 %v3033
        %v3658 = vunpack.c.l.b16 %v3034
        %v3659 = vunpack.c.l.b16 %v3035
        %v3660 = vunpack.c.l.b16 %v3036
        %v3661 = vunpack.c.l.b16 %v3037
        %v3662 = vunpack.c.l.b16 %v3038
        %v3663 = vunpack.c.l.b16 %v3039
        %v3664 = vunpack.c.l.b16 %v3040
        %v3665 = vunpack.c.l.b16 %v3041
        %v3666 = vunpack.c.l.b16 %v3042
        %v3667 = vunpack.c.l.b16 %v3043
        %v3668 = vunpack.c.l.b16 %v3044
        %v3669 = vunpack.c.l.b16 %v3045
        %v3670 = vunpack.c.l.b16 %v3046
        %v3671 = vunpack.c.l.b16 %v3047
        %v3672 = vunpack.c.l.b16 %v3048
        %v3673 = vunpack.c.l.b16 %v3049
        %v3674 = vunpack.c.l.b16 %v3050
        %v3675 = vunpack.c.l.b16 %v3051
        %v3676 = vunpack.c.l.b16 %v3052
        %v3677 = vunpack.c.l.b16 %v3053
        %v3678 = vunpack.c.l.b16 %v3054
        %v3679 = vunpack.c.l.b16 %v3055
        %v3680 = vunpack.c.l.b16 %v3056
        %v3681 = vunpack.c.l.b16 %v3057
        %v3682 = vunpack.c.l.b16 %v3058
        %v3683 = vpack.c.b16 %v3652, %v3651
        %v3684 = vpack.c.b16 %v3654, %v3653
        %v3685 = vpack.c.b16 %v3656, %v3655
        %v3686 = vpack.c.b16 %v3658, %v3657
        %v3687 = vpack.c.b16 %v3660, %v3659
        %v3688 = vpack.c.b16 %v3662, %v3661
        %v3689 = vpack.c.b16 %v3664, %v3663
        %v3690 = vpack.c.b16 %v3666, %v3665
        %v3691 = vpack.c.b16 %v3668, %v3667
        %v3692 = vpack.c.b16 %v3670, %v3669
        %v3693 = vpack.c.b16 %v3672, %v3671
        %v3694 = vpack.c.b16 %v3674, %v3673
        %v3695 = vpack.c.b16 %v3676, %v3675
        %v3696 = vpack.c.b16 %v3678, %v3677
        %v3697 = vpack.c.b16 %v3680, %v3679
        %v3698 = vpack.c.b16 %v3682, %v3681
        %v3715 = vunpack.c.l.b16 %v3088
        %v3716 = vunpack.c.l.b16 %v3098
        %v3717 = vunpack.c.l.b16 %v3112
        %v3718 = vunpack.c.l.b16 %v3122
        %v3719 = vunpack.c.l.b16 %v3136
        %v3720 = vunpack.c.l.b16 %v3146
        %v3721 = vunpack.c.l.b16 %v3160
        %v3722 = vunpack.c.l.b16 %v3170
        %v3723 = vunpack.c.l.b16 %v3184
        %v3724 = vunpack.c.l.b16 %v3194
        %v3725 = vunpack.c.l.b16 %v3208
        %v3726 = vunpack.c.l.b16 %v3218
        %v3727 = vunpack.c.l.b16 %v3232
        %v3728 = vunpack.c.l.b16 %v3242
        %v3729 = vunpack.c.l.b16 %v3256
        %v3730 = vunpack.c.l.b16 %v3266
        %v3731 = vunpack.c.l.b16 %v3280
        %v3732 = vunpack.c.l.b16 %v3290
        %v3733 = vunpack.c.l.b16 %v3304
        %v3734 = vunpack.c.l.b16 %v3314
        %v3735 = vunpack.c.l.b16 %v3328
        %v3736 = vunpack.c.l.b16 %v3338
        %v3737 = vunpack.c.l.b16 %v3352
        %v3738 = vunpack.c.l.b16 %v3362
        %v3739 = vunpack.c.l.b16 %v3376
        %v3740 = vunpack.c.l.b16 %v3386
        %v3741 = vunpack.c.l.b16 %v3400
        %v3742 = vunpack.c.l.b16 %v3410
        %v3743 = vunpack.c.l.b16 %v3424
        %v3744 = vunpack.c.l.b16 %v3434
        %v3745 = vunpack.c.l.b16 %v3448
        %v3746 = vunpack.c.l.b16 %v3458
        %v3747 = vpack.c.b16 %v3716, %v3715
        %v3748 = vpack.c.b16 %v3718, %v3717
        %v3749 = vpack.c.b16 %v3720, %v3719
        %v3750 = vpack.c.b16 %v3722, %v3721
        %v3751 = vpack.c.b16 %v3724, %v3723
        %v3752 = vpack.c.b16 %v3726, %v3725
        %v3753 = vpack.c.b16 %v3728, %v3727
        %v3754 = vpack.c.b16 %v3730, %v3729
        %v3755 = vpack.c.b16 %v3732, %v3731
        %v3756 = vpack.c.b16 %v3734, %v3733
        %v3757 = vpack.c.b16 %v3736, %v3735
        %v3758 = vpack.c.b16 %v3738, %v3737
        %v3759 = vpack.c.b16 %v3740, %v3739
        %v3760 = vpack.c.b16 %v3742, %v3741
        %v3761 = vpack.c.b16 %v3744, %v3743
        %v3762 = vpack.c.b16 %v3746, %v3745
        %v3779 = vunpack.c.l.b16 %v3526
        %v3780 = vunpack.c.l.b16 %v3529
        %v3781 = vunpack.c.l.b16 %v3533
        %v3782 = vunpack.c.l.b16 %v3536
        %v3783 = vunpack.c.l.b16 %v3540
        %v3784 = vunpack.c.l.b16 %v3543
        %v3785 = vunpack.c.l.b16 %v3547
        %v3786 = vunpack.c.l.b16 %v3550
        %v3787 = vunpack.c.l.b16 %v3554
        %v3788 = vunpack.c.l.b16 %v3557
        %v3789 = vunpack.c.l.b16 %v3561
        %v3790 = vunpack.c.l.b16 %v3564
        %v3791 = vunpack.c.l.b16 %v3568
        %v3792 = vunpack.c.l.b16 %v3571
        %v3793 = vunpack.c.l.b16 %v3575
        %v3794 = vunpack.c.l.b16 %v3578
        %v3795 = vunpack.c.l.b16 %v3582
        %v3796 = vunpack.c.l.b16 %v3585
        %v3797 = vunpack.c.l.b16 %v3589
        %v3798 = vunpack.c.l.b16 %v3592
        %v3799 = vunpack.c.l.b16 %v3596
        %v3800 = vunpack.c.l.b16 %v3599
        %v3801 = vunpack.c.l.b16 %v3603
        %v3802 = vunpack.c.l.b16 %v3606
        %v3803 = vunpack.c.l.b16 %v3610
        %v3804 = vunpack.c.l.b16 %v3613
        %v3805 = vunpack.c.l.b16 %v3617
        %v3806 = vunpack.c.l.b16 %v3620
        %v3807 = vunpack.c.l.b16 %v3624
        %v3808 = vunpack.c.l.b16 %v3627
        %v3809 = vunpack.c.l.b16 %v3631
        %v3810 = vunpack.c.l.b16 %v3634
        %v3811 = vpack.c.b16 %v3780, %v3779
        %v3812 = vpack.c.b16 %v3782, %v3781
        %v3813 = vpack.c.b16 %v3784, %v3783
        %v3814 = vpack.c.b16 %v3786, %v3785
        %v3815 = vpack.c.b16 %v3788, %v3787
        %v3816 = vpack.c.b16 %v3790, %v3789
        %v3817 = vpack.c.b16 %v3792, %v3791
        %v3818 = vpack.c.b16 %v3794, %v3793
        %v3819 = vpack.c.b16 %v3796, %v3795
        %v3820 = vpack.c.b16 %v3798, %v3797
        %v3821 = vpack.c.b16 %v3800, %v3799
        %v3822 = vpack.c.b16 %v3802, %v3801
        %v3823 = vpack.c.b16 %v3804, %v3803
        %v3824 = vpack.c.b16 %v3806, %v3805
        %v3825 = vpack.c.b16 %v3808, %v3807
        %v3826 = vpack.c.b16 %v3810, %v3809
        %v3843 = vld [vmem:[#allocation2] sm:$0xff]
        %v3844 = vld [vmem:[#allocation2 + $0x8] sm:$0xff]
        %v3845 = vld [vmem:[#allocation2 + $0x10] sm:$0xff]
        %v3846 = vld [vmem:[#allocation2 + $0x18] sm:$0xff]
        %v3847 = vld [vmem:[#allocation2 + $0x20] sm:$0xff]
        %v3848 = vld [vmem:[#allocation2 + $0x28] sm:$0xff]
        %v3849 = vld [vmem:[#allocation2 + $0x30] sm:$0xff]
        %v3850 = vld [vmem:[#allocation2 + $0x38] sm:$0xff]
        %v3851 = vld [vmem:[#allocation2 + $0x40] sm:$0xff]
        %v3852 = vld [vmem:[#allocation2 + $0x48] sm:$0xff]
        %v3853 = vld [vmem:[#allocation2 + $0x50] sm:$0xff]
        %v3854 = vld [vmem:[#allocation2 + $0x58] sm:$0xff]
        %v3855 = vld [vmem:[#allocation2 + $0x60] sm:$0xff]
        %v3856 = vld [vmem:[#allocation2 + $0x68] sm:$0xff]
        %v3857 = vld [vmem:[#allocation2 + $0x70] sm:$0xff]
        %v3858 = vld [vmem:[#allocation2 + $0x78] sm:$0xff]
        %v3859 = vld [vmem:[#allocation2 + $0x80] sm:$0xff]
        %v3860 = vld [vmem:[#allocation2 + $0x88] sm:$0xff]
        %v3861 = vld [vmem:[#allocation2 + $0x90] sm:$0xff]
        %v3862 = vld [vmem:[#allocation2 + $0x98] sm:$0xff]
        %v3863 = vld [vmem:[#allocation2 + $0xa0] sm:$0xff]
        %v3864 = vld [vmem:[#allocation2 + $0xa8] sm:$0xff]
        %v3865 = vld [vmem:[#allocation2 + $0xb0] sm:$0xff]
        %v3866 = vld [vmem:[#allocation2 + $0xb8] sm:$0xff]
        %v3867 = vld [vmem:[#allocation2 + $0xc0] sm:$0xff]
        %v3868 = vld [vmem:[#allocation2 + $0xc8] sm:$0xff]
        %v3869 = vld [vmem:[#allocation2 + $0xd0] sm:$0xff]
        %v3870 = vld [vmem:[#allocation2 + $0xd8] sm:$0xff]
        %v3871 = vld [vmem:[#allocation2 + $0xe0] sm:$0xff]
        %v3872 = vld [vmem:[#allocation2 + $0xe8] sm:$0xff]
        %v3873 = vld [vmem:[#allocation2 + $0xf0] sm:$0xff]
        %v3874 = vld [vmem:[#allocation2 + $0xf8] sm:$0xff]
        %v3875 = vld [vmem:[#allocation2 + $0x100] sm:$0xff]
        %v3876 = vld [vmem:[#allocation2 + $0x108] sm:$0xff]
        %v3877 = vld [vmem:[#allocation2 + $0x110] sm:$0xff]
        %v3878 = vld [vmem:[#allocation2 + $0x118] sm:$0xff]
        %v3879 = vld [vmem:[#allocation2 + $0x120] sm:$0xff]
        %v3880 = vld [vmem:[#allocation2 + $0x128] sm:$0xff]
        %v3881 = vld [vmem:[#allocation2 + $0x130] sm:$0xff]
        %v3882 = vld [vmem:[#allocation2 + $0x138] sm:$0xff]
        %v3883 = vld [vmem:[#allocation2 + $0x140] sm:$0xff]
        %v3884 = vld [vmem:[#allocation2 + $0x148] sm:$0xff]
        %v3885 = vld [vmem:[#allocation2 + $0x150] sm:$0xff]
        %v3886 = vld [vmem:[#allocation2 + $0x158] sm:$0xff]
        %v3887 = vld [vmem:[#allocation2 + $0x160] sm:$0xff]
        %v3888 = vld [vmem:[#allocation2 + $0x168] sm:$0xff]
        %v3889 = vld [vmem:[#allocation2 + $0x170] sm:$0xff]
        %v3890 = vld [vmem:[#allocation2 + $0x178] sm:$0xff]
        %v3891 = vld [vmem:[#allocation2 + $0x180] sm:$0xff]
        %v3892 = vld [vmem:[#allocation2 + $0x188] sm:$0xff]
        %v3893 = vld [vmem:[#allocation2 + $0x190] sm:$0xff]
        %v3894 = vld [vmem:[#allocation2 + $0x198] sm:$0xff]
        %v3895 = vld [vmem:[#allocation2 + $0x1a0] sm:$0xff]
        %v3896 = vld [vmem:[#allocation2 + $0x1a8] sm:$0xff]
        %v3897 = vld [vmem:[#allocation2 + $0x1b0] sm:$0xff]
        %v3898 = vld [vmem:[#allocation2 + $0x1b8] sm:$0xff]
        %v3899 = vld [vmem:[#allocation2 + $0x1c0] sm:$0xff]
        %v3900 = vld [vmem:[#allocation2 + $0x1c8] sm:$0xff]
        %v3901 = vld [vmem:[#allocation2 + $0x1d0] sm:$0xff]
        %v3902 = vld [vmem:[#allocation2 + $0x1d8] sm:$0xff]
        %v3903 = vld [vmem:[#allocation2 + $0x1e0] sm:$0xff]
        %v3904 = vld [vmem:[#allocation2 + $0x1e8] sm:$0xff]
        %v3905 = vld [vmem:[#allocation2 + $0x1f0] sm:$0xff]
        %v3906 = vld [vmem:[#allocation2 + $0x1f8] sm:$0xff]
        %v3907 = vld [vmem:[#allocation2 + $0x200] sm:$0xff]
        %v3908 = vld [vmem:[#allocation2 + $0x208] sm:$0xff]
        %v3909 = vld [vmem:[#allocation2 + $0x210] sm:$0xff]
        %v3910 = vld [vmem:[#allocation2 + $0x218] sm:$0xff]
        %v3911 = vld [vmem:[#allocation2 + $0x220] sm:$0xff]
        %v3912 = vld [vmem:[#allocation2 + $0x228] sm:$0xff]
        %v3913 = vld [vmem:[#allocation2 + $0x230] sm:$0xff]
        %v3914 = vld [vmem:[#allocation2 + $0x238] sm:$0xff]
        %v3915 = vld [vmem:[#allocation2 + $0x240] sm:$0xff]
        %v3916 = vld [vmem:[#allocation2 + $0x248] sm:$0xff]
        %v3917 = vld [vmem:[#allocation2 + $0x250] sm:$0xff]
        %v3918 = vld [vmem:[#allocation2 + $0x258] sm:$0xff]
        %v3919 = vld [vmem:[#allocation2 + $0x260] sm:$0xff]
        %v3920 = vld [vmem:[#allocation2 + $0x268] sm:$0xff]
        %v3921 = vld [vmem:[#allocation2 + $0x270] sm:$0xff]
        %v3922 = vld [vmem:[#allocation2 + $0x278] sm:$0xff]
        %v3923 = vld [vmem:[#allocation2 + $0x280] sm:$0xff]
        %v3924 = vld [vmem:[#allocation2 + $0x288] sm:$0xff]
        %v3925 = vld [vmem:[#allocation2 + $0x290] sm:$0xff]
        %v3926 = vld [vmem:[#allocation2 + $0x298] sm:$0xff]
        %v3927 = vld [vmem:[#allocation2 + $0x2a0] sm:$0xff]
        %v3928 = vld [vmem:[#allocation2 + $0x2a8] sm:$0xff]
        %v3929 = vld [vmem:[#allocation2 + $0x2b0] sm:$0xff]
        %v3930 = vld [vmem:[#allocation2 + $0x2b8] sm:$0xff]
        %v3931 = vld [vmem:[#allocation2 + $0x2c0] sm:$0xff]
        %v3932 = vld [vmem:[#allocation2 + $0x2c8] sm:$0xff]
        %v3933 = vld [vmem:[#allocation2 + $0x2d0] sm:$0xff]
        %v3934 = vld [vmem:[#allocation2 + $0x2d8] sm:$0xff]
        %v3935 = vld [vmem:[#allocation2 + $0x2e0] sm:$0xff]
        %v3936 = vld [vmem:[#allocation2 + $0x2e8] sm:$0xff]
        %v3937 = vld [vmem:[#allocation2 + $0x2f0] sm:$0xff]
        %v3938 = vld [vmem:[#allocation2 + $0x2f8] sm:$0xff]
        %v3939 = vld [vmem:[#allocation2 + $0x300] sm:$0xff]
        %v3940 = vld [vmem:[#allocation2 + $0x308] sm:$0xff]
        %v3941 = vld [vmem:[#allocation2 + $0x310] sm:$0xff]
        %v3942 = vld [vmem:[#allocation2 + $0x318] sm:$0xff]
        %v3943 = vld [vmem:[#allocation2 + $0x320] sm:$0xff]
        %v3944 = vld [vmem:[#allocation2 + $0x328] sm:$0xff]
        %v3945 = vld [vmem:[#allocation2 + $0x330] sm:$0xff]
        %v3946 = vld [vmem:[#allocation2 + $0x338] sm:$0xff]
        %v3947 = vld [vmem:[#allocation2 + $0x340] sm:$0xff]
        %v3948 = vld [vmem:[#allocation2 + $0x348] sm:$0xff]
        %v3949 = vld [vmem:[#allocation2 + $0x350] sm:$0xff]
        %v3950 = vld [vmem:[#allocation2 + $0x358] sm:$0xff]
        %v3951 = vld [vmem:[#allocation2 + $0x360] sm:$0xff]
        %v3952 = vld [vmem:[#allocation2 + $0x368] sm:$0xff]
        %v3953 = vld [vmem:[#allocation2 + $0x370] sm:$0xff]
        %v3954 = vld [vmem:[#allocation2 + $0x378] sm:$0xff]
        %v3955 = vld [vmem:[#allocation2 + $0x380] sm:$0xff]
        %v3956 = vld [vmem:[#allocation2 + $0x388] sm:$0xff]
        %v3957 = vld [vmem:[#allocation2 + $0x390] sm:$0xff]
        %v3958 = vld [vmem:[#allocation2 + $0x398] sm:$0xff]
        %v3959 = vld [vmem:[#allocation2 + $0x3a0] sm:$0xff]
        %v3960 = vld [vmem:[#allocation2 + $0x3a8] sm:$0xff]
        %v3961 = vld [vmem:[#allocation2 + $0x3b0] sm:$0xff]
        %v3962 = vld [vmem:[#allocation2 + $0x3b8] sm:$0xff]
        %v3963 = vld [vmem:[#allocation2 + $0x3c0] sm:$0xff]
        %v3964 = vld [vmem:[#allocation2 + $0x3c8] sm:$0xff]
        %v3965 = vld [vmem:[#allocation2 + $0x3d0] sm:$0xff]
        %v3966 = vld [vmem:[#allocation2 + $0x3d8] sm:$0xff]
        %v3967 = vld [vmem:[#allocation2 + $0x3e0] sm:$0xff]
        %v3968 = vld [vmem:[#allocation2 + $0x3e8] sm:$0xff]
        %v3969 = vld [vmem:[#allocation2 + $0x3f0] sm:$0xff]
        %v3970 = vld [vmem:[#allocation2 + $0x3f8] sm:$0xff]
        %s3971 = scalar_lea.vmem [#allocation6], 768
        %v3972 = vld [vmem:[%s3971] sm:$0xff]
        %v3973 = vld [vmem:[%s3971 + $0x8] sm:$0xff]
        %v3974 = vld [vmem:[%s3971 + $0x10] sm:$0xff]
        %v3975 = vld [vmem:[%s3971 + $0x18] sm:$0xff]
        %v3976 = vld [vmem:[%s3971 + $0x20] sm:$0xff]
        %v3977 = vld [vmem:[%s3971 + $0x28] sm:$0xff]
        %v3978 = vld [vmem:[%s3971 + $0x30] sm:$0xff]
        %v3979 = vld [vmem:[%s3971 + $0x38] sm:$0xff]
        %v3980 = vld [vmem:[%s3971 + $0x40] sm:$0xff]
        %v3981 = vld [vmem:[%s3971 + $0x48] sm:$0xff]
        %v3982 = vld [vmem:[%s3971 + $0x50] sm:$0xff]
        %v3983 = vld [vmem:[%s3971 + $0x58] sm:$0xff]
        %v3984 = vld [vmem:[%s3971 + $0x60] sm:$0xff]
        %v3985 = vld [vmem:[%s3971 + $0x68] sm:$0xff]
        %v3986 = vld [vmem:[%s3971 + $0x70] sm:$0xff]
        %v3987 = vld [vmem:[%s3971 + $0x78] sm:$0xff]
        %v3988 = vld [vmem:[%s3971 + $0x80] sm:$0xff]
        %v3989 = vld [vmem:[%s3971 + $0x88] sm:$0xff]
        %v3990 = vld [vmem:[%s3971 + $0x90] sm:$0xff]
        %v3991 = vld [vmem:[%s3971 + $0x98] sm:$0xff]
        %v3992 = vld [vmem:[%s3971 + $0xa0] sm:$0xff]
        %v3993 = vld [vmem:[%s3971 + $0xa8] sm:$0xff]
        %v3994 = vld [vmem:[%s3971 + $0xb0] sm:$0xff]
        %v3995 = vld [vmem:[%s3971 + $0xb8] sm:$0xff]
        %v3996 = vld [vmem:[%s3971 + $0xc0] sm:$0xff]
        %v3997 = vld [vmem:[%s3971 + $0xc8] sm:$0xff]
        %v3998 = vld [vmem:[%s3971 + $0xd0] sm:$0xff]
        %v3999 = vld [vmem:[%s3971 + $0xd8] sm:$0xff]
        %v4000 = vld [vmem:[%s3971 + $0xe0] sm:$0xff]
        %v4001 = vld [vmem:[%s3971 + $0xe8] sm:$0xff]
        %v4002 = vld [vmem:[%s3971 + $0xf0] sm:$0xff]
        %v4003 = vld [vmem:[%s3971 + $0xf8] sm:$0xff]
        %v4004 = vld [vmem:[%s3971 + $0x100] sm:$0xff]
        %v4005 = vld [vmem:[%s3971 + $0x108] sm:$0xff]
        %v4006 = vld [vmem:[%s3971 + $0x110] sm:$0xff]
        %v4007 = vld [vmem:[%s3971 + $0x118] sm:$0xff]
        %v4008 = vld [vmem:[%s3971 + $0x120] sm:$0xff]
        %v4009 = vld [vmem:[%s3971 + $0x128] sm:$0xff]
        %v4010 = vld [vmem:[%s3971 + $0x130] sm:$0xff]
        %v4011 = vld [vmem:[%s3971 + $0x138] sm:$0xff]
        %v4012 = vld [vmem:[%s3971 + $0x140] sm:$0xff]
        %v4013 = vld [vmem:[%s3971 + $0x148] sm:$0xff]
        %v4014 = vld [vmem:[%s3971 + $0x150] sm:$0xff]
        %v4015 = vld [vmem:[%s3971 + $0x158] sm:$0xff]
        %v4016 = vld [vmem:[%s3971 + $0x160] sm:$0xff]
        %v4017 = vld [vmem:[%s3971 + $0x168] sm:$0xff]
        %v4018 = vld [vmem:[%s3971 + $0x170] sm:$0xff]
        %v4019 = vld [vmem:[%s3971 + $0x178] sm:$0xff]
        %v4020 = vld [vmem:[%s3971 + $0x180] sm:$0xff]
        %v4021 = vld [vmem:[%s3971 + $0x188] sm:$0xff]
        %v4022 = vld [vmem:[%s3971 + $0x190] sm:$0xff]
        %v4023 = vld [vmem:[%s3971 + $0x198] sm:$0xff]
        %v4024 = vld [vmem:[%s3971 + $0x1a0] sm:$0xff]
        %v4025 = vld [vmem:[%s3971 + $0x1a8] sm:$0xff]
        %v4026 = vld [vmem:[%s3971 + $0x1b0] sm:$0xff]
        %v4027 = vld [vmem:[%s3971 + $0x1b8] sm:$0xff]
        %v4028 = vld [vmem:[%s3971 + $0x1c0] sm:$0xff]
        %v4029 = vld [vmem:[%s3971 + $0x1c8] sm:$0xff]
        %v4030 = vld [vmem:[%s3971 + $0x1d0] sm:$0xff]
        %v4031 = vld [vmem:[%s3971 + $0x1d8] sm:$0xff]
        %v4032 = vld [vmem:[%s3971 + $0x1e0] sm:$0xff]
        %v4033 = vld [vmem:[%s3971 + $0x1e8] sm:$0xff]
        %v4034 = vld [vmem:[%s3971 + $0x1f0] sm:$0xff]
        %v4035 = vld [vmem:[%s3971 + $0x1f8] sm:$0xff]
        %v4036 = vld [vmem:[%s3971 + $0x200] sm:$0xff]
        %v4037 = vld [vmem:[%s3971 + $0x208] sm:$0xff]
        %v4038 = vld [vmem:[%s3971 + $0x210] sm:$0xff]
        %v4039 = vld [vmem:[%s3971 + $0x218] sm:$0xff]
        %v4040 = vld [vmem:[%s3971 + $0x220] sm:$0xff]
        %v4041 = vld [vmem:[%s3971 + $0x228] sm:$0xff]
        %v4042 = vld [vmem:[%s3971 + $0x230] sm:$0xff]
        %v4043 = vld [vmem:[%s3971 + $0x238] sm:$0xff]
        %v4044 = vld [vmem:[%s3971 + $0x240] sm:$0xff]
        %v4045 = vld [vmem:[%s3971 + $0x248] sm:$0xff]
        %v4046 = vld [vmem:[%s3971 + $0x250] sm:$0xff]
        %v4047 = vld [vmem:[%s3971 + $0x258] sm:$0xff]
        %v4048 = vld [vmem:[%s3971 + $0x260] sm:$0xff]
        %v4049 = vld [vmem:[%s3971 + $0x268] sm:$0xff]
        %v4050 = vld [vmem:[%s3971 + $0x270] sm:$0xff]
        %v4051 = vld [vmem:[%s3971 + $0x278] sm:$0xff]
        %v4052 = vld [vmem:[%s3971 + $0x280] sm:$0xff]
        %v4053 = vld [vmem:[%s3971 + $0x288] sm:$0xff]
        %v4054 = vld [vmem:[%s3971 + $0x290] sm:$0xff]
        %v4055 = vld [vmem:[%s3971 + $0x298] sm:$0xff]
        %v4056 = vld [vmem:[%s3971 + $0x2a0] sm:$0xff]
        %v4057 = vld [vmem:[%s3971 + $0x2a8] sm:$0xff]
        %v4058 = vld [vmem:[%s3971 + $0x2b0] sm:$0xff]
        %v4059 = vld [vmem:[%s3971 + $0x2b8] sm:$0xff]
        %v4060 = vld [vmem:[%s3971 + $0x2c0] sm:$0xff]
        %v4061 = vld [vmem:[%s3971 + $0x2c8] sm:$0xff]
        %v4062 = vld [vmem:[%s3971 + $0x2d0] sm:$0xff]
        %v4063 = vld [vmem:[%s3971 + $0x2d8] sm:$0xff]
        %v4064 = vld [vmem:[%s3971 + $0x2e0] sm:$0xff]
        %v4065 = vld [vmem:[%s3971 + $0x2e8] sm:$0xff]
        %v4066 = vld [vmem:[%s3971 + $0x2f0] sm:$0xff]
        %v4067 = vld [vmem:[%s3971 + $0x2f8] sm:$0xff]
        %v4164 = vunpack.c.l.b16 %v3972
        %v4165 = vunpack.c.h.b16 %v3972
        %v4166 = vunpack.c.l.b16 %v3973
        %v4167 = vunpack.c.h.b16 %v3973
        %v4168 = vunpack.c.l.b16 %v3974
        %v4169 = vunpack.c.h.b16 %v3974
        %v4170 = vunpack.c.l.b16 %v3975
        %v4171 = vunpack.c.h.b16 %v3975
        %v4172 = vunpack.c.l.b16 %v3976
        %v4173 = vunpack.c.h.b16 %v3976
        %v4174 = vunpack.c.l.b16 %v3977
        %v4175 = vunpack.c.h.b16 %v3977
        %v4176 = vunpack.c.l.b16 %v3978
        %v4177 = vunpack.c.h.b16 %v3978
        %v4178 = vunpack.c.l.b16 %v3979
        %v4179 = vunpack.c.h.b16 %v3979
        %v4180 = vunpack.c.l.b16 %v3980
        %v4181 = vunpack.c.h.b16 %v3980
        %v4182 = vunpack.c.l.b16 %v3981
        %v4183 = vunpack.c.h.b16 %v3981
        %v4184 = vunpack.c.l.b16 %v3982
        %v4185 = vunpack.c.h.b16 %v3982
        %v4186 = vunpack.c.l.b16 %v3983
        %v4187 = vunpack.c.h.b16 %v3983
        %v4188 = vunpack.c.l.b16 %v3984
        %v4189 = vunpack.c.h.b16 %v3984
        %v4190 = vunpack.c.l.b16 %v3985
        %v4191 = vunpack.c.h.b16 %v3985
        %v4192 = vunpack.c.l.b16 %v3986
        %v4193 = vunpack.c.h.b16 %v3986
        %v4194 = vunpack.c.l.b16 %v3987
        %v4195 = vunpack.c.h.b16 %v3987
        %v4196 = vunpack.c.l.b16 %v3988
        %v4197 = vunpack.c.h.b16 %v3988
        %v4198 = vunpack.c.l.b16 %v3989
        %v4199 = vunpack.c.h.b16 %v3989
        %v4200 = vunpack.c.l.b16 %v3990
        %v4201 = vunpack.c.h.b16 %v3990
        %v4202 = vunpack.c.l.b16 %v3991
        %v4203 = vunpack.c.h.b16 %v3991
        %v4204 = vunpack.c.l.b16 %v3992
        %v4205 = vunpack.c.h.b16 %v3992
        %v4206 = vunpack.c.l.b16 %v3993
        %v4207 = vunpack.c.h.b16 %v3993
        %v4208 = vunpack.c.l.b16 %v3994
        %v4209 = vunpack.c.h.b16 %v3994
        %v4210 = vunpack.c.l.b16 %v3995
        %v4211 = vunpack.c.h.b16 %v3995
        %v4212 = vunpack.c.l.b16 %v3996
        %v4213 = vunpack.c.h.b16 %v3996
        %v4214 = vunpack.c.l.b16 %v3997
        %v4215 = vunpack.c.h.b16 %v3997
        %v4216 = vunpack.c.l.b16 %v3998
        %v4217 = vunpack.c.h.b16 %v3998
        %v4218 = vunpack.c.l.b16 %v3999
        %v4219 = vunpack.c.h.b16 %v3999
        %v4220 = vunpack.c.l.b16 %v4000
        %v4221 = vunpack.c.h.b16 %v4000
        %v4222 = vunpack.c.l.b16 %v4001
        %v4223 = vunpack.c.h.b16 %v4001
        %v4224 = vunpack.c.l.b16 %v4002
        %v4225 = vunpack.c.h.b16 %v4002
        %v4226 = vunpack.c.l.b16 %v4003
        %v4227 = vunpack.c.h.b16 %v4003
        %v4228 = vunpack.c.l.b16 %v4004
        %v4229 = vunpack.c.h.b16 %v4004
        %v4230 = vunpack.c.l.b16 %v4005
        %v4231 = vunpack.c.h.b16 %v4005
        %v4232 = vunpack.c.l.b16 %v4006
        %v4233 = vunpack.c.h.b16 %v4006
        %v4234 = vunpack.c.l.b16 %v4007
        %v4235 = vunpack.c.h.b16 %v4007
        %v4236 = vunpack.c.l.b16 %v4008
        %v4237 = vunpack.c.h.b16 %v4008
        %v4238 = vunpack.c.l.b16 %v4009
        %v4239 = vunpack.c.h.b16 %v4009
        %v4240 = vunpack.c.l.b16 %v4010
        %v4241 = vunpack.c.h.b16 %v4010
        %v4242 = vunpack.c.l.b16 %v4011
        %v4243 = vunpack.c.h.b16 %v4011
        %v4244 = vunpack.c.l.b16 %v4012
        %v4245 = vunpack.c.h.b16 %v4012
        %v4246 = vunpack.c.l.b16 %v4013
        %v4247 = vunpack.c.h.b16 %v4013
        %v4248 = vunpack.c.l.b16 %v4014
        %v4249 = vunpack.c.h.b16 %v4014
        %v4250 = vunpack.c.l.b16 %v4015
        %v4251 = vunpack.c.h.b16 %v4015
        %v4252 = vunpack.c.l.b16 %v4016
        %v4253 = vunpack.c.h.b16 %v4016
        %v4254 = vunpack.c.l.b16 %v4017
        %v4255 = vunpack.c.h.b16 %v4017
        %v4256 = vunpack.c.l.b16 %v4018
        %v4257 = vunpack.c.h.b16 %v4018
        %v4258 = vunpack.c.l.b16 %v4019
        %v4259 = vunpack.c.h.b16 %v4019
        %v4260 = vunpack.c.l.b16 %v4020
        %v4261 = vunpack.c.h.b16 %v4020
        %v4262 = vunpack.c.l.b16 %v4021
        %v4263 = vunpack.c.h.b16 %v4021
        %v4264 = vunpack.c.l.b16 %v4022
        %v4265 = vunpack.c.h.b16 %v4022
        %v4266 = vunpack.c.l.b16 %v4023
        %v4267 = vunpack.c.h.b16 %v4023
        %v4268 = vunpack.c.l.b16 %v4024
        %v4269 = vunpack.c.h.b16 %v4024
        %v4270 = vunpack.c.l.b16 %v4025
        %v4271 = vunpack.c.h.b16 %v4025
        %v4272 = vunpack.c.l.b16 %v4026
        %v4273 = vunpack.c.h.b16 %v4026
        %v4274 = vunpack.c.l.b16 %v4027
        %v4275 = vunpack.c.h.b16 %v4027
        %v4276 = vunpack.c.l.b16 %v4028
        %v4277 = vunpack.c.h.b16 %v4028
        %v4278 = vunpack.c.l.b16 %v4029
        %v4279 = vunpack.c.h.b16 %v4029
        %v4280 = vunpack.c.l.b16 %v4030
        %v4281 = vunpack.c.h.b16 %v4030
        %v4282 = vunpack.c.l.b16 %v4031
        %v4283 = vunpack.c.h.b16 %v4031
        %v4284 = vunpack.c.l.b16 %v4032
        %v4285 = vunpack.c.h.b16 %v4032
        %v4286 = vunpack.c.l.b16 %v4033
        %v4287 = vunpack.c.h.b16 %v4033
        %v4288 = vunpack.c.l.b16 %v4034
        %v4289 = vunpack.c.h.b16 %v4034
        %v4290 = vunpack.c.l.b16 %v4035
        %v4291 = vunpack.c.h.b16 %v4035
        %v4292 = vunpack.c.l.b16 %v4036
        %v4293 = vunpack.c.h.b16 %v4036
        %v4294 = vunpack.c.l.b16 %v4037
        %v4295 = vunpack.c.h.b16 %v4037
        %v4296 = vunpack.c.l.b16 %v4038
        %v4297 = vunpack.c.h.b16 %v4038
        %v4298 = vunpack.c.l.b16 %v4039
        %v4299 = vunpack.c.h.b16 %v4039
        %v4300 = vunpack.c.l.b16 %v4040
        %v4301 = vunpack.c.h.b16 %v4040
        %v4302 = vunpack.c.l.b16 %v4041
        %v4303 = vunpack.c.h.b16 %v4041
        %v4304 = vunpack.c.l.b16 %v4042
        %v4305 = vunpack.c.h.b16 %v4042
        %v4306 = vunpack.c.l.b16 %v4043
        %v4307 = vunpack.c.h.b16 %v4043
        %v4308 = vunpack.c.l.b16 %v4044
        %v4309 = vunpack.c.h.b16 %v4044
        %v4310 = vunpack.c.l.b16 %v4045
        %v4311 = vunpack.c.h.b16 %v4045
        %v4312 = vunpack.c.l.b16 %v4046
        %v4313 = vunpack.c.h.b16 %v4046
        %v4314 = vunpack.c.l.b16 %v4047
        %v4315 = vunpack.c.h.b16 %v4047
        %v4316 = vunpack.c.l.b16 %v4048
        %v4317 = vunpack.c.h.b16 %v4048
        %v4318 = vunpack.c.l.b16 %v4049
        %v4319 = vunpack.c.h.b16 %v4049
        %v4320 = vunpack.c.l.b16 %v4050
        %v4321 = vunpack.c.h.b16 %v4050
        %v4322 = vunpack.c.l.b16 %v4051
        %v4323 = vunpack.c.h.b16 %v4051
        %v4324 = vunpack.c.l.b16 %v4052
        %v4325 = vunpack.c.h.b16 %v4052
        %v4326 = vunpack.c.l.b16 %v4053
        %v4327 = vunpack.c.h.b16 %v4053
        %v4328 = vunpack.c.l.b16 %v4054
        %v4329 = vunpack.c.h.b16 %v4054
        %v4330 = vunpack.c.l.b16 %v4055
        %v4331 = vunpack.c.h.b16 %v4055
        %v4332 = vunpack.c.l.b16 %v4056
        %v4333 = vunpack.c.h.b16 %v4056
        %v4334 = vunpack.c.l.b16 %v4057
        %v4335 = vunpack.c.h.b16 %v4057
        %v4336 = vunpack.c.l.b16 %v4058
        %v4337 = vunpack.c.h.b16 %v4058
        %v4338 = vunpack.c.l.b16 %v4059
        %v4339 = vunpack.c.h.b16 %v4059
        %v4340 = vunpack.c.l.b16 %v4060
        %v4341 = vunpack.c.h.b16 %v4060
        %v4342 = vunpack.c.l.b16 %v4061
        %v4343 = vunpack.c.h.b16 %v4061
        %v4344 = vunpack.c.l.b16 %v4062
        %v4345 = vunpack.c.h.b16 %v4062
        %v4346 = vunpack.c.l.b16 %v4063
        %v4347 = vunpack.c.h.b16 %v4063
        %v4348 = vunpack.c.l.b16 %v4064
        %v4349 = vunpack.c.h.b16 %v4064
        %v4350 = vunpack.c.l.b16 %v4065
        %v4351 = vunpack.c.h.b16 %v4065
        %v4352 = vunpack.c.l.b16 %v4066
        %v4353 = vunpack.c.h.b16 %v4066
        %v4354 = vunpack.c.l.b16 %v4067
        %v4355 = vunpack.c.h.b16 %v4067
        %v4356 = vpack.c.b16 %v4168, %v4164
        %v4357 = vpack.c.b16 %v4169, %v4165
        %v4358 = vpack.c.b16 %v4170, %v4166
        %v4359 = vpack.c.b16 %v4171, %v4167
        %v4360 = vpack.c.b16 %v4176, %v4172
        %v4361 = vpack.c.b16 %v4177, %v4173
        %v4362 = vpack.c.b16 %v4178, %v4174
        %v4363 = vpack.c.b16 %v4179, %v4175
        %v4364 = vpack.c.b16 %v4184, %v4180
        %v4365 = vpack.c.b16 %v4185, %v4181
        %v4366 = vpack.c.b16 %v4186, %v4182
        %v4367 = vpack.c.b16 %v4187, %v4183
        %v4368 = vpack.c.b16 %v4192, %v4188
        %v4369 = vpack.c.b16 %v4193, %v4189
        %v4370 = vpack.c.b16 %v4194, %v4190
        %v4371 = vpack.c.b16 %v4195, %v4191
        %v4372 = vpack.c.b16 %v4200, %v4196
        %v4373 = vpack.c.b16 %v4201, %v4197
        %v4374 = vpack.c.b16 %v4202, %v4198
        %v4375 = vpack.c.b16 %v4203, %v4199
        %v4376 = vpack.c.b16 %v4208, %v4204
        %v4377 = vpack.c.b16 %v4209, %v4205
        %v4378 = vpack.c.b16 %v4210, %v4206
        %v4379 = vpack.c.b16 %v4211, %v4207
        %v4380 = vpack.c.b16 %v4216, %v4212
        %v4381 = vpack.c.b16 %v4217, %v4213
        %v4382 = vpack.c.b16 %v4218, %v4214
        %v4383 = vpack.c.b16 %v4219, %v4215
        %v4384 = vpack.c.b16 %v4224, %v4220
        %v4385 = vpack.c.b16 %v4225, %v4221
        %v4386 = vpack.c.b16 %v4226, %v4222
        %v4387 = vpack.c.b16 %v4227, %v4223
        %v4388 = vpack.c.b16 %v4232, %v4228
        %v4389 = vpack.c.b16 %v4233, %v4229
        %v4390 = vpack.c.b16 %v4234, %v4230
        %v4391 = vpack.c.b16 %v4235, %v4231
        %v4392 = vpack.c.b16 %v4240, %v4236
        %v4393 = vpack.c.b16 %v4241, %v4237
        %v4394 = vpack.c.b16 %v4242, %v4238
        %v4395 = vpack.c.b16 %v4243, %v4239
        %v4396 = vpack.c.b16 %v4248, %v4244
        %v4397 = vpack.c.b16 %v4249, %v4245
        %v4398 = vpack.c.b16 %v4250, %v4246
        %v4399 = vpack.c.b16 %v4251, %v4247
        %v4400 = vpack.c.b16 %v4256, %v4252
        %v4401 = vpack.c.b16 %v4257, %v4253
        %v4402 = vpack.c.b16 %v4258, %v4254
        %v4403 = vpack.c.b16 %v4259, %v4255
        %v4404 = vpack.c.b16 %v4264, %v4260
        %v4405 = vpack.c.b16 %v4265, %v4261
        %v4406 = vpack.c.b16 %v4266, %v4262
        %v4407 = vpack.c.b16 %v4267, %v4263
        %v4408 = vpack.c.b16 %v4272, %v4268
        %v4409 = vpack.c.b16 %v4273, %v4269
        %v4410 = vpack.c.b16 %v4274, %v4270
        %v4411 = vpack.c.b16 %v4275, %v4271
        %v4412 = vpack.c.b16 %v4280, %v4276
        %v4413 = vpack.c.b16 %v4281, %v4277
        %v4414 = vpack.c.b16 %v4282, %v4278
        %v4415 = vpack.c.b16 %v4283, %v4279
        %v4416 = vpack.c.b16 %v4288, %v4284
        %v4417 = vpack.c.b16 %v4289, %v4285
        %v4418 = vpack.c.b16 %v4290, %v4286
        %v4419 = vpack.c.b16 %v4291, %v4287
        %v4420 = vpack.c.b16 %v4296, %v4292
        %v4421 = vpack.c.b16 %v4297, %v4293
        %v4422 = vpack.c.b16 %v4298, %v4294
        %v4423 = vpack.c.b16 %v4299, %v4295
        %v4424 = vpack.c.b16 %v4304, %v4300
        %v4425 = vpack.c.b16 %v4305, %v4301
        %v4426 = vpack.c.b16 %v4306, %v4302
        %v4427 = vpack.c.b16 %v4307, %v4303
        %v4428 = vpack.c.b16 %v4312, %v4308
        %v4429 = vpack.c.b16 %v4313, %v4309
        %v4430 = vpack.c.b16 %v4314, %v4310
        %v4431 = vpack.c.b16 %v4315, %v4311
        %v4432 = vpack.c.b16 %v4320, %v4316
        %v4433 = vpack.c.b16 %v4321, %v4317
        %v4434 = vpack.c.b16 %v4322, %v4318
        %v4435 = vpack.c.b16 %v4323, %v4319
        %v4436 = vpack.c.b16 %v4328, %v4324
        %v4437 = vpack.c.b16 %v4329, %v4325
        %v4438 = vpack.c.b16 %v4330, %v4326
        %v4439 = vpack.c.b16 %v4331, %v4327
        %v4440 = vpack.c.b16 %v4336, %v4332
        %v4441 = vpack.c.b16 %v4337, %v4333
        %v4442 = vpack.c.b16 %v4338, %v4334
        %v4443 = vpack.c.b16 %v4339, %v4335
        %v4444 = vpack.c.b16 %v4344, %v4340
        %v4445 = vpack.c.b16 %v4345, %v4341
        %v4446 = vpack.c.b16 %v4346, %v4342
        %v4447 = vpack.c.b16 %v4347, %v4343
        %v4448 = vpack.c.b16 %v4352, %v4348
        %v4449 = vpack.c.b16 %v4353, %v4349
        %v4450 = vpack.c.b16 %v4354, %v4350
        %v4451 = vpack.c.b16 %v4355, %v4351
        %4548 = vmatprep.subr.bf16.mxu0 %v4357
        %4549 = vmatpush1.bf16.msra.mxu0 %v4356
        %4550 = vmatprep.subr.bf16.mxu0 %v4361
        %4551 = vmatpush1.bf16.msra.mxu0 %v4360
        %4552 = vmatprep.subr.bf16.mxu0 %v4365
        %4553 = vmatpush1.bf16.msra.mxu0 %v4364
        %4554 = vmatprep.subr.bf16.mxu0 %v4369
        %4555 = vmatpush1.bf16.msra.mxu0 %v4368
        %4556 = vmatprep.subr.bf16.mxu0 %v4373
        %4557 = vmatpush1.bf16.msra.mxu0 %v4372
        %4558 = vmatprep.subr.bf16.mxu0 %v4377
        %4559 = vmatpush1.bf16.msra.mxu0 %v4376
        %4560 = vmatprep.subr.bf16.mxu0 %v4381
        %4561 = vmatpush1.bf16.msra.mxu0 %v4380
        %4562 = vmatprep.subr.bf16.mxu0 %v4385
        %4563 = vmatpush1.bf16.msra.mxu0 %v4384
        %4564 = vmatprep.subr.bf16.mxu0 %v4389
        %4565 = vmatpush1.bf16.msra.mxu0 %v4388
        %4566 = vmatprep.subr.bf16.mxu0 %v4393
        %4567 = vmatpush1.bf16.msra.mxu0 %v4392
        %4568 = vmatprep.subr.bf16.mxu0 %v4397
        %4569 = vmatpush1.bf16.msra.mxu0 %v4396
        %4570 = vmatprep.subr.bf16.mxu0 %v4401
        %4571 = vmatpush1.bf16.msra.mxu0 %v4400
        %4572 = vmatprep.subr.bf16.mxu0 %v4405
        %4573 = vmatpush1.bf16.msra.mxu0 %v4404
        %4574 = vmatprep.subr.bf16.mxu0 %v4409
        %4575 = vmatpush1.bf16.msra.mxu0 %v4408
        %4576 = vmatprep.subr.bf16.mxu0 %v4413
        %4577 = vmatpush1.bf16.msra.mxu0 %v4412
        %4578 = vmatprep.subr.bf16.mxu0 %v4417
        %4579 = vmatpush1.bf16.msra.mxu0 %v4416
        %4580 = vmatprep.mubr.bf16.mxu0 %v3747
        %4581 = vmatmul.mubr.bf16.gmra.mrb[0].mxu0 %v3683
        %v4582 = vpop.f32.mrb[0].mxu0
        %v4583 = vadd.f32 0.0, %v4582
        %v4584 = vpop.f32.mrb[0].mxu0
        %v4585 = vadd.f32 0.0, %v4584
        %v4586 = vpop.f32.mrb[0].mxu0
        %v4587 = vadd.f32 0.0, %v4586
        %v4588 = vpop.f32.mrb[0].mxu0
        %v4589 = vadd.f32 0.0, %v4588
        %4590 = vmatprep.mubr.bf16.mxu0 %v3748
        %4591 = vmatmul.mubr.bf16.gmra.mrb[0].mxu0 %v3684
        %v4592 = vpop.f32.mrb[0].mxu0
        %v4593 = vadd.f32 0.0, %v4592
        %v4594 = vpop.f32.mrb[0].mxu0
        %v4595 = vadd.f32 0.0, %v4594
        %v4596 = vpop.f32.mrb[0].mxu0
        %v4597 = vadd.f32 0.0, %v4596
        %v4598 = vpop.f32.mrb[0].mxu0
        %v4599 = vadd.f32 0.0, %v4598
        %4600 = vmatprep.mubr.bf16.mxu0 %v3749
        %4601 = vmatmul.mubr.bf16.gmra.mrb[0].mxu0 %v3685
        %v4602 = vpop.f32.mrb[0].mxu0
        %v4603 = vadd.f32 0.0, %v4602
        %v4604 = vpop.f32.mrb[0].mxu0
        %v4605 = vadd.f32 0.0, %v4604
        %v4606 = vpop.f32.mrb[0].mxu0
        %v4607 = vadd.f32 0.0, %v4606
        %v4608 = vpop.f32.mrb[0].mxu0
        %v4609 = vadd.f32 0.0, %v4608
        %4610 = vmatprep.mubr.bf16.mxu0 %v3750
        %4611 = vmatmul.mubr.bf16.gmra.mrb[0].mxu0 %v3686
        %v4612 = vpop.f32.mrb[0].mxu0
        %v4613 = vadd.f32 0.0, %v4612
        %v4614 = vpop.f32.mrb[0].mxu0
        %v4615 = vadd.f32 0.0, %v4614
        %v4616 = vpop.f32.mrb[0].mxu0
        %v4617 = vadd.f32 0.0, %v4616
        %v4618 = vpop.f32.mrb[0].mxu0
        %v4619 = vadd.f32 0.0, %v4618
        %4620 = vmatprep.mubr.bf16.mxu0 %v3751
        %4621 = vmatmul.mubr.bf16.gmra.mrb[0].mxu0 %v3687
        %v4622 = vpop.f32.mrb[0].mxu0
        %v4623 = vadd.f32 0.0, %v4622
        %v4624 = vpop.f32.mrb[0].mxu0
        %v4625 = vadd.f32 0.0, %v4624
        %v4626 = vpop.f32.mrb[0].mxu0
        %v4627 = vadd.f32 0.0, %v4626
        %v4628 = vpop.f32.mrb[0].mxu0
        %v4629 = vadd.f32 0.0, %v4628
        %4630 = vmatprep.mubr.bf16.mxu0 %v3752
        %4631 = vmatmul.mubr.bf16.gmra.mrb[0].mxu0 %v3688
        %v4632 = vpop.f32.mrb[0].mxu0
        %v4633 = vadd.f32 0.0, %v4632
        %v4634 = vpop.f32.mrb[0].mxu0
        %v4635 = vadd.f32 0.0, %v4634
        %v4636 = vpop.f32.mrb[0].mxu0
        %v4637 = vadd.f32 0.0, %v4636
        %v4638 = vpop.f32.mrb[0].mxu0
        %v4639 = vadd.f32 0.0, %v4638
        %4640 = vmatprep.mubr.bf16.mxu0 %v3753
        %4641 = vmatmul.mubr.bf16.gmra.mrb[0].mxu0 %v3689
        %v4642 = vpop.f32.mrb[0].mxu0
        %v4643 = vadd.f32 0.0, %v4642
        %v4644 = vpop.f32.mrb[0].mxu0
        %v4645 = vadd.f32 0.0, %v4644
        %v4646 = vpop.f32.mrb[0].mxu0
        %v4647 = vadd.f32 0.0, %v4646
        %v4648 = vpop.f32.mrb[0].mxu0
        %v4649 = vadd.f32 0.0, %v4648
        %4650 = vmatprep.mubr.bf16.mxu0 %v3754
        %4651 = vmatmul.mubr.bf16.gmra.mrb[0].mxu0 %v3690
        %v4652 = vpop.f32.mrb[0].mxu0
        %v4653 = vadd.f32 0.0, %v4652
        %v4654 = vpop.f32.mrb[0].mxu0
        %v4655 = vadd.f32 0.0, %v4654
        %v4656 = vpop.f32.mrb[0].mxu0
        %v4657 = vadd.f32 0.0, %v4656
        %v4658 = vpop.f32.mrb[0].mxu0
        %v4659 = vadd.f32 0.0, %v4658
        %4660 = vmatprep.mubr.bf16.mxu0 %v3755
        %4661 = vmatmul.mubr.bf16.gmra.mrb[0].mxu0 %v3691
        %v4662 = vpop.f32.mrb[0].mxu0
        %v4663 = vadd.f32 0.0, %v4662
        %v4664 = vpop.f32.mrb[0].mxu0
        %v4665 = vadd.f32 0.0, %v4664
        %v4666 = vpop.f32.mrb[0].mxu0
        %v4667 = vadd.f32 0.0, %v4666
        %v4668 = vpop.f32.mrb[0].mxu0
        %v4669 = vadd.f32 0.0, %v4668
        %4670 = vmatprep.mubr.bf16.mxu0 %v3756
        %4671 = vmatmul.mubr.bf16.gmra.mrb[0].mxu0 %v3692
        %v4672 = vpop.f32.mrb[0].mxu0
        %v4673 = vadd.f32 0.0, %v4672
        %v4674 = vpop.f32.mrb[0].mxu0
        %v4675 = vadd.f32 0.0, %v4674
        %v4676 = vpop.f32.mrb[0].mxu0
        %v4677 = vadd.f32 0.0, %v4676
        %v4678 = vpop.f32.mrb[0].mxu0
        %v4679 = vadd.f32 0.0, %v4678
        %4680 = vmatprep.mubr.bf16.mxu0 %v3757
        %4681 = vmatmul.mubr.bf16.gmra.mrb[0].mxu0 %v3693
        %v4682 = vpop.f32.mrb[0].mxu0
        %v4683 = vadd.f32 0.0, %v4682
        %v4684 = vpop.f32.mrb[0].mxu0
        %v4685 = vadd.f32 0.0, %v4684
        %v4686 = vpop.f32.mrb[0].mxu0
        %v4687 = vadd.f32 0.0, %v4686
        %v4688 = vpop.f32.mrb[0].mxu0
        %v4689 = vadd.f32 0.0, %v4688
        %4690 = vmatprep.mubr.bf16.mxu0 %v3758
        %4691 = vmatmul.mubr.bf16.gmra.mrb[0].mxu0 %v3694
        %v4692 = vpop.f32.mrb[0].mxu0
        %v4693 = vadd.f32 0.0, %v4692
        %v4694 = vpop.f32.mrb[0].mxu0
        %v4695 = vadd.f32 0.0, %v4694
        %v4696 = vpop.f32.mrb[0].mxu0
        %v4697 = vadd.f32 0.0, %v4696
        %v4698 = vpop.f32.mrb[0].mxu0
        %v4699 = vadd.f32 0.0, %v4698
        %4700 = vmatprep.mubr.bf16.mxu0 %v3759
        %4701 = vmatmul.mubr.bf16.gmra.mrb[0].mxu0 %v3695
        %v4702 = vpop.f32.mrb[0].mxu0
        %v4703 = vadd.f32 0.0, %v4702
        %v4704 = vpop.f32.mrb[0].mxu0
        %v4705 = vadd.f32 0.0, %v4704
        %v4706 = vpop.f32.mrb[0].mxu0
        %v4707 = vadd.f32 0.0, %v4706
        %v4708 = vpop.f32.mrb[0].mxu0
        %v4709 = vadd.f32 0.0, %v4708
        %4710 = vmatprep.mubr.bf16.mxu0 %v3760
        %4711 = vmatmul.mubr.bf16.gmra.mrb[0].mxu0 %v3696
        %v4712 = vpop.f32.mrb[0].mxu0
        %v4713 = vadd.f32 0.0, %v4712
        %v4714 = vpop.f32.mrb[0].mxu0
        %v4715 = vadd.f32 0.0, %v4714
        %v4716 = vpop.f32.mrb[0].mxu0
        %v4717 = vadd.f32 0.0, %v4716
        %v4718 = vpop.f32.mrb[0].mxu0
        %v4719 = vadd.f32 0.0, %v4718
        %4720 = vmatprep.mubr.bf16.mxu0 %v3761
        %4721 = vmatmul.mubr.bf16.gmra.mrb[0].mxu0 %v3697
        %v4722 = vpop.f32.mrb[0].mxu0
        %v4723 = vadd.f32 0.0, %v4722
        %v4724 = vpop.f32.mrb[0].mxu0
        %v4725 = vadd.f32 0.0, %v4724
        %v4726 = vpop.f32.mrb[0].mxu0
        %v4727 = vadd.f32 0.0, %v4726
        %v4728 = vpop.f32.mrb[0].mxu0
        %v4729 = vadd.f32 0.0, %v4728
        %4730 = vmatprep.mubr.bf16.mxu0 %v3762
        %4731 = vmatmul.mubr.bf16.gmra.mrb[0].mxu0 %v3698
        %v4732 = vpop.f32.mrb[0].mxu0
        %v4733 = vadd.f32 0.0, %v4732
        %v4734 = vpop.f32.mrb[0].mxu0
        %v4735 = vadd.f32 0.0, %v4734
        %v4736 = vpop.f32.mrb[0].mxu0
        %v4737 = vadd.f32 0.0, %v4736
        %v4738 = vpop.f32.mrb[0].mxu0
        %v4739 = vadd.f32 0.0, %v4738
        %4740 = vdwg.mxu0
        %4741 = vmatprep.subr.bf16.mxu0 %v4421
        %4742 = vmatpush1.bf16.msra.mxu0 %v4420
        %4743 = vmatprep.subr.bf16.mxu0 %v4425
        %4744 = vmatpush1.bf16.msra.mxu0 %v4424
        %4745 = vmatprep.subr.bf16.mxu0 %v4429
        %4746 = vmatpush1.bf16.msra.mxu0 %v4428
        %4747 = vmatprep.subr.bf16.mxu0 %v4433
        %4748 = vmatpush1.bf16.msra.mxu0 %v4432
        %4749 = vmatprep.subr.bf16.mxu0 %v4437
        %4750 = vmatpush1.bf16.msra.mxu0 %v4436
        %4751 = vmatprep.subr.bf16.mxu0 %v4441
        %4752 = vmatpush1.bf16.msra.mxu0 %v4440
        %4753 = vmatprep.subr.bf16.mxu0 %v4445
        %4754 = vmatpush1.bf16.msra.mxu0 %v4444
        %4755 = vmatprep.subr.bf16.mxu0 %v4449
        %4756 = vmatpush1.bf16.msra.mxu0 %v4448
        %4757 = vmatprep.subr.bf16.mxu0 0
        %4758 = vmatpush1.bf16.msra.mxu0 0
        %4759 = vmatprep.subr.bf16.mxu0 0
        %4760 = vmatpush1.bf16.msra.mxu0 0
        %4761 = vmatprep.subr.bf16.mxu0 0
        %4762 = vmatpush1.bf16.msra.mxu0 0
        %4763 = vmatprep.subr.bf16.mxu0 0
        %4764 = vmatpush1.bf16.msra.mxu0 0
        %4765 = vmatprep.subr.bf16.mxu0 0
        %4766 = vmatpush1.bf16.msra.mxu0 0
        %4767 = vmatprep.subr.bf16.mxu0 0
        %4768 = vmatpush1.bf16.msra.mxu0 0
        %4769 = vmatprep.subr.bf16.mxu0 0
        %4770 = vmatpush1.bf16.msra.mxu0 0
        %4771 = vmatprep.subr.bf16.mxu0 0
        %4772 = vmatpush1.bf16.msra.mxu0 0
        %4773 = vmatprep.mubr.bf16.mxu0 0
        %4774 = vmatmul.mubr.bf16.gmra.mrb[0].mxu0 %v3811
        %v4775 = vpop.f32.mrb[0].mxu0
        %v4776 = vadd.f32 %v4583, %v4775
        %v4777 = vpop.f32.mrb[0].mxu0
        %v4778 = vadd.f32 %v4585, %v4777
        %v4779 = vpop.f32.mrb[0].mxu0
        %v4780 = vadd.f32 %v4587, %v4779
        %v4781 = vpop.f32.mrb[0].mxu0
        %v4782 = vadd.f32 %v4589, %v4781
        %4783 = vmatprep.mubr.bf16.mxu0 0
        %4784 = vmatmul.mubr.bf16.gmra.mrb[0].mxu0 %v3812
        %v4785 = vpop.f32.mrb[0].mxu0
        %v4786 = vadd.f32 %v4593, %v4785
        %v4787 = vpop.f32.mrb[0].mxu0
        %v4788 = vadd.f32 %v4595, %v4787
        %v4789 = vpop.f32.mrb[0].mxu0
        %v4790 = vadd.f32 %v4597, %v4789
        %v4791 = vpop.f32.mrb[0].mxu0
        %v4792 = vadd.f32 %v4599, %v4791
        %4793 = vmatprep.mubr.bf16.mxu0 0
        %4794 = vmatmul.mubr.bf16.gmra.mrb[0].mxu0 %v3813
        %v4795 = vpop.f32.mrb[0].mxu0
        %v4796 = vadd.f32 %v4603, %v4795
        %v4797 = vpop.f32.mrb[0].mxu0
        %v4798 = vadd.f32 %v4605, %v4797
        %v4799 = vpop.f32.mrb[0].mxu0
        %v4800 = vadd.f32 %v4607, %v4799
        %v4801 = vpop.f32.mrb[0].mxu0
        %v4802 = vadd.f32 %v4609, %v4801
        %4803 = vmatprep.mubr.bf16.mxu0 0
        %4804 = vmatmul.mubr.bf16.gmra.mrb[0].mxu0 %v3814
        %v4805 = vpop.f32.mrb[0].mxu0
        %v4806 = vadd.f32 %v4613, %v4805
        %v4807 = vpop.f32.mrb[0].mxu0
        %v4808 = vadd.f32 %v4615, %v4807
        %v4809 = vpop.f32.mrb[0].mxu0
        %v4810 = vadd.f32 %v4617, %v4809
        %v4811 = vpop.f32.mrb[0].mxu0
        %v4812 = vadd.f32 %v4619, %v4811
        %4813 = vmatprep.mubr.bf16.mxu0 0
        %4814 = vmatmul.mubr.bf16.gmra.mrb[0].mxu0 %v3815
        %v4815 = vpop.f32.mrb[0].mxu0
        %v4816 = vadd.f32 %v4623, %v4815
        %v4817 = vpop.f32.mrb[0].mxu0
        %v4818 = vadd.f32 %v4625, %v4817
        %v4819 = vpop.f32.mrb[0].mxu0
        %v4820 = vadd.f32 %v4627, %v4819
        %v4821 = vpop.f32.mrb[0].mxu0
        %v4822 = vadd.f32 %v4629, %v4821
        %4823 = vmatprep.mubr.bf16.mxu0 0
        %4824 = vmatmul.mubr.bf16.gmra.mrb[0].mxu0 %v3816
        %v4825 = vpop.f32.mrb[0].mxu0
        %v4826 = vadd.f32 %v4633, %v4825
        %v4827 = vpop.f32.mrb[0].mxu0
        %v4828 = vadd.f32 %v4635, %v4827
        %v4829 = vpop.f32.mrb[0].mxu0
        %v4830 = vadd.f32 %v4637, %v4829
        %v4831 = vpop.f32.mrb[0].mxu0
        %v4832 = vadd.f32 %v4639, %v4831
        %4833 = vmatprep.mubr.bf16.mxu0 0
        %4834 = vmatmul.mubr.bf16.gmra.mrb[0].mxu0 %v3817
        %v4835 = vpop.f32.mrb[0].mxu0
        %v4836 = vadd.f32 %v4643, %v4835
        %v4837 = vpop.f32.mrb[0].mxu0
        %v4838 = vadd.f32 %v4645, %v4837
        %v4839 = vpop.f32.mrb[0].mxu0
        %v4840 = vadd.f32 %v4647, %v4839
        %v4841 = vpop.f32.mrb[0].mxu0
        %v4842 = vadd.f32 %v4649, %v4841
        %4843 = vmatprep.mubr.bf16.mxu0 0
        %4844 = vmatmul.mubr.bf16.gmra.mrb[0].mxu0 %v3818
        %v4845 = vpop.f32.mrb[0].mxu0
        %v4846 = vadd.f32 %v4653, %v4845
        %v4847 = vpop.f32.mrb[0].mxu0
        %v4848 = vadd.f32 %v4655, %v4847
        %v4849 = vpop.f32.mrb[0].mxu0
        %v4850 = vadd.f32 %v4657, %v4849
        %v4851 = vpop.f32.mrb[0].mxu0
        %v4852 = vadd.f32 %v4659, %v4851
        %4853 = vmatprep.mubr.bf16.mxu0 0
        %4854 = vmatmul.mubr.bf16.gmra.mrb[0].mxu0 %v3819
        %v4855 = vpop.f32.mrb[0].mxu0
        %v4856 = vadd.f32 %v4663, %v4855
        %v4857 = vpop.f32.mrb[0].mxu0
        %v4858 = vadd.f32 %v4665, %v4857
        %v4859 = vpop.f32.mrb[0].mxu0
        %v4860 = vadd.f32 %v4667, %v4859
        %v4861 = vpop.f32.mrb[0].mxu0
        %v4862 = vadd.f32 %v4669, %v4861
        %4863 = vmatprep.mubr.bf16.mxu0 0
        %4864 = vmatmul.mubr.bf16.gmra.mrb[0].mxu0 %v3820
        %v4865 = vpop.f32.mrb[0].mxu0
        %v4866 = vadd.f32 %v4673, %v4865
        %v4867 = vpop.f32.mrb[0].mxu0
        %v4868 = vadd.f32 %v4675, %v4867
        %v4869 = vpop.f32.mrb[0].mxu0
        %v4870 = vadd.f32 %v4677, %v4869
        %v4871 = vpop.f32.mrb[0].mxu0
        %v4872 = vadd.f32 %v4679, %v4871
        %4873 = vmatprep.mubr.bf16.mxu0 0
        %4874 = vmatmul.mubr.bf16.gmra.mrb[0].mxu0 %v3821
        %v4875 = vpop.f32.mrb[0].mxu0
        %v4876 = vadd.f32 %v4683, %v4875
        %v4877 = vpop.f32.mrb[0].mxu0
        %v4878 = vadd.f32 %v4685, %v4877
        %v4879 = vpop.f32.mrb[0].mxu0
        %v4880 = vadd.f32 %v4687, %v4879
        %v4881 = vpop.f32.mrb[0].mxu0
        %v4882 = vadd.f32 %v4689, %v4881
        %4883 = vmatprep.mubr.bf16.mxu0 0
        %4884 = vmatmul.mubr.bf16.gmra.mrb[0].mxu0 %v3822
        %v4885 = vpop.f32.mrb[0].mxu0
        %v4886 = vadd.f32 %v4693, %v4885
        %v4887 = vpop.f32.mrb[0].mxu0
        %v4888 = vadd.f32 %v4695, %v4887
        %v4889 = vpop.f32.mrb[0].mxu0
        %v4890 = vadd.f32 %v4697, %v4889
        %v4891 = vpop.f32.mrb[0].mxu0
        %v4892 = vadd.f32 %v4699, %v4891
        %4893 = vmatprep.mubr.bf16.mxu0 0
        %4894 = vmatmul.mubr.bf16.gmra.mrb[0].mxu0 %v3823
        %v4895 = vpop.f32.mrb[0].mxu0
        %v4896 = vadd.f32 %v4703, %v4895
        %v4897 = vpop.f32.mrb[0].mxu0
        %v4898 = vadd.f32 %v4705, %v4897
        %v4899 = vpop.f32.mrb[0].mxu0
        %v4900 = vadd.f32 %v4707, %v4899
        %v4901 = vpop.f32.mrb[0].mxu0
        %v4902 = vadd.f32 %v4709, %v4901
        %4903 = vmatprep.mubr.bf16.mxu0 0
        %4904 = vmatmul.mubr.bf16.gmra.mrb[0].mxu0 %v3824
        %v4905 = vpop.f32.mrb[0].mxu0
        %v4906 = vadd.f32 %v4713, %v4905
        %v4907 = vpop.f32.mrb[0].mxu0
        %v4908 = vadd.f32 %v4715, %v4907
        %v4909 = vpop.f32.mrb[0].mxu0
        %v4910 = vadd.f32 %v4717, %v4909
        %v4911 = vpop.f32.mrb[0].mxu0
        %v4912 = vadd.f32 %v4719, %v4911
        %4913 = vmatprep.mubr.bf16.mxu0 0
        %4914 = vmatmul.mubr.bf16.gmra.mrb[0].mxu0 %v3825
        %v4915 = vpop.f32.mrb[0].mxu0
        %v4916 = vadd.f32 %v4723, %v4915
        %v4917 = vpop.f32.mrb[0].mxu0
        %v4918 = vadd.f32 %v4725, %v4917
        %v4919 = vpop.f32.mrb[0].mxu0
        %v4920 = vadd.f32 %v4727, %v4919
        %v4921 = vpop.f32.mrb[0].mxu0
        %v4922 = vadd.f32 %v4729, %v4921
        %4923 = vmatprep.mubr.bf16.mxu0 0
        %4924 = vmatmul.mubr.bf16.gmra.mrb[0].mxu0 %v3826
        %v4925 = vpop.f32.mrb[0].mxu0
        %v4926 = vadd.f32 %v4733, %v4925
        %v4927 = vpop.f32.mrb[0].mxu0
        %v4928 = vadd.f32 %v4735, %v4927
        %v4929 = vpop.f32.mrb[0].mxu0
        %v4930 = vadd.f32 %v4737, %v4929
        %v4931 = vpop.f32.mrb[0].mxu0
        %v4932 = vadd.f32 %v4739, %v4931
        %4933 = vdwg.mxu0
        %4934 = vmatprep.subr.bf16.mxu0 %v4359
        %4935 = vmatpush1.bf16.msra.mxu0 %v4358
        %4936 = vmatprep.subr.bf16.mxu0 %v4363
        %4937 = vmatpush1.bf16.msra.mxu0 %v4362
        %4938 = vmatprep.subr.bf16.mxu0 %v4367
        %4939 = vmatpush1.bf16.msra.mxu0 %v4366
        %4940 = vmatprep.subr.bf16.mxu0 %v4371
        %4941 = vmatpush1.bf16.msra.mxu0 %v4370
        %4942 = vmatprep.subr.bf16.mxu0 %v4375
        %4943 = vmatpush1.bf16.msra.mxu0 %v4374
        %4944 = vmatprep.subr.bf16.mxu0 %v4379
        %4945 = vmatpush1.bf16.msra.mxu0 %v4378
        %4946 = vmatprep.subr.bf16.mxu0 %v4383
        %4947 = vmatpush1.bf16.msra.mxu0 %v4382
        %4948 = vmatprep.subr.bf16.mxu0 %v4387
        %4949 = vmatpush1.bf16.msra.mxu0 %v4386
        %4950 = vmatprep.subr.bf16.mxu0 %v4391
        %4951 = vmatpush1.bf16.msra.mxu0 %v4390
        %4952 = vmatprep.subr.bf16.mxu0 %v4395
        %4953 = vmatpush1.bf16.msra.mxu0 %v4394
        %4954 = vmatprep.subr.bf16.mxu0 %v4399
        %4955 = vmatpush1.bf16.msra.mxu0 %v4398
        %4956 = vmatprep.subr.bf16.mxu0 %v4403
        %4957 = vmatpush1.bf16.msra.mxu0 %v4402
        %4958 = vmatprep.subr.bf16.mxu0 %v4407
        %4959 = vmatpush1.bf16.msra.mxu0 %v4406
        %4960 = vmatprep.subr.bf16.mxu0 %v4411
        %4961 = vmatpush1.bf16.msra.mxu0 %v4410
        %4962 = vmatprep.subr.bf16.mxu0 %v4415
        %4963 = vmatpush1.bf16.msra.mxu0 %v4414
        %4964 = vmatprep.subr.bf16.mxu0 %v4419
        %4965 = vmatpush1.bf16.msra.mxu0 %v4418
        %4966 = vmatprep.mubr.bf16.mxu0 %v3747
        %4967 = vmatmul.mubr.bf16.gmra.mrb[0].mxu0 %v3683
        %v4968 = vpop.f32.mrb[0].mxu0
        %v4969 = vadd.f32 0.0, %v4968
        %v4970 = vpop.f32.mrb[0].mxu0
        %v4971 = vadd.f32 0.0, %v4970
        %v4972 = vpop.f32.mrb[0].mxu0
        %v4973 = vadd.f32 0.0, %v4972
        %v4974 = vpop.f32.mrb[0].mxu0
        %v4975 = vadd.f32 0.0, %v4974
        %4976 = vmatprep.mubr.bf16.mxu0 %v3748
        %4977 = vmatmul.mubr.bf16.gmra.mrb[0].mxu0 %v3684
        %v4978 = vpop.f32.mrb[0].mxu0
        %v4979 = vadd.f32 0.0, %v4978
        %v4980 = vpop.f32.mrb[0].mxu0
        %v4981 = vadd.f32 0.0, %v4980
        %v4982 = vpop.f32.mrb[0].mxu0
        %v4983 = vadd.f32 0.0, %v4982
        %v4984 = vpop.f32.mrb[0].mxu0
        %v4985 = vadd.f32 0.0, %v4984
        %4986 = vmatprep.mubr.bf16.mxu0 %v3749
        %4987 = vmatmul.mubr.bf16.gmra.mrb[0].mxu0 %v3685
        %v4988 = vpop.f32.mrb[0].mxu0
        %v4989 = vadd.f32 0.0, %v4988
        %v4990 = vpop.f32.mrb[0].mxu0
        %v4991 = vadd.f32 0.0, %v4990
        %v4992 = vpop.f32.mrb[0].mxu0
        %v4993 = vadd.f32 0.0, %v4992
        %v4994 = vpop.f32.mrb[0].mxu0
        %v4995 = vadd.f32 0.0, %v4994
        %4996 = vmatprep.mubr.bf16.mxu0 %v3750
        %4997 = vmatmul.mubr.bf16.gmra.mrb[0].mxu0 %v3686
        %v4998 = vpop.f32.mrb[0].mxu0
        %v4999 = vadd.f32 0.0, %v4998
        %v5000 = vpop.f32.mrb[0].mxu0
        %v5001 = vadd.f32 0.0, %v5000
        %v5002 = vpop.f32.mrb[0].mxu0
        %v5003 = vadd.f32 0.0, %v5002
        %v5004 = vpop.f32.mrb[0].mxu0
        %v5005 = vadd.f32 0.0, %v5004
        %5006 = vmatprep.mubr.bf16.mxu0 %v3751
        %5007 = vmatmul.mubr.bf16.gmra.mrb[0].mxu0 %v3687
        %v5008 = vpop.f32.mrb[0].mxu0
        %v5009 = vadd.f32 0.0, %v5008
        %v5010 = vpop.f32.mrb[0].mxu0
        %v5011 = vadd.f32 0.0, %v5010
        %v5012 = vpop.f32.mrb[0].mxu0
        %v5013 = vadd.f32 0.0, %v5012
        %v5014 = vpop.f32.mrb[0].mxu0
        %v5015 = vadd.f32 0.0, %v5014
        %5016 = vmatprep.mubr.bf16.mxu0 %v3752
        %5017 = vmatmul.mubr.bf16.gmra.mrb[0].mxu0 %v3688
        %v5018 = vpop.f32.mrb[0].mxu0
        %v5019 = vadd.f32 0.0, %v5018
        %v5020 = vpop.f32.mrb[0].mxu0
        %v5021 = vadd.f32 0.0, %v5020
        %v5022 = vpop.f32.mrb[0].mxu0
        %v5023 = vadd.f32 0.0, %v5022
        %v5024 = vpop.f32.mrb[0].mxu0
        %v5025 = vadd.f32 0.0, %v5024
        %5026 = vmatprep.mubr.bf16.mxu0 %v3753
        %5027 = vmatmul.mubr.bf16.gmra.mrb[0].mxu0 %v3689
        %v5028 = vpop.f32.mrb[0].mxu0
        %v5029 = vadd.f32 0.0, %v5028
        %v5030 = vpop.f32.mrb[0].mxu0
        %v5031 = vadd.f32 0.0, %v5030
        %v5032 = vpop.f32.mrb[0].mxu0
        %v5033 = vadd.f32 0.0, %v5032
        %v5034 = vpop.f32.mrb[0].mxu0
        %v5035 = vadd.f32 0.0, %v5034
        %5036 = vmatprep.mubr.bf16.mxu0 %v3754
        %5037 = vmatmul.mubr.bf16.gmra.mrb[0].mxu0 %v3690
        %v5038 = vpop.f32.mrb[0].mxu0
        %v5039 = vadd.f32 0.0, %v5038
        %v5040 = vpop.f32.mrb[0].mxu0
        %v5041 = vadd.f32 0.0, %v5040
        %v5042 = vpop.f32.mrb[0].mxu0
        %v5043 = vadd.f32 0.0, %v5042
        %v5044 = vpop.f32.mrb[0].mxu0
        %v5045 = vadd.f32 0.0, %v5044
        %5046 = vmatprep.mubr.bf16.mxu0 %v3755
        %5047 = vmatmul.mubr.bf16.gmra.mrb[0].mxu0 %v3691
        %v5048 = vpop.f32.mrb[0].mxu0
        %v5049 = vadd.f32 0.0, %v5048
        %v5050 = vpop.f32.mrb[0].mxu0
        %v5051 = vadd.f32 0.0, %v5050
        %v5052 = vpop.f32.mrb[0].mxu0
        %v5053 = vadd.f32 0.0, %v5052
        %v5054 = vpop.f32.mrb[0].mxu0
        %v5055 = vadd.f32 0.0, %v5054
        %5056 = vmatprep.mubr.bf16.mxu0 %v3756
        %5057 = vmatmul.mubr.bf16.gmra.mrb[0].mxu0 %v3692
        %v5058 = vpop.f32.mrb[0].mxu0
        %v5059 = vadd.f32 0.0, %v5058
        %v5060 = vpop.f32.mrb[0].mxu0
        %v5061 = vadd.f32 0.0, %v5060
        %v5062 = vpop.f32.mrb[0].mxu0
        %v5063 = vadd.f32 0.0, %v5062
        %v5064 = vpop.f32.mrb[0].mxu0
        %v5065 = vadd.f32 0.0, %v5064
        %5066 = vmatprep.mubr.bf16.mxu0 %v3757
        %5067 = vmatmul.mubr.bf16.gmra.mrb[0].mxu0 %v3693
        %v5068 = vpop.f32.mrb[0].mxu0
        %v5069 = vadd.f32 0.0, %v5068
        %v5070 = vpop.f32.mrb[0].mxu0
        %v5071 = vadd.f32 0.0, %v5070
        %v5072 = vpop.f32.mrb[0].mxu0
        %v5073 = vadd.f32 0.0, %v5072
        %v5074 = vpop.f32.mrb[0].mxu0
        %v5075 = vadd.f32 0.0, %v5074
        %5076 = vmatprep.mubr.bf16.mxu0 %v3758
        %5077 = vmatmul.mubr.bf16.gmra.mrb[0].mxu0 %v3694
        %v5078 = vpop.f32.mrb[0].mxu0
        %v5079 = vadd.f32 0.0, %v5078
        %v5080 = vpop.f32.mrb[0].mxu0
        %v5081 = vadd.f32 0.0, %v5080
        %v5082 = vpop.f32.mrb[0].mxu0
        %v5083 = vadd.f32 0.0, %v5082
        %v5084 = vpop.f32.mrb[0].mxu0
        %v5085 = vadd.f32 0.0, %v5084
        %5086 = vmatprep.mubr.bf16.mxu0 %v3759
        %5087 = vmatmul.mubr.bf16.gmra.mrb[0].mxu0 %v3695
        %v5088 = vpop.f32.mrb[0].mxu0
        %v5089 = vadd.f32 0.0, %v5088
        %v5090 = vpop.f32.mrb[0].mxu0
        %v5091 = vadd.f32 0.0, %v5090
        %v5092 = vpop.f32.mrb[0].mxu0
        %v5093 = vadd.f32 0.0, %v5092
        %v5094 = vpop.f32.mrb[0].mxu0
        %v5095 = vadd.f32 0.0, %v5094
        %5096 = vmatprep.mubr.bf16.mxu0 %v3760
        %5097 = vmatmul.mubr.bf16.gmra.mrb[0].mxu0 %v3696
        %v5098 = vpop.f32.mrb[0].mxu0
        %v5099 = vadd.f32 0.0, %v5098
        %v5100 = vpop.f32.mrb[0].mxu0
        %v5101 = vadd.f32 0.0, %v5100
        %v5102 = vpop.f32.mrb[0].mxu0
        %v5103 = vadd.f32 0.0, %v5102
        %v5104 = vpop.f32.mrb[0].mxu0
        %v5105 = vadd.f32 0.0, %v5104
        %5106 = vmatprep.mubr.bf16.mxu0 %v3761
        %5107 = vmatmul.mubr.bf16.gmra.mrb[0].mxu0 %v3697
        %v5108 = vpop.f32.mrb[0].mxu0
        %v5109 = vadd.f32 0.0, %v5108
        %v5110 = vpop.f32.mrb[0].mxu0
        %v5111 = vadd.f32 0.0, %v5110
        %v5112 = vpop.f32.mrb[0].mxu0
        %v5113 = vadd.f32 0.0, %v5112
        %v5114 = vpop.f32.mrb[0].mxu0
        %v5115 = vadd.f32 0.0, %v5114
        %5116 = vmatprep.mubr.bf16.mxu0 %v3762
        %5117 = vmatmul.mubr.bf16.gmra.mrb[0].mxu0 %v3698
        %v5118 = vpop.f32.mrb[0].mxu0
        %v5119 = vadd.f32 0.0, %v5118
        %v5120 = vpop.f32.mrb[0].mxu0
        %v5121 = vadd.f32 0.0, %v5120
        %v5122 = vpop.f32.mrb[0].mxu0
        %v5123 = vadd.f32 0.0, %v5122
        %v5124 = vpop.f32.mrb[0].mxu0
        %v5125 = vadd.f32 0.0, %v5124
        %5126 = vdwg.mxu0
        %5127 = vmatprep.subr.bf16.mxu0 %v4423
        %5128 = vmatpush1.bf16.msra.mxu0 %v4422
        %5129 = vmatprep.subr.bf16.mxu0 %v4427
        %5130 = vmatpush1.bf16.msra.mxu0 %v4426
        %5131 = vmatprep.subr.bf16.mxu0 %v4431
        %5132 = vmatpush1.bf16.msra.mxu0 %v4430
        %5133 = vmatprep.subr.bf16.mxu0 %v4435
        %5134 = vmatpush1.bf16.msra.mxu0 %v4434
        %5135 = vmatprep.subr.bf16.mxu0 %v4439
        %5136 = vmatpush1.bf16.msra.mxu0 %v4438
        %5137 = vmatprep.subr.bf16.mxu0 %v4443
        %5138 = vmatpush1.bf16.msra.mxu0 %v4442
        %5139 = vmatprep.subr.bf16.mxu0 %v4447
        %5140 = vmatpush1.bf16.msra.mxu0 %v4446
        %5141 = vmatprep.subr.bf16.mxu0 %v4451
        %5142 = vmatpush1.bf16.msra.mxu0 %v4450
        %5143 = vmatprep.subr.bf16.mxu0 0
        %5144 = vmatpush1.bf16.msra.mxu0 0
        %5145 = vmatprep.subr.bf16.mxu0 0
        %5146 = vmatpush1.bf16.msra.mxu0 0
        %5147 = vmatprep.subr.bf16.mxu0 0
        %5148 = vmatpush1.bf16.msra.mxu0 0
        %5149 = vmatprep.subr.bf16.mxu0 0
        %5150 = vmatpush1.bf16.msra.mxu0 0
        %5151 = vmatprep.subr.bf16.mxu0 0
        %5152 = vmatpush1.bf16.msra.mxu0 0
        %5153 = vmatprep.subr.bf16.mxu0 0
        %5154 = vmatpush1.bf16.msra.mxu0 0
        %5155 = vmatprep.subr.bf16.mxu0 0
        %5156 = vmatpush1.bf16.msra.mxu0 0
        %5157 = vmatprep.subr.bf16.mxu0 0
        %5158 = vmatpush1.bf16.msra.mxu0 0
        %5159 = vmatprep.mubr.bf16.mxu0 0
        %5160 = vmatmul.mubr.bf16.gmra.mrb[0].mxu0 %v3811
        %v5161 = vpop.f32.mrb[0].mxu0
        %v5162 = vadd.f32 %v4969, %v5161
        %v5163 = vpop.f32.mrb[0].mxu0
        %v5164 = vadd.f32 %v4971, %v5163
        %v5165 = vpop.f32.mrb[0].mxu0
        %v5166 = vadd.f32 %v4973, %v5165
        %v5167 = vpop.f32.mrb[0].mxu0
        %v5168 = vadd.f32 %v4975, %v5167
        %5169 = vmatprep.mubr.bf16.mxu0 0
        %5170 = vmatmul.mubr.bf16.gmra.mrb[0].mxu0 %v3812
        %v5171 = vpop.f32.mrb[0].mxu0
        %v5172 = vadd.f32 %v4979, %v5171
        %v5173 = vpop.f32.mrb[0].mxu0
        %v5174 = vadd.f32 %v4981, %v5173
        %v5175 = vpop.f32.mrb[0].mxu0
        %v5176 = vadd.f32 %v4983, %v5175
        %v5177 = vpop.f32.mrb[0].mxu0
        %v5178 = vadd.f32 %v4985, %v5177
        %5179 = vmatprep.mubr.bf16.mxu0 0
        %5180 = vmatmul.mubr.bf16.gmra.mrb[0].mxu0 %v3813
        %v5181 = vpop.f32.mrb[0].mxu0
        %v5182 = vadd.f32 %v4989, %v5181
        %v5183 = vpop.f32.mrb[0].mxu0
        %v5184 = vadd.f32 %v4991, %v5183
        %v5185 = vpop.f32.mrb[0].mxu0
        %v5186 = vadd.f32 %v4993, %v5185
        %v5187 = vpop.f32.mrb[0].mxu0
        %v5188 = vadd.f32 %v4995, %v5187
        %5189 = vmatprep.mubr.bf16.mxu0 0
        %5190 = vmatmul.mubr.bf16.gmra.mrb[0].mxu0 %v3814
        %v5191 = vpop.f32.mrb[0].mxu0
        %v5192 = vadd.f32 %v4999, %v5191
        %v5193 = vpop.f32.mrb[0].mxu0
        %v5194 = vadd.f32 %v5001, %v5193
        %v5195 = vpop.f32.mrb[0].mxu0
        %v5196 = vadd.f32 %v5003, %v5195
        %v5197 = vpop.f32.mrb[0].mxu0
        %v5198 = vadd.f32 %v5005, %v5197
        %5199 = vmatprep.mubr.bf16.mxu0 0
        %5200 = vmatmul.mubr.bf16.gmra.mrb[0].mxu0 %v3815
        %v5201 = vpop.f32.mrb[0].mxu0
        %v5202 = vadd.f32 %v5009, %v5201
        %v5203 = vpop.f32.mrb[0].mxu0
        %v5204 = vadd.f32 %v5011, %v5203
        %v5205 = vpop.f32.mrb[0].mxu0
        %v5206 = vadd.f32 %v5013, %v5205
        %v5207 = vpop.f32.mrb[0].mxu0
        %v5208 = vadd.f32 %v5015, %v5207
        %5209 = vmatprep.mubr.bf16.mxu0 0
        %5210 = vmatmul.mubr.bf16.gmra.mrb[0].mxu0 %v3816
        %v5211 = vpop.f32.mrb[0].mxu0
        %v5212 = vadd.f32 %v5019, %v5211
        %v5213 = vpop.f32.mrb[0].mxu0
        %v5214 = vadd.f32 %v5021, %v5213
        %v5215 = vpop.f32.mrb[0].mxu0
        %v5216 = vadd.f32 %v5023, %v5215
        %v5217 = vpop.f32.mrb[0].mxu0
        %v5218 = vadd.f32 %v5025, %v5217
        %5219 = vmatprep.mubr.bf16.mxu0 0
        %5220 = vmatmul.mubr.bf16.gmra.mrb[0].mxu0 %v3817
        %v5221 = vpop.f32.mrb[0].mxu0
        %v5222 = vadd.f32 %v5029, %v5221
        %v5223 = vpop.f32.mrb[0].mxu0
        %v5224 = vadd.f32 %v5031, %v5223
        %v5225 = vpop.f32.mrb[0].mxu0
        %v5226 = vadd.f32 %v5033, %v5225
        %v5227 = vpop.f32.mrb[0].mxu0
        %v5228 = vadd.f32 %v5035, %v5227
        %5229 = vmatprep.mubr.bf16.mxu0 0
        %5230 = vmatmul.mubr.bf16.gmra.mrb[0].mxu0 %v3818
        %v5231 = vpop.f32.mrb[0].mxu0
        %v5232 = vadd.f32 %v5039, %v5231
        %v5233 = vpop.f32.mrb[0].mxu0
        %v5234 = vadd.f32 %v5041, %v5233
        %v5235 = vpop.f32.mrb[0].mxu0
        %v5236 = vadd.f32 %v5043, %v5235
        %v5237 = vpop.f32.mrb[0].mxu0
        %v5238 = vadd.f32 %v5045, %v5237
        %5239 = vmatprep.mubr.bf16.mxu0 0
        %5240 = vmatmul.mubr.bf16.gmra.mrb[0].mxu0 %v3819
        %v5241 = vpop.f32.mrb[0].mxu0
        %v5242 = vadd.f32 %v5049, %v5241
        %v5243 = vpop.f32.mrb[0].mxu0
        %v5244 = vadd.f32 %v5051, %v5243
        %v5245 = vpop.f32.mrb[0].mxu0
        %v5246 = vadd.f32 %v5053, %v5245
        %v5247 = vpop.f32.mrb[0].mxu0
        %v5248 = vadd.f32 %v5055, %v5247
        %5249 = vmatprep.mubr.bf16.mxu0 0
        %5250 = vmatmul.mubr.bf16.gmra.mrb[0].mxu0 %v3820
        %v5251 = vpop.f32.mrb[0].mxu0
        %v5252 = vadd.f32 %v5059, %v5251
        %v5253 = vpop.f32.mrb[0].mxu0
        %v5254 = vadd.f32 %v5061, %v5253
        %v5255 = vpop.f32.mrb[0].mxu0
        %v5256 = vadd.f32 %v5063, %v5255
        %v5257 = vpop.f32.mrb[0].mxu0
        %v5258 = vadd.f32 %v5065, %v5257
        %5259 = vmatprep.mubr.bf16.mxu0 0
        %5260 = vmatmul.mubr.bf16.gmra.mrb[0].mxu0 %v3821
        %v5261 = vpop.f32.mrb[0].mxu0
        %v5262 = vadd.f32 %v5069, %v5261
        %v5263 = vpop.f32.mrb[0].mxu0
        %v5264 = vadd.f32 %v5071, %v5263
        %v5265 = vpop.f32.mrb[0].mxu0
        %v5266 = vadd.f32 %v5073, %v5265
        %v5267 = vpop.f32.mrb[0].mxu0
        %v5268 = vadd.f32 %v5075, %v5267
        %5269 = vmatprep.mubr.bf16.mxu0 0
        %5270 = vmatmul.mubr.bf16.gmra.mrb[0].mxu0 %v3822
        %v5271 = vpop.f32.mrb[0].mxu0
        %v5272 = vadd.f32 %v5079, %v5271
        %v5273 = vpop.f32.mrb[0].mxu0
        %v5274 = vadd.f32 %v5081, %v5273
        %v5275 = vpop.f32.mrb[0].mxu0
        %v5276 = vadd.f32 %v5083, %v5275
        %v5277 = vpop.f32.mrb[0].mxu0
        %v5278 = vadd.f32 %v5085, %v5277
        %5279 = vmatprep.mubr.bf16.mxu0 0
        %5280 = vmatmul.mubr.bf16.gmra.mrb[0].mxu0 %v3823
        %v5281 = vpop.f32.mrb[0].mxu0
        %v5282 = vadd.f32 %v5089, %v5281
        %v5283 = vpop.f32.mrb[0].mxu0
        %v5284 = vadd.f32 %v5091, %v5283
        %v5285 = vpop.f32.mrb[0].mxu0
        %v5286 = vadd.f32 %v5093, %v5285
        %v5287 = vpop.f32.mrb[0].mxu0
        %v5288 = vadd.f32 %v5095, %v5287
        %5289 = vmatprep.mubr.bf16.mxu0 0
        %5290 = vmatmul.mubr.bf16.gmra.mrb[0].mxu0 %v3824
        %v5291 = vpop.f32.mrb[0].mxu0
        %v5292 = vadd.f32 %v5099, %v5291
        %v5293 = vpop.f32.mrb[0].mxu0
        %v5294 = vadd.f32 %v5101, %v5293
        %v5295 = vpop.f32.mrb[0].mxu0
        %v5296 = vadd.f32 %v5103, %v5295
        %v5297 = vpop.f32.mrb[0].mxu0
        %v5298 = vadd.f32 %v5105, %v5297
        %5299 = vmatprep.mubr.bf16.mxu0 0
        %5300 = vmatmul.mubr.bf16.gmra.mrb[0].mxu0 %v3825
        %v5301 = vpop.f32.mrb[0].mxu0
        %v5302 = vadd.f32 %v5109, %v5301
        %v5303 = vpop.f32.mrb[0].mxu0
        %v5304 = vadd.f32 %v5111, %v5303
        %v5305 = vpop.f32.mrb[0].mxu0
        %v5306 = vadd.f32 %v5113, %v5305
        %v5307 = vpop.f32.mrb[0].mxu0
        %v5308 = vadd.f32 %v5115, %v5307
        %5309 = vmatprep.mubr.bf16.mxu0 0
        %5310 = vmatmul.mubr.bf16.gmra.mrb[0].mxu0 %v3826
        %v5311 = vpop.f32.mrb[0].mxu0
        %v5312 = vadd.f32 %v5119, %v5311
        %v5313 = vpop.f32.mrb[0].mxu0
        %v5314 = vadd.f32 %v5121, %v5313
        %v5315 = vpop.f32.mrb[0].mxu0
        %v5316 = vadd.f32 %v5123, %v5315
        %v5317 = vpop.f32.mrb[0].mxu0
        %v5318 = vadd.f32 %v5125, %v5317
        %5319 = vdwg.mxu0
        %v5320 = vadd.f32 %v3843, %v4776
        %v5321 = vadd.f32 %v3844, %v4778
        %v5322 = vadd.f32 %v3845, %v5162
        %v5323 = vadd.f32 %v3846, %v5164
        %v5324 = vadd.f32 %v3847, %v4780
        %v5325 = vadd.f32 %v3848, %v4782
        %v5326 = vadd.f32 %v3849, %v5166
        %v5327 = vadd.f32 %v3850, %v5168
        %v5328 = vadd.f32 %v3851, %v4786
        %v5329 = vadd.f32 %v3852, %v4788
        %v5330 = vadd.f32 %v3853, %v5172
        %v5331 = vadd.f32 %v3854, %v5174
        %v5332 = vadd.f32 %v3855, %v4790
        %v5333 = vadd.f32 %v3856, %v4792
        %v5334 = vadd.f32 %v3857, %v5176
        %v5335 = vadd.f32 %v3858, %v5178
        %v5336 = vadd.f32 %v3859, %v4796
        %v5337 = vadd.f32 %v3860, %v4798
        %v5338 = vadd.f32 %v3861, %v5182
        %v5339 = vadd.f32 %v3862, %v5184
        %v5340 = vadd.f32 %v3863, %v4800
        %v5341 = vadd.f32 %v3864, %v4802
        %v5342 = vadd.f32 %v3865, %v5186
        %v5343 = vadd.f32 %v3866, %v5188
        %v5344 = vadd.f32 %v3867, %v4806
        %v5345 = vadd.f32 %v3868, %v4808
        %v5346 = vadd.f32 %v3869, %v5192
        %v5347 = vadd.f32 %v3870, %v5194
        %v5348 = vadd.f32 %v3871, %v4810
        %v5349 = vadd.f32 %v3872, %v4812
        %v5350 = vadd.f32 %v3873, %v5196
        %v5351 = vadd.f32 %v3874, %v5198
        %v5352 = vadd.f32 %v3875, %v4816
        %v5353 = vadd.f32 %v3876, %v4818
        %v5354 = vadd.f32 %v3877, %v5202
        %v5355 = vadd.f32 %v3878, %v5204
        %v5356 = vadd.f32 %v3879, %v4820
        %v5357 = vadd.f32 %v3880, %v4822
        %v5358 = vadd.f32 %v3881, %v5206
        %v5359 = vadd.f32 %v3882, %v5208
        %v5360 = vadd.f32 %v3883, %v4826
        %v5361 = vadd.f32 %v3884, %v4828
        %v5362 = vadd.f32 %v3885, %v5212
        %v5363 = vadd.f32 %v3886, %v5214
        %v5364 = vadd.f32 %v3887, %v4830
        %v5365 = vadd.f32 %v3888, %v4832
        %v5366 = vadd.f32 %v3889, %v5216
        %v5367 = vadd.f32 %v3890, %v5218
        %v5368 = vadd.f32 %v3891, %v4836
        %v5369 = vadd.f32 %v3892, %v4838
        %v5370 = vadd.f32 %v3893, %v5222
        %v5371 = vadd.f32 %v3894, %v5224
        %v5372 = vadd.f32 %v3895, %v4840
        %v5373 = vadd.f32 %v3896, %v4842
        %v5374 = vadd.f32 %v3897, %v5226
        %v5375 = vadd.f32 %v3898, %v5228
        %v5376 = vadd.f32 %v3899, %v4846
        %v5377 = vadd.f32 %v3900, %v4848
        %v5378 = vadd.f32 %v3901, %v5232
        %v5379 = vadd.f32 %v3902, %v5234
        %v5380 = vadd.f32 %v3903, %v4850
        %v5381 = vadd.f32 %v3904, %v4852
        %v5382 = vadd.f32 %v3905, %v5236
        %v5383 = vadd.f32 %v3906, %v5238
        %v5384 = vadd.f32 %v3907, %v4856
        %v5385 = vadd.f32 %v3908, %v4858
        %v5386 = vadd.f32 %v3909, %v5242
        %v5387 = vadd.f32 %v3910, %v5244
        %v5388 = vadd.f32 %v3911, %v4860
        %v5389 = vadd.f32 %v3912, %v4862
        %v5390 = vadd.f32 %v3913, %v5246
        %v5391 = vadd.f32 %v3914, %v5248
        %v5392 = vadd.f32 %v3915, %v4866
        %v5393 = vadd.f32 %v3916, %v4868
        %v5394 = vadd.f32 %v3917, %v5252
        %v5395 = vadd.f32 %v3918, %v5254
        %v5396 = vadd.f32 %v3919, %v4870
        %v5397 = vadd.f32 %v3920, %v4872
        %v5398 = vadd.f32 %v3921, %v5256
        %v5399 = vadd.f32 %v3922, %v5258
        %v5400 = vadd.f32 %v3923, %v4876
        %v5401 = vadd.f32 %v3924, %v4878
        %v5402 = vadd.f32 %v3925, %v5262
        %v5403 = vadd.f32 %v3926, %v5264
        %v5404 = vadd.f32 %v3927, %v4880
        %v5405 = vadd.f32 %v3928, %v4882
        %v5406 = vadd.f32 %v3929, %v5266
        %v5407 = vadd.f32 %v3930, %v5268
        %v5408 = vadd.f32 %v3931, %v4886
        %v5409 = vadd.f32 %v3932, %v4888
        %v5410 = vadd.f32 %v3933, %v5272
        %v5411 = vadd.f32 %v3934, %v5274
        %v5412 = vadd.f32 %v3935, %v4890
        %v5413 = vadd.f32 %v3936, %v4892
        %v5414 = vadd.f32 %v3937, %v5276
        %v5415 = vadd.f32 %v3938, %v5278
        %v5416 = vadd.f32 %v3939, %v4896
        %v5417 = vadd.f32 %v3940, %v4898
        %v5418 = vadd.f32 %v3941, %v5282
        %v5419 = vadd.f32 %v3942, %v5284
        %v5420 = vadd.f32 %v3943, %v4900
        %v5421 = vadd.f32 %v3944, %v4902
        %v5422 = vadd.f32 %v3945, %v5286
        %v5423 = vadd.f32 %v3946, %v5288
        %v5424 = vadd.f32 %v3947, %v4906
        %v5425 = vadd.f32 %v3948, %v4908
        %v5426 = vadd.f32 %v3949, %v5292
        %v5427 = vadd.f32 %v3950, %v5294
        %v5428 = vadd.f32 %v3951, %v4910
        %v5429 = vadd.f32 %v3952, %v4912
        %v5430 = vadd.f32 %v3953, %v5296
        %v5431 = vadd.f32 %v3954, %v5298
        %v5432 = vadd.f32 %v3955, %v4916
        %v5433 = vadd.f32 %v3956, %v4918
        %v5434 = vadd.f32 %v3957, %v5302
        %v5435 = vadd.f32 %v3958, %v5304
        %v5436 = vadd.f32 %v3959, %v4920
        %v5437 = vadd.f32 %v3960, %v4922
        %v5438 = vadd.f32 %v3961, %v5306
        %v5439 = vadd.f32 %v3962, %v5308
        %v5440 = vadd.f32 %v3963, %v4926
        %v5441 = vadd.f32 %v3964, %v4928
        %v5442 = vadd.f32 %v3965, %v5312
        %v5443 = vadd.f32 %v3966, %v5314
        %v5444 = vadd.f32 %v3967, %v4930
        %v5445 = vadd.f32 %v3968, %v4932
        %v5446 = vadd.f32 %v3969, %v5316
        %v5447 = vadd.f32 %v3970, %v5318
        %5448 = vst [vmem:[#allocation2] sm:$0xff] %v5320
        %5449 = vst [vmem:[#allocation2 + $0x8] sm:$0xff] %v5321
        %5450 = vst [vmem:[#allocation2 + $0x10] sm:$0xff] %v5322
        %5451 = vst [vmem:[#allocation2 + $0x18] sm:$0xff] %v5323
        %5452 = vst [vmem:[#allocation2 + $0x20] sm:$0xff] %v5324
        %5453 = vst [vmem:[#allocation2 + $0x28] sm:$0xff] %v5325
        %5454 = vst [vmem:[#allocation2 + $0x30] sm:$0xff] %v5326
        %5455 = vst [vmem:[#allocation2 + $0x38] sm:$0xff] %v5327
        %5456 = vst [vmem:[#allocation2 + $0x40] sm:$0xff] %v5328
        %5457 = vst [vmem:[#allocation2 + $0x48] sm:$0xff] %v5329
        %5458 = vst [vmem:[#allocation2 + $0x50] sm:$0xff] %v5330
        %5459 = vst [vmem:[#allocation2 + $0x58] sm:$0xff] %v5331
        %5460 = vst [vmem:[#allocation2 + $0x60] sm:$0xff] %v5332
        %5461 = vst [vmem:[#allocation2 + $0x68] sm:$0xff] %v5333
        %5462 = vst [vmem:[#allocation2 + $0x70] sm:$0xff] %v5334
        %5463 = vst [vmem:[#allocation2 + $0x78] sm:$0xff] %v5335
        %5464 = vst [vmem:[#allocation2 + $0x80] sm:$0xff] %v5336
        %5465 = vst [vmem:[#allocation2 + $0x88] sm:$0xff] %v5337
        %5466 = vst [vmem:[#allocation2 + $0x90] sm:$0xff] %v5338
        %5467 = vst [vmem:[#allocation2 + $0x98] sm:$0xff] %v5339
        %5468 = vst [vmem:[#allocation2 + $0xa0] sm:$0xff] %v5340
        %5469 = vst [vmem:[#allocation2 + $0xa8] sm:$0xff] %v5341
        %5470 = vst [vmem:[#allocation2 + $0xb0] sm:$0xff] %v5342
        %5471 = vst [vmem:[#allocation2 + $0xb8] sm:$0xff] %v5343
        %5472 = vst [vmem:[#allocation2 + $0xc0] sm:$0xff] %v5344
        %5473 = vst [vmem:[#allocation2 + $0xc8] sm:$0xff] %v5345
        %5474 = vst [vmem:[#allocation2 + $0xd0] sm:$0xff] %v5346
        %5475 = vst [vmem:[#allocation2 + $0xd8] sm:$0xff] %v5347
        %5476 = vst [vmem:[#allocation2 + $0xe0] sm:$0xff] %v5348
        %5477 = vst [vmem:[#allocation2 + $0xe8] sm:$0xff] %v5349
        %5478 = vst [vmem:[#allocation2 + $0xf0] sm:$0xff] %v5350
        %5479 = vst [vmem:[#allocation2 + $0xf8] sm:$0xff] %v5351
        %5480 = vst [vmem:[#allocation2 + $0x100] sm:$0xff] %v5352
        %5481 = vst [vmem:[#allocation2 + $0x108] sm:$0xff] %v5353
        %5482 = vst [vmem:[#allocation2 + $0x110] sm:$0xff] %v5354
        %5483 = vst [vmem:[#allocation2 + $0x118] sm:$0xff] %v5355
        %5484 = vst [vmem:[#allocation2 + $0x120] sm:$0xff] %v5356
        %5485 = vst [vmem:[#allocation2 + $0x128] sm:$0xff] %v5357
        %5486 = vst [vmem:[#allocation2 + $0x130] sm:$0xff] %v5358
        %5487 = vst [vmem:[#allocation2 + $0x138] sm:$0xff] %v5359
        %5488 = vst [vmem:[#allocation2 + $0x140] sm:$0xff] %v5360
        %5489 = vst [vmem:[#allocation2 + $0x148] sm:$0xff] %v5361
        %5490 = vst [vmem:[#allocation2 + $0x150] sm:$0xff] %v5362
        %5491 = vst [vmem:[#allocation2 + $0x158] sm:$0xff] %v5363
        %5492 = vst [vmem:[#allocation2 + $0x160] sm:$0xff] %v5364
        %5493 = vst [vmem:[#allocation2 + $0x168] sm:$0xff] %v5365
        %5494 = vst [vmem:[#allocation2 + $0x170] sm:$0xff] %v5366
        %5495 = vst [vmem:[#allocation2 + $0x178] sm:$0xff] %v5367
        %5496 = vst [vmem:[#allocation2 + $0x180] sm:$0xff] %v5368
        %5497 = vst [vmem:[#allocation2 + $0x188] sm:$0xff] %v5369
        %5498 = vst [vmem:[#allocation2 + $0x190] sm:$0xff] %v5370
        %5499 = vst [vmem:[#allocation2 + $0x198] sm:$0xff] %v5371
        %5500 = vst [vmem:[#allocation2 + $0x1a0] sm:$0xff] %v5372
        %5501 = vst [vmem:[#allocation2 + $0x1a8] sm:$0xff] %v5373
        %5502 = vst [vmem:[#allocation2 + $0x1b0] sm:$0xff] %v5374
        %5503 = vst [vmem:[#allocation2 + $0x1b8] sm:$0xff] %v5375
        %5504 = vst [vmem:[#allocation2 + $0x1c0] sm:$0xff] %v5376
        %5505 = vst [vmem:[#allocation2 + $0x1c8] sm:$0xff] %v5377
        %5506 = vst [vmem:[#allocation2 + $0x1d0] sm:$0xff] %v5378
        %5507 = vst [vmem:[#allocation2 + $0x1d8] sm:$0xff] %v5379
        %5508 = vst [vmem:[#allocation2 + $0x1e0] sm:$0xff] %v5380
        %5509 = vst [vmem:[#allocation2 + $0x1e8] sm:$0xff] %v5381
        %5510 = vst [vmem:[#allocation2 + $0x1f0] sm:$0xff] %v5382
        %5511 = vst [vmem:[#allocation2 + $0x1f8] sm:$0xff] %v5383
        %5512 = vst [vmem:[#allocation2 + $0x200] sm:$0xff] %v5384
        %5513 = vst [vmem:[#allocation2 + $0x208] sm:$0xff] %v5385
        %5514 = vst [vmem:[#allocation2 + $0x210] sm:$0xff] %v5386
        %5515 = vst [vmem:[#allocation2 + $0x218] sm:$0xff] %v5387
        %5516 = vst [vmem:[#allocation2 + $0x220] sm:$0xff] %v5388
        %5517 = vst [vmem:[#allocation2 + $0x228] sm:$0xff] %v5389
        %5518 = vst [vmem:[#allocation2 + $0x230] sm:$0xff] %v5390
        %5519 = vst [vmem:[#allocation2 + $0x238] sm:$0xff] %v5391
        %5520 = vst [vmem:[#allocation2 + $0x240] sm:$0xff] %v5392
        %5521 = vst [vmem:[#allocation2 + $0x248] sm:$0xff] %v5393
        %5522 = vst [vmem:[#allocation2 + $0x250] sm:$0xff] %v5394
        %5523 = vst [vmem:[#allocation2 + $0x258] sm:$0xff] %v5395
        %5524 = vst [vmem:[#allocation2 + $0x260] sm:$0xff] %v5396
        %5525 = vst [vmem:[#allocation2 + $0x268] sm:$0xff] %v5397
        %5526 = vst [vmem:[#allocation2 + $0x270] sm:$0xff] %v5398
        %5527 = vst [vmem:[#allocation2 + $0x278] sm:$0xff] %v5399
        %5528 = vst [vmem:[#allocation2 + $0x280] sm:$0xff] %v5400
        %5529 = vst [vmem:[#allocation2 + $0x288] sm:$0xff] %v5401
        %5530 = vst [vmem:[#allocation2 + $0x290] sm:$0xff] %v5402
        %5531 = vst [vmem:[#allocation2 + $0x298] sm:$0xff] %v5403
        %5532 = vst [vmem:[#allocation2 + $0x2a0] sm:$0xff] %v5404
        %5533 = vst [vmem:[#allocation2 + $0x2a8] sm:$0xff] %v5405
        %5534 = vst [vmem:[#allocation2 + $0x2b0] sm:$0xff] %v5406
        %5535 = vst [vmem:[#allocation2 + $0x2b8] sm:$0xff] %v5407
        %5536 = vst [vmem:[#allocation2 + $0x2c0] sm:$0xff] %v5408
        %5537 = vst [vmem:[#allocation2 + $0x2c8] sm:$0xff] %v5409
        %5538 = vst [vmem:[#allocation2 + $0x2d0] sm:$0xff] %v5410
        %5539 = vst [vmem:[#allocation2 + $0x2d8] sm:$0xff] %v5411
        %5540 = vst [vmem:[#allocation2 + $0x2e0] sm:$0xff] %v5412
        %5541 = vst [vmem:[#allocation2 + $0x2e8] sm:$0xff] %v5413
        %5542 = vst [vmem:[#allocation2 + $0x2f0] sm:$0xff] %v5414
        %5543 = vst [vmem:[#allocation2 + $0x2f8] sm:$0xff] %v5415
        %5544 = vst [vmem:[#allocation2 + $0x300] sm:$0xff] %v5416
        %5545 = vst [vmem:[#allocation2 + $0x308] sm:$0xff] %v5417
        %5546 = vst [vmem:[#allocation2 + $0x310] sm:$0xff] %v5418
        %5547 = vst [vmem:[#allocation2 + $0x318] sm:$0xff] %v5419
        %5548 = vst [vmem:[#allocation2 + $0x320] sm:$0xff] %v5420
        %5549 = vst [vmem:[#allocation2 + $0x328] sm:$0xff] %v5421
        %5550 = vst [vmem:[#allocation2 + $0x330] sm:$0xff] %v5422
        %5551 = vst [vmem:[#allocation2 + $0x338] sm:$0xff] %v5423
        %5552 = vst [vmem:[#allocation2 + $0x340] sm:$0xff] %v5424
        %5553 = vst [vmem:[#allocation2 + $0x348] sm:$0xff] %v5425
        %5554 = vst [vmem:[#allocation2 + $0x350] sm:$0xff] %v5426
        %5555 = vst [vmem:[#allocation2 + $0x358] sm:$0xff] %v5427
        %5556 = vst [vmem:[#allocation2 + $0x360] sm:$0xff] %v5428
        %5557 = vst [vmem:[#allocation2 + $0x368] sm:$0xff] %v5429
        %5558 = vst [vmem:[#allocation2 + $0x370] sm:$0xff] %v5430
        %5559 = vst [vmem:[#allocation2 + $0x378] sm:$0xff] %v5431
        %5560 = vst [vmem:[#allocation2 + $0x380] sm:$0xff] %v5432
        %5561 = vst [vmem:[#allocation2 + $0x388] sm:$0xff] %v5433
        %5562 = vst [vmem:[#allocation2 + $0x390] sm:$0xff] %v5434
        %5563 = vst [vmem:[#allocation2 + $0x398] sm:$0xff] %v5435
        %5564 = vst [vmem:[#allocation2 + $0x3a0] sm:$0xff] %v5436
        %5565 = vst [vmem:[#allocation2 + $0x3a8] sm:$0xff] %v5437
        %5566 = vst [vmem:[#allocation2 + $0x3b0] sm:$0xff] %v5438
        %5567 = vst [vmem:[#allocation2 + $0x3b8] sm:$0xff] %v5439
        %5568 = vst [vmem:[#allocation2 + $0x3c0] sm:$0xff] %v5440
        %5569 = vst [vmem:[#allocation2 + $0x3c8] sm:$0xff] %v5441
        %5570 = vst [vmem:[#allocation2 + $0x3d0] sm:$0xff] %v5442
        %5571 = vst [vmem:[#allocation2 + $0x3d8] sm:$0xff] %v5443
        %5572 = vst [vmem:[#allocation2 + $0x3e0] sm:$0xff] %v5444
        %5573 = vst [vmem:[#allocation2 + $0x3e8] sm:$0xff] %v5445
        %5574 = vst [vmem:[#allocation2 + $0x3f0] sm:$0xff] %v5446
        %5575 = vst [vmem:[#allocation2 + $0x3f8] sm:$0xff] %v5447
        %s5576 = scalar_lea.vmem %s267, 24 [#allocation3]
        %v5577 = vld [vmem:[%s5576] sm:$0xf]
        %v5578 = vld [vmem:[%s5576 + $0x4] sm:$0xf]
        %v5579 = vld [vmem:[%s5576 + $0xc] sm:$0xf]
        %v5580 = vld [vmem:[%s5576 + $0x10] sm:$0xf]
        %v5581 = vld [vmem:[%s5576 + $0x18] sm:$0xf]
        %v5582 = vld [vmem:[%s5576 + $0x1c] sm:$0xf]
        %v5583 = vld [vmem:[%s5576 + $0x24] sm:$0xf]
        %v5584 = vld [vmem:[%s5576 + $0x28] sm:$0xf]
        %v5585 = vld [vmem:[%s5576 + $0x30] sm:$0xf]
        %v5586 = vld [vmem:[%s5576 + $0x34] sm:$0xf]
        %v5587 = vld [vmem:[%s5576 + $0x3c] sm:$0xf]
        %v5588 = vld [vmem:[%s5576 + $0x40] sm:$0xf]
        %v5589 = vld [vmem:[%s5576 + $0x48] sm:$0xf]
        %v5590 = vld [vmem:[%s5576 + $0x4c] sm:$0xf]
        %v5591 = vld [vmem:[%s5576 + $0x54] sm:$0xf]
        %v5592 = vld [vmem:[%s5576 + $0x58] sm:$0xf]
        %v5593 = vld [vmem:[%s5576 + $0x60] sm:$0xf]
        %v5594 = vld [vmem:[%s5576 + $0x64] sm:$0xf]
        %v5595 = vld [vmem:[%s5576 + $0x6c] sm:$0xf]
        %v5596 = vld [vmem:[%s5576 + $0x70] sm:$0xf]
        %v5597 = vld [vmem:[%s5576 + $0x78] sm:$0xf]
        %v5598 = vld [vmem:[%s5576 + $0x7c] sm:$0xf]
        %v5599 = vld [vmem:[%s5576 + $0x84] sm:$0xf]
        %v5600 = vld [vmem:[%s5576 + $0x88] sm:$0xf]
        %v5601 = vld [vmem:[%s5576 + $0x90] sm:$0xf]
        %v5602 = vld [vmem:[%s5576 + $0x94] sm:$0xf]
        %v5603 = vld [vmem:[%s5576 + $0x9c] sm:$0xf]
        %v5604 = vld [vmem:[%s5576 + $0xa0] sm:$0xf]
        %v5605 = vld [vmem:[%s5576 + $0xa8] sm:$0xf]
        %v5606 = vld [vmem:[%s5576 + $0xac] sm:$0xf]
        %v5607 = vld [vmem:[%s5576 + $0xb4] sm:$0xf]
        %v5608 = vld [vmem:[%s5576 + $0xb8] sm:$0xf]
        %v5609 = vld [vmem:[%s5576 + $0x8] sm:$0x1]
        %v5610 = vld [vmem:[%s5576 + $0x14] sm:$0x1]
        %v5611 = vld [vmem:[%s5576 + $0x20] sm:$0x1]
        %v5612 = vld [vmem:[%s5576 + $0x2c] sm:$0x1]
        %v5613 = vld [vmem:[%s5576 + $0x38] sm:$0x1]
        %v5614 = vld [vmem:[%s5576 + $0x44] sm:$0x1]
        %v5615 = vld [vmem:[%s5576 + $0x50] sm:$0x1]
        %v5616 = vld [vmem:[%s5576 + $0x5c] sm:$0x1]
        %v5617 = vld [vmem:[%s5576 + $0x68] sm:$0x1]
        %v5618 = vld [vmem:[%s5576 + $0x74] sm:$0x1]
        %v5619 = vld [vmem:[%s5576 + $0x80] sm:$0x1]
        %v5620 = vld [vmem:[%s5576 + $0x8c] sm:$0x1]
        %v5621 = vld [vmem:[%s5576 + $0x98] sm:$0x1]
        %v5622 = vld [vmem:[%s5576 + $0xa4] sm:$0x1]
        %v5623 = vld [vmem:[%s5576 + $0xb0] sm:$0x1]
        %v5624 = vld [vmem:[%s5576 + $0xbc] sm:$0x1]
        %v5626 = vshrl.u32 %v5577, 16
        %v5628 = vrot.slane %v5626, 4
        %v5629 = vshll.u32 %v5577, 16
        %v5631 = vrot.slane %v5629, 5
        %v5632 = vor.u32 %v5628, %v5631
        %v5633 = vrot.slane %v5632, 4
        %v5635 = vshll.u32 %v5578, 16
        %v5637 = vrot.slane %v5635, 5
        %v5638 = vsel %vm522, %v5633, %v5637
        %v5639 = vshrl.u32 %v5578, 16
        %v5641 = vrot.slane %v5639, 4
        %v5642 = vor.u32 %v5641, %v5637
        %v5643 = vrot.slane %v5642, 4
        %v5645 = vshll.u32 %v5609, 16
        %v5647 = vrot.slane %v5645, 5
        %v5648 = vsel %vm522, %v5643, %v5647
        %v5650 = vshrl.u32 %v5579, 16
        %v5652 = vrot.slane %v5650, 4
        %v5653 = vshll.u32 %v5579, 16
        %v5655 = vrot.slane %v5653, 5
        %v5656 = vor.u32 %v5652, %v5655
        %v5657 = vrot.slane %v5656, 4
        %v5659 = vshll.u32 %v5580, 16
        %v5661 = vrot.slane %v5659, 5
        %v5662 = vsel %vm522, %v5657, %v5661
        %v5663 = vshrl.u32 %v5580, 16
        %v5665 = vrot.slane %v5663, 4
        %v5666 = vor.u32 %v5665, %v5661
        %v5667 = vrot.slane %v5666, 4
        %v5669 = vshll.u32 %v5610, 16
        %v5671 = vrot.slane %v5669, 5
        %v5672 = vsel %vm522, %v5667, %v5671
        %v5674 = vshrl.u32 %v5581, 16
        %v5676 = vrot.slane %v5674, 4
        %v5677 = vshll.u32 %v5581, 16
        %v5679 = vrot.slane %v5677, 5
        %v5680 = vor.u32 %v5676, %v5679
        %v5681 = vrot.slane %v5680, 4
        %v5683 = vshll.u32 %v5582, 16
        %v5685 = vrot.slane %v5683, 5
        %v5686 = vsel %vm522, %v5681, %v5685
        %v5687 = vshrl.u32 %v5582, 16
        %v5689 = vrot.slane %v5687, 4
        %v5690 = vor.u32 %v5689, %v5685
        %v5691 = vrot.slane %v5690, 4
        %v5693 = vshll.u32 %v5611, 16
        %v5695 = vrot.slane %v5693, 5
        %v5696 = vsel %vm522, %v5691, %v5695
        %v5698 = vshrl.u32 %v5583, 16
        %v5700 = vrot.slane %v5698, 4
        %v5701 = vshll.u32 %v5583, 16
        %v5703 = vrot.slane %v5701, 5
        %v5704 = vor.u32 %v5700, %v5703
        %v5705 = vrot.slane %v5704, 4
        %v5707 = vshll.u32 %v5584, 16
        %v5709 = vrot.slane %v5707, 5
        %v5710 = vsel %vm522, %v5705, %v5709
        %v5711 = vshrl.u32 %v5584, 16
        %v5713 = vrot.slane %v5711, 4
        %v5714 = vor.u32 %v5713, %v5709
        %v5715 = vrot.slane %v5714, 4
        %v5717 = vshll.u32 %v5612, 16
        %v5719 = vrot.slane %v5717, 5
        %v5720 = vsel %vm522, %v5715, %v5719
        %v5722 = vshrl.u32 %v5585, 16
        %v5724 = vrot.slane %v5722, 4
        %v5725 = vshll.u32 %v5585, 16
        %v5727 = vrot.slane %v5725, 5
        %v5728 = vor.u32 %v5724, %v5727
        %v5729 = vrot.slane %v5728, 4
        %v5731 = vshll.u32 %v5586, 16
        %v5733 = vrot.slane %v5731, 5
        %v5734 = vsel %vm522, %v5729, %v5733
        %v5735 = vshrl.u32 %v5586, 16
        %v5737 = vrot.slane %v5735, 4
        %v5738 = vor.u32 %v5737, %v5733
        %v5739 = vrot.slane %v5738, 4
        %v5741 = vshll.u32 %v5613, 16
        %v5743 = vrot.slane %v5741, 5
        %v5744 = vsel %vm522, %v5739, %v5743
        %v5746 = vshrl.u32 %v5587, 16
        %v5748 = vrot.slane %v5746, 4
        %v5749 = vshll.u32 %v5587, 16
        %v5751 = vrot.slane %v5749, 5
        %v5752 = vor.u32 %v5748, %v5751
        %v5753 = vrot.slane %v5752, 4
        %v5755 = vshll.u32 %v5588, 16
        %v5757 = vrot.slane %v5755, 5
        %v5758 = vsel %vm522, %v5753, %v5757
        %v5759 = vshrl.u32 %v5588, 16
        %v5761 = vrot.slane %v5759, 4
        %v5762 = vor.u32 %v5761, %v5757
        %v5763 = vrot.slane %v5762, 4
        %v5765 = vshll.u32 %v5614, 16
        %v5767 = vrot.slane %v5765, 5
        %v5768 = vsel %vm522, %v5763, %v5767
        %v5770 = vshrl.u32 %v5589, 16
        %v5772 = vrot.slane %v5770, 4
        %v5773 = vshll.u32 %v5589, 16
        %v5775 = vrot.slane %v5773, 5
        %v5776 = vor.u32 %v5772, %v5775
        %v5777 = vrot.slane %v5776, 4
        %v5779 = vshll.u32 %v5590, 16
        %v5781 = vrot.slane %v5779, 5
        %v5782 = vsel %vm522, %v5777, %v5781
        %v5783 = vshrl.u32 %v5590, 16
        %v5785 = vrot.slane %v5783, 4
        %v5786 = vor.u32 %v5785, %v5781
        %v5787 = vrot.slane %v5786, 4
        %v5789 = vshll.u32 %v5615, 16
        %v5791 = vrot.slane %v5789, 5
        %v5792 = vsel %vm522, %v5787, %v5791
        %v5794 = vshrl.u32 %v5591, 16
        %v5796 = vrot.slane %v5794, 4
        %v5797 = vshll.u32 %v5591, 16
        %v5799 = vrot.slane %v5797, 5
        %v5800 = vor.u32 %v5796, %v5799
        %v5801 = vrot.slane %v5800, 4
        %v5803 = vshll.u32 %v5592, 16
        %v5805 = vrot.slane %v5803, 5
        %v5806 = vsel %vm522, %v5801, %v5805
        %v5807 = vshrl.u32 %v5592, 16
        %v5809 = vrot.slane %v5807, 4
        %v5810 = vor.u32 %v5809, %v5805
        %v5811 = vrot.slane %v5810, 4
        %v5813 = vshll.u32 %v5616, 16
        %v5815 = vrot.slane %v5813, 5
        %v5816 = vsel %vm522, %v5811, %v5815
        %v5818 = vshrl.u32 %v5593, 16
        %v5820 = vrot.slane %v5818, 4
        %v5821 = vshll.u32 %v5593, 16
        %v5823 = vrot.slane %v5821, 5
        %v5824 = vor.u32 %v5820, %v5823
        %v5825 = vrot.slane %v5824, 4
        %v5827 = vshll.u32 %v5594, 16
        %v5829 = vrot.slane %v5827, 5
        %v5830 = vsel %vm522, %v5825, %v5829
        %v5831 = vshrl.u32 %v5594, 16
        %v5833 = vrot.slane %v5831, 4
        %v5834 = vor.u32 %v5833, %v5829
        %v5835 = vrot.slane %v5834, 4
        %v5837 = vshll.u32 %v5617, 16
        %v5839 = vrot.slane %v5837, 5
        %v5840 = vsel %vm522, %v5835, %v5839
        %v5842 = vshrl.u32 %v5595, 16
        %v5844 = vrot.slane %v5842, 4
        %v5845 = vshll.u32 %v5595, 16
        %v5847 = vrot.slane %v5845, 5
        %v5848 = vor.u32 %v5844, %v5847
        %v5849 = vrot.slane %v5848, 4
        %v5851 = vshll.u32 %v5596, 16
        %v5853 = vrot.slane %v5851, 5
        %v5854 = vsel %vm522, %v5849, %v5853
        %v5855 = vshrl.u32 %v5596, 16
        %v5857 = vrot.slane %v5855, 4
        %v5858 = vor.u32 %v5857, %v5853
        %v5859 = vrot.slane %v5858, 4
        %v5861 = vshll.u32 %v5618, 16
        %v5863 = vrot.slane %v5861, 5
        %v5864 = vsel %vm522, %v5859, %v5863
        %v5866 = vshrl.u32 %v5597, 16
        %v5868 = vrot.slane %v5866, 4
        %v5869 = vshll.u32 %v5597, 16
        %v5871 = vrot.slane %v5869, 5
        %v5872 = vor.u32 %v5868, %v5871
        %v5873 = vrot.slane %v5872, 4
        %v5875 = vshll.u32 %v5598, 16
        %v5877 = vrot.slane %v5875, 5
        %v5878 = vsel %vm522, %v5873, %v5877
        %v5879 = vshrl.u32 %v5598, 16
        %v5881 = vrot.slane %v5879, 4
        %v5882 = vor.u32 %v5881, %v5877
        %v5883 = vrot.slane %v5882, 4
        %v5885 = vshll.u32 %v5619, 16
        %v5887 = vrot.slane %v5885, 5
        %v5888 = vsel %vm522, %v5883, %v5887
        %v5890 = vshrl.u32 %v5599, 16
        %v5892 = vrot.slane %v5890, 4
        %v5893 = vshll.u32 %v5599, 16
        %v5895 = vrot.slane %v5893, 5
        %v5896 = vor.u32 %v5892, %v5895
        %v5897 = vrot.slane %v5896, 4
        %v5899 = vshll.u32 %v5600, 16
        %v5901 = vrot.slane %v5899, 5
        %v5902 = vsel %vm522, %v5897, %v5901
        %v5903 = vshrl.u32 %v5600, 16
        %v5905 = vrot.slane %v5903, 4
        %v5906 = vor.u32 %v5905, %v5901
        %v5907 = vrot.slane %v5906, 4
        %v5909 = vshll.u32 %v5620, 16
        %v5911 = vrot.slane %v5909, 5
        %v5912 = vsel %vm522, %v5907, %v5911
        %v5914 = vshrl.u32 %v5601, 16
        %v5916 = vrot.slane %v5914, 4
        %v5917 = vshll.u32 %v5601, 16
        %v5919 = vrot.slane %v5917, 5
        %v5920 = vor.u32 %v5916, %v5919
        %v5921 = vrot.slane %v5920, 4
        %v5923 = vshll.u32 %v5602, 16
        %v5925 = vrot.slane %v5923, 5
        %v5926 = vsel %vm522, %v5921, %v5925
        %v5927 = vshrl.u32 %v5602, 16
        %v5929 = vrot.slane %v5927, 4
        %v5930 = vor.u32 %v5929, %v5925
        %v5931 = vrot.slane %v5930, 4
        %v5933 = vshll.u32 %v5621, 16
        %v5935 = vrot.slane %v5933, 5
        %v5936 = vsel %vm522, %v5931, %v5935
        %v5938 = vshrl.u32 %v5603, 16
        %v5940 = vrot.slane %v5938, 4
        %v5941 = vshll.u32 %v5603, 16
        %v5943 = vrot.slane %v5941, 5
        %v5944 = vor.u32 %v5940, %v5943
        %v5945 = vrot.slane %v5944, 4
        %v5947 = vshll.u32 %v5604, 16
        %v5949 = vrot.slane %v5947, 5
        %v5950 = vsel %vm522, %v5945, %v5949
        %v5951 = vshrl.u32 %v5604, 16
        %v5953 = vrot.slane %v5951, 4
        %v5954 = vor.u32 %v5953, %v5949
        %v5955 = vrot.slane %v5954, 4
        %v5957 = vshll.u32 %v5622, 16
        %v5959 = vrot.slane %v5957, 5
        %v5960 = vsel %vm522, %v5955, %v5959
        %v5962 = vshrl.u32 %v5605, 16
        %v5964 = vrot.slane %v5962, 4
        %v5965 = vshll.u32 %v5605, 16
        %v5967 = vrot.slane %v5965, 5
        %v5968 = vor.u32 %v5964, %v5967
        %v5969 = vrot.slane %v5968, 4
        %v5971 = vshll.u32 %v5606, 16
        %v5973 = vrot.slane %v5971, 5
        %v5974 = vsel %vm522, %v5969, %v5973
        %v5975 = vshrl.u32 %v5606, 16
        %v5977 = vrot.slane %v5975, 4
        %v5978 = vor.u32 %v5977, %v5973
        %v5979 = vrot.slane %v5978, 4
        %v5981 = vshll.u32 %v5623, 16
        %v5983 = vrot.slane %v5981, 5
        %v5984 = vsel %vm522, %v5979, %v5983
        %v5986 = vshrl.u32 %v5607, 16
        %v5988 = vrot.slane %v5986, 4
        %v5989 = vshll.u32 %v5607, 16
        %v5991 = vrot.slane %v5989, 5
        %v5992 = vor.u32 %v5988, %v5991
        %v5993 = vrot.slane %v5992, 4
        %v5995 = vshll.u32 %v5608, 16
        %v5997 = vrot.slane %v5995, 5
        %v5998 = vsel %vm522, %v5993, %v5997
        %v5999 = vshrl.u32 %v5608, 16
        %v6001 = vrot.slane %v5999, 4
        %v6002 = vor.u32 %v6001, %v5997
        %v6003 = vrot.slane %v6002, 4
        %v6005 = vshll.u32 %v5624, 16
        %v6007 = vrot.slane %v6005, 5
        %v6008 = vsel %vm522, %v6003, %v6007
        %v6009 = vld [vmem:[%s5576] sm:$0xe]
        %v6010 = vld [vmem:[%s5576 + $0xc] sm:$0xe]
        %v6011 = vld [vmem:[%s5576 + $0x18] sm:$0xe]
        %v6012 = vld [vmem:[%s5576 + $0x24] sm:$0xe]
        %v6013 = vld [vmem:[%s5576 + $0x30] sm:$0xe]
        %v6014 = vld [vmem:[%s5576 + $0x3c] sm:$0xe]
        %v6015 = vld [vmem:[%s5576 + $0x48] sm:$0xe]
        %v6016 = vld [vmem:[%s5576 + $0x54] sm:$0xe]
        %v6017 = vld [vmem:[%s5576 + $0x60] sm:$0xe]
        %v6018 = vld [vmem:[%s5576 + $0x6c] sm:$0xe]
        %v6019 = vld [vmem:[%s5576 + $0x78] sm:$0xe]
        %v6020 = vld [vmem:[%s5576 + $0x84] sm:$0xe]
        %v6021 = vld [vmem:[%s5576 + $0x90] sm:$0xe]
        %v6022 = vld [vmem:[%s5576 + $0x9c] sm:$0xe]
        %v6023 = vld [vmem:[%s5576 + $0xa8] sm:$0xe]
        %v6024 = vld [vmem:[%s5576 + $0xb4] sm:$0xe]
        %v6073 = vrot.slane %v6009, 5
        %v6074 = vrot.slane %v6073, 4
        %v6075 = vrot.slane %v5578, 5
        %v6076 = vsel %vm973, %v6074, %v6075
        %v6077 = vrot.slane %v6075, 4
        %v6078 = vrot.slane %v5609, 5
        %v6079 = vsel %vm973, %v6077, %v6078
        %v6080 = vrot.slane %v6010, 5
        %v6081 = vrot.slane %v6080, 4
        %v6082 = vrot.slane %v5580, 5
        %v6083 = vsel %vm973, %v6081, %v6082
        %v6084 = vrot.slane %v6082, 4
        %v6085 = vrot.slane %v5610, 5
        %v6086 = vsel %vm973, %v6084, %v6085
        %v6087 = vrot.slane %v6011, 5
        %v6088 = vrot.slane %v6087, 4
        %v6089 = vrot.slane %v5582, 5
        %v6090 = vsel %vm973, %v6088, %v6089
        %v6091 = vrot.slane %v6089, 4
        %v6092 = vrot.slane %v5611, 5
        %v6093 = vsel %vm973, %v6091, %v6092
        %v6094 = vrot.slane %v6012, 5
        %v6095 = vrot.slane %v6094, 4
        %v6096 = vrot.slane %v5584, 5
        %v6097 = vsel %vm973, %v6095, %v6096
        %v6098 = vrot.slane %v6096, 4
        %v6099 = vrot.slane %v5612, 5
        %v6100 = vsel %vm973, %v6098, %v6099
        %v6101 = vrot.slane %v6013, 5
        %v6102 = vrot.slane %v6101, 4
        %v6103 = vrot.slane %v5586, 5
        %v6104 = vsel %vm973, %v6102, %v6103
        %v6105 = vrot.slane %v6103, 4
        %v6106 = vrot.slane %v5613, 5
        %v6107 = vsel %vm973, %v6105, %v6106
        %v6108 = vrot.slane %v6014, 5
        %v6109 = vrot.slane %v6108, 4
        %v6110 = vrot.slane %v5588, 5
        %v6111 = vsel %vm973, %v6109, %v6110
        %v6112 = vrot.slane %v6110, 4
        %v6113 = vrot.slane %v5614, 5
        %v6114 = vsel %vm973, %v6112, %v6113
        %v6115 = vrot.slane %v6015, 5
        %v6116 = vrot.slane %v6115, 4
        %v6117 = vrot.slane %v5590, 5
        %v6118 = vsel %vm973, %v6116, %v6117
        %v6119 = vrot.slane %v6117, 4
        %v6120 = vrot.slane %v5615, 5
        %v6121 = vsel %vm973, %v6119, %v6120
        %v6122 = vrot.slane %v6016, 5
        %v6123 = vrot.slane %v6122, 4
        %v6124 = vrot.slane %v5592, 5
        %v6125 = vsel %vm973, %v6123, %v6124
        %v6126 = vrot.slane %v6124, 4
        %v6127 = vrot.slane %v5616, 5
        %v6128 = vsel %vm973, %v6126, %v6127
        %v6129 = vrot.slane %v6017, 5
        %v6130 = vrot.slane %v6129, 4
        %v6131 = vrot.slane %v5594, 5
        %v6132 = vsel %vm973, %v6130, %v6131
        %v6133 = vrot.slane %v6131, 4
        %v6134 = vrot.slane %v5617, 5
        %v6135 = vsel %vm973, %v6133, %v6134
        %v6136 = vrot.slane %v6018, 5
        %v6137 = vrot.slane %v6136, 4
        %v6138 = vrot.slane %v5596, 5
        %v6139 = vsel %vm973, %v6137, %v6138
        %v6140 = vrot.slane %v6138, 4
        %v6141 = vrot.slane %v5618, 5
        %v6142 = vsel %vm973, %v6140, %v6141
        %v6143 = vrot.slane %v6019, 5
        %v6144 = vrot.slane %v6143, 4
        %v6145 = vrot.slane %v5598, 5
        %v6146 = vsel %vm973, %v6144, %v6145
        %v6147 = vrot.slane %v6145, 4
        %v6148 = vrot.slane %v5619, 5
        %v6149 = vsel %vm973, %v6147, %v6148
        %v6150 = vrot.slane %v6020, 5
        %v6151 = vrot.slane %v6150, 4
        %v6152 = vrot.slane %v5600, 5
        %v6153 = vsel %vm973, %v6151, %v6152
        %v6154 = vrot.slane %v6152, 4
        %v6155 = vrot.slane %v5620, 5
        %v6156 = vsel %vm973, %v6154, %v6155
        %v6157 = vrot.slane %v6021, 5
        %v6158 = vrot.slane %v6157, 4
        %v6159 = vrot.slane %v5602, 5
        %v6160 = vsel %vm973, %v6158, %v6159
        %v6161 = vrot.slane %v6159, 4
        %v6162 = vrot.slane %v5621, 5
        %v6163 = vsel %vm973, %v6161, %v6162
        %v6164 = vrot.slane %v6022, 5
        %v6165 = vrot.slane %v6164, 4
        %v6166 = vrot.slane %v5604, 5
        %v6167 = vsel %vm973, %v6165, %v6166
        %v6168 = vrot.slane %v6166, 4
        %v6169 = vrot.slane %v5622, 5
        %v6170 = vsel %vm973, %v6168, %v6169
        %v6171 = vrot.slane %v6023, 5
        %v6172 = vrot.slane %v6171, 4
        %v6173 = vrot.slane %v5606, 5
        %v6174 = vsel %vm973, %v6172, %v6173
        %v6175 = vrot.slane %v6173, 4
        %v6176 = vrot.slane %v5623, 5
        %v6177 = vsel %vm973, %v6175, %v6176
        %v6178 = vrot.slane %v6024, 5
        %v6179 = vrot.slane %v6178, 4
        %v6180 = vrot.slane %v5608, 5
        %v6181 = vsel %vm973, %v6179, %v6180
        %v6182 = vrot.slane %v6180, 4
        %v6183 = vrot.slane %v5624, 5
        %v6184 = vsel %vm973, %v6182, %v6183
        %v6201 = vunpack.c.l.b16 %v5577
        %v6202 = vunpack.c.l.b16 %v5578
        %v6203 = vunpack.c.l.b16 %v5579
        %v6204 = vunpack.c.l.b16 %v5580
        %v6205 = vunpack.c.l.b16 %v5581
        %v6206 = vunpack.c.l.b16 %v5582
        %v6207 = vunpack.c.l.b16 %v5583
        %v6208 = vunpack.c.l.b16 %v5584
        %v6209 = vunpack.c.l.b16 %v5585
        %v6210 = vunpack.c.l.b16 %v5586
        %v6211 = vunpack.c.l.b16 %v5587
        %v6212 = vunpack.c.l.b16 %v5588
        %v6213 = vunpack.c.l.b16 %v5589
        %v6214 = vunpack.c.l.b16 %v5590
        %v6215 = vunpack.c.l.b16 %v5591
        %v6216 = vunpack.c.l.b16 %v5592
        %v6217 = vunpack.c.l.b16 %v5593
        %v6218 = vunpack.c.l.b16 %v5594
        %v6219 = vunpack.c.l.b16 %v5595
        %v6220 = vunpack.c.l.b16 %v5596
        %v6221 = vunpack.c.l.b16 %v5597
        %v6222 = vunpack.c.l.b16 %v5598
        %v6223 = vunpack.c.l.b16 %v5599
        %v6224 = vunpack.c.l.b16 %v5600
        %v6225 = vunpack.c.l.b16 %v5601
        %v6226 = vunpack.c.l.b16 %v5602
        %v6227 = vunpack.c.l.b16 %v5603
        %v6228 = vunpack.c.l.b16 %v5604
        %v6229 = vunpack.c.l.b16 %v5605
        %v6230 = vunpack.c.l.b16 %v5606
        %v6231 = vunpack.c.l.b16 %v5607
        %v6232 = vunpack.c.l.b16 %v5608
        %v6233 = vpack.c.b16 %v6202, %v6201
        %v6234 = vpack.c.b16 %v6204, %v6203
        %v6235 = vpack.c.b16 %v6206, %v6205
        %v6236 = vpack.c.b16 %v6208, %v6207
        %v6237 = vpack.c.b16 %v6210, %v6209
        %v6238 = vpack.c.b16 %v6212, %v6211
        %v6239 = vpack.c.b16 %v6214, %v6213
        %v6240 = vpack.c.b16 %v6216, %v6215
        %v6241 = vpack.c.b16 %v6218, %v6217
        %v6242 = vpack.c.b16 %v6220, %v6219
        %v6243 = vpack.c.b16 %v6222, %v6221
        %v6244 = vpack.c.b16 %v6224, %v6223
        %v6245 = vpack.c.b16 %v6226, %v6225
        %v6246 = vpack.c.b16 %v6228, %v6227
        %v6247 = vpack.c.b16 %v6230, %v6229
        %v6248 = vpack.c.b16 %v6232, %v6231
        %v6265 = vunpack.c.l.b16 %v5638
        %v6266 = vunpack.c.l.b16 %v5648
        %v6267 = vunpack.c.l.b16 %v5662
        %v6268 = vunpack.c.l.b16 %v5672
        %v6269 = vunpack.c.l.b16 %v5686
        %v6270 = vunpack.c.l.b16 %v5696
        %v6271 = vunpack.c.l.b16 %v5710
        %v6272 = vunpack.c.l.b16 %v5720
        %v6273 = vunpack.c.l.b16 %v5734
        %v6274 = vunpack.c.l.b16 %v5744
        %v6275 = vunpack.c.l.b16 %v5758
        %v6276 = vunpack.c.l.b16 %v5768
        %v6277 = vunpack.c.l.b16 %v5782
        %v6278 = vunpack.c.l.b16 %v5792
        %v6279 = vunpack.c.l.b16 %v5806
        %v6280 = vunpack.c.l.b16 %v5816
        %v6281 = vunpack.c.l.b16 %v5830
        %v6282 = vunpack.c.l.b16 %v5840
        %v6283 = vunpack.c.l.b16 %v5854
        %v6284 = vunpack.c.l.b16 %v5864
        %v6285 = vunpack.c.l.b16 %v5878
        %v6286 = vunpack.c.l.b16 %v5888
        %v6287 = vunpack.c.l.b16 %v5902
        %v6288 = vunpack.c.l.b16 %v5912
        %v6289 = vunpack.c.l.b16 %v5926
        %v6290 = vunpack.c.l.b16 %v5936
        %v6291 = vunpack.c.l.b16 %v5950
        %v6292 = vunpack.c.l.b16 %v5960
        %v6293 = vunpack.c.l.b16 %v5974
        %v6294 = vunpack.c.l.b16 %v5984
        %v6295 = vunpack.c.l.b16 %v5998
        %v6296 = vunpack.c.l.b16 %v6008
        %v6297 = vpack.c.b16 %v6266, %v6265
        %v6298 = vpack.c.b16 %v6268, %v6267
        %v6299 = vpack.c.b16 %v6270, %v6269
        %v6300 = vpack.c.b16 %v6272, %v6271
        %v6301 = vpack.c.b16 %v6274, %v6273
        %v6302 = vpack.c.b16 %v6276, %v6275
        %v6303 = vpack.c.b16 %v6278, %v6277
        %v6304 = vpack.c.b16 %v6280, %v6279
        %v6305 = vpack.c.b16 %v6282, %v6281
        %v6306 = vpack.c.b16 %v6284, %v6283
        %v6307 = vpack.c.b16 %v6286, %v6285
        %v6308 = vpack.c.b16 %v6288, %v6287
        %v6309 = vpack.c.b16 %v6290, %v6289
        %v6310 = vpack.c.b16 %v6292, %v6291
        %v6311 = vpack.c.b16 %v6294, %v6293
        %v6312 = vpack.c.b16 %v6296, %v6295
        %v6329 = vunpack.c.l.b16 %v6076
        %v6330 = vunpack.c.l.b16 %v6079
        %v6331 = vunpack.c.l.b16 %v6083
        %v6332 = vunpack.c.l.b16 %v6086
        %v6333 = vunpack.c.l.b16 %v6090
        %v6334 = vunpack.c.l.b16 %v6093
        %v6335 = vunpack.c.l.b16 %v6097
        %v6336 = vunpack.c.l.b16 %v6100
        %v6337 = vunpack.c.l.b16 %v6104
        %v6338 = vunpack.c.l.b16 %v6107
        %v6339 = vunpack.c.l.b16 %v6111
        %v6340 = vunpack.c.l.b16 %v6114
        %v6341 = vunpack.c.l.b16 %v6118
        %v6342 = vunpack.c.l.b16 %v6121
        %v6343 = vunpack.c.l.b16 %v6125
        %v6344 = vunpack.c.l.b16 %v6128
        %v6345 = vunpack.c.l.b16 %v6132
        %v6346 = vunpack.c.l.b16 %v6135
        %v6347 = vunpack.c.l.b16 %v6139
        %v6348 = vunpack.c.l.b16 %v6142
        %v6349 = vunpack.c.l.b16 %v6146
        %v6350 = vunpack.c.l.b16 %v6149
        %v6351 = vunpack.c.l.b16 %v6153
        %v6352 = vunpack.c.l.b16 %v6156
        %v6353 = vunpack.c.l.b16 %v6160
        %v6354 = vunpack.c.l.b16 %v6163
        %v6355 = vunpack.c.l.b16 %v6167
        %v6356 = vunpack.c.l.b16 %v6170
        %v6357 = vunpack.c.l.b16 %v6174
        %v6358 = vunpack.c.l.b16 %v6177
        %v6359 = vunpack.c.l.b16 %v6181
        %v6360 = vunpack.c.l.b16 %v6184
        %v6361 = vpack.c.b16 %v6330, %v6329
        %v6362 = vpack.c.b16 %v6332, %v6331
        %v6363 = vpack.c.b16 %v6334, %v6333
        %v6364 = vpack.c.b16 %v6336, %v6335
        %v6365 = vpack.c.b16 %v6338, %v6337
        %v6366 = vpack.c.b16 %v6340, %v6339
        %v6367 = vpack.c.b16 %v6342, %v6341
        %v6368 = vpack.c.b16 %v6344, %v6343
        %v6369 = vpack.c.b16 %v6346, %v6345
        %v6370 = vpack.c.b16 %v6348, %v6347
        %v6371 = vpack.c.b16 %v6350, %v6349
        %v6372 = vpack.c.b16 %v6352, %v6351
        %v6373 = vpack.c.b16 %v6354, %v6353
        %v6374 = vpack.c.b16 %v6356, %v6355
        %v6375 = vpack.c.b16 %v6358, %v6357
        %v6376 = vpack.c.b16 %v6360, %v6359
        %v6393 = vld [vmem:[#allocation2] sm:$0xff]
        %v6394 = vld [vmem:[#allocation2 + $0x8] sm:$0xff]
        %v6395 = vld [vmem:[#allocation2 + $0x10] sm:$0xff]
        %v6396 = vld [vmem:[#allocation2 + $0x18] sm:$0xff]
        %v6397 = vld [vmem:[#allocation2 + $0x20] sm:$0xff]
        %v6398 = vld [vmem:[#allocation2 + $0x28] sm:$0xff]
        %v6399 = vld [vmem:[#allocation2 + $0x30] sm:$0xff]
        %v6400 = vld [vmem:[#allocation2 + $0x38] sm:$0xff]
        %v6401 = vld [vmem:[#allocation2 + $0x40] sm:$0xff]
        %v6402 = vld [vmem:[#allocation2 + $0x48] sm:$0xff]
        %v6403 = vld [vmem:[#allocation2 + $0x50] sm:$0xff]
        %v6404 = vld [vmem:[#allocation2 + $0x58] sm:$0xff]
        %v6405 = vld [vmem:[#allocation2 + $0x60] sm:$0xff]
        %v6406 = vld [vmem:[#allocation2 + $0x68] sm:$0xff]
        %v6407 = vld [vmem:[#allocation2 + $0x70] sm:$0xff]
        %v6408 = vld [vmem:[#allocation2 + $0x78] sm:$0xff]
        %v6409 = vld [vmem:[#allocation2 + $0x80] sm:$0xff]
        %v6410 = vld [vmem:[#allocation2 + $0x88] sm:$0xff]
        %v6411 = vld [vmem:[#allocation2 + $0x90] sm:$0xff]
        %v6412 = vld [vmem:[#allocation2 + $0x98] sm:$0xff]
        %v6413 = vld [vmem:[#allocation2 + $0xa0] sm:$0xff]
        %v6414 = vld [vmem:[#allocation2 + $0xa8] sm:$0xff]
        %v6415 = vld [vmem:[#allocation2 + $0xb0] sm:$0xff]
        %v6416 = vld [vmem:[#allocation2 + $0xb8] sm:$0xff]
        %v6417 = vld [vmem:[#allocation2 + $0xc0] sm:$0xff]
        %v6418 = vld [vmem:[#allocation2 + $0xc8] sm:$0xff]
        %v6419 = vld [vmem:[#allocation2 + $0xd0] sm:$0xff]
        %v6420 = vld [vmem:[#allocation2 + $0xd8] sm:$0xff]
        %v6421 = vld [vmem:[#allocation2 + $0xe0] sm:$0xff]
        %v6422 = vld [vmem:[#allocation2 + $0xe8] sm:$0xff]
        %v6423 = vld [vmem:[#allocation2 + $0xf0] sm:$0xff]
        %v6424 = vld [vmem:[#allocation2 + $0xf8] sm:$0xff]
        %v6425 = vld [vmem:[#allocation2 + $0x100] sm:$0xff]
        %v6426 = vld [vmem:[#allocation2 + $0x108] sm:$0xff]
        %v6427 = vld [vmem:[#allocation2 + $0x110] sm:$0xff]
        %v6428 = vld [vmem:[#allocation2 + $0x118] sm:$0xff]
        %v6429 = vld [vmem:[#allocation2 + $0x120] sm:$0xff]
        %v6430 = vld [vmem:[#allocation2 + $0x128] sm:$0xff]
        %v6431 = vld [vmem:[#allocation2 + $0x130] sm:$0xff]
        %v6432 = vld [vmem:[#allocation2 + $0x138] sm:$0xff]
        %v6433 = vld [vmem:[#allocation2 + $0x140] sm:$0xff]
        %v6434 = vld [vmem:[#allocation2 + $0x148] sm:$0xff]
        %v6435 = vld [vmem:[#allocation2 + $0x150] sm:$0xff]
        %v6436 = vld [vmem:[#allocation2 + $0x158] sm:$0xff]
        %v6437 = vld [vmem:[#allocation2 + $0x160] sm:$0xff]
        %v6438 = vld [vmem:[#allocation2 + $0x168] sm:$0xff]
        %v6439 = vld [vmem:[#allocation2 + $0x170] sm:$0xff]
        %v6440 = vld [vmem:[#allocation2 + $0x178] sm:$0xff]
        %v6441 = vld [vmem:[#allocation2 + $0x180] sm:$0xff]
        %v6442 = vld [vmem:[#allocation2 + $0x188] sm:$0xff]
        %v6443 = vld [vmem:[#allocation2 + $0x190] sm:$0xff]
        %v6444 = vld [vmem:[#allocation2 + $0x198] sm:$0xff]
        %v6445 = vld [vmem:[#allocation2 + $0x1a0] sm:$0xff]
        %v6446 = vld [vmem:[#allocation2 + $0x1a8] sm:$0xff]
        %v6447 = vld [vmem:[#allocation2 + $0x1b0] sm:$0xff]
        %v6448 = vld [vmem:[#allocation2 + $0x1b8] sm:$0xff]
        %v6449 = vld [vmem:[#allocation2 + $0x1c0] sm:$0xff]
        %v6450 = vld [vmem:[#allocation2 + $0x1c8] sm:$0xff]
        %v6451 = vld [vmem:[#allocation2 + $0x1d0] sm:$0xff]
        %v6452 = vld [vmem:[#allocation2 + $0x1d8] sm:$0xff]
        %v6453 = vld [vmem:[#allocation2 + $0x1e0] sm:$0xff]
        %v6454 = vld [vmem:[#allocation2 + $0x1e8] sm:$0xff]
        %v6455 = vld [vmem:[#allocation2 + $0x1f0] sm:$0xff]
        %v6456 = vld [vmem:[#allocation2 + $0x1f8] sm:$0xff]
        %v6457 = vld [vmem:[#allocation2 + $0x200] sm:$0xff]
        %v6458 = vld [vmem:[#allocation2 + $0x208] sm:$0xff]
        %v6459 = vld [vmem:[#allocation2 + $0x210] sm:$0xff]
        %v6460 = vld [vmem:[#allocation2 + $0x218] sm:$0xff]
        %v6461 = vld [vmem:[#allocation2 + $0x220] sm:$0xff]
        %v6462 = vld [vmem:[#allocation2 + $0x228] sm:$0xff]
        %v6463 = vld [vmem:[#allocation2 + $0x230] sm:$0xff]
        %v6464 = vld [vmem:[#allocation2 + $0x238] sm:$0xff]
        %v6465 = vld [vmem:[#allocation2 + $0x240] sm:$0xff]
        %v6466 = vld [vmem:[#allocation2 + $0x248] sm:$0xff]
        %v6467 = vld [vmem:[#allocation2 + $0x250] sm:$0xff]
        %v6468 = vld [vmem:[#allocation2 + $0x258] sm:$0xff]
        %v6469 = vld [vmem:[#allocation2 + $0x260] sm:$0xff]
        %v6470 = vld [vmem:[#allocation2 + $0x268] sm:$0xff]
        %v6471 = vld [vmem:[#allocation2 + $0x270] sm:$0xff]
        %v6472 = vld [vmem:[#allocation2 + $0x278] sm:$0xff]
        %v6473 = vld [vmem:[#allocation2 + $0x280] sm:$0xff]
        %v6474 = vld [vmem:[#allocation2 + $0x288] sm:$0xff]
        %v6475 = vld [vmem:[#allocation2 + $0x290] sm:$0xff]
        %v6476 = vld [vmem:[#allocation2 + $0x298] sm:$0xff]
        %v6477 = vld [vmem:[#allocation2 + $0x2a0] sm:$0xff]
        %v6478 = vld [vmem:[#allocation2 + $0x2a8] sm:$0xff]
        %v6479 = vld [vmem:[#allocation2 + $0x2b0] sm:$0xff]
        %v6480 = vld [vmem:[#allocation2 + $0x2b8] sm:$0xff]
        %v6481 = vld [vmem:[#allocation2 + $0x2c0] sm:$0xff]
        %v6482 = vld [vmem:[#allocation2 + $0x2c8] sm:$0xff]
        %v6483 = vld [vmem:[#allocation2 + $0x2d0] sm:$0xff]
        %v6484 = vld [vmem:[#allocation2 + $0x2d8] sm:$0xff]
        %v6485 = vld [vmem:[#allocation2 + $0x2e0] sm:$0xff]
        %v6486 = vld [vmem:[#allocation2 + $0x2e8] sm:$0xff]
        %v6487 = vld [vmem:[#allocation2 + $0x2f0] sm:$0xff]
        %v6488 = vld [vmem:[#allocation2 + $0x2f8] sm:$0xff]
        %v6489 = vld [vmem:[#allocation2 + $0x300] sm:$0xff]
        %v6490 = vld [vmem:[#allocation2 + $0x308] sm:$0xff]
        %v6491 = vld [vmem:[#allocation2 + $0x310] sm:$0xff]
        %v6492 = vld [vmem:[#allocation2 + $0x318] sm:$0xff]
        %v6493 = vld [vmem:[#allocation2 + $0x320] sm:$0xff]
        %v6494 = vld [vmem:[#allocation2 + $0x328] sm:$0xff]
        %v6495 = vld [vmem:[#allocation2 + $0x330] sm:$0xff]
        %v6496 = vld [vmem:[#allocation2 + $0x338] sm:$0xff]
        %v6497 = vld [vmem:[#allocation2 + $0x340] sm:$0xff]
        %v6498 = vld [vmem:[#allocation2 + $0x348] sm:$0xff]
        %v6499 = vld [vmem:[#allocation2 + $0x350] sm:$0xff]
        %v6500 = vld [vmem:[#allocation2 + $0x358] sm:$0xff]
        %v6501 = vld [vmem:[#allocation2 + $0x360] sm:$0xff]
        %v6502 = vld [vmem:[#allocation2 + $0x368] sm:$0xff]
        %v6503 = vld [vmem:[#allocation2 + $0x370] sm:$0xff]
        %v6504 = vld [vmem:[#allocation2 + $0x378] sm:$0xff]
        %v6505 = vld [vmem:[#allocation2 + $0x380] sm:$0xff]
        %v6506 = vld [vmem:[#allocation2 + $0x388] sm:$0xff]
        %v6507 = vld [vmem:[#allocation2 + $0x390] sm:$0xff]
        %v6508 = vld [vmem:[#allocation2 + $0x398] sm:$0xff]
        %v6509 = vld [vmem:[#allocation2 + $0x3a0] sm:$0xff]
        %v6510 = vld [vmem:[#allocation2 + $0x3a8] sm:$0xff]
        %v6511 = vld [vmem:[#allocation2 + $0x3b0] sm:$0xff]
        %v6512 = vld [vmem:[#allocation2 + $0x3b8] sm:$0xff]
        %v6513 = vld [vmem:[#allocation2 + $0x3c0] sm:$0xff]
        %v6514 = vld [vmem:[#allocation2 + $0x3c8] sm:$0xff]
        %v6515 = vld [vmem:[#allocation2 + $0x3d0] sm:$0xff]
        %v6516 = vld [vmem:[#allocation2 + $0x3d8] sm:$0xff]
        %v6517 = vld [vmem:[#allocation2 + $0x3e0] sm:$0xff]
        %v6518 = vld [vmem:[#allocation2 + $0x3e8] sm:$0xff]
        %v6519 = vld [vmem:[#allocation2 + $0x3f0] sm:$0xff]
        %v6520 = vld [vmem:[#allocation2 + $0x3f8] sm:$0xff]
        %s6521 = scalar_lea.vmem [#allocation6], 1536
        %v6522 = vld [vmem:[%s6521] sm:$0xff]
        %v6523 = vld [vmem:[%s6521 + $0x8] sm:$0xff]
        %v6524 = vld [vmem:[%s6521 + $0x10] sm:$0xff]
        %v6525 = vld [vmem:[%s6521 + $0x18] sm:$0xff]
        %v6526 = vld [vmem:[%s6521 + $0x20] sm:$0xff]
        %v6527 = vld [vmem:[%s6521 + $0x28] sm:$0xff]
        %v6528 = vld [vmem:[%s6521 + $0x30] sm:$0xff]
        %v6529 = vld [vmem:[%s6521 + $0x38] sm:$0xff]
        %v6530 = vld [vmem:[%s6521 + $0x40] sm:$0xff]
        %v6531 = vld [vmem:[%s6521 + $0x48] sm:$0xff]
        %v6532 = vld [vmem:[%s6521 + $0x50] sm:$0xff]
        %v6533 = vld [vmem:[%s6521 + $0x58] sm:$0xff]
        %v6534 = vld [vmem:[%s6521 + $0x60] sm:$0xff]
        %v6535 = vld [vmem:[%s6521 + $0x68] sm:$0xff]
        %v6536 = vld [vmem:[%s6521 + $0x70] sm:$0xff]
        %v6537 = vld [vmem:[%s6521 + $0x78] sm:$0xff]
        %v6538 = vld [vmem:[%s6521 + $0x80] sm:$0xff]
        %v6539 = vld [vmem:[%s6521 + $0x88] sm:$0xff]
        %v6540 = vld [vmem:[%s6521 + $0x90] sm:$0xff]
        %v6541 = vld [vmem:[%s6521 + $0x98] sm:$0xff]
        %v6542 = vld [vmem:[%s6521 + $0xa0] sm:$0xff]
        %v6543 = vld [vmem:[%s6521 + $0xa8] sm:$0xff]
        %v6544 = vld [vmem:[%s6521 + $0xb0] sm:$0xff]
        %v6545 = vld [vmem:[%s6521 + $0xb8] sm:$0xff]
        %v6546 = vld [vmem:[%s6521 + $0xc0] sm:$0xff]
        %v6547 = vld [vmem:[%s6521 + $0xc8] sm:$0xff]
        %v6548 = vld [vmem:[%s6521 + $0xd0] sm:$0xff]
        %v6549 = vld [vmem:[%s6521 + $0xd8] sm:$0xff]
        %v6550 = vld [vmem:[%s6521 + $0xe0] sm:$0xff]
        %v6551 = vld [vmem:[%s6521 + $0xe8] sm:$0xff]
        %v6552 = vld [vmem:[%s6521 + $0xf0] sm:$0xff]
        %v6553 = vld [vmem:[%s6521 + $0xf8] sm:$0xff]
        %v6554 = vld [vmem:[%s6521 + $0x100] sm:$0xff]
        %v6555 = vld [vmem:[%s6521 + $0x108] sm:$0xff]
        %v6556 = vld [vmem:[%s6521 + $0x110] sm:$0xff]
        %v6557 = vld [vmem:[%s6521 + $0x118] sm:$0xff]
        %v6558 = vld [vmem:[%s6521 + $0x120] sm:$0xff]
        %v6559 = vld [vmem:[%s6521 + $0x128] sm:$0xff]
        %v6560 = vld [vmem:[%s6521 + $0x130] sm:$0xff]
        %v6561 = vld [vmem:[%s6521 + $0x138] sm:$0xff]
        %v6562 = vld [vmem:[%s6521 + $0x140] sm:$0xff]
        %v6563 = vld [vmem:[%s6521 + $0x148] sm:$0xff]
        %v6564 = vld [vmem:[%s6521 + $0x150] sm:$0xff]
        %v6565 = vld [vmem:[%s6521 + $0x158] sm:$0xff]
        %v6566 = vld [vmem:[%s6521 + $0x160] sm:$0xff]
        %v6567 = vld [vmem:[%s6521 + $0x168] sm:$0xff]
        %v6568 = vld [vmem:[%s6521 + $0x170] sm:$0xff]
        %v6569 = vld [vmem:[%s6521 + $0x178] sm:$0xff]
        %v6570 = vld [vmem:[%s6521 + $0x180] sm:$0xff]
        %v6571 = vld [vmem:[%s6521 + $0x188] sm:$0xff]
        %v6572 = vld [vmem:[%s6521 + $0x190] sm:$0xff]
        %v6573 = vld [vmem:[%s6521 + $0x198] sm:$0xff]
        %v6574 = vld [vmem:[%s6521 + $0x1a0] sm:$0xff]
        %v6575 = vld [vmem:[%s6521 + $0x1a8] sm:$0xff]
        %v6576 = vld [vmem:[%s6521 + $0x1b0] sm:$0xff]
        %v6577 = vld [vmem:[%s6521 + $0x1b8] sm:$0xff]
        %v6578 = vld [vmem:[%s6521 + $0x1c0] sm:$0xff]
        %v6579 = vld [vmem:[%s6521 + $0x1c8] sm:$0xff]
        %v6580 = vld [vmem:[%s6521 + $0x1d0] sm:$0xff]
        %v6581 = vld [vmem:[%s6521 + $0x1d8] sm:$0xff]
        %v6582 = vld [vmem:[%s6521 + $0x1e0] sm:$0xff]
        %v6583 = vld [vmem:[%s6521 + $0x1e8] sm:$0xff]
        %v6584 = vld [vmem:[%s6521 + $0x1f0] sm:$0xff]
        %v6585 = vld [vmem:[%s6521 + $0x1f8] sm:$0xff]
        %v6586 = vld [vmem:[%s6521 + $0x200] sm:$0xff]
        %v6587 = vld [vmem:[%s6521 + $0x208] sm:$0xff]
        %v6588 = vld [vmem:[%s6521 + $0x210] sm:$0xff]
        %v6589 = vld [vmem:[%s6521 + $0x218] sm:$0xff]
        %v6590 = vld [vmem:[%s6521 + $0x220] sm:$0xff]
        %v6591 = vld [vmem:[%s6521 + $0x228] sm:$0xff]
        %v6592 = vld [vmem:[%s6521 + $0x230] sm:$0xff]
        %v6593 = vld [vmem:[%s6521 + $0x238] sm:$0xff]
        %v6594 = vld [vmem:[%s6521 + $0x240] sm:$0xff]
        %v6595 = vld [vmem:[%s6521 + $0x248] sm:$0xff]
        %v6596 = vld [vmem:[%s6521 + $0x250] sm:$0xff]
        %v6597 = vld [vmem:[%s6521 + $0x258] sm:$0xff]
        %v6598 = vld [vmem:[%s6521 + $0x260] sm:$0xff]
        %v6599 = vld [vmem:[%s6521 + $0x268] sm:$0xff]
        %v6600 = vld [vmem:[%s6521 + $0x270] sm:$0xff]
        %v6601 = vld [vmem:[%s6521 + $0x278] sm:$0xff]
        %v6602 = vld [vmem:[%s6521 + $0x280] sm:$0xff]
        %v6603 = vld [vmem:[%s6521 + $0x288] sm:$0xff]
        %v6604 = vld [vmem:[%s6521 + $0x290] sm:$0xff]
        %v6605 = vld [vmem:[%s6521 + $0x298] sm:$0xff]
        %v6606 = vld [vmem:[%s6521 + $0x2a0] sm:$0xff]
        %v6607 = vld [vmem:[%s6521 + $0x2a8] sm:$0xff]
        %v6608 = vld [vmem:[%s6521 + $0x2b0] sm:$0xff]
        %v6609 = vld [vmem:[%s6521 + $0x2b8] sm:$0xff]
        %v6610 = vld [vmem:[%s6521 + $0x2c0] sm:$0xff]
        %v6611 = vld [vmem:[%s6521 + $0x2c8] sm:$0xff]
        %v6612 = vld [vmem:[%s6521 + $0x2d0] sm:$0xff]
        %v6613 = vld [vmem:[%s6521 + $0x2d8] sm:$0xff]
        %v6614 = vld [vmem:[%s6521 + $0x2e0] sm:$0xff]
        %v6615 = vld [vmem:[%s6521 + $0x2e8] sm:$0xff]
        %v6616 = vld [vmem:[%s6521 + $0x2f0] sm:$0xff]
        %v6617 = vld [vmem:[%s6521 + $0x2f8] sm:$0xff]
        %v6714 = vunpack.c.l.b16 %v6522
        %v6715 = vunpack.c.h.b16 %v6522
        %v6716 = vunpack.c.l.b16 %v6523
        %v6717 = vunpack.c.h.b16 %v6523
        %v6718 = vunpack.c.l.b16 %v6524
        %v6719 = vunpack.c.h.b16 %v6524
        %v6720 = vunpack.c.l.b16 %v6525
        %v6721 = vunpack.c.h.b16 %v6525
        %v6722 = vunpack.c.l.b16 %v6526
        %v6723 = vunpack.c.h.b16 %v6526
        %v6724 = vunpack.c.l.b16 %v6527
        %v6725 = vunpack.c.h.b16 %v6527
        %v6726 = vunpack.c.l.b16 %v6528
        %v6727 = vunpack.c.h.b16 %v6528
        %v6728 = vunpack.c.l.b16 %v6529
        %v6729 = vunpack.c.h.b16 %v6529
        %v6730 = vunpack.c.l.b16 %v6530
        %v6731 = vunpack.c.h.b16 %v6530
        %v6732 = vunpack.c.l.b16 %v6531
        %v6733 = vunpack.c.h.b16 %v6531
        %v6734 = vunpack.c.l.b16 %v6532
        %v6735 = vunpack.c.h.b16 %v6532
        %v6736 = vunpack.c.l.b16 %v6533
        %v6737 = vunpack.c.h.b16 %v6533
        %v6738 = vunpack.c.l.b16 %v6534
        %v6739 = vunpack.c.h.b16 %v6534
        %v6740 = vunpack.c.l.b16 %v6535
        %v6741 = vunpack.c.h.b16 %v6535
        %v6742 = vunpack.c.l.b16 %v6536
        %v6743 = vunpack.c.h.b16 %v6536
        %v6744 = vunpack.c.l.b16 %v6537
        %v6745 = vunpack.c.h.b16 %v6537
        %v6746 = vunpack.c.l.b16 %v6538
        %v6747 = vunpack.c.h.b16 %v6538
        %v6748 = vunpack.c.l.b16 %v6539
        %v6749 = vunpack.c.h.b16 %v6539
        %v6750 = vunpack.c.l.b16 %v6540
        %v6751 = vunpack.c.h.b16 %v6540
        %v6752 = vunpack.c.l.b16 %v6541
        %v6753 = vunpack.c.h.b16 %v6541
        %v6754 = vunpack.c.l.b16 %v6542
        %v6755 = vunpack.c.h.b16 %v6542
        %v6756 = vunpack.c.l.b16 %v6543
        %v6757 = vunpack.c.h.b16 %v6543
        %v6758 = vunpack.c.l.b16 %v6544
        %v6759 = vunpack.c.h.b16 %v6544
        %v6760 = vunpack.c.l.b16 %v6545
        %v6761 = vunpack.c.h.b16 %v6545
        %v6762 = vunpack.c.l.b16 %v6546
        %v6763 = vunpack.c.h.b16 %v6546
        %v6764 = vunpack.c.l.b16 %v6547
        %v6765 = vunpack.c.h.b16 %v6547
        %v6766 = vunpack.c.l.b16 %v6548
        %v6767 = vunpack.c.h.b16 %v6548
        %v6768 = vunpack.c.l.b16 %v6549
        %v6769 = vunpack.c.h.b16 %v6549
        %v6770 = vunpack.c.l.b16 %v6550
        %v6771 = vunpack.c.h.b16 %v6550
        %v6772 = vunpack.c.l.b16 %v6551
        %v6773 = vunpack.c.h.b16 %v6551
        %v6774 = vunpack.c.l.b16 %v6552
        %v6775 = vunpack.c.h.b16 %v6552
        %v6776 = vunpack.c.l.b16 %v6553
        %v6777 = vunpack.c.h.b16 %v6553
        %v6778 = vunpack.c.l.b16 %v6554
        %v6779 = vunpack.c.h.b16 %v6554
        %v6780 = vunpack.c.l.b16 %v6555
        %v6781 = vunpack.c.h.b16 %v6555
        %v6782 = vunpack.c.l.b16 %v6556
        %v6783 = vunpack.c.h.b16 %v6556
        %v6784 = vunpack.c.l.b16 %v6557
        %v6785 = vunpack.c.h.b16 %v6557
        %v6786 = vunpack.c.l.b16 %v6558
        %v6787 = vunpack.c.h.b16 %v6558
        %v6788 = vunpack.c.l.b16 %v6559
        %v6789 = vunpack.c.h.b16 %v6559
        %v6790 = vunpack.c.l.b16 %v6560
        %v6791 = vunpack.c.h.b16 %v6560
        %v6792 = vunpack.c.l.b16 %v6561
        %v6793 = vunpack.c.h.b16 %v6561
        %v6794 = vunpack.c.l.b16 %v6562
        %v6795 = vunpack.c.h.b16 %v6562
        %v6796 = vunpack.c.l.b16 %v6563
        %v6797 = vunpack.c.h.b16 %v6563
        %v6798 = vunpack.c.l.b16 %v6564
        %v6799 = vunpack.c.h.b16 %v6564
        %v6800 = vunpack.c.l.b16 %v6565
        %v6801 = vunpack.c.h.b16 %v6565
        %v6802 = vunpack.c.l.b16 %v6566
        %v6803 = vunpack.c.h.b16 %v6566
        %v6804 = vunpack.c.l.b16 %v6567
        %v6805 = vunpack.c.h.b16 %v6567
        %v6806 = vunpack.c.l.b16 %v6568
        %v6807 = vunpack.c.h.b16 %v6568
        %v6808 = vunpack.c.l.b16 %v6569
        %v6809 = vunpack.c.h.b16 %v6569
        %v6810 = vunpack.c.l.b16 %v6570
        %v6811 = vunpack.c.h.b16 %v6570
        %v6812 = vunpack.c.l.b16 %v6571
        %v6813 = vunpack.c.h.b16 %v6571
        %v6814 = vunpack.c.l.b16 %v6572
        %v6815 = vunpack.c.h.b16 %v6572
        %v6816 = vunpack.c.l.b16 %v6573
        %v6817 = vunpack.c.h.b16 %v6573
        %v6818 = vunpack.c.l.b16 %v6574
        %v6819 = vunpack.c.h.b16 %v6574
        %v6820 = vunpack.c.l.b16 %v6575
        %v6821 = vunpack.c.h.b16 %v6575
        %v6822 = vunpack.c.l.b16 %v6576
        %v6823 = vunpack.c.h.b16 %v6576
        %v6824 = vunpack.c.l.b16 %v6577
        %v6825 = vunpack.c.h.b16 %v6577
        %v6826 = vunpack.c.l.b16 %v6578
        %v6827 = vunpack.c.h.b16 %v6578
        %v6828 = vunpack.c.l.b16 %v6579
        %v6829 = vunpack.c.h.b16 %v6579
        %v6830 = vunpack.c.l.b16 %v6580
        %v6831 = vunpack.c.h.b16 %v6580
        %v6832 = vunpack.c.l.b16 %v6581
        %v6833 = vunpack.c.h.b16 %v6581
        %v6834 = vunpack.c.l.b16 %v6582
        %v6835 = vunpack.c.h.b16 %v6582
        %v6836 = vunpack.c.l.b16 %v6583
        %v6837 = vunpack.c.h.b16 %v6583
        %v6838 = vunpack.c.l.b16 %v6584
        %v6839 = vunpack.c.h.b16 %v6584
        %v6840 = vunpack.c.l.b16 %v6585
        %v6841 = vunpack.c.h.b16 %v6585
        %v6842 = vunpack.c.l.b16 %v6586
        %v6843 = vunpack.c.h.b16 %v6586
        %v6844 = vunpack.c.l.b16 %v6587
        %v6845 = vunpack.c.h.b16 %v6587
        %v6846 = vunpack.c.l.b16 %v6588
        %v6847 = vunpack.c.h.b16 %v6588
        %v6848 = vunpack.c.l.b16 %v6589
        %v6849 = vunpack.c.h.b16 %v6589
        %v6850 = vunpack.c.l.b16 %v6590
        %v6851 = vunpack.c.h.b16 %v6590
        %v6852 = vunpack.c.l.b16 %v6591
        %v6853 = vunpack.c.h.b16 %v6591
        %v6854 = vunpack.c.l.b16 %v6592
        %v6855 = vunpack.c.h.b16 %v6592
        %v6856 = vunpack.c.l.b16 %v6593
        %v6857 = vunpack.c.h.b16 %v6593
        %v6858 = vunpack.c.l.b16 %v6594
        %v6859 = vunpack.c.h.b16 %v6594
        %v6860 = vunpack.c.l.b16 %v6595
        %v6861 = vunpack.c.h.b16 %v6595
        %v6862 = vunpack.c.l.b16 %v6596
        %v6863 = vunpack.c.h.b16 %v6596
        %v6864 = vunpack.c.l.b16 %v6597
        %v6865 = vunpack.c.h.b16 %v6597
        %v6866 = vunpack.c.l.b16 %v6598
        %v6867 = vunpack.c.h.b16 %v6598
        %v6868 = vunpack.c.l.b16 %v6599
        %v6869 = vunpack.c.h.b16 %v6599
        %v6870 = vunpack.c.l.b16 %v6600
        %v6871 = vunpack.c.h.b16 %v6600
        %v6872 = vunpack.c.l.b16 %v6601
        %v6873 = vunpack.c.h.b16 %v6601
        %v6874 = vunpack.c.l.b16 %v6602
        %v6875 = vunpack.c.h.b16 %v6602
        %v6876 = vunpack.c.l.b16 %v6603
        %v6877 = vunpack.c.h.b16 %v6603
        %v6878 = vunpack.c.l.b16 %v6604
        %v6879 = vunpack.c.h.b16 %v6604
        %v6880 = vunpack.c.l.b16 %v6605
        %v6881 = vunpack.c.h.b16 %v6605
        %v6882 = vunpack.c.l.b16 %v6606
        %v6883 = vunpack.c.h.b16 %v6606
        %v6884 = vunpack.c.l.b16 %v6607
        %v6885 = vunpack.c.h.b16 %v6607
        %v6886 = vunpack.c.l.b16 %v6608
        %v6887 = vunpack.c.h.b16 %v6608
        %v6888 = vunpack.c.l.b16 %v6609
        %v6889 = vunpack.c.h.b16 %v6609
        %v6890 = vunpack.c.l.b16 %v6610
        %v6891 = vunpack.c.h.b16 %v6610
        %v6892 = vunpack.c.l.b16 %v6611
        %v6893 = vunpack.c.h.b16 %v6611
        %v6894 = vunpack.c.l.b16 %v6612
        %v6895 = vunpack.c.h.b16 %v6612
        %v6896 = vunpack.c.l.b16 %v6613
        %v6897 = vunpack.c.h.b16 %v6613
        %v6898 = vunpack.c.l.b16 %v6614
        %v6899 = vunpack.c.h.b16 %v6614
        %v6900 = vunpack.c.l.b16 %v6615
        %v6901 = vunpack.c.h.b16 %v6615
        %v6902 = vunpack.c.l.b16 %v6616
        %v6903 = vunpack.c.h.b16 %v6616
        %v6904 = vunpack.c.l.b16 %v6617
        %v6905 = vunpack.c.h.b16 %v6617
        %v6906 = vpack.c.b16 %v6718, %v6714
        %v6907 = vpack.c.b16 %v6719, %v6715
        %v6908 = vpack.c.b16 %v6720, %v6716
        %v6909 = vpack.c.b16 %v6721, %v6717
        %v6910 = vpack.c.b16 %v6726, %v6722
        %v6911 = vpack.c.b16 %v6727, %v6723
        %v6912 = vpack.c.b16 %v6728, %v6724
        %v6913 = vpack.c.b16 %v6729, %v6725
        %v6914 = vpack.c.b16 %v6734, %v6730
        %v6915 = vpack.c.b16 %v6735, %v6731
        %v6916 = vpack.c.b16 %v6736, %v6732
        %v6917 = vpack.c.b16 %v6737, %v6733
        %v6918 = vpack.c.b16 %v6742, %v6738
        %v6919 = vpack.c.b16 %v6743, %v6739
        %v6920 = vpack.c.b16 %v6744, %v6740
        %v6921 = vpack.c.b16 %v6745, %v6741
        %v6922 = vpack.c.b16 %v6750, %v6746
        %v6923 = vpack.c.b16 %v6751, %v6747
        %v6924 = vpack.c.b16 %v6752, %v6748
        %v6925 = vpack.c.b16 %v6753, %v6749
        %v6926 = vpack.c.b16 %v6758, %v6754
        %v6927 = vpack.c.b16 %v6759, %v6755
        %v6928 = vpack.c.b16 %v6760, %v6756
        %v6929 = vpack.c.b16 %v6761, %v6757
        %v6930 = vpack.c.b16 %v6766, %v6762
        %v6931 = vpack.c.b16 %v6767, %v6763
        %v6932 = vpack.c.b16 %v6768, %v6764
        %v6933 = vpack.c.b16 %v6769, %v6765
        %v6934 = vpack.c.b16 %v6774, %v6770
        %v6935 = vpack.c.b16 %v6775, %v6771
        %v6936 = vpack.c.b16 %v6776, %v6772
        %v6937 = vpack.c.b16 %v6777, %v6773
        %v6938 = vpack.c.b16 %v6782, %v6778
        %v6939 = vpack.c.b16 %v6783, %v6779
        %v6940 = vpack.c.b16 %v6784, %v6780
        %v6941 = vpack.c.b16 %v6785, %v6781
        %v6942 = vpack.c.b16 %v6790, %v6786
        %v6943 = vpack.c.b16 %v6791, %v6787
        %v6944 = vpack.c.b16 %v6792, %v6788
        %v6945 = vpack.c.b16 %v6793, %v6789
        %v6946 = vpack.c.b16 %v6798, %v6794
        %v6947 = vpack.c.b16 %v6799, %v6795
        %v6948 = vpack.c.b16 %v6800, %v6796
        %v6949 = vpack.c.b16 %v6801, %v6797
        %v6950 = vpack.c.b16 %v6806, %v6802
        %v6951 = vpack.c.b16 %v6807, %v6803
        %v6952 = vpack.c.b16 %v6808, %v6804
        %v6953 = vpack.c.b16 %v6809, %v6805
        %v6954 = vpack.c.b16 %v6814, %v6810
        %v6955 = vpack.c.b16 %v6815, %v6811
        %v6956 = vpack.c.b16 %v6816, %v6812
        %v6957 = vpack.c.b16 %v6817, %v6813
        %v6958 = vpack.c.b16 %v6822, %v6818
        %v6959 = vpack.c.b16 %v6823, %v6819
        %v6960 = vpack.c.b16 %v6824, %v6820
        %v6961 = vpack.c.b16 %v6825, %v6821
        %v6962 = vpack.c.b16 %v6830, %v6826
        %v6963 = vpack.c.b16 %v6831, %v6827
        %v6964 = vpack.c.b16 %v6832, %v6828
        %v6965 = vpack.c.b16 %v6833, %v6829
        %v6966 = vpack.c.b16 %v6838, %v6834
        %v6967 = vpack.c.b16 %v6839, %v6835
        %v6968 = vpack.c.b16 %v6840, %v6836
        %v6969 = vpack.c.b16 %v6841, %v6837
        %v6970 = vpack.c.b16 %v6846, %v6842
        %v6971 = vpack.c.b16 %v6847, %v6843
        %v6972 = vpack.c.b16 %v6848, %v6844
        %v6973 = vpack.c.b16 %v6849, %v6845
        %v6974 = vpack.c.b16 %v6854, %v6850
        %v6975 = vpack.c.b16 %v6855, %v6851
        %v6976 = vpack.c.b16 %v6856, %v6852
        %v6977 = vpack.c.b16 %v6857, %v6853
        %v6978 = vpack.c.b16 %v6862, %v6858
        %v6979 = vpack.c.b16 %v6863, %v6859
        %v6980 = vpack.c.b16 %v6864, %v6860
        %v6981 = vpack.c.b16 %v6865, %v6861
        %v6982 = vpack.c.b16 %v6870, %v6866
        %v6983 = vpack.c.b16 %v6871, %v6867
        %v6984 = vpack.c.b16 %v6872, %v6868
        %v6985 = vpack.c.b16 %v6873, %v6869
        %v6986 = vpack.c.b16 %v6878, %v6874
        %v6987 = vpack.c.b16 %v6879, %v6875
        %v6988 = vpack.c.b16 %v6880, %v6876
        %v6989 = vpack.c.b16 %v6881, %v6877
        %v6990 = vpack.c.b16 %v6886, %v6882
        %v6991 = vpack.c.b16 %v6887, %v6883
        %v6992 = vpack.c.b16 %v6888, %v6884
        %v6993 = vpack.c.b16 %v6889, %v6885
        %v6994 = vpack.c.b16 %v6894, %v6890
        %v6995 = vpack.c.b16 %v6895, %v6891
        %v6996 = vpack.c.b16 %v6896, %v6892
        %v6997 = vpack.c.b16 %v6897, %v6893
        %v6998 = vpack.c.b16 %v6902, %v6898
        %v6999 = vpack.c.b16 %v6903, %v6899
        %v7000 = vpack.c.b16 %v6904, %v6900
        %v7001 = vpack.c.b16 %v6905, %v6901
        %7098 = vmatprep.subr.bf16.mxu0 %v6907
        %7099 = vmatpush1.bf16.msra.mxu0 %v6906
        %7100 = vmatprep.subr.bf16.mxu0 %v6911
        %7101 = vmatpush1.bf16.msra.mxu0 %v6910
        %7102 = vmatprep.subr.bf16.mxu0 %v6915
        %7103 = vmatpush1.bf16.msra.mxu0 %v6914
        %7104 = vmatprep.subr.bf16.mxu0 %v6919
        %7105 = vmatpush1.bf16.msra.mxu0 %v6918
        %7106 = vmatprep.subr.bf16.mxu0 %v6923
        %7107 = vmatpush1.bf16.msra.mxu0 %v6922
        %7108 = vmatprep.subr.bf16.mxu0 %v6927
        %7109 = vmatpush1.bf16.msra.mxu0 %v6926
        %7110 = vmatprep.subr.bf16.mxu0 %v6931
        %7111 = vmatpush1.bf16.msra.mxu0 %v6930
        %7112 = vmatprep.subr.bf16.mxu0 %v6935
        %7113 = vmatpush1.bf16.msra.mxu0 %v6934
        %7114 = vmatprep.subr.bf16.mxu0 %v6939
        %7115 = vmatpush1.bf16.msra.mxu0 %v6938
        %7116 = vmatprep.subr.bf16.mxu0 %v6943
        %7117 = vmatpush1.bf16.msra.mxu0 %v6942
        %7118 = vmatprep.subr.bf16.mxu0 %v6947
        %7119 = vmatpush1.bf16.msra.mxu0 %v6946
        %7120 = vmatprep.subr.bf16.mxu0 %v6951
        %7121 = vmatpush1.bf16.msra.mxu0 %v6950
        %7122 = vmatprep.subr.bf16.mxu0 %v6955
        %7123 = vmatpush1.bf16.msra.mxu0 %v6954
        %7124 = vmatprep.subr.bf16.mxu0 %v6959
        %7125 = vmatpush1.bf16.msra.mxu0 %v6958
        %7126 = vmatprep.subr.bf16.mxu0 %v6963
        %7127 = vmatpush1.bf16.msra.mxu0 %v6962
        %7128 = vmatprep.subr.bf16.mxu0 %v6967
        %7129 = vmatpush1.bf16.msra.mxu0 %v6966
        %7130 = vmatprep.mubr.bf16.mxu0 %v6297
        %7131 = vmatmul.mubr.bf16.gmra.mrb[0].mxu0 %v6233
        %v7132 = vpop.f32.mrb[0].mxu0
        %v7133 = vadd.f32 0.0, %v7132
        %v7134 = vpop.f32.mrb[0].mxu0
        %v7135 = vadd.f32 0.0, %v7134
        %v7136 = vpop.f32.mrb[0].mxu0
        %v7137 = vadd.f32 0.0, %v7136
        %v7138 = vpop.f32.mrb[0].mxu0
        %v7139 = vadd.f32 0.0, %v7138
        %7140 = vmatprep.mubr.bf16.mxu0 %v6298
        %7141 = vmatmul.mubr.bf16.gmra.mrb[0].mxu0 %v6234
        %v7142 = vpop.f32.mrb[0].mxu0
        %v7143 = vadd.f32 0.0, %v7142
        %v7144 = vpop.f32.mrb[0].mxu0
        %v7145 = vadd.f32 0.0, %v7144
        %v7146 = vpop.f32.mrb[0].mxu0
        %v7147 = vadd.f32 0.0, %v7146
        %v7148 = vpop.f32.mrb[0].mxu0
        %v7149 = vadd.f32 0.0, %v7148
        %7150 = vmatprep.mubr.bf16.mxu0 %v6299
        %7151 = vmatmul.mubr.bf16.gmra.mrb[0].mxu0 %v6235
        %v7152 = vpop.f32.mrb[0].mxu0
        %v7153 = vadd.f32 0.0, %v7152
        %v7154 = vpop.f32.mrb[0].mxu0
        %v7155 = vadd.f32 0.0, %v7154
        %v7156 = vpop.f32.mrb[0].mxu0
        %v7157 = vadd.f32 0.0, %v7156
        %v7158 = vpop.f32.mrb[0].mxu0
        %v7159 = vadd.f32 0.0, %v7158
        %7160 = vmatprep.mubr.bf16.mxu0 %v6300
        %7161 = vmatmul.mubr.bf16.gmra.mrb[0].mxu0 %v6236
        %v7162 = vpop.f32.mrb[0].mxu0
        %v7163 = vadd.f32 0.0, %v7162
        %v7164 = vpop.f32.mrb[0].mxu0
        %v7165 = vadd.f32 0.0, %v7164
        %v7166 = vpop.f32.mrb[0].mxu0
        %v7167 = vadd.f32 0.0, %v7166
        %v7168 = vpop.f32.mrb[0].mxu0
        %v7169 = vadd.f32 0.0, %v7168
        %7170 = vmatprep.mubr.bf16.mxu0 %v6301
        %7171 = vmatmul.mubr.bf16.gmra.mrb[0].mxu0 %v6237
        %v7172 = vpop.f32.mrb[0].mxu0
        %v7173 = vadd.f32 0.0, %v7172
        %v7174 = vpop.f32.mrb[0].mxu0
        %v7175 = vadd.f32 0.0, %v7174
        %v7176 = vpop.f32.mrb[0].mxu0
        %v7177 = vadd.f32 0.0, %v7176
        %v7178 = vpop.f32.mrb[0].mxu0
        %v7179 = vadd.f32 0.0, %v7178
        %7180 = vmatprep.mubr.bf16.mxu0 %v6302
        %7181 = vmatmul.mubr.bf16.gmra.mrb[0].mxu0 %v6238
        %v7182 = vpop.f32.mrb[0].mxu0
        %v7183 = vadd.f32 0.0, %v7182
        %v7184 = vpop.f32.mrb[0].mxu0
        %v7185 = vadd.f32 0.0, %v7184
        %v7186 = vpop.f32.mrb[0].mxu0
        %v7187 = vadd.f32 0.0, %v7186
        %v7188 = vpop.f32.mrb[0].mxu0
        %v7189 = vadd.f32 0.0, %v7188
        %7190 = vmatprep.mubr.bf16.mxu0 %v6303
        %7191 = vmatmul.mubr.bf16.gmra.mrb[0].mxu0 %v6239
        %v7192 = vpop.f32.mrb[0].mxu0
        %v7193 = vadd.f32 0.0, %v7192
        %v7194 = vpop.f32.mrb[0].mxu0
        %v7195 = vadd.f32 0.0, %v7194
        %v7196 = vpop.f32.mrb[0].mxu0
        %v7197 = vadd.f32 0.0, %v7196
        %v7198 = vpop.f32.mrb[0].mxu0
        %v7199 = vadd.f32 0.0, %v7198
        %7200 = vmatprep.mubr.bf16.mxu0 %v6304
        %7201 = vmatmul.mubr.bf16.gmra.mrb[0].mxu0 %v6240
        %v7202 = vpop.f32.mrb[0].mxu0
        %v7203 = vadd.f32 0.0, %v7202
        %v7204 = vpop.f32.mrb[0].mxu0
        %v7205 = vadd.f32 0.0, %v7204
        %v7206 = vpop.f32.mrb[0].mxu0
        %v7207 = vadd.f32 0.0, %v7206
        %v7208 = vpop.f32.mrb[0].mxu0
        %v7209 = vadd.f32 0.0, %v7208
        %7210 = vmatprep.mubr.bf16.mxu0 %v6305
        %7211 = vmatmul.mubr.bf16.gmra.mrb[0].mxu0 %v6241
        %v7212 = vpop.f32.mrb[0].mxu0
        %v7213 = vadd.f32 0.0, %v7212
        %v7214 = vpop.f32.mrb[0].mxu0
        %v7215 = vadd.f32 0.0, %v7214
        %v7216 = vpop.f32.mrb[0].mxu0
        %v7217 = vadd.f32 0.0, %v7216
        %v7218 = vpop.f32.mrb[0].mxu0
        %v7219 = vadd.f32 0.0, %v7218
        %7220 = vmatprep.mubr.bf16.mxu0 %v6306
        %7221 = vmatmul.mubr.bf16.gmra.mrb[0].mxu0 %v6242
        %v7222 = vpop.f32.mrb[0].mxu0
        %v7223 = vadd.f32 0.0, %v7222
        %v7224 = vpop.f32.mrb[0].mxu0
        %v7225 = vadd.f32 0.0, %v7224
        %v7226 = vpop.f32.mrb[0].mxu0
        %v7227 = vadd.f32 0.0, %v7226
        %v7228 = vpop.f32.mrb[0].mxu0
        %v7229 = vadd.f32 0.0, %v7228
        %7230 = vmatprep.mubr.bf16.mxu0 %v6307
        %7231 = vmatmul.mubr.bf16.gmra.mrb[0].mxu0 %v6243
        %v7232 = vpop.f32.mrb[0].mxu0
        %v7233 = vadd.f32 0.0, %v7232
        %v7234 = vpop.f32.mrb[0].mxu0
        %v7235 = vadd.f32 0.0, %v7234
        %v7236 = vpop.f32.mrb[0].mxu0
        %v7237 = vadd.f32 0.0, %v7236
        %v7238 = vpop.f32.mrb[0].mxu0
        %v7239 = vadd.f32 0.0, %v7238
        %7240 = vmatprep.mubr.bf16.mxu0 %v6308
        %7241 = vmatmul.mubr.bf16.gmra.mrb[0].mxu0 %v6244
        %v7242 = vpop.f32.mrb[0].mxu0
        %v7243 = vadd.f32 0.0, %v7242
        %v7244 = vpop.f32.mrb[0].mxu0
        %v7245 = vadd.f32 0.0, %v7244
        %v7246 = vpop.f32.mrb[0].mxu0
        %v7247 = vadd.f32 0.0, %v7246
        %v7248 = vpop.f32.mrb[0].mxu0
        %v7249 = vadd.f32 0.0, %v7248
        %7250 = vmatprep.mubr.bf16.mxu0 %v6309
        %7251 = vmatmul.mubr.bf16.gmra.mrb[0].mxu0 %v6245
        %v7252 = vpop.f32.mrb[0].mxu0
        %v7253 = vadd.f32 0.0, %v7252
        %v7254 = vpop.f32.mrb[0].mxu0
        %v7255 = vadd.f32 0.0, %v7254
        %v7256 = vpop.f32.mrb[0].mxu0
        %v7257 = vadd.f32 0.0, %v7256
        %v7258 = vpop.f32.mrb[0].mxu0
        %v7259 = vadd.f32 0.0, %v7258
        %7260 = vmatprep.mubr.bf16.mxu0 %v6310
        %7261 = vmatmul.mubr.bf16.gmra.mrb[0].mxu0 %v6246
        %v7262 = vpop.f32.mrb[0].mxu0
        %v7263 = vadd.f32 0.0, %v7262
        %v7264 = vpop.f32.mrb[0].mxu0
        %v7265 = vadd.f32 0.0, %v7264
        %v7266 = vpop.f32.mrb[0].mxu0
        %v7267 = vadd.f32 0.0, %v7266
        %v7268 = vpop.f32.mrb[0].mxu0
        %v7269 = vadd.f32 0.0, %v7268
        %7270 = vmatprep.mubr.bf16.mxu0 %v6311
        %7271 = vmatmul.mubr.bf16.gmra.mrb[0].mxu0 %v6247
        %v7272 = vpop.f32.mrb[0].mxu0
        %v7273 = vadd.f32 0.0, %v7272
        %v7274 = vpop.f32.mrb[0].mxu0
        %v7275 = vadd.f32 0.0, %v7274
        %v7276 = vpop.f32.mrb[0].mxu0
        %v7277 = vadd.f32 0.0, %v7276
        %v7278 = vpop.f32.mrb[0].mxu0
        %v7279 = vadd.f32 0.0, %v7278
        %7280 = vmatprep.mubr.bf16.mxu0 %v6312
        %7281 = vmatmul.mubr.bf16.gmra.mrb[0].mxu0 %v6248
        %v7282 = vpop.f32.mrb[0].mxu0
        %v7283 = vadd.f32 0.0, %v7282
        %v7284 = vpop.f32.mrb[0].mxu0
        %v7285 = vadd.f32 0.0, %v7284
        %v7286 = vpop.f32.mrb[0].mxu0
        %v7287 = vadd.f32 0.0, %v7286
        %v7288 = vpop.f32.mrb[0].mxu0
        %v7289 = vadd.f32 0.0, %v7288
        %7290 = vdwg.mxu0
        %7291 = vmatprep.subr.bf16.mxu0 %v6971
        %7292 = vmatpush1.bf16.msra.mxu0 %v6970
        %7293 = vmatprep.subr.bf16.mxu0 %v6975
        %7294 = vmatpush1.bf16.msra.mxu0 %v6974
        %7295 = vmatprep.subr.bf16.mxu0 %v6979
        %7296 = vmatpush1.bf16.msra.mxu0 %v6978
        %7297 = vmatprep.subr.bf16.mxu0 %v6983
        %7298 = vmatpush1.bf16.msra.mxu0 %v6982
        %7299 = vmatprep.subr.bf16.mxu0 %v6987
        %7300 = vmatpush1.bf16.msra.mxu0 %v6986
        %7301 = vmatprep.subr.bf16.mxu0 %v6991
        %7302 = vmatpush1.bf16.msra.mxu0 %v6990
        %7303 = vmatprep.subr.bf16.mxu0 %v6995
        %7304 = vmatpush1.bf16.msra.mxu0 %v6994
        %7305 = vmatprep.subr.bf16.mxu0 %v6999
        %7306 = vmatpush1.bf16.msra.mxu0 %v6998
        %7307 = vmatprep.subr.bf16.mxu0 0
        %7308 = vmatpush1.bf16.msra.mxu0 0
        %7309 = vmatprep.subr.bf16.mxu0 0
        %7310 = vmatpush1.bf16.msra.mxu0 0
        %7311 = vmatprep.subr.bf16.mxu0 0
        %7312 = vmatpush1.bf16.msra.mxu0 0
        %7313 = vmatprep.subr.bf16.mxu0 0
        %7314 = vmatpush1.bf16.msra.mxu0 0
        %7315 = vmatprep.subr.bf16.mxu0 0
        %7316 = vmatpush1.bf16.msra.mxu0 0
        %7317 = vmatprep.subr.bf16.mxu0 0
        %7318 = vmatpush1.bf16.msra.mxu0 0
        %7319 = vmatprep.subr.bf16.mxu0 0
        %7320 = vmatpush1.bf16.msra.mxu0 0
        %7321 = vmatprep.subr.bf16.mxu0 0
        %7322 = vmatpush1.bf16.msra.mxu0 0
        %7323 = vmatprep.mubr.bf16.mxu0 0
        %7324 = vmatmul.mubr.bf16.gmra.mrb[0].mxu0 %v6361
        %v7325 = vpop.f32.mrb[0].mxu0
        %v7326 = vadd.f32 %v7133, %v7325
        %v7327 = vpop.f32.mrb[0].mxu0
        %v7328 = vadd.f32 %v7135, %v7327
        %v7329 = vpop.f32.mrb[0].mxu0
        %v7330 = vadd.f32 %v7137, %v7329
        %v7331 = vpop.f32.mrb[0].mxu0
        %v7332 = vadd.f32 %v7139, %v7331
        %7333 = vmatprep.mubr.bf16.mxu0 0
        %7334 = vmatmul.mubr.bf16.gmra.mrb[0].mxu0 %v6362
        %v7335 = vpop.f32.mrb[0].mxu0
        %v7336 = vadd.f32 %v7143, %v7335
        %v7337 = vpop.f32.mrb[0].mxu0
        %v7338 = vadd.f32 %v7145, %v7337
        %v7339 = vpop.f32.mrb[0].mxu0
        %v7340 = vadd.f32 %v7147, %v7339
        %v7341 = vpop.f32.mrb[0].mxu0
        %v7342 = vadd.f32 %v7149, %v7341
        %7343 = vmatprep.mubr.bf16.mxu0 0
        %7344 = vmatmul.mubr.bf16.gmra.mrb[0].mxu0 %v6363
        %v7345 = vpop.f32.mrb[0].mxu0
        %v7346 = vadd.f32 %v7153, %v7345
        %v7347 = vpop.f32.mrb[0].mxu0
        %v7348 = vadd.f32 %v7155, %v7347
        %v7349 = vpop.f32.mrb[0].mxu0
        %v7350 = vadd.f32 %v7157, %v7349
        %v7351 = vpop.f32.mrb[0].mxu0
        %v7352 = vadd.f32 %v7159, %v7351
        %7353 = vmatprep.mubr.bf16.mxu0 0
        %7354 = vmatmul.mubr.bf16.gmra.mrb[0].mxu0 %v6364
        %v7355 = vpop.f32.mrb[0].mxu0
        %v7356 = vadd.f32 %v7163, %v7355
        %v7357 = vpop.f32.mrb[0].mxu0
        %v7358 = vadd.f32 %v7165, %v7357
        %v7359 = vpop.f32.mrb[0].mxu0
        %v7360 = vadd.f32 %v7167, %v7359
        %v7361 = vpop.f32.mrb[0].mxu0
        %v7362 = vadd.f32 %v7169, %v7361
        %7363 = vmatprep.mubr.bf16.mxu0 0
        %7364 = vmatmul.mubr.bf16.gmra.mrb[0].mxu0 %v6365
        %v7365 = vpop.f32.mrb[0].mxu0
        %v7366 = vadd.f32 %v7173, %v7365
        %v7367 = vpop.f32.mrb[0].mxu0
        %v7368 = vadd.f32 %v7175, %v7367
        %v7369 = vpop.f32.mrb[0].mxu0
        %v7370 = vadd.f32 %v7177, %v7369
        %v7371 = vpop.f32.mrb[0].mxu0
        %v7372 = vadd.f32 %v7179, %v7371
        %7373 = vmatprep.mubr.bf16.mxu0 0
        %7374 = vmatmul.mubr.bf16.gmra.mrb[0].mxu0 %v6366
        %v7375 = vpop.f32.mrb[0].mxu0
        %v7376 = vadd.f32 %v7183, %v7375
        %v7377 = vpop.f32.mrb[0].mxu0
        %v7378 = vadd.f32 %v7185, %v7377
        %v7379 = vpop.f32.mrb[0].mxu0
        %v7380 = vadd.f32 %v7187, %v7379
        %v7381 = vpop.f32.mrb[0].mxu0
        %v7382 = vadd.f32 %v7189, %v7381
        %7383 = vmatprep.mubr.bf16.mxu0 0
        %7384 = vmatmul.mubr.bf16.gmra.mrb[0].mxu0 %v6367
        %v7385 = vpop.f32.mrb[0].mxu0
        %v7386 = vadd.f32 %v7193, %v7385
        %v7387 = vpop.f32.mrb[0].mxu0
        %v7388 = vadd.f32 %v7195, %v7387
        %v7389 = vpop.f32.mrb[0].mxu0
        %v7390 = vadd.f32 %v7197, %v7389
        %v7391 = vpop.f32.mrb[0].mxu0
        %v7392 = vadd.f32 %v7199, %v7391
        %7393 = vmatprep.mubr.bf16.mxu0 0
        %7394 = vmatmul.mubr.bf16.gmra.mrb[0].mxu0 %v6368
        %v7395 = vpop.f32.mrb[0].mxu0
        %v7396 = vadd.f32 %v7203, %v7395
        %v7397 = vpop.f32.mrb[0].mxu0
        %v7398 = vadd.f32 %v7205, %v7397
        %v7399 = vpop.f32.mrb[0].mxu0
        %v7400 = vadd.f32 %v7207, %v7399
        %v7401 = vpop.f32.mrb[0].mxu0
        %v7402 = vadd.f32 %v7209, %v7401
        %7403 = vmatprep.mubr.bf16.mxu0 0
        %7404 = vmatmul.mubr.bf16.gmra.mrb[0].mxu0 %v6369
        %v7405 = vpop.f32.mrb[0].mxu0
        %v7406 = vadd.f32 %v7213, %v7405
        %v7407 = vpop.f32.mrb[0].mxu0
        %v7408 = vadd.f32 %v7215, %v7407
        %v7409 = vpop.f32.mrb[0].mxu0
        %v7410 = vadd.f32 %v7217, %v7409
        %v7411 = vpop.f32.mrb[0].mxu0
        %v7412 = vadd.f32 %v7219, %v7411
        %7413 = vmatprep.mubr.bf16.mxu0 0
        %7414 = vmatmul.mubr.bf16.gmra.mrb[0].mxu0 %v6370
        %v7415 = vpop.f32.mrb[0].mxu0
        %v7416 = vadd.f32 %v7223, %v7415
        %v7417 = vpop.f32.mrb[0].mxu0
        %v7418 = vadd.f32 %v7225, %v7417
        %v7419 = vpop.f32.mrb[0].mxu0
        %v7420 = vadd.f32 %v7227, %v7419
        %v7421 = vpop.f32.mrb[0].mxu0
        %v7422 = vadd.f32 %v7229, %v7421
        %7423 = vmatprep.mubr.bf16.mxu0 0
        %7424 = vmatmul.mubr.bf16.gmra.mrb[0].mxu0 %v6371
        %v7425 = vpop.f32.mrb[0].mxu0
        %v7426 = vadd.f32 %v7233, %v7425
        %v7427 = vpop.f32.mrb[0].mxu0
        %v7428 = vadd.f32 %v7235, %v7427
        %v7429 = vpop.f32.mrb[0].mxu0
        %v7430 = vadd.f32 %v7237, %v7429
        %v7431 = vpop.f32.mrb[0].mxu0
        %v7432 = vadd.f32 %v7239, %v7431
        %7433 = vmatprep.mubr.bf16.mxu0 0
        %7434 = vmatmul.mubr.bf16.gmra.mrb[0].mxu0 %v6372
        %v7435 = vpop.f32.mrb[0].mxu0
        %v7436 = vadd.f32 %v7243, %v7435
        %v7437 = vpop.f32.mrb[0].mxu0
        %v7438 = vadd.f32 %v7245, %v7437
        %v7439 = vpop.f32.mrb[0].mxu0
        %v7440 = vadd.f32 %v7247, %v7439
        %v7441 = vpop.f32.mrb[0].mxu0
        %v7442 = vadd.f32 %v7249, %v7441
        %7443 = vmatprep.mubr.bf16.mxu0 0
        %7444 = vmatmul.mubr.bf16.gmra.mrb[0].mxu0 %v6373
        %v7445 = vpop.f32.mrb[0].mxu0
        %v7446 = vadd.f32 %v7253, %v7445
        %v7447 = vpop.f32.mrb[0].mxu0
        %v7448 = vadd.f32 %v7255, %v7447
        %v7449 = vpop.f32.mrb[0].mxu0
        %v7450 = vadd.f32 %v7257, %v7449
        %v7451 = vpop.f32.mrb[0].mxu0
        %v7452 = vadd.f32 %v7259, %v7451
        %7453 = vmatprep.mubr.bf16.mxu0 0
        %7454 = vmatmul.mubr.bf16.gmra.mrb[0].mxu0 %v6374
        %v7455 = vpop.f32.mrb[0].mxu0
        %v7456 = vadd.f32 %v7263, %v7455
        %v7457 = vpop.f32.mrb[0].mxu0
        %v7458 = vadd.f32 %v7265, %v7457
        %v7459 = vpop.f32.mrb[0].mxu0
        %v7460 = vadd.f32 %v7267, %v7459
        %v7461 = vpop.f32.mrb[0].mxu0
        %v7462 = vadd.f32 %v7269, %v7461
        %7463 = vmatprep.mubr.bf16.mxu0 0
        %7464 = vmatmul.mubr.bf16.gmra.mrb[0].mxu0 %v6375
        %v7465 = vpop.f32.mrb[0].mxu0
        %v7466 = vadd.f32 %v7273, %v7465
        %v7467 = vpop.f32.mrb[0].mxu0
        %v7468 = vadd.f32 %v7275, %v7467
        %v7469 = vpop.f32.mrb[0].mxu0
        %v7470 = vadd.f32 %v7277, %v7469
        %v7471 = vpop.f32.mrb[0].mxu0
        %v7472 = vadd.f32 %v7279, %v7471
        %7473 = vmatprep.mubr.bf16.mxu0 0
        %7474 = vmatmul.mubr.bf16.gmra.mrb[0].mxu0 %v6376
        %v7475 = vpop.f32.mrb[0].mxu0
        %v7476 = vadd.f32 %v7283, %v7475
        %v7477 = vpop.f32.mrb[0].mxu0
        %v7478 = vadd.f32 %v7285, %v7477
        %v7479 = vpop.f32.mrb[0].mxu0
        %v7480 = vadd.f32 %v7287, %v7479
        %v7481 = vpop.f32.mrb[0].mxu0
        %v7482 = vadd.f32 %v7289, %v7481
        %7483 = vdwg.mxu0
        %7484 = vmatprep.subr.bf16.mxu0 %v6909
        %7485 = vmatpush1.bf16.msra.mxu0 %v6908
        %7486 = vmatprep.subr.bf16.mxu0 %v6913
        %7487 = vmatpush1.bf16.msra.mxu0 %v6912
        %7488 = vmatprep.subr.bf16.mxu0 %v6917
        %7489 = vmatpush1.bf16.msra.mxu0 %v6916
        %7490 = vmatprep.subr.bf16.mxu0 %v6921
        %7491 = vmatpush1.bf16.msra.mxu0 %v6920
        %7492 = vmatprep.subr.bf16.mxu0 %v6925
        %7493 = vmatpush1.bf16.msra.mxu0 %v6924
        %7494 = vmatprep.subr.bf16.mxu0 %v6929
        %7495 = vmatpush1.bf16.msra.mxu0 %v6928
        %7496 = vmatprep.subr.bf16.mxu0 %v6933
        %7497 = vmatpush1.bf16.msra.mxu0 %v6932
        %7498 = vmatprep.subr.bf16.mxu0 %v6937
        %7499 = vmatpush1.bf16.msra.mxu0 %v6936
        %7500 = vmatprep.subr.bf16.mxu0 %v6941
        %7501 = vmatpush1.bf16.msra.mxu0 %v6940
        %7502 = vmatprep.subr.bf16.mxu0 %v6945
        %7503 = vmatpush1.bf16.msra.mxu0 %v6944
        %7504 = vmatprep.subr.bf16.mxu0 %v6949
        %7505 = vmatpush1.bf16.msra.mxu0 %v6948
        %7506 = vmatprep.subr.bf16.mxu0 %v6953
        %7507 = vmatpush1.bf16.msra.mxu0 %v6952
        %7508 = vmatprep.subr.bf16.mxu0 %v6957
        %7509 = vmatpush1.bf16.msra.mxu0 %v6956
        %7510 = vmatprep.subr.bf16.mxu0 %v6961
        %7511 = vmatpush1.bf16.msra.mxu0 %v6960
        %7512 = vmatprep.subr.bf16.mxu0 %v6965
        %7513 = vmatpush1.bf16.msra.mxu0 %v6964
        %7514 = vmatprep.subr.bf16.mxu0 %v6969
        %7515 = vmatpush1.bf16.msra.mxu0 %v6968
        %7516 = vmatprep.mubr.bf16.mxu0 %v6297
        %7517 = vmatmul.mubr.bf16.gmra.mrb[0].mxu0 %v6233
        %v7518 = vpop.f32.mrb[0].mxu0
        %v7519 = vadd.f32 0.0, %v7518
        %v7520 = vpop.f32.mrb[0].mxu0
        %v7521 = vadd.f32 0.0, %v7520
        %v7522 = vpop.f32.mrb[0].mxu0
        %v7523 = vadd.f32 0.0, %v7522
        %v7524 = vpop.f32.mrb[0].mxu0
        %v7525 = vadd.f32 0.0, %v7524
        %7526 = vmatprep.mubr.bf16.mxu0 %v6298
        %7527 = vmatmul.mubr.bf16.gmra.mrb[0].mxu0 %v6234
        %v7528 = vpop.f32.mrb[0].mxu0
        %v7529 = vadd.f32 0.0, %v7528
        %v7530 = vpop.f32.mrb[0].mxu0
        %v7531 = vadd.f32 0.0, %v7530
        %v7532 = vpop.f32.mrb[0].mxu0
        %v7533 = vadd.f32 0.0, %v7532
        %v7534 = vpop.f32.mrb[0].mxu0
        %v7535 = vadd.f32 0.0, %v7534
        %7536 = vmatprep.mubr.bf16.mxu0 %v6299
        %7537 = vmatmul.mubr.bf16.gmra.mrb[0].mxu0 %v6235
        %v7538 = vpop.f32.mrb[0].mxu0
        %v7539 = vadd.f32 0.0, %v7538
        %v7540 = vpop.f32.mrb[0].mxu0
        %v7541 = vadd.f32 0.0, %v7540
        %v7542 = vpop.f32.mrb[0].mxu0
        %v7543 = vadd.f32 0.0, %v7542
        %v7544 = vpop.f32.mrb[0].mxu0
        %v7545 = vadd.f32 0.0, %v7544
        %7546 = vmatprep.mubr.bf16.mxu0 %v6300
        %7547 = vmatmul.mubr.bf16.gmra.mrb[0].mxu0 %v6236
        %v7548 = vpop.f32.mrb[0].mxu0
        %v7549 = vadd.f32 0.0, %v7548
        %v7550 = vpop.f32.mrb[0].mxu0
        %v7551 = vadd.f32 0.0, %v7550
        %v7552 = vpop.f32.mrb[0].mxu0
        %v7553 = vadd.f32 0.0, %v7552
        %v7554 = vpop.f32.mrb[0].mxu0
        %v7555 = vadd.f32 0.0, %v7554
        %7556 = vmatprep.mubr.bf16.mxu0 %v6301
        %7557 = vmatmul.mubr.bf16.gmra.mrb[0].mxu0 %v6237
        %v7558 = vpop.f32.mrb[0].mxu0
        %v7559 = vadd.f32 0.0, %v7558
        %v7560 = vpop.f32.mrb[0].mxu0
        %v7561 = vadd.f32 0.0, %v7560
        %v7562 = vpop.f32.mrb[0].mxu0
        %v7563 = vadd.f32 0.0, %v7562
        %v7564 = vpop.f32.mrb[0].mxu0
        %v7565 = vadd.f32 0.0, %v7564
        %7566 = vmatprep.mubr.bf16.mxu0 %v6302
        %7567 = vmatmul.mubr.bf16.gmra.mrb[0].mxu0 %v6238
        %v7568 = vpop.f32.mrb[0].mxu0
        %v7569 = vadd.f32 0.0, %v7568
        %v7570 = vpop.f32.mrb[0].mxu0
        %v7571 = vadd.f32 0.0, %v7570
        %v7572 = vpop.f32.mrb[0].mxu0
        %v7573 = vadd.f32 0.0, %v7572
        %v7574 = vpop.f32.mrb[0].mxu0
        %v7575 = vadd.f32 0.0, %v7574
        %7576 = vmatprep.mubr.bf16.mxu0 %v6303
        %7577 = vmatmul.mubr.bf16.gmra.mrb[0].mxu0 %v6239
        %v7578 = vpop.f32.mrb[0].mxu0
        %v7579 = vadd.f32 0.0, %v7578
        %v7580 = vpop.f32.mrb[0].mxu0
        %v7581 = vadd.f32 0.0, %v7580
        %v7582 = vpop.f32.mrb[0].mxu0
        %v7583 = vadd.f32 0.0, %v7582
        %v7584 = vpop.f32.mrb[0].mxu0
        %v7585 = vadd.f32 0.0, %v7584
        %7586 = vmatprep.mubr.bf16.mxu0 %v6304
        %7587 = vmatmul.mubr.bf16.gmra.mrb[0].mxu0 %v6240
        %v7588 = vpop.f32.mrb[0].mxu0
        %v7589 = vadd.f32 0.0, %v7588
        %v7590 = vpop.f32.mrb[0].mxu0
        %v7591 = vadd.f32 0.0, %v7590
        %v7592 = vpop.f32.mrb[0].mxu0
        %v7593 = vadd.f32 0.0, %v7592
        %v7594 = vpop.f32.mrb[0].mxu0
        %v7595 = vadd.f32 0.0, %v7594
        %7596 = vmatprep.mubr.bf16.mxu0 %v6305
        %7597 = vmatmul.mubr.bf16.gmra.mrb[0].mxu0 %v6241
        %v7598 = vpop.f32.mrb[0].mxu0
        %v7599 = vadd.f32 0.0, %v7598
        %v7600 = vpop.f32.mrb[0].mxu0
        %v7601 = vadd.f32 0.0, %v7600
        %v7602 = vpop.f32.mrb[0].mxu0
        %v7603 = vadd.f32 0.0, %v7602
        %v7604 = vpop.f32.mrb[0].mxu0
        %v7605 = vadd.f32 0.0, %v7604
        %7606 = vmatprep.mubr.bf16.mxu0 %v6306
        %7607 = vmatmul.mubr.bf16.gmra.mrb[0].mxu0 %v6242
        %v7608 = vpop.f32.mrb[0].mxu0
        %v7609 = vadd.f32 0.0, %v7608
        %v7610 = vpop.f32.mrb[0].mxu0
        %v7611 = vadd.f32 0.0, %v7610
        %v7612 = vpop.f32.mrb[0].mxu0
        %v7613 = vadd.f32 0.0, %v7612
        %v7614 = vpop.f32.mrb[0].mxu0
        %v7615 = vadd.f32 0.0, %v7614
        %7616 = vmatprep.mubr.bf16.mxu0 %v6307
        %7617 = vmatmul.mubr.bf16.gmra.mrb[0].mxu0 %v6243
        %v7618 = vpop.f32.mrb[0].mxu0
        %v7619 = vadd.f32 0.0, %v7618
        %v7620 = vpop.f32.mrb[0].mxu0
        %v7621 = vadd.f32 0.0, %v7620
        %v7622 = vpop.f32.mrb[0].mxu0
        %v7623 = vadd.f32 0.0, %v7622
        %v7624 = vpop.f32.mrb[0].mxu0
        %v7625 = vadd.f32 0.0, %v7624
        %7626 = vmatprep.mubr.bf16.mxu0 %v6308
        %7627 = vmatmul.mubr.bf16.gmra.mrb[0].mxu0 %v6244
        %v7628 = vpop.f32.mrb[0].mxu0
        %v7629 = vadd.f32 0.0, %v7628
        %v7630 = vpop.f32.mrb[0].mxu0
        %v7631 = vadd.f32 0.0, %v7630
        %v7632 = vpop.f32.mrb[0].mxu0
        %v7633 = vadd.f32 0.0, %v7632
        %v7634 = vpop.f32.mrb[0].mxu0
        %v7635 = vadd.f32 0.0, %v7634
        %7636 = vmatprep.mubr.bf16.mxu0 %v6309
        %7637 = vmatmul.mubr.bf16.gmra.mrb[0].mxu0 %v6245
        %v7638 = vpop.f32.mrb[0].mxu0
        %v7639 = vadd.f32 0.0, %v7638
        %v7640 = vpop.f32.mrb[0].mxu0
        %v7641 = vadd.f32 0.0, %v7640
        %v7642 = vpop.f32.mrb[0].mxu0
        %v7643 = vadd.f32 0.0, %v7642
        %v7644 = vpop.f32.mrb[0].mxu0
        %v7645 = vadd.f32 0.0, %v7644
        %7646 = vmatprep.mubr.bf16.mxu0 %v6310
        %7647 = vmatmul.mubr.bf16.gmra.mrb[0].mxu0 %v6246
        %v7648 = vpop.f32.mrb[0].mxu0
        %v7649 = vadd.f32 0.0, %v7648
        %v7650 = vpop.f32.mrb[0].mxu0
        %v7651 = vadd.f32 0.0, %v7650
        %v7652 = vpop.f32.mrb[0].mxu0
        %v7653 = vadd.f32 0.0, %v7652
        %v7654 = vpop.f32.mrb[0].mxu0
        %v7655 = vadd.f32 0.0, %v7654
        %7656 = vmatprep.mubr.bf16.mxu0 %v6311
        %7657 = vmatmul.mubr.bf16.gmra.mrb[0].mxu0 %v6247
        %v7658 = vpop.f32.mrb[0].mxu0
        %v7659 = vadd.f32 0.0, %v7658
        %v7660 = vpop.f32.mrb[0].mxu0
        %v7661 = vadd.f32 0.0, %v7660
        %v7662 = vpop.f32.mrb[0].mxu0
        %v7663 = vadd.f32 0.0, %v7662
        %v7664 = vpop.f32.mrb[0].mxu0
        %v7665 = vadd.f32 0.0, %v7664
        %7666 = vmatprep.mubr.bf16.mxu0 %v6312
        %7667 = vmatmul.mubr.bf16.gmra.mrb[0].mxu0 %v6248
        %v7668 = vpop.f32.mrb[0].mxu0
        %v7669 = vadd.f32 0.0, %v7668
        %v7670 = vpop.f32.mrb[0].mxu0
        %v7671 = vadd.f32 0.0, %v7670
        %v7672 = vpop.f32.mrb[0].mxu0
        %v7673 = vadd.f32 0.0, %v7672
        %v7674 = vpop.f32.mrb[0].mxu0
        %v7675 = vadd.f32 0.0, %v7674
        %7676 = vdwg.mxu0
        %7677 = vmatprep.subr.bf16.mxu0 %v6973
        %7678 = vmatpush1.bf16.msra.mxu0 %v6972
        %7679 = vmatprep.subr.bf16.mxu0 %v6977
        %7680 = vmatpush1.bf16.msra.mxu0 %v6976
        %7681 = vmatprep.subr.bf16.mxu0 %v6981
        %7682 = vmatpush1.bf16.msra.mxu0 %v6980
        %7683 = vmatprep.subr.bf16.mxu0 %v6985
        %7684 = vmatpush1.bf16.msra.mxu0 %v6984
        %7685 = vmatprep.subr.bf16.mxu0 %v6989
        %7686 = vmatpush1.bf16.msra.mxu0 %v6988
        %7687 = vmatprep.subr.bf16.mxu0 %v6993
        %7688 = vmatpush1.bf16.msra.mxu0 %v6992
        %7689 = vmatprep.subr.bf16.mxu0 %v6997
        %7690 = vmatpush1.bf16.msra.mxu0 %v6996
        %7691 = vmatprep.subr.bf16.mxu0 %v7001
        %7692 = vmatpush1.bf16.msra.mxu0 %v7000
        %7693 = vmatprep.subr.bf16.mxu0 0
        %7694 = vmatpush1.bf16.msra.mxu0 0
        %7695 = vmatprep.subr.bf16.mxu0 0
        %7696 = vmatpush1.bf16.msra.mxu0 0
        %7697 = vmatprep.subr.bf16.mxu0 0
        %7698 = vmatpush1.bf16.msra.mxu0 0
        %7699 = vmatprep.subr.bf16.mxu0 0
        %7700 = vmatpush1.bf16.msra.mxu0 0
        %7701 = vmatprep.subr.bf16.mxu0 0
        %7702 = vmatpush1.bf16.msra.mxu0 0
        %7703 = vmatprep.subr.bf16.mxu0 0
        %7704 = vmatpush1.bf16.msra.mxu0 0
        %7705 = vmatprep.subr.bf16.mxu0 0
        %7706 = vmatpush1.bf16.msra.mxu0 0
        %7707 = vmatprep.subr.bf16.mxu0 0
        %7708 = vmatpush1.bf16.msra.mxu0 0
        %7709 = vmatprep.mubr.bf16.mxu0 0
        %7710 = vmatmul.mubr.bf16.gmra.mrb[0].mxu0 %v6361
        %v7711 = vpop.f32.mrb[0].mxu0
        %v7712 = vadd.f32 %v7519, %v7711
        %v7713 = vpop.f32.mrb[0].mxu0
        %v7714 = vadd.f32 %v7521, %v7713
        %v7715 = vpop.f32.mrb[0].mxu0
        %v7716 = vadd.f32 %v7523, %v7715
        %v7717 = vpop.f32.mrb[0].mxu0
        %v7718 = vadd.f32 %v7525, %v7717
        %7719 = vmatprep.mubr.bf16.mxu0 0
        %7720 = vmatmul.mubr.bf16.gmra.mrb[0].mxu0 %v6362
        %v7721 = vpop.f32.mrb[0].mxu0
        %v7722 = vadd.f32 %v7529, %v7721
        %v7723 = vpop.f32.mrb[0].mxu0
        %v7724 = vadd.f32 %v7531, %v7723
        %v7725 = vpop.f32.mrb[0].mxu0
        %v7726 = vadd.f32 %v7533, %v7725
        %v7727 = vpop.f32.mrb[0].mxu0
        %v7728 = vadd.f32 %v7535, %v7727
        %7729 = vmatprep.mubr.bf16.mxu0 0
        %7730 = vmatmul.mubr.bf16.gmra.mrb[0].mxu0 %v6363
        %v7731 = vpop.f32.mrb[0].mxu0
        %v7732 = vadd.f32 %v7539, %v7731
        %v7733 = vpop.f32.mrb[0].mxu0
        %v7734 = vadd.f32 %v7541, %v7733
        %v7735 = vpop.f32.mrb[0].mxu0
        %v7736 = vadd.f32 %v7543, %v7735
        %v7737 = vpop.f32.mrb[0].mxu0
        %v7738 = vadd.f32 %v7545, %v7737
        %7739 = vmatprep.mubr.bf16.mxu0 0
        %7740 = vmatmul.mubr.bf16.gmra.mrb[0].mxu0 %v6364
        %v7741 = vpop.f32.mrb[0].mxu0
        %v7742 = vadd.f32 %v7549, %v7741
        %v7743 = vpop.f32.mrb[0].mxu0
        %v7744 = vadd.f32 %v7551, %v7743
        %v7745 = vpop.f32.mrb[0].mxu0
        %v7746 = vadd.f32 %v7553, %v7745
        %v7747 = vpop.f32.mrb[0].mxu0
        %v7748 = vadd.f32 %v7555, %v7747
        %7749 = vmatprep.mubr.bf16.mxu0 0
        %7750 = vmatmul.mubr.bf16.gmra.mrb[0].mxu0 %v6365
        %v7751 = vpop.f32.mrb[0].mxu0
        %v7752 = vadd.f32 %v7559, %v7751
        %v7753 = vpop.f32.mrb[0].mxu0
        %v7754 = vadd.f32 %v7561, %v7753
        %v7755 = vpop.f32.mrb[0].mxu0
        %v7756 = vadd.f32 %v7563, %v7755
        %v7757 = vpop.f32.mrb[0].mxu0
        %v7758 = vadd.f32 %v7565, %v7757
        %7759 = vmatprep.mubr.bf16.mxu0 0
        %7760 = vmatmul.mubr.bf16.gmra.mrb[0].mxu0 %v6366
        %v7761 = vpop.f32.mrb[0].mxu0
        %v7762 = vadd.f32 %v7569, %v7761
        %v7763 = vpop.f32.mrb[0].mxu0
        %v7764 = vadd.f32 %v7571, %v7763
        %v7765 = vpop.f32.mrb[0].mxu0
        %v7766 = vadd.f32 %v7573, %v7765
        %v7767 = vpop.f32.mrb[0].mxu0
        %v7768 = vadd.f32 %v7575, %v7767
        %7769 = vmatprep.mubr.bf16.mxu0 0
        %7770 = vmatmul.mubr.bf16.gmra.mrb[0].mxu0 %v6367
        %v7771 = vpop.f32.mrb[0].mxu0
        %v7772 = vadd.f32 %v7579, %v7771
        %v7773 = vpop.f32.mrb[0].mxu0
        %v7774 = vadd.f32 %v7581, %v7773
        %v7775 = vpop.f32.mrb[0].mxu0
        %v7776 = vadd.f32 %v7583, %v7775
        %v7777 = vpop.f32.mrb[0].mxu0
        %v7778 = vadd.f32 %v7585, %v7777
        %7779 = vmatprep.mubr.bf16.mxu0 0
        %7780 = vmatmul.mubr.bf16.gmra.mrb[0].mxu0 %v6368
        %v7781 = vpop.f32.mrb[0].mxu0
        %v7782 = vadd.f32 %v7589, %v7781
        %v7783 = vpop.f32.mrb[0].mxu0
        %v7784 = vadd.f32 %v7591, %v7783
        %v7785 = vpop.f32.mrb[0].mxu0
        %v7786 = vadd.f32 %v7593, %v7785
        %v7787 = vpop.f32.mrb[0].mxu0
        %v7788 = vadd.f32 %v7595, %v7787
        %7789 = vmatprep.mubr.bf16.mxu0 0
        %7790 = vmatmul.mubr.bf16.gmra.mrb[0].mxu0 %v6369
        %v7791 = vpop.f32.mrb[0].mxu0
        %v7792 = vadd.f32 %v7599, %v7791
        %v7793 = vpop.f32.mrb[0].mxu0
        %v7794 = vadd.f32 %v7601, %v7793
        %v7795 = vpop.f32.mrb[0].mxu0
        %v7796 = vadd.f32 %v7603, %v7795
        %v7797 = vpop.f32.mrb[0].mxu0
        %v7798 = vadd.f32 %v7605, %v7797
        %7799 = vmatprep.mubr.bf16.mxu0 0
        %7800 = vmatmul.mubr.bf16.gmra.mrb[0].mxu0 %v6370
        %v7801 = vpop.f32.mrb[0].mxu0
        %v7802 = vadd.f32 %v7609, %v7801
        %v7803 = vpop.f32.mrb[0].mxu0
        %v7804 = vadd.f32 %v7611, %v7803
        %v7805 = vpop.f32.mrb[0].mxu0
        %v7806 = vadd.f32 %v7613, %v7805
        %v7807 = vpop.f32.mrb[0].mxu0
        %v7808 = vadd.f32 %v7615, %v7807
        %7809 = vmatprep.mubr.bf16.mxu0 0
        %7810 = vmatmul.mubr.bf16.gmra.mrb[0].mxu0 %v6371
        %v7811 = vpop.f32.mrb[0].mxu0
        %v7812 = vadd.f32 %v7619, %v7811
        %v7813 = vpop.f32.mrb[0].mxu0
        %v7814 = vadd.f32 %v7621, %v7813
        %v7815 = vpop.f32.mrb[0].mxu0
        %v7816 = vadd.f32 %v7623, %v7815
        %v7817 = vpop.f32.mrb[0].mxu0
        %v7818 = vadd.f32 %v7625, %v7817
        %7819 = vmatprep.mubr.bf16.mxu0 0
        %7820 = vmatmul.mubr.bf16.gmra.mrb[0].mxu0 %v6372
        %v7821 = vpop.f32.mrb[0].mxu0
        %v7822 = vadd.f32 %v7629, %v7821
        %v7823 = vpop.f32.mrb[0].mxu0
        %v7824 = vadd.f32 %v7631, %v7823
        %v7825 = vpop.f32.mrb[0].mxu0
        %v7826 = vadd.f32 %v7633, %v7825
        %v7827 = vpop.f32.mrb[0].mxu0
        %v7828 = vadd.f32 %v7635, %v7827
        %7829 = vmatprep.mubr.bf16.mxu0 0
        %7830 = vmatmul.mubr.bf16.gmra.mrb[0].mxu0 %v6373
        %v7831 = vpop.f32.mrb[0].mxu0
        %v7832 = vadd.f32 %v7639, %v7831
        %v7833 = vpop.f32.mrb[0].mxu0
        %v7834 = vadd.f32 %v7641, %v7833
        %v7835 = vpop.f32.mrb[0].mxu0
        %v7836 = vadd.f32 %v7643, %v7835
        %v7837 = vpop.f32.mrb[0].mxu0
        %v7838 = vadd.f32 %v7645, %v7837
        %7839 = vmatprep.mubr.bf16.mxu0 0
        %7840 = vmatmul.mubr.bf16.gmra.mrb[0].mxu0 %v6374
        %v7841 = vpop.f32.mrb[0].mxu0
        %v7842 = vadd.f32 %v7649, %v7841
        %v7843 = vpop.f32.mrb[0].mxu0
        %v7844 = vadd.f32 %v7651, %v7843
        %v7845 = vpop.f32.mrb[0].mxu0
        %v7846 = vadd.f32 %v7653, %v7845
        %v7847 = vpop.f32.mrb[0].mxu0
        %v7848 = vadd.f32 %v7655, %v7847
        %7849 = vmatprep.mubr.bf16.mxu0 0
        %7850 = vmatmul.mubr.bf16.gmra.mrb[0].mxu0 %v6375
        %v7851 = vpop.f32.mrb[0].mxu0
        %v7852 = vadd.f32 %v7659, %v7851
        %v7853 = vpop.f32.mrb[0].mxu0
        %v7854 = vadd.f32 %v7661, %v7853
        %v7855 = vpop.f32.mrb[0].mxu0
        %v7856 = vadd.f32 %v7663, %v7855
        %v7857 = vpop.f32.mrb[0].mxu0
        %v7858 = vadd.f32 %v7665, %v7857
        %7859 = vmatprep.mubr.bf16.mxu0 0
        %7860 = vmatmul.mubr.bf16.gmra.mrb[0].mxu0 %v6376
        %v7861 = vpop.f32.mrb[0].mxu0
        %v7862 = vadd.f32 %v7669, %v7861
        %v7863 = vpop.f32.mrb[0].mxu0
        %v7864 = vadd.f32 %v7671, %v7863
        %v7865 = vpop.f32.mrb[0].mxu0
        %v7866 = vadd.f32 %v7673, %v7865
        %v7867 = vpop.f32.mrb[0].mxu0
        %v7868 = vadd.f32 %v7675, %v7867
        %7869 = vdwg.mxu0
        %v7870 = vadd.f32 %v6393, %v7326
        %v7871 = vadd.f32 %v6394, %v7328
        %v7872 = vadd.f32 %v6395, %v7712
        %v7873 = vadd.f32 %v6396, %v7714
        %v7874 = vadd.f32 %v6397, %v7330
        %v7875 = vadd.f32 %v6398, %v7332
        %v7876 = vadd.f32 %v6399, %v7716
        %v7877 = vadd.f32 %v6400, %v7718
        %v7878 = vadd.f32 %v6401, %v7336
        %v7879 = vadd.f32 %v6402, %v7338
        %v7880 = vadd.f32 %v6403, %v7722
        %v7881 = vadd.f32 %v6404, %v7724
        %v7882 = vadd.f32 %v6405, %v7340
        %v7883 = vadd.f32 %v6406, %v7342
        %v7884 = vadd.f32 %v6407, %v7726
        %v7885 = vadd.f32 %v6408, %v7728
        %v7886 = vadd.f32 %v6409, %v7346
        %v7887 = vadd.f32 %v6410, %v7348
        %v7888 = vadd.f32 %v6411, %v7732
        %v7889 = vadd.f32 %v6412, %v7734
        %v7890 = vadd.f32 %v6413, %v7350
        %v7891 = vadd.f32 %v6414, %v7352
        %v7892 = vadd.f32 %v6415, %v7736
        %v7893 = vadd.f32 %v6416, %v7738
        %v7894 = vadd.f32 %v6417, %v7356
        %v7895 = vadd.f32 %v6418, %v7358
        %v7896 = vadd.f32 %v6419, %v7742
        %v7897 = vadd.f32 %v6420, %v7744
        %v7898 = vadd.f32 %v6421, %v7360
        %v7899 = vadd.f32 %v6422, %v7362
        %v7900 = vadd.f32 %v6423, %v7746
        %v7901 = vadd.f32 %v6424, %v7748
        %v7902 = vadd.f32 %v6425, %v7366
        %v7903 = vadd.f32 %v6426, %v7368
        %v7904 = vadd.f32 %v6427, %v7752
        %v7905 = vadd.f32 %v6428, %v7754
        %v7906 = vadd.f32 %v6429, %v7370
        %v7907 = vadd.f32 %v6430, %v7372
        %v7908 = vadd.f32 %v6431, %v7756
        %v7909 = vadd.f32 %v6432, %v7758
        %v7910 = vadd.f32 %v6433, %v7376
        %v7911 = vadd.f32 %v6434, %v7378
        %v7912 = vadd.f32 %v6435, %v7762
        %v7913 = vadd.f32 %v6436, %v7764
        %v7914 = vadd.f32 %v6437, %v7380
        %v7915 = vadd.f32 %v6438, %v7382
        %v7916 = vadd.f32 %v6439, %v7766
        %v7917 = vadd.f32 %v6440, %v7768
        %v7918 = vadd.f32 %v6441, %v7386
        %v7919 = vadd.f32 %v6442, %v7388
        %v7920 = vadd.f32 %v6443, %v7772
        %v7921 = vadd.f32 %v6444, %v7774
        %v7922 = vadd.f32 %v6445, %v7390
        %v7923 = vadd.f32 %v6446, %v7392
        %v7924 = vadd.f32 %v6447, %v7776
        %v7925 = vadd.f32 %v6448, %v7778
        %v7926 = vadd.f32 %v6449, %v7396
        %v7927 = vadd.f32 %v6450, %v7398
        %v7928 = vadd.f32 %v6451, %v7782
        %v7929 = vadd.f32 %v6452, %v7784
        %v7930 = vadd.f32 %v6453, %v7400
        %v7931 = vadd.f32 %v6454, %v7402
        %v7932 = vadd.f32 %v6455, %v7786
        %v7933 = vadd.f32 %v6456, %v7788
        %v7934 = vadd.f32 %v6457, %v7406
        %v7935 = vadd.f32 %v6458, %v7408
        %v7936 = vadd.f32 %v6459, %v7792
        %v7937 = vadd.f32 %v6460, %v7794
        %v7938 = vadd.f32 %v6461, %v7410
        %v7939 = vadd.f32 %v6462, %v7412
        %v7940 = vadd.f32 %v6463, %v7796
        %v7941 = vadd.f32 %v6464, %v7798
        %v7942 = vadd.f32 %v6465, %v7416
        %v7943 = vadd.f32 %v6466, %v7418
        %v7944 = vadd.f32 %v6467, %v7802
        %v7945 = vadd.f32 %v6468, %v7804
        %v7946 = vadd.f32 %v6469, %v7420
        %v7947 = vadd.f32 %v6470, %v7422
        %v7948 = vadd.f32 %v6471, %v7806
        %v7949 = vadd.f32 %v6472, %v7808
        %v7950 = vadd.f32 %v6473, %v7426
        %v7951 = vadd.f32 %v6474, %v7428
        %v7952 = vadd.f32 %v6475, %v7812
        %v7953 = vadd.f32 %v6476, %v7814
        %v7954 = vadd.f32 %v6477, %v7430
        %v7955 = vadd.f32 %v6478, %v7432
        %v7956 = vadd.f32 %v6479, %v7816
        %v7957 = vadd.f32 %v6480, %v7818
        %v7958 = vadd.f32 %v6481, %v7436
        %v7959 = vadd.f32 %v6482, %v7438
        %v7960 = vadd.f32 %v6483, %v7822
        %v7961 = vadd.f32 %v6484, %v7824
        %v7962 = vadd.f32 %v6485, %v7440
        %v7963 = vadd.f32 %v6486, %v7442
        %v7964 = vadd.f32 %v6487, %v7826
        %v7965 = vadd.f32 %v6488, %v7828
        %v7966 = vadd.f32 %v6489, %v7446
        %v7967 = vadd.f32 %v6490, %v7448
        %v7968 = vadd.f32 %v6491, %v7832
        %v7969 = vadd.f32 %v6492, %v7834
        %v7970 = vadd.f32 %v6493, %v7450
        %v7971 = vadd.f32 %v6494, %v7452
        %v7972 = vadd.f32 %v6495, %v7836
        %v7973 = vadd.f32 %v6496, %v7838
        %v7974 = vadd.f32 %v6497, %v7456
        %v7975 = vadd.f32 %v6498, %v7458
        %v7976 = vadd.f32 %v6499, %v7842
        %v7977 = vadd.f32 %v6500, %v7844
        %v7978 = vadd.f32 %v6501, %v7460
        %v7979 = vadd.f32 %v6502, %v7462
        %v7980 = vadd.f32 %v6503, %v7846
        %v7981 = vadd.f32 %v6504, %v7848
        %v7982 = vadd.f32 %v6505, %v7466
        %v7983 = vadd.f32 %v6506, %v7468
        %v7984 = vadd.f32 %v6507, %v7852
        %v7985 = vadd.f32 %v6508, %v7854
        %v7986 = vadd.f32 %v6509, %v7470
        %v7987 = vadd.f32 %v6510, %v7472
        %v7988 = vadd.f32 %v6511, %v7856
        %v7989 = vadd.f32 %v6512, %v7858
        %v7990 = vadd.f32 %v6513, %v7476
        %v7991 = vadd.f32 %v6514, %v7478
        %v7992 = vadd.f32 %v6515, %v7862
        %v7993 = vadd.f32 %v6516, %v7864
        %v7994 = vadd.f32 %v6517, %v7480
        %v7995 = vadd.f32 %v6518, %v7482
        %v7996 = vadd.f32 %v6519, %v7866
        %v7997 = vadd.f32 %v6520, %v7868
        %7998 = vst [vmem:[#allocation2] sm:$0xff] %v7870
        %7999 = vst [vmem:[#allocation2 + $0x8] sm:$0xff] %v7871
        %8000 = vst [vmem:[#allocation2 + $0x10] sm:$0xff] %v7872
        %8001 = vst [vmem:[#allocation2 + $0x18] sm:$0xff] %v7873
        %8002 = vst [vmem:[#allocation2 + $0x20] sm:$0xff] %v7874
        %8003 = vst [vmem:[#allocation2 + $0x28] sm:$0xff] %v7875
        %8004 = vst [vmem:[#allocation2 + $0x30] sm:$0xff] %v7876
        %8005 = vst [vmem:[#allocation2 + $0x38] sm:$0xff] %v7877
        %8006 = vst [vmem:[#allocation2 + $0x40] sm:$0xff] %v7878
        %8007 = vst [vmem:[#allocation2 + $0x48] sm:$0xff] %v7879
        %8008 = vst [vmem:[#allocation2 + $0x50] sm:$0xff] %v7880
        %8009 = vst [vmem:[#allocation2 + $0x58] sm:$0xff] %v7881
        %8010 = vst [vmem:[#allocation2 + $0x60] sm:$0xff] %v7882
        %8011 = vst [vmem:[#allocation2 + $0x68] sm:$0xff] %v7883
        %8012 = vst [vmem:[#allocation2 + $0x70] sm:$0xff] %v7884
        %8013 = vst [vmem:[#allocation2 + $0x78] sm:$0xff] %v7885
        %8014 = vst [vmem:[#allocation2 + $0x80] sm:$0xff] %v7886
        %8015 = vst [vmem:[#allocation2 + $0x88] sm:$0xff] %v7887
        %8016 = vst [vmem:[#allocation2 + $0x90] sm:$0xff] %v7888
        %8017 = vst [vmem:[#allocation2 + $0x98] sm:$0xff] %v7889
        %8018 = vst [vmem:[#allocation2 + $0xa0] sm:$0xff] %v7890
        %8019 = vst [vmem:[#allocation2 + $0xa8] sm:$0xff] %v7891
        %8020 = vst [vmem:[#allocation2 + $0xb0] sm:$0xff] %v7892
        %8021 = vst [vmem:[#allocation2 + $0xb8] sm:$0xff] %v7893
        %8022 = vst [vmem:[#allocation2 + $0xc0] sm:$0xff] %v7894
        %8023 = vst [vmem:[#allocation2 + $0xc8] sm:$0xff] %v7895
        %8024 = vst [vmem:[#allocation2 + $0xd0] sm:$0xff] %v7896
        %8025 = vst [vmem:[#allocation2 + $0xd8] sm:$0xff] %v7897
        %8026 = vst [vmem:[#allocation2 + $0xe0] sm:$0xff] %v7898
        %8027 = vst [vmem:[#allocation2 + $0xe8] sm:$0xff] %v7899
        %8028 = vst [vmem:[#allocation2 + $0xf0] sm:$0xff] %v7900
        %8029 = vst [vmem:[#allocation2 + $0xf8] sm:$0xff] %v7901
        %8030 = vst [vmem:[#allocation2 + $0x100] sm:$0xff] %v7902
        %8031 = vst [vmem:[#allocation2 + $0x108] sm:$0xff] %v7903
        %8032 = vst [vmem:[#allocation2 + $0x110] sm:$0xff] %v7904
        %8033 = vst [vmem:[#allocation2 + $0x118] sm:$0xff] %v7905
        %8034 = vst [vmem:[#allocation2 + $0x120] sm:$0xff] %v7906
        %8035 = vst [vmem:[#allocation2 + $0x128] sm:$0xff] %v7907
        %8036 = vst [vmem:[#allocation2 + $0x130] sm:$0xff] %v7908
        %8037 = vst [vmem:[#allocation2 + $0x138] sm:$0xff] %v7909
        %8038 = vst [vmem:[#allocation2 + $0x140] sm:$0xff] %v7910
        %8039 = vst [vmem:[#allocation2 + $0x148] sm:$0xff] %v7911
        %8040 = vst [vmem:[#allocation2 + $0x150] sm:$0xff] %v7912
        %8041 = vst [vmem:[#allocation2 + $0x158] sm:$0xff] %v7913
        %8042 = vst [vmem:[#allocation2 + $0x160] sm:$0xff] %v7914
        %8043 = vst [vmem:[#allocation2 + $0x168] sm:$0xff] %v7915
        %8044 = vst [vmem:[#allocation2 + $0x170] sm:$0xff] %v7916
        %8045 = vst [vmem:[#allocation2 + $0x178] sm:$0xff] %v7917
        %8046 = vst [vmem:[#allocation2 + $0x180] sm:$0xff] %v7918
        %8047 = vst [vmem:[#allocation2 + $0x188] sm:$0xff] %v7919
        %8048 = vst [vmem:[#allocation2 + $0x190] sm:$0xff] %v7920
        %8049 = vst [vmem:[#allocation2 + $0x198] sm:$0xff] %v7921
        %8050 = vst [vmem:[#allocation2 + $0x1a0] sm:$0xff] %v7922
        %8051 = vst [vmem:[#allocation2 + $0x1a8] sm:$0xff] %v7923
        %8052 = vst [vmem:[#allocation2 + $0x1b0] sm:$0xff] %v7924
        %8053 = vst [vmem:[#allocation2 + $0x1b8] sm:$0xff] %v7925
        %8054 = vst [vmem:[#allocation2 + $0x1c0] sm:$0xff] %v7926
        %8055 = vst [vmem:[#allocation2 + $0x1c8] sm:$0xff] %v7927
        %8056 = vst [vmem:[#allocation2 + $0x1d0] sm:$0xff] %v7928
        %8057 = vst [vmem:[#allocation2 + $0x1d8] sm:$0xff] %v7929
        %8058 = vst [vmem:[#allocation2 + $0x1e0] sm:$0xff] %v7930
        %8059 = vst [vmem:[#allocation2 + $0x1e8] sm:$0xff] %v7931
        %8060 = vst [vmem:[#allocation2 + $0x1f0] sm:$0xff] %v7932
        %8061 = vst [vmem:[#allocation2 + $0x1f8] sm:$0xff] %v7933
        %8062 = vst [vmem:[#allocation2 + $0x200] sm:$0xff] %v7934
        %8063 = vst [vmem:[#allocation2 + $0x208] sm:$0xff] %v7935
        %8064 = vst [vmem:[#allocation2 + $0x210] sm:$0xff] %v7936
        %8065 = vst [vmem:[#allocation2 + $0x218] sm:$0xff] %v7937
        %8066 = vst [vmem:[#allocation2 + $0x220] sm:$0xff] %v7938
        %8067 = vst [vmem:[#allocation2 + $0x228] sm:$0xff] %v7939
        %8068 = vst [vmem:[#allocation2 + $0x230] sm:$0xff] %v7940
        %8069 = vst [vmem:[#allocation2 + $0x238] sm:$0xff] %v7941
        %8070 = vst [vmem:[#allocation2 + $0x240] sm:$0xff] %v7942
        %8071 = vst [vmem:[#allocation2 + $0x248] sm:$0xff] %v7943
        %8072 = vst [vmem:[#allocation2 + $0x250] sm:$0xff] %v7944
        %8073 = vst [vmem:[#allocation2 + $0x258] sm:$0xff] %v7945
        %8074 = vst [vmem:[#allocation2 + $0x260] sm:$0xff] %v7946
        %8075 = vst [vmem:[#allocation2 + $0x268] sm:$0xff] %v7947
        %8076 = vst [vmem:[#allocation2 + $0x270] sm:$0xff] %v7948
        %8077 = vst [vmem:[#allocation2 + $0x278] sm:$0xff] %v7949
        %8078 = vst [vmem:[#allocation2 + $0x280] sm:$0xff] %v7950
        %8079 = vst [vmem:[#allocation2 + $0x288] sm:$0xff] %v7951
        %8080 = vst [vmem:[#allocation2 + $0x290] sm:$0xff] %v7952
        %8081 = vst [vmem:[#allocation2 + $0x298] sm:$0xff] %v7953
        %8082 = vst [vmem:[#allocation2 + $0x2a0] sm:$0xff] %v7954
        %8083 = vst [vmem:[#allocation2 + $0x2a8] sm:$0xff] %v7955
        %8084 = vst [vmem:[#allocation2 + $0x2b0] sm:$0xff] %v7956
        %8085 = vst [vmem:[#allocation2 + $0x2b8] sm:$0xff] %v7957
        %8086 = vst [vmem:[#allocation2 + $0x2c0] sm:$0xff] %v7958
        %8087 = vst [vmem:[#allocation2 + $0x2c8] sm:$0xff] %v7959
        %8088 = vst [vmem:[#allocation2 + $0x2d0] sm:$0xff] %v7960
        %8089 = vst [vmem:[#allocation2 + $0x2d8] sm:$0xff] %v7961
        %8090 = vst [vmem:[#allocation2 + $0x2e0] sm:$0xff] %v7962
        %8091 = vst [vmem:[#allocation2 + $0x2e8] sm:$0xff] %v7963
        %8092 = vst [vmem:[#allocation2 + $0x2f0] sm:$0xff] %v7964
        %8093 = vst [vmem:[#allocation2 + $0x2f8] sm:$0xff] %v7965
        %8094 = vst [vmem:[#allocation2 + $0x300] sm:$0xff] %v7966
        %8095 = vst [vmem:[#allocation2 + $0x308] sm:$0xff] %v7967
        %8096 = vst [vmem:[#allocation2 + $0x310] sm:$0xff] %v7968
        %8097 = vst [vmem:[#allocation2 + $0x318] sm:$0xff] %v7969
        %8098 = vst [vmem:[#allocation2 + $0x320] sm:$0xff] %v7970
        %8099 = vst [vmem:[#allocation2 + $0x328] sm:$0xff] %v7971
        %8100 = vst [vmem:[#allocation2 + $0x330] sm:$0xff] %v7972
        %8101 = vst [vmem:[#allocation2 + $0x338] sm:$0xff] %v7973
        %8102 = vst [vmem:[#allocation2 + $0x340] sm:$0xff] %v7974
        %8103 = vst [vmem:[#allocation2 + $0x348] sm:$0xff] %v7975
        %8104 = vst [vmem:[#allocation2 + $0x350] sm:$0xff] %v7976
        %8105 = vst [vmem:[#allocation2 + $0x358] sm:$0xff] %v7977
        %8106 = vst [vmem:[#allocation2 + $0x360] sm:$0xff] %v7978
        %8107 = vst [vmem:[#allocation2 + $0x368] sm:$0xff] %v7979
        %8108 = vst [vmem:[#allocation2 + $0x370] sm:$0xff] %v7980
        %8109 = vst [vmem:[#allocation2 + $0x378] sm:$0xff] %v7981
        %8110 = vst [vmem:[#allocation2 + $0x380] sm:$0xff] %v7982
        %8111 = vst [vmem:[#allocation2 + $0x388] sm:$0xff] %v7983
        %8112 = vst [vmem:[#allocation2 + $0x390] sm:$0xff] %v7984
        %8113 = vst [vmem:[#allocation2 + $0x398] sm:$0xff] %v7985
        %8114 = vst [vmem:[#allocation2 + $0x3a0] sm:$0xff] %v7986
        %8115 = vst [vmem:[#allocation2 + $0x3a8] sm:$0xff] %v7987
        %8116 = vst [vmem:[#allocation2 + $0x3b0] sm:$0xff] %v7988
        %8117 = vst [vmem:[#allocation2 + $0x3b8] sm:$0xff] %v7989
        %8118 = vst [vmem:[#allocation2 + $0x3c0] sm:$0xff] %v7990
        %8119 = vst [vmem:[#allocation2 + $0x3c8] sm:$0xff] %v7991
        %8120 = vst [vmem:[#allocation2 + $0x3d0] sm:$0xff] %v7992
        %8121 = vst [vmem:[#allocation2 + $0x3d8] sm:$0xff] %v7993
        %8122 = vst [vmem:[#allocation2 + $0x3e0] sm:$0xff] %v7994
        %8123 = vst [vmem:[#allocation2 + $0x3e8] sm:$0xff] %v7995
        %8124 = vst [vmem:[#allocation2 + $0x3f0] sm:$0xff] %v7996
        %8125 = vst [vmem:[#allocation2 + $0x3f8] sm:$0xff] %v7997
        %v8126 = vld [vmem:[#allocation2] sm:$0xff]
        %v8127 = vld [vmem:[#allocation2 + $0x20] sm:$0xff]
        %v8128 = vld [vmem:[#allocation2 + $0x40] sm:$0xff]
        %v8129 = vld [vmem:[#allocation2 + $0x60] sm:$0xff]
        %v8130 = vld [vmem:[#allocation2 + $0x80] sm:$0xff]
        %v8131 = vld [vmem:[#allocation2 + $0xa0] sm:$0xff]
        %v8132 = vld [vmem:[#allocation2 + $0xc0] sm:$0xff]
        %v8133 = vld [vmem:[#allocation2 + $0xe0] sm:$0xff]
        %v8134 = vld [vmem:[#allocation2 + $0x100] sm:$0xff]
        %v8135 = vld [vmem:[#allocation2 + $0x120] sm:$0xff]
        %v8136 = vld [vmem:[#allocation2 + $0x140] sm:$0xff]
        %v8137 = vld [vmem:[#allocation2 + $0x160] sm:$0xff]
        %v8138 = vld [vmem:[#allocation2 + $0x180] sm:$0xff]
        %v8139 = vld [vmem:[#allocation2 + $0x1a0] sm:$0xff]
        %v8140 = vld [vmem:[#allocation2 + $0x1c0] sm:$0xff]
        %v8141 = vld [vmem:[#allocation2 + $0x1e0] sm:$0xff]
        %v8142 = vld [vmem:[#allocation2 + $0x200] sm:$0xff]
        %v8143 = vld [vmem:[#allocation2 + $0x220] sm:$0xff]
        %v8144 = vld [vmem:[#allocation2 + $0x240] sm:$0xff]
        %v8145 = vld [vmem:[#allocation2 + $0x260] sm:$0xff]
        %v8146 = vld [vmem:[#allocation2 + $0x280] sm:$0xff]
        %v8147 = vld [vmem:[#allocation2 + $0x2a0] sm:$0xff]
        %v8148 = vld [vmem:[#allocation2 + $0x2c0] sm:$0xff]
        %v8149 = vld [vmem:[#allocation2 + $0x2e0] sm:$0xff]
        %v8150 = vld [vmem:[#allocation2 + $0x300] sm:$0xff]
        %v8151 = vld [vmem:[#allocation2 + $0x320] sm:$0xff]
        %v8152 = vld [vmem:[#allocation2 + $0x340] sm:$0xff]
        %v8153 = vld [vmem:[#allocation2 + $0x360] sm:$0xff]
        %v8154 = vld [vmem:[#allocation2 + $0x380] sm:$0xff]
        %v8155 = vld [vmem:[#allocation2 + $0x3a0] sm:$0xff]
        %v8156 = vld [vmem:[#allocation2 + $0x3c0] sm:$0xff]
        %v8157 = vld [vmem:[#allocation2 + $0x3e0] sm:$0xff]
        %v8158 = vxor.u32 %v8126, 2147483648
        %v8159 = vxor.u32 %v8127, 2147483648
        %v8160 = vxor.u32 %v8128, 2147483648
        %v8161 = vxor.u32 %v8129, 2147483648
        %v8162 = vxor.u32 %v8130, 2147483648
        %v8163 = vxor.u32 %v8131, 2147483648
        %v8164 = vxor.u32 %v8132, 2147483648
        %v8165 = vxor.u32 %v8133, 2147483648
        %v8166 = vxor.u32 %v8134, 2147483648
        %v8167 = vxor.u32 %v8135, 2147483648
        %v8168 = vxor.u32 %v8136, 2147483648
        %v8169 = vxor.u32 %v8137, 2147483648
        %v8170 = vxor.u32 %v8138, 2147483648
        %v8171 = vxor.u32 %v8139, 2147483648
        %v8172 = vxor.u32 %v8140, 2147483648
        %v8173 = vxor.u32 %v8141, 2147483648
        %v8174 = vxor.u32 %v8142, 2147483648
        %v8175 = vxor.u32 %v8143, 2147483648
        %v8176 = vxor.u32 %v8144, 2147483648
        %v8177 = vxor.u32 %v8145, 2147483648
        %v8178 = vxor.u32 %v8146, 2147483648
        %v8179 = vxor.u32 %v8147, 2147483648
        %v8180 = vxor.u32 %v8148, 2147483648
        %v8181 = vxor.u32 %v8149, 2147483648
        %v8182 = vxor.u32 %v8150, 2147483648
        %v8183 = vxor.u32 %v8151, 2147483648
        %v8184 = vxor.u32 %v8152, 2147483648
        %v8185 = vxor.u32 %v8153, 2147483648
        %v8186 = vxor.u32 %v8154, 2147483648
        %v8187 = vxor.u32 %v8155, 2147483648
        %v8188 = vxor.u32 %v8156, 2147483648
        %v8189 = vxor.u32 %v8157, 2147483648
        %v8190 = vmul.f32 %v8158, 1.442695
        %v8191 = vpow.pop %v8190
        %v8192 = vmul.f32 %v8159, 1.442695
        %v8193 = vpow.pop %v8192
        %v8194 = vmul.f32 %v8160, 1.442695
        %v8195 = vpow.pop %v8194
        %v8196 = vmul.f32 %v8161, 1.442695
        %v8197 = vpow.pop %v8196
        %v8198 = vmul.f32 %v8162, 1.442695
        %v8199 = vpow.pop %v8198
        %v8200 = vmul.f32 %v8163, 1.442695
        %v8201 = vpow.pop %v8200
        %v8202 = vmul.f32 %v8164, 1.442695
        %v8203 = vpow.pop %v8202
        %v8204 = vmul.f32 %v8165, 1.442695
        %v8205 = vpow.pop %v8204
        %v8206 = vmul.f32 %v8166, 1.442695
        %v8207 = vpow.pop %v8206
        %v8208 = vmul.f32 %v8167, 1.442695
        %v8209 = vpow.pop %v8208
        %v8210 = vmul.f32 %v8168, 1.442695
        %v8211 = vpow.pop %v8210
        %v8212 = vmul.f32 %v8169, 1.442695
        %v8213 = vpow.pop %v8212
        %v8214 = vmul.f32 %v8170, 1.442695
        %v8215 = vpow.pop %v8214
        %v8216 = vmul.f32 %v8171, 1.442695
        %v8217 = vpow.pop %v8216
        %v8218 = vmul.f32 %v8172, 1.442695
        %v8219 = vpow.pop %v8218
        %v8220 = vmul.f32 %v8173, 1.442695
        %v8221 = vpow.pop %v8220
        %v8222 = vmul.f32 %v8174, 1.442695
        %v8223 = vpow.pop %v8222
        %v8224 = vmul.f32 %v8175, 1.442695
        %v8225 = vpow.pop %v8224
        %v8226 = vmul.f32 %v8176, 1.442695
        %v8227 = vpow.pop %v8226
        %v8228 = vmul.f32 %v8177, 1.442695
        %v8229 = vpow.pop %v8228
        %v8230 = vmul.f32 %v8178, 1.442695
        %v8231 = vpow.pop %v8230
        %v8232 = vmul.f32 %v8179, 1.442695
        %v8233 = vpow.pop %v8232
        %v8234 = vmul.f32 %v8180, 1.442695
        %v8235 = vpow.pop %v8234
        %v8236 = vmul.f32 %v8181, 1.442695
        %v8237 = vpow.pop %v8236
        %v8238 = vmul.f32 %v8182, 1.442695
        %v8239 = vpow.pop %v8238
        %v8240 = vmul.f32 %v8183, 1.442695
        %v8241 = vpow.pop %v8240
        %v8242 = vmul.f32 %v8184, 1.442695
        %v8243 = vpow.pop %v8242
        %v8244 = vmul.f32 %v8185, 1.442695
        %v8245 = vpow.pop %v8244
        %v8246 = vmul.f32 %v8186, 1.442695
        %v8247 = vpow.pop %v8246
        %v8248 = vmul.f32 %v8187, 1.442695
        %v8249 = vpow.pop %v8248
        %v8250 = vmul.f32 %v8188, 1.442695
        %v8251 = vpow.pop %v8250
        %v8252 = vmul.f32 %v8189, 1.442695
        %v8253 = vpow.pop %v8252
        %v8254 = vadd.f32 %v8191, 1.0
        %v8255 = vadd.f32 %v8193, 1.0
        %v8256 = vadd.f32 %v8195, 1.0
        %v8257 = vadd.f32 %v8197, 1.0
        %v8258 = vadd.f32 %v8199, 1.0
        %v8259 = vadd.f32 %v8201, 1.0
        %v8260 = vadd.f32 %v8203, 1.0
        %v8261 = vadd.f32 %v8205, 1.0
        %v8262 = vadd.f32 %v8207, 1.0
        %v8263 = vadd.f32 %v8209, 1.0
        %v8264 = vadd.f32 %v8211, 1.0
        %v8265 = vadd.f32 %v8213, 1.0
        %v8266 = vadd.f32 %v8215, 1.0
        %v8267 = vadd.f32 %v8217, 1.0
        %v8268 = vadd.f32 %v8219, 1.0
        %v8269 = vadd.f32 %v8221, 1.0
        %v8270 = vadd.f32 %v8223, 1.0
        %v8271 = vadd.f32 %v8225, 1.0
        %v8272 = vadd.f32 %v8227, 1.0
        %v8273 = vadd.f32 %v8229, 1.0
        %v8274 = vadd.f32 %v8231, 1.0
        %v8275 = vadd.f32 %v8233, 1.0
        %v8276 = vadd.f32 %v8235, 1.0
        %v8277 = vadd.f32 %v8237, 1.0
        %v8278 = vadd.f32 %v8239, 1.0
        %v8279 = vadd.f32 %v8241, 1.0
        %v8280 = vadd.f32 %v8243, 1.0
        %v8281 = vadd.f32 %v8245, 1.0
        %v8282 = vadd.f32 %v8247, 1.0
        %v8283 = vadd.f32 %v8249, 1.0
        %v8284 = vadd.f32 %v8251, 1.0
        %v8285 = vadd.f32 %v8253, 1.0
        %v8286 = vrcp.pop %v8254
        %v8287 = vmul.f32 1.0, %v8286
        %v8288 = vrcp.pop %v8255
        %v8289 = vmul.f32 1.0, %v8288
        %v8290 = vrcp.pop %v8256
        %v8291 = vmul.f32 1.0, %v8290
        %v8292 = vrcp.pop %v8257
        %v8293 = vmul.f32 1.0, %v8292
        %v8294 = vrcp.pop %v8258
        %v8295 = vmul.f32 1.0, %v8294
        %v8296 = vrcp.pop %v8259
        %v8297 = vmul.f32 1.0, %v8296
        %v8298 = vrcp.pop %v8260
        %v8299 = vmul.f32 1.0, %v8298
        %v8300 = vrcp.pop %v8261
        %v8301 = vmul.f32 1.0, %v8300
        %v8302 = vrcp.pop %v8262
        %v8303 = vmul.f32 1.0, %v8302
        %v8304 = vrcp.pop %v8263
        %v8305 = vmul.f32 1.0, %v8304
        %v8306 = vrcp.pop %v8264
        %v8307 = vmul.f32 1.0, %v8306
        %v8308 = vrcp.pop %v8265
        %v8309 = vmul.f32 1.0, %v8308
        %v8310 = vrcp.pop %v8266
        %v8311 = vmul.f32 1.0, %v8310
        %v8312 = vrcp.pop %v8267
        %v8313 = vmul.f32 1.0, %v8312
        %v8314 = vrcp.pop %v8268
        %v8315 = vmul.f32 1.0, %v8314
        %v8316 = vrcp.pop %v8269
        %v8317 = vmul.f32 1.0, %v8316
        %v8318 = vrcp.pop %v8270
        %v8319 = vmul.f32 1.0, %v8318
        %v8320 = vrcp.pop %v8271
        %v8321 = vmul.f32 1.0, %v8320
        %v8322 = vrcp.pop %v8272
        %v8323 = vmul.f32 1.0, %v8322
        %v8324 = vrcp.pop %v8273
        %v8325 = vmul.f32 1.0, %v8324
        %v8326 = vrcp.pop %v8274
        %v8327 = vmul.f32 1.0, %v8326
        %v8328 = vrcp.pop %v8275
        %v8329 = vmul.f32 1.0, %v8328
        %v8330 = vrcp.pop %v8276
        %v8331 = vmul.f32 1.0, %v8330
        %v8332 = vrcp.pop %v8277
        %v8333 = vmul.f32 1.0, %v8332
        %v8334 = vrcp.pop %v8278
        %v8335 = vmul.f32 1.0, %v8334
        %v8336 = vrcp.pop %v8279
        %v8337 = vmul.f32 1.0, %v8336
        %v8338 = vrcp.pop %v8280
        %v8339 = vmul.f32 1.0, %v8338
        %v8340 = vrcp.pop %v8281
        %v8341 = vmul.f32 1.0, %v8340
        %v8342 = vrcp.pop %v8282
        %v8343 = vmul.f32 1.0, %v8342
        %v8344 = vrcp.pop %v8283
        %v8345 = vmul.f32 1.0, %v8344
        %v8346 = vrcp.pop %v8284
        %v8347 = vmul.f32 1.0, %v8346
        %v8348 = vrcp.pop %v8285
        %v8349 = vmul.f32 1.0, %v8348
        %v8350 = vld [vmem:[#allocation2 + $0x8] sm:$0xff]
        %v8351 = vld [vmem:[#allocation2 + $0x28] sm:$0xff]
        %v8352 = vld [vmem:[#allocation2 + $0x48] sm:$0xff]
        %v8353 = vld [vmem:[#allocation2 + $0x68] sm:$0xff]
        %v8354 = vld [vmem:[#allocation2 + $0x88] sm:$0xff]
        %v8355 = vld [vmem:[#allocation2 + $0xa8] sm:$0xff]
        %v8356 = vld [vmem:[#allocation2 + $0xc8] sm:$0xff]
        %v8357 = vld [vmem:[#allocation2 + $0xe8] sm:$0xff]
        %v8358 = vld [vmem:[#allocation2 + $0x108] sm:$0xff]
        %v8359 = vld [vmem:[#allocation2 + $0x128] sm:$0xff]
        %v8360 = vld [vmem:[#allocation2 + $0x148] sm:$0xff]
        %v8361 = vld [vmem:[#allocation2 + $0x168] sm:$0xff]
        %v8362 = vld [vmem:[#allocation2 + $0x188] sm:$0xff]
        %v8363 = vld [vmem:[#allocation2 + $0x1a8] sm:$0xff]
        %v8364 = vld [vmem:[#allocation2 + $0x1c8] sm:$0xff]
        %v8365 = vld [vmem:[#allocation2 + $0x1e8] sm:$0xff]
        %v8366 = vld [vmem:[#allocation2 + $0x208] sm:$0xff]
        %v8367 = vld [vmem:[#allocation2 + $0x228] sm:$0xff]
        %v8368 = vld [vmem:[#allocation2 + $0x248] sm:$0xff]
        %v8369 = vld [vmem:[#allocation2 + $0x268] sm:$0xff]
        %v8370 = vld [vmem:[#allocation2 + $0x288] sm:$0xff]
        %v8371 = vld [vmem:[#allocation2 + $0x2a8] sm:$0xff]
        %v8372 = vld [vmem:[#allocation2 + $0x2c8] sm:$0xff]
        %v8373 = vld [vmem:[#allocation2 + $0x2e8] sm:$0xff]
        %v8374 = vld [vmem:[#allocation2 + $0x308] sm:$0xff]
        %v8375 = vld [vmem:[#allocation2 + $0x328] sm:$0xff]
        %v8376 = vld [vmem:[#allocation2 + $0x348] sm:$0xff]
        %v8377 = vld [vmem:[#allocation2 + $0x368] sm:$0xff]
        %v8378 = vld [vmem:[#allocation2 + $0x388] sm:$0xff]
        %v8379 = vld [vmem:[#allocation2 + $0x3a8] sm:$0xff]
        %v8380 = vld [vmem:[#allocation2 + $0x3c8] sm:$0xff]
        %v8381 = vld [vmem:[#allocation2 + $0x3e8] sm:$0xff]
        %v8382 = vxor.u32 %v8350, 2147483648
        %v8383 = vxor.u32 %v8351, 2147483648
        %v8384 = vxor.u32 %v8352, 2147483648
        %v8385 = vxor.u32 %v8353, 2147483648
        %v8386 = vxor.u32 %v8354, 2147483648
        %v8387 = vxor.u32 %v8355, 2147483648
        %v8388 = vxor.u32 %v8356, 2147483648
        %v8389 = vxor.u32 %v8357, 2147483648
        %v8390 = vxor.u32 %v8358, 2147483648
        %v8391 = vxor.u32 %v8359, 2147483648
        %v8392 = vxor.u32 %v8360, 2147483648
        %v8393 = vxor.u32 %v8361, 2147483648
        %v8394 = vxor.u32 %v8362, 2147483648
        %v8395 = vxor.u32 %v8363, 2147483648
        %v8396 = vxor.u32 %v8364, 2147483648
        %v8397 = vxor.u32 %v8365, 2147483648
        %v8398 = vxor.u32 %v8366, 2147483648
        %v8399 = vxor.u32 %v8367, 2147483648
        %v8400 = vxor.u32 %v8368, 2147483648
        %v8401 = vxor.u32 %v8369, 2147483648
        %v8402 = vxor.u32 %v8370, 2147483648
        %v8403 = vxor.u32 %v8371, 2147483648
        %v8404 = vxor.u32 %v8372, 2147483648
        %v8405 = vxor.u32 %v8373, 2147483648
        %v8406 = vxor.u32 %v8374, 2147483648
        %v8407 = vxor.u32 %v8375, 2147483648
        %v8408 = vxor.u32 %v8376, 2147483648
        %v8409 = vxor.u32 %v8377, 2147483648
        %v8410 = vxor.u32 %v8378, 2147483648
        %v8411 = vxor.u32 %v8379, 2147483648
        %v8412 = vxor.u32 %v8380, 2147483648
        %v8413 = vxor.u32 %v8381, 2147483648
        %v8414 = vmul.f32 %v8382, 1.442695
        %v8415 = vpow.pop %v8414
        %v8416 = vmul.f32 %v8383, 1.442695
        %v8417 = vpow.pop %v8416
        %v8418 = vmul.f32 %v8384, 1.442695
        %v8419 = vpow.pop %v8418
        %v8420 = vmul.f32 %v8385, 1.442695
        %v8421 = vpow.pop %v8420
        %v8422 = vmul.f32 %v8386, 1.442695
        %v8423 = vpow.pop %v8422
        %v8424 = vmul.f32 %v8387, 1.442695
        %v8425 = vpow.pop %v8424
        %v8426 = vmul.f32 %v8388, 1.442695
        %v8427 = vpow.pop %v8426
        %v8428 = vmul.f32 %v8389, 1.442695
        %v8429 = vpow.pop %v8428
        %v8430 = vmul.f32 %v8390, 1.442695
        %v8431 = vpow.pop %v8430
        %v8432 = vmul.f32 %v8391, 1.442695
        %v8433 = vpow.pop %v8432
        %v8434 = vmul.f32 %v8392, 1.442695
        %v8435 = vpow.pop %v8434
        %v8436 = vmul.f32 %v8393, 1.442695
        %v8437 = vpow.pop %v8436
        %v8438 = vmul.f32 %v8394, 1.442695
        %v8439 = vpow.pop %v8438
        %v8440 = vmul.f32 %v8395, 1.442695
        %v8441 = vpow.pop %v8440
        %v8442 = vmul.f32 %v8396, 1.442695
        %v8443 = vpow.pop %v8442
        %v8444 = vmul.f32 %v8397, 1.442695
        %v8445 = vpow.pop %v8444
        %v8446 = vmul.f32 %v8398, 1.442695
        %v8447 = vpow.pop %v8446
        %v8448 = vmul.f32 %v8399, 1.442695
        %v8449 = vpow.pop %v8448
        %v8450 = vmul.f32 %v8400, 1.442695
        %v8451 = vpow.pop %v8450
        %v8452 = vmul.f32 %v8401, 1.442695
        %v8453 = vpow.pop %v8452
        %v8454 = vmul.f32 %v8402, 1.442695
        %v8455 = vpow.pop %v8454
        %v8456 = vmul.f32 %v8403, 1.442695
        %v8457 = vpow.pop %v8456
        %v8458 = vmul.f32 %v8404, 1.442695
        %v8459 = vpow.pop %v8458
        %v8460 = vmul.f32 %v8405, 1.442695
        %v8461 = vpow.pop %v8460
        %v8462 = vmul.f32 %v8406, 1.442695
        %v8463 = vpow.pop %v8462
        %v8464 = vmul.f32 %v8407, 1.442695
        %v8465 = vpow.pop %v8464
        %v8466 = vmul.f32 %v8408, 1.442695
        %v8467 = vpow.pop %v8466
        %v8468 = vmul.f32 %v8409, 1.442695
        %v8469 = vpow.pop %v8468
        %v8470 = vmul.f32 %v8410, 1.442695
        %v8471 = vpow.pop %v8470
        %v8472 = vmul.f32 %v8411, 1.442695
        %v8473 = vpow.pop %v8472
        %v8474 = vmul.f32 %v8412, 1.442695
        %v8475 = vpow.pop %v8474
        %v8476 = vmul.f32 %v8413, 1.442695
        %v8477 = vpow.pop %v8476
        %v8478 = vadd.f32 %v8415, 1.0
        %v8479 = vadd.f32 %v8417, 1.0
        %v8480 = vadd.f32 %v8419, 1.0
        %v8481 = vadd.f32 %v8421, 1.0
        %v8482 = vadd.f32 %v8423, 1.0
        %v8483 = vadd.f32 %v8425, 1.0
        %v8484 = vadd.f32 %v8427, 1.0
        %v8485 = vadd.f32 %v8429, 1.0
        %v8486 = vadd.f32 %v8431, 1.0
        %v8487 = vadd.f32 %v8433, 1.0
        %v8488 = vadd.f32 %v8435, 1.0
        %v8489 = vadd.f32 %v8437, 1.0
        %v8490 = vadd.f32 %v8439, 1.0
        %v8491 = vadd.f32 %v8441, 1.0
        %v8492 = vadd.f32 %v8443, 1.0
        %v8493 = vadd.f32 %v8445, 1.0
        %v8494 = vadd.f32 %v8447, 1.0
        %v8495 = vadd.f32 %v8449, 1.0
        %v8496 = vadd.f32 %v8451, 1.0
        %v8497 = vadd.f32 %v8453, 1.0
        %v8498 = vadd.f32 %v8455, 1.0
        %v8499 = vadd.f32 %v8457, 1.0
        %v8500 = vadd.f32 %v8459, 1.0
        %v8501 = vadd.f32 %v8461, 1.0
        %v8502 = vadd.f32 %v8463, 1.0
        %v8503 = vadd.f32 %v8465, 1.0
        %v8504 = vadd.f32 %v8467, 1.0
        %v8505 = vadd.f32 %v8469, 1.0
        %v8506 = vadd.f32 %v8471, 1.0
        %v8507 = vadd.f32 %v8473, 1.0
        %v8508 = vadd.f32 %v8475, 1.0
        %v8509 = vadd.f32 %v8477, 1.0
        %v8510 = vrcp.pop %v8478
        %v8511 = vmul.f32 1.0, %v8510
        %v8512 = vrcp.pop %v8479
        %v8513 = vmul.f32 1.0, %v8512
        %v8514 = vrcp.pop %v8480
        %v8515 = vmul.f32 1.0, %v8514
        %v8516 = vrcp.pop %v8481
        %v8517 = vmul.f32 1.0, %v8516
        %v8518 = vrcp.pop %v8482
        %v8519 = vmul.f32 1.0, %v8518
        %v8520 = vrcp.pop %v8483
        %v8521 = vmul.f32 1.0, %v8520
        %v8522 = vrcp.pop %v8484
        %v8523 = vmul.f32 1.0, %v8522
        %v8524 = vrcp.pop %v8485
        %v8525 = vmul.f32 1.0, %v8524
        %v8526 = vrcp.pop %v8486
        %v8527 = vmul.f32 1.0, %v8526
        %v8528 = vrcp.pop %v8487
        %v8529 = vmul.f32 1.0, %v8528
        %v8530 = vrcp.pop %v8488
        %v8531 = vmul.f32 1.0, %v8530
        %v8532 = vrcp.pop %v8489
        %v8533 = vmul.f32 1.0, %v8532
        %v8534 = vrcp.pop %v8490
        %v8535 = vmul.f32 1.0, %v8534
        %v8536 = vrcp.pop %v8491
        %v8537 = vmul.f32 1.0, %v8536
        %v8538 = vrcp.pop %v8492
        %v8539 = vmul.f32 1.0, %v8538
        %v8540 = vrcp.pop %v8493
        %v8541 = vmul.f32 1.0, %v8540
        %v8542 = vrcp.pop %v8494
        %v8543 = vmul.f32 1.0, %v8542
        %v8544 = vrcp.pop %v8495
        %v8545 = vmul.f32 1.0, %v8544
        %v8546 = vrcp.pop %v8496
        %v8547 = vmul.f32 1.0, %v8546
        %v8548 = vrcp.pop %v8497
        %v8549 = vmul.f32 1.0, %v8548
        %v8550 = vrcp.pop %v8498
        %v8551 = vmul.f32 1.0, %v8550
        %v8552 = vrcp.pop %v8499
        %v8553 = vmul.f32 1.0, %v8552
        %v8554 = vrcp.pop %v8500
        %v8555 = vmul.f32 1.0, %v8554
        %v8556 = vrcp.pop %v8501
        %v8557 = vmul.f32 1.0, %v8556
        %v8558 = vrcp.pop %v8502
        %v8559 = vmul.f32 1.0, %v8558
        %v8560 = vrcp.pop %v8503
        %v8561 = vmul.f32 1.0, %v8560
        %v8562 = vrcp.pop %v8504
        %v8563 = vmul.f32 1.0, %v8562
        %v8564 = vrcp.pop %v8505
        %v8565 = vmul.f32 1.0, %v8564
        %v8566 = vrcp.pop %v8506
        %v8567 = vmul.f32 1.0, %v8566
        %v8568 = vrcp.pop %v8507
        %v8569 = vmul.f32 1.0, %v8568
        %v8570 = vrcp.pop %v8508
        %v8571 = vmul.f32 1.0, %v8570
        %v8572 = vrcp.pop %v8509
        %v8573 = vmul.f32 1.0, %v8572
        %v8574 = vld [vmem:[#allocation2 + $0x10] sm:$0xff]
        %v8575 = vld [vmem:[#allocation2 + $0x30] sm:$0xff]
        %v8576 = vld [vmem:[#allocation2 + $0x50] sm:$0xff]
        %v8577 = vld [vmem:[#allocation2 + $0x70] sm:$0xff]
        %v8578 = vld [vmem:[#allocation2 + $0x90] sm:$0xff]
        %v8579 = vld [vmem:[#allocation2 + $0xb0] sm:$0xff]
        %v8580 = vld [vmem:[#allocation2 + $0xd0] sm:$0xff]
        %v8581 = vld [vmem:[#allocation2 + $0xf0] sm:$0xff]
        %v8582 = vld [vmem:[#allocation2 + $0x110] sm:$0xff]
        %v8583 = vld [vmem:[#allocation2 + $0x130] sm:$0xff]
        %v8584 = vld [vmem:[#allocation2 + $0x150] sm:$0xff]
        %v8585 = vld [vmem:[#allocation2 + $0x170] sm:$0xff]
        %v8586 = vld [vmem:[#allocation2 + $0x190] sm:$0xff]
        %v8587 = vld [vmem:[#allocation2 + $0x1b0] sm:$0xff]
        %v8588 = vld [vmem:[#allocation2 + $0x1d0] sm:$0xff]
        %v8589 = vld [vmem:[#allocation2 + $0x1f0] sm:$0xff]
        %v8590 = vld [vmem:[#allocation2 + $0x210] sm:$0xff]
        %v8591 = vld [vmem:[#allocation2 + $0x230] sm:$0xff]
        %v8592 = vld [vmem:[#allocation2 + $0x250] sm:$0xff]
        %v8593 = vld [vmem:[#allocation2 + $0x270] sm:$0xff]
        %v8594 = vld [vmem:[#allocation2 + $0x290] sm:$0xff]
        %v8595 = vld [vmem:[#allocation2 + $0x2b0] sm:$0xff]
        %v8596 = vld [vmem:[#allocation2 + $0x2d0] sm:$0xff]
        %v8597 = vld [vmem:[#allocation2 + $0x2f0] sm:$0xff]
        %v8598 = vld [vmem:[#allocation2 + $0x310] sm:$0xff]
        %v8599 = vld [vmem:[#allocation2 + $0x330] sm:$0xff]
        %v8600 = vld [vmem:[#allocation2 + $0x350] sm:$0xff]
        %v8601 = vld [vmem:[#allocation2 + $0x370] sm:$0xff]
        %v8602 = vld [vmem:[#allocation2 + $0x390] sm:$0xff]
        %v8603 = vld [vmem:[#allocation2 + $0x3b0] sm:$0xff]
        %v8604 = vld [vmem:[#allocation2 + $0x3d0] sm:$0xff]
        %v8605 = vld [vmem:[#allocation2 + $0x3f0] sm:$0xff]
        %v8606 = vtanh.pop %v8574
        %v8607 = vtanh.pop %v8575
        %v8608 = vtanh.pop %v8576
        %v8609 = vtanh.pop %v8577
        %v8610 = vtanh.pop %v8578
        %v8611 = vtanh.pop %v8579
        %v8612 = vtanh.pop %v8580
        %v8613 = vtanh.pop %v8581
        %v8614 = vtanh.pop %v8582
        %v8615 = vtanh.pop %v8583
        %v8616 = vtanh.pop %v8584
        %v8617 = vtanh.pop %v8585
        %v8618 = vtanh.pop %v8586
        %v8619 = vtanh.pop %v8587
        %v8620 = vtanh.pop %v8588
        %v8621 = vtanh.pop %v8589
        %v8622 = vtanh.pop %v8590
        %v8623 = vtanh.pop %v8591
        %v8624 = vtanh.pop %v8592
        %v8625 = vtanh.pop %v8593
        %v8626 = vtanh.pop %v8594
        %v8627 = vtanh.pop %v8595
        %v8628 = vtanh.pop %v8596
        %v8629 = vtanh.pop %v8597
        %v8630 = vtanh.pop %v8598
        %v8631 = vtanh.pop %v8599
        %v8632 = vtanh.pop %v8600
        %v8633 = vtanh.pop %v8601
        %v8634 = vtanh.pop %v8602
        %v8635 = vtanh.pop %v8603
        %v8636 = vtanh.pop %v8604
        %v8637 = vtanh.pop %v8605
        %v8638 = vld [vmem:[#allocation2 + $0x18] sm:$0xff]
        %v8639 = vld [vmem:[#allocation2 + $0x38] sm:$0xff]
        %v8640 = vld [vmem:[#allocation2 + $0x58] sm:$0xff]
        %v8641 = vld [vmem:[#allocation2 + $0x78] sm:$0xff]
        %v8642 = vld [vmem:[#allocation2 + $0x98] sm:$0xff]
        %v8643 = vld [vmem:[#allocation2 + $0xb8] sm:$0xff]
        %v8644 = vld [vmem:[#allocation2 + $0xd8] sm:$0xff]
        %v8645 = vld [vmem:[#allocation2 + $0xf8] sm:$0xff]
        %v8646 = vld [vmem:[#allocation2 + $0x118] sm:$0xff]
        %v8647 = vld [vmem:[#allocation2 + $0x138] sm:$0xff]
        %v8648 = vld [vmem:[#allocation2 + $0x158] sm:$0xff]
        %v8649 = vld [vmem:[#allocation2 + $0x178] sm:$0xff]
        %v8650 = vld [vmem:[#allocation2 + $0x198] sm:$0xff]
        %v8651 = vld [vmem:[#allocation2 + $0x1b8] sm:$0xff]
        %v8652 = vld [vmem:[#allocation2 + $0x1d8] sm:$0xff]
        %v8653 = vld [vmem:[#allocation2 + $0x1f8] sm:$0xff]
        %v8654 = vld [vmem:[#allocation2 + $0x218] sm:$0xff]
        %v8655 = vld [vmem:[#allocation2 + $0x238] sm:$0xff]
        %v8656 = vld [vmem:[#allocation2 + $0x258] sm:$0xff]
        %v8657 = vld [vmem:[#allocation2 + $0x278] sm:$0xff]
        %v8658 = vld [vmem:[#allocation2 + $0x298] sm:$0xff]
        %v8659 = vld [vmem:[#allocation2 + $0x2b8] sm:$0xff]
        %v8660 = vld [vmem:[#allocation2 + $0x2d8] sm:$0xff]
        %v8661 = vld [vmem:[#allocation2 + $0x2f8] sm:$0xff]
        %v8662 = vld [vmem:[#allocation2 + $0x318] sm:$0xff]
        %v8663 = vld [vmem:[#allocation2 + $0x338] sm:$0xff]
        %v8664 = vld [vmem:[#allocation2 + $0x358] sm:$0xff]
        %v8665 = vld [vmem:[#allocation2 + $0x378] sm:$0xff]
        %v8666 = vld [vmem:[#allocation2 + $0x398] sm:$0xff]
        %v8667 = vld [vmem:[#allocation2 + $0x3b8] sm:$0xff]
        %v8668 = vld [vmem:[#allocation2 + $0x3d8] sm:$0xff]
        %v8669 = vld [vmem:[#allocation2 + $0x3f8] sm:$0xff]
        %v8670 = vxor.u32 %v8638, 2147483648
        %v8671 = vxor.u32 %v8639, 2147483648
        %v8672 = vxor.u32 %v8640, 2147483648
        %v8673 = vxor.u32 %v8641, 2147483648
        %v8674 = vxor.u32 %v8642, 2147483648
        %v8675 = vxor.u32 %v8643, 2147483648
        %v8676 = vxor.u32 %v8644, 2147483648
        %v8677 = vxor.u32 %v8645, 2147483648
        %v8678 = vxor.u32 %v8646, 2147483648
        %v8679 = vxor.u32 %v8647, 2147483648
        %v8680 = vxor.u32 %v8648, 2147483648
        %v8681 = vxor.u32 %v8649, 2147483648
        %v8682 = vxor.u32 %v8650, 2147483648
        %v8683 = vxor.u32 %v8651, 2147483648
        %v8684 = vxor.u32 %v8652, 2147483648
        %v8685 = vxor.u32 %v8653, 2147483648
        %v8686 = vxor.u32 %v8654, 2147483648
        %v8687 = vxor.u32 %v8655, 2147483648
        %v8688 = vxor.u32 %v8656, 2147483648
        %v8689 = vxor.u32 %v8657, 2147483648
        %v8690 = vxor.u32 %v8658, 2147483648
        %v8691 = vxor.u32 %v8659, 2147483648
        %v8692 = vxor.u32 %v8660, 2147483648
        %v8693 = vxor.u32 %v8661, 2147483648
        %v8694 = vxor.u32 %v8662, 2147483648
        %v8695 = vxor.u32 %v8663, 2147483648
        %v8696 = vxor.u32 %v8664, 2147483648
        %v8697 = vxor.u32 %v8665, 2147483648
        %v8698 = vxor.u32 %v8666, 2147483648
        %v8699 = vxor.u32 %v8667, 2147483648
        %v8700 = vxor.u32 %v8668, 2147483648
        %v8701 = vxor.u32 %v8669, 2147483648
        %v8702 = vmul.f32 %v8670, 1.442695
        %v8703 = vpow.pop %v8702
        %v8704 = vmul.f32 %v8671, 1.442695
        %v8705 = vpow.pop %v8704
        %v8706 = vmul.f32 %v8672, 1.442695
        %v8707 = vpow.pop %v8706
        %v8708 = vmul.f32 %v8673, 1.442695
        %v8709 = vpow.pop %v8708
        %v8710 = vmul.f32 %v8674, 1.442695
        %v8711 = vpow.pop %v8710
        %v8712 = vmul.f32 %v8675, 1.442695
        %v8713 = vpow.pop %v8712
        %v8714 = vmul.f32 %v8676, 1.442695
        %v8715 = vpow.pop %v8714
        %v8716 = vmul.f32 %v8677, 1.442695
        %v8717 = vpow.pop %v8716
        %v8718 = vmul.f32 %v8678, 1.442695
        %v8719 = vpow.pop %v8718
        %v8720 = vmul.f32 %v8679, 1.442695
        %v8721 = vpow.pop %v8720
        %v8722 = vmul.f32 %v8680, 1.442695
        %v8723 = vpow.pop %v8722
        %v8724 = vmul.f32 %v8681, 1.442695
        %v8725 = vpow.pop %v8724
        %v8726 = vmul.f32 %v8682, 1.442695
        %v8727 = vpow.pop %v8726
        %v8728 = vmul.f32 %v8683, 1.442695
        %v8729 = vpow.pop %v8728
        %v8730 = vmul.f32 %v8684, 1.442695
        %v8731 = vpow.pop %v8730
        %v8732 = vmul.f32 %v8685, 1.442695
        %v8733 = vpow.pop %v8732
        %v8734 = vmul.f32 %v8686, 1.442695
        %v8735 = vpow.pop %v8734
        %v8736 = vmul.f32 %v8687, 1.442695
        %v8737 = vpow.pop %v8736
        %v8738 = vmul.f32 %v8688, 1.442695
        %v8739 = vpow.pop %v8738
        %v8740 = vmul.f32 %v8689, 1.442695
        %v8741 = vpow.pop %v8740
        %v8742 = vmul.f32 %v8690, 1.442695
        %v8743 = vpow.pop %v8742
        %v8744 = vmul.f32 %v8691, 1.442695
        %v8745 = vpow.pop %v8744
        %v8746 = vmul.f32 %v8692, 1.442695
        %v8747 = vpow.pop %v8746
        %v8748 = vmul.f32 %v8693, 1.442695
        %v8749 = vpow.pop %v8748
        %v8750 = vmul.f32 %v8694, 1.442695
        %v8751 = vpow.pop %v8750
        %v8752 = vmul.f32 %v8695, 1.442695
        %v8753 = vpow.pop %v8752
        %v8754 = vmul.f32 %v8696, 1.442695
        %v8755 = vpow.pop %v8754
        %v8756 = vmul.f32 %v8697, 1.442695
        %v8757 = vpow.pop %v8756
        %v8758 = vmul.f32 %v8698, 1.442695
        %v8759 = vpow.pop %v8758
        %v8760 = vmul.f32 %v8699, 1.442695
        %v8761 = vpow.pop %v8760
        %v8762 = vmul.f32 %v8700, 1.442695
        %v8763 = vpow.pop %v8762
        %v8764 = vmul.f32 %v8701, 1.442695
        %v8765 = vpow.pop %v8764
        %v8766 = vadd.f32 %v8703, 1.0
        %v8767 = vadd.f32 %v8705, 1.0
        %v8768 = vadd.f32 %v8707, 1.0
        %v8769 = vadd.f32 %v8709, 1.0
        %v8770 = vadd.f32 %v8711, 1.0
        %v8771 = vadd.f32 %v8713, 1.0
        %v8772 = vadd.f32 %v8715, 1.0
        %v8773 = vadd.f32 %v8717, 1.0
        %v8774 = vadd.f32 %v8719, 1.0
        %v8775 = vadd.f32 %v8721, 1.0
        %v8776 = vadd.f32 %v8723, 1.0
        %v8777 = vadd.f32 %v8725, 1.0
        %v8778 = vadd.f32 %v8727, 1.0
        %v8779 = vadd.f32 %v8729, 1.0
        %v8780 = vadd.f32 %v8731, 1.0
        %v8781 = vadd.f32 %v8733, 1.0
        %v8782 = vadd.f32 %v8735, 1.0
        %v8783 = vadd.f32 %v8737, 1.0
        %v8784 = vadd.f32 %v8739, 1.0
        %v8785 = vadd.f32 %v8741, 1.0
        %v8786 = vadd.f32 %v8743, 1.0
        %v8787 = vadd.f32 %v8745, 1.0
        %v8788 = vadd.f32 %v8747, 1.0
        %v8789 = vadd.f32 %v8749, 1.0
        %v8790 = vadd.f32 %v8751, 1.0
        %v8791 = vadd.f32 %v8753, 1.0
        %v8792 = vadd.f32 %v8755, 1.0
        %v8793 = vadd.f32 %v8757, 1.0
        %v8794 = vadd.f32 %v8759, 1.0
        %v8795 = vadd.f32 %v8761, 1.0
        %v8796 = vadd.f32 %v8763, 1.0
        %v8797 = vadd.f32 %v8765, 1.0
        %v8798 = vrcp.pop %v8766
        %v8799 = vmul.f32 1.0, %v8798
        %v8800 = vrcp.pop %v8767
        %v8801 = vmul.f32 1.0, %v8800
        %v8802 = vrcp.pop %v8768
        %v8803 = vmul.f32 1.0, %v8802
        %v8804 = vrcp.pop %v8769
        %v8805 = vmul.f32 1.0, %v8804
        %v8806 = vrcp.pop %v8770
        %v8807 = vmul.f32 1.0, %v8806
        %v8808 = vrcp.pop %v8771
        %v8809 = vmul.f32 1.0, %v8808
        %v8810 = vrcp.pop %v8772
        %v8811 = vmul.f32 1.0, %v8810
        %v8812 = vrcp.pop %v8773
        %v8813 = vmul.f32 1.0, %v8812
        %v8814 = vrcp.pop %v8774
        %v8815 = vmul.f32 1.0, %v8814
        %v8816 = vrcp.pop %v8775
        %v8817 = vmul.f32 1.0, %v8816
        %v8818 = vrcp.pop %v8776
        %v8819 = vmul.f32 1.0, %v8818
        %v8820 = vrcp.pop %v8777
        %v8821 = vmul.f32 1.0, %v8820
        %v8822 = vrcp.pop %v8778
        %v8823 = vmul.f32 1.0, %v8822
        %v8824 = vrcp.pop %v8779
        %v8825 = vmul.f32 1.0, %v8824
        %v8826 = vrcp.pop %v8780
        %v8827 = vmul.f32 1.0, %v8826
        %v8828 = vrcp.pop %v8781
        %v8829 = vmul.f32 1.0, %v8828
        %v8830 = vrcp.pop %v8782
        %v8831 = vmul.f32 1.0, %v8830
        %v8832 = vrcp.pop %v8783
        %v8833 = vmul.f32 1.0, %v8832
        %v8834 = vrcp.pop %v8784
        %v8835 = vmul.f32 1.0, %v8834
        %v8836 = vrcp.pop %v8785
        %v8837 = vmul.f32 1.0, %v8836
        %v8838 = vrcp.pop %v8786
        %v8839 = vmul.f32 1.0, %v8838
        %v8840 = vrcp.pop %v8787
        %v8841 = vmul.f32 1.0, %v8840
        %v8842 = vrcp.pop %v8788
        %v8843 = vmul.f32 1.0, %v8842
        %v8844 = vrcp.pop %v8789
        %v8845 = vmul.f32 1.0, %v8844
        %v8846 = vrcp.pop %v8790
        %v8847 = vmul.f32 1.0, %v8846
        %v8848 = vrcp.pop %v8791
        %v8849 = vmul.f32 1.0, %v8848
        %v8850 = vrcp.pop %v8792
        %v8851 = vmul.f32 1.0, %v8850
        %v8852 = vrcp.pop %v8793
        %v8853 = vmul.f32 1.0, %v8852
        %v8854 = vrcp.pop %v8794
        %v8855 = vmul.f32 1.0, %v8854
        %v8856 = vrcp.pop %v8795
        %v8857 = vmul.f32 1.0, %v8856
        %v8858 = vrcp.pop %v8796
        %v8859 = vmul.f32 1.0, %v8858
        %v8860 = vrcp.pop %v8797
        %v8861 = vmul.f32 1.0, %v8860
        %v8862 = vld [vmem:[%s284] sm:$0xff]
        %v8863 = vld [vmem:[%s284 + $0x8] sm:$0xff]
        %v8864 = vld [vmem:[%s284 + $0x10] sm:$0xff]
        %v8865 = vld [vmem:[%s284 + $0x18] sm:$0xff]
        %v8866 = vld [vmem:[%s284 + $0x20] sm:$0xff]
        %v8867 = vld [vmem:[%s284 + $0x28] sm:$0xff]
        %v8868 = vld [vmem:[%s284 + $0x30] sm:$0xff]
        %v8869 = vld [vmem:[%s284 + $0x38] sm:$0xff]
        %v8870 = vld [vmem:[%s284 + $0x40] sm:$0xff]
        %v8871 = vld [vmem:[%s284 + $0x48] sm:$0xff]
        %v8872 = vld [vmem:[%s284 + $0x50] sm:$0xff]
        %v8873 = vld [vmem:[%s284 + $0x58] sm:$0xff]
        %v8874 = vld [vmem:[%s284 + $0x60] sm:$0xff]
        %v8875 = vld [vmem:[%s284 + $0x68] sm:$0xff]
        %v8876 = vld [vmem:[%s284 + $0x70] sm:$0xff]
        %v8877 = vld [vmem:[%s284 + $0x78] sm:$0xff]
        %v8878 = vld [vmem:[%s284 + $0x80] sm:$0xff]
        %v8879 = vld [vmem:[%s284 + $0x88] sm:$0xff]
        %v8880 = vld [vmem:[%s284 + $0x90] sm:$0xff]
        %v8881 = vld [vmem:[%s284 + $0x98] sm:$0xff]
        %v8882 = vld [vmem:[%s284 + $0xa0] sm:$0xff]
        %v8883 = vld [vmem:[%s284 + $0xa8] sm:$0xff]
        %v8884 = vld [vmem:[%s284 + $0xb0] sm:$0xff]
        %v8885 = vld [vmem:[%s284 + $0xb8] sm:$0xff]
        %v8886 = vld [vmem:[%s284 + $0xc0] sm:$0xff]
        %v8887 = vld [vmem:[%s284 + $0xc8] sm:$0xff]
        %v8888 = vld [vmem:[%s284 + $0xd0] sm:$0xff]
        %v8889 = vld [vmem:[%s284 + $0xd8] sm:$0xff]
        %v8890 = vld [vmem:[%s284 + $0xe0] sm:$0xff]
        %v8891 = vld [vmem:[%s284 + $0xe8] sm:$0xff]
        %v8892 = vld [vmem:[%s284 + $0xf0] sm:$0xff]
        %v8893 = vld [vmem:[%s284 + $0xf8] sm:$0xff]
        %v8894 = vmul.f32 %v8511, %v8862
        %v8895 = vmul.f32 %v8513, %v8863
        %v8896 = vmul.f32 %v8515, %v8864
        %v8897 = vmul.f32 %v8517, %v8865
        %v8898 = vmul.f32 %v8519, %v8866
        %v8899 = vmul.f32 %v8521, %v8867
        %v8900 = vmul.f32 %v8523, %v8868
        %v8901 = vmul.f32 %v8525, %v8869
        %v8902 = vmul.f32 %v8527, %v8870
        %v8903 = vmul.f32 %v8529, %v8871
        %v8904 = vmul.f32 %v8531, %v8872
        %v8905 = vmul.f32 %v8533, %v8873
        %v8906 = vmul.f32 %v8535, %v8874
        %v8907 = vmul.f32 %v8537, %v8875
        %v8908 = vmul.f32 %v8539, %v8876
        %v8909 = vmul.f32 %v8541, %v8877
        %v8910 = vmul.f32 %v8543, %v8878
        %v8911 = vmul.f32 %v8545, %v8879
        %v8912 = vmul.f32 %v8547, %v8880
        %v8913 = vmul.f32 %v8549, %v8881
        %v8914 = vmul.f32 %v8551, %v8882
        %v8915 = vmul.f32 %v8553, %v8883
        %v8916 = vmul.f32 %v8555, %v8884
        %v8917 = vmul.f32 %v8557, %v8885
        %v8918 = vmul.f32 %v8559, %v8886
        %v8919 = vmul.f32 %v8561, %v8887
        %v8920 = vmul.f32 %v8563, %v8888
        %v8921 = vmul.f32 %v8565, %v8889
        %v8922 = vmul.f32 %v8567, %v8890
        %v8923 = vmul.f32 %v8569, %v8891
        %v8924 = vmul.f32 %v8571, %v8892
        %v8925 = vmul.f32 %v8573, %v8893
        %v8926 = vmul.f32 %v8287, %v8606
        %v8927 = vmul.f32 %v8289, %v8607
        %v8928 = vmul.f32 %v8291, %v8608
        %v8929 = vmul.f32 %v8293, %v8609
        %v8930 = vmul.f32 %v8295, %v8610
        %v8931 = vmul.f32 %v8297, %v8611
        %v8932 = vmul.f32 %v8299, %v8612
        %v8933 = vmul.f32 %v8301, %v8613
        %v8934 = vmul.f32 %v8303, %v8614
        %v8935 = vmul.f32 %v8305, %v8615
        %v8936 = vmul.f32 %v8307, %v8616
        %v8937 = vmul.f32 %v8309, %v8617
        %v8938 = vmul.f32 %v8311, %v8618
        %v8939 = vmul.f32 %v8313, %v8619
        %v8940 = vmul.f32 %v8315, %v8620
        %v8941 = vmul.f32 %v8317, %v8621
        %v8942 = vmul.f32 %v8319, %v8622
        %v8943 = vmul.f32 %v8321, %v8623
        %v8944 = vmul.f32 %v8323, %v8624
        %v8945 = vmul.f32 %v8325, %v8625
        %v8946 = vmul.f32 %v8327, %v8626
        %v8947 = vmul.f32 %v8329, %v8627
        %v8948 = vmul.f32 %v8331, %v8628
        %v8949 = vmul.f32 %v8333, %v8629
        %v8950 = vmul.f32 %v8335, %v8630
        %v8951 = vmul.f32 %v8337, %v8631
        %v8952 = vmul.f32 %v8339, %v8632
        %v8953 = vmul.f32 %v8341, %v8633
        %v8954 = vmul.f32 %v8343, %v8634
        %v8955 = vmul.f32 %v8345, %v8635
        %v8956 = vmul.f32 %v8347, %v8636
        %v8957 = vmul.f32 %v8349, %v8637
        %v8958 = vadd.f32 %v8894, %v8926
        %v8959 = vadd.f32 %v8895, %v8927
        %v8960 = vadd.f32 %v8896, %v8928
        %v8961 = vadd.f32 %v8897, %v8929
        %v8962 = vadd.f32 %v8898, %v8930
        %v8963 = vadd.f32 %v8899, %v8931
        %v8964 = vadd.f32 %v8900, %v8932
        %v8965 = vadd.f32 %v8901, %v8933
        %v8966 = vadd.f32 %v8902, %v8934
        %v8967 = vadd.f32 %v8903, %v8935
        %v8968 = vadd.f32 %v8904, %v8936
        %v8969 = vadd.f32 %v8905, %v8937
        %v8970 = vadd.f32 %v8906, %v8938
        %v8971 = vadd.f32 %v8907, %v8939
        %v8972 = vadd.f32 %v8908, %v8940
        %v8973 = vadd.f32 %v8909, %v8941
        %v8974 = vadd.f32 %v8910, %v8942
        %v8975 = vadd.f32 %v8911, %v8943
        %v8976 = vadd.f32 %v8912, %v8944
        %v8977 = vadd.f32 %v8913, %v8945
        %v8978 = vadd.f32 %v8914, %v8946
        %v8979 = vadd.f32 %v8915, %v8947
        %v8980 = vadd.f32 %v8916, %v8948
        %v8981 = vadd.f32 %v8917, %v8949
        %v8982 = vadd.f32 %v8918, %v8950
        %v8983 = vadd.f32 %v8919, %v8951
        %v8984 = vadd.f32 %v8920, %v8952
        %v8985 = vadd.f32 %v8921, %v8953
        %v8986 = vadd.f32 %v8922, %v8954
        %v8987 = vadd.f32 %v8923, %v8955
        %v8988 = vadd.f32 %v8924, %v8956
        %v8989 = vadd.f32 %v8925, %v8957
        %v8990 = vtanh.pop %v8958
        %v8991 = vtanh.pop %v8959
        %v8992 = vtanh.pop %v8960
        %v8993 = vtanh.pop %v8961
        %v8994 = vtanh.pop %v8962
        %v8995 = vtanh.pop %v8963
        %v8996 = vtanh.pop %v8964
        %v8997 = vtanh.pop %v8965
        %v8998 = vtanh.pop %v8966
        %v8999 = vtanh.pop %v8967
        %v9000 = vtanh.pop %v8968
        %v9001 = vtanh.pop %v8969
        %v9002 = vtanh.pop %v8970
        %v9003 = vtanh.pop %v8971
        %v9004 = vtanh.pop %v8972
        %v9005 = vtanh.pop %v8973
        %v9006 = vtanh.pop %v8974
        %v9007 = vtanh.pop %v8975
        %v9008 = vtanh.pop %v8976
        %v9009 = vtanh.pop %v8977
        %v9010 = vtanh.pop %v8978
        %v9011 = vtanh.pop %v8979
        %v9012 = vtanh.pop %v8980
        %v9013 = vtanh.pop %v8981
        %v9014 = vtanh.pop %v8982
        %v9015 = vtanh.pop %v8983
        %v9016 = vtanh.pop %v8984
        %v9017 = vtanh.pop %v8985
        %v9018 = vtanh.pop %v8986
        %v9019 = vtanh.pop %v8987
        %v9020 = vtanh.pop %v8988
        %v9021 = vtanh.pop %v8989
        %v9022 = vmul.f32 %v8799, %v8990
        %v9023 = vmul.f32 %v8801, %v8991
        %v9024 = vmul.f32 %v8803, %v8992
        %v9025 = vmul.f32 %v8805, %v8993
        %v9026 = vmul.f32 %v8807, %v8994
        %v9027 = vmul.f32 %v8809, %v8995
        %v9028 = vmul.f32 %v8811, %v8996
        %v9029 = vmul.f32 %v8813, %v8997
        %v9030 = vmul.f32 %v8815, %v8998
        %v9031 = vmul.f32 %v8817, %v8999
        %v9032 = vmul.f32 %v8819, %v9000
        %v9033 = vmul.f32 %v8821, %v9001
        %v9034 = vmul.f32 %v8823, %v9002
        %v9035 = vmul.f32 %v8825, %v9003
        %v9036 = vmul.f32 %v8827, %v9004
        %v9037 = vmul.f32 %v8829, %v9005
        %v9038 = vmul.f32 %v8831, %v9006
        %v9039 = vmul.f32 %v8833, %v9007
        %v9040 = vmul.f32 %v8835, %v9008
        %v9041 = vmul.f32 %v8837, %v9009
        %v9042 = vmul.f32 %v8839, %v9010
        %v9043 = vmul.f32 %v8841, %v9011
        %v9044 = vmul.f32 %v8843, %v9012
        %v9045 = vmul.f32 %v8845, %v9013
        %v9046 = vmul.f32 %v8847, %v9014
        %v9047 = vmul.f32 %v8849, %v9015
        %v9048 = vmul.f32 %v8851, %v9016
        %v9049 = vmul.f32 %v8853, %v9017
        %v9050 = vmul.f32 %v8855, %v9018
        %v9051 = vmul.f32 %v8857, %v9019
        %v9052 = vmul.f32 %v8859, %v9020
        %v9053 = vmul.f32 %v8861, %v9021
        %9054 = vst [vmem:[%s313] sm:$0xff] %v9022
        %9055 = vst [vmem:[%s313 + $0x8] sm:$0xff] %v9023
        %9056 = vst [vmem:[%s313 + $0x10] sm:$0xff] %v9024
        %9057 = vst [vmem:[%s313 + $0x18] sm:$0xff] %v9025
        %9058 = vst [vmem:[%s313 + $0x20] sm:$0xff] %v9026
        %9059 = vst [vmem:[%s313 + $0x28] sm:$0xff] %v9027
        %9060 = vst [vmem:[%s313 + $0x30] sm:$0xff] %v9028
        %9061 = vst [vmem:[%s313 + $0x38] sm:$0xff] %v9029
        %9062 = vst [vmem:[%s313 + $0x40] sm:$0xff] %v9030
        %9063 = vst [vmem:[%s313 + $0x48] sm:$0xff] %v9031
        %9064 = vst [vmem:[%s313 + $0x50] sm:$0xff] %v9032
        %9065 = vst [vmem:[%s313 + $0x58] sm:$0xff] %v9033
        %9066 = vst [vmem:[%s313 + $0x60] sm:$0xff] %v9034
        %9067 = vst [vmem:[%s313 + $0x68] sm:$0xff] %v9035
        %9068 = vst [vmem:[%s313 + $0x70] sm:$0xff] %v9036
        %9069 = vst [vmem:[%s313 + $0x78] sm:$0xff] %v9037
        %9070 = vst [vmem:[%s313 + $0x80] sm:$0xff] %v9038
        %9071 = vst [vmem:[%s313 + $0x88] sm:$0xff] %v9039
        %9072 = vst [vmem:[%s313 + $0x90] sm:$0xff] %v9040
        %9073 = vst [vmem:[%s313 + $0x98] sm:$0xff] %v9041
        %9074 = vst [vmem:[%s313 + $0xa0] sm:$0xff] %v9042
        %9075 = vst [vmem:[%s313 + $0xa8] sm:$0xff] %v9043
        %9076 = vst [vmem:[%s313 + $0xb0] sm:$0xff] %v9044
        %9077 = vst [vmem:[%s313 + $0xb8] sm:$0xff] %v9045
        %9078 = vst [vmem:[%s313 + $0xc0] sm:$0xff] %v9046
        %9079 = vst [vmem:[%s313 + $0xc8] sm:$0xff] %v9047
        %9080 = vst [vmem:[%s313 + $0xd0] sm:$0xff] %v9048
        %9081 = vst [vmem:[%s313 + $0xd8] sm:$0xff] %v9049
        %9082 = vst [vmem:[%s313 + $0xe0] sm:$0xff] %v9050
        %9083 = vst [vmem:[%s313 + $0xe8] sm:$0xff] %v9051
        %9084 = vst [vmem:[%s313 + $0xf0] sm:$0xff] %v9052
        %9085 = vst [vmem:[%s313 + $0xf8] sm:$0xff] %v9053
        %9086 = vst [vmem:[%s320] sm:$0xff] %v8958
        %9087 = vst [vmem:[%s320 + $0x8] sm:$0xff] %v8959
        %9088 = vst [vmem:[%s320 + $0x10] sm:$0xff] %v8960
        %9089 = vst [vmem:[%s320 + $0x18] sm:$0xff] %v8961
        %9090 = vst [vmem:[%s320 + $0x20] sm:$0xff] %v8962
        %9091 = vst [vmem:[%s320 + $0x28] sm:$0xff] %v8963
        %9092 = vst [vmem:[%s320 + $0x30] sm:$0xff] %v8964
        %9093 = vst [vmem:[%s320 + $0x38] sm:$0xff] %v8965
        %9094 = vst [vmem:[%s320 + $0x40] sm:$0xff] %v8966
        %9095 = vst [vmem:[%s320 + $0x48] sm:$0xff] %v8967
        %9096 = vst [vmem:[%s320 + $0x50] sm:$0xff] %v8968
        %9097 = vst [vmem:[%s320 + $0x58] sm:$0xff] %v8969
        %9098 = vst [vmem:[%s320 + $0x60] sm:$0xff] %v8970
        %9099 = vst [vmem:[%s320 + $0x68] sm:$0xff] %v8971
        %9100 = vst [vmem:[%s320 + $0x70] sm:$0xff] %v8972
        %9101 = vst [vmem:[%s320 + $0x78] sm:$0xff] %v8973
        %9102 = vst [vmem:[%s320 + $0x80] sm:$0xff] %v8974
        %9103 = vst [vmem:[%s320 + $0x88] sm:$0xff] %v8975
        %9104 = vst [vmem:[%s320 + $0x90] sm:$0xff] %v8976
        %9105 = vst [vmem:[%s320 + $0x98] sm:$0xff] %v8977
        %9106 = vst [vmem:[%s320 + $0xa0] sm:$0xff] %v8978
        %9107 = vst [vmem:[%s320 + $0xa8] sm:$0xff] %v8979
        %9108 = vst [vmem:[%s320 + $0xb0] sm:$0xff] %v8980
        %9109 = vst [vmem:[%s320 + $0xb8] sm:$0xff] %v8981
        %9110 = vst [vmem:[%s320 + $0xc0] sm:$0xff] %v8982
        %9111 = vst [vmem:[%s320 + $0xc8] sm:$0xff] %v8983
        %9112 = vst [vmem:[%s320 + $0xd0] sm:$0xff] %v8984
        %9113 = vst [vmem:[%s320 + $0xd8] sm:$0xff] %v8985
        %9114 = vst [vmem:[%s320 + $0xe0] sm:$0xff] %v8986
        %9115 = vst [vmem:[%s320 + $0xe8] sm:$0xff] %v8987
        %9116 = vst [vmem:[%s320 + $0xf0] sm:$0xff] %v8988
        %9117 = vst [vmem:[%s320 + $0xf8] sm:$0xff] %v8989
        %s9118 = sand.u32 %s132, 1
        %s9119 = scalar_lea.sflag [#allocation5], %s9118
        %s9120 = sand.u32 %s132, 1
        %s9121 = smul.addr %s9120, 256
        %s9122 = scalar_lea.vmem [#allocation11], %s9121
        %s9123 = sand.u32 %s158, 1
        %s9124 = scalar_lea.sflag [#allocation13], %s9123
        %s9125 = sand.u32 %s158, 1
        %s9126 = smul.addr %s9125, 256
        %s9127 = scalar_lea.vmem [#allocation12], %s9126
        // Predicated region
        $region53: #{tpu_custom_call.1} parent=35 // pred_check
          %p9128 = pneg %p142
        $region54: #{tpu_custom_call.1} parent=35 // pred_check_branch
          %9130 = sbr.rel (%p9128) target = $region56
        $region55: #{tpu_custom_call.1} parent=35 // pred_region
          %s9132 = ssub.s32 4096, 4096
          %9133 = vsyncadd %s9119, %s9132
          %s9134 = smul.addr %s30, 32
          %s9135 = smul.addr %s9134, 128
          %s9136 = scalar_lea.hbm %s4, %s9135
          %s9137 = sshll.u32 %s9122, 4
          %s9138 = int_to_ptr.vmem [resolvable:$true] %s9137
          %9143 = dma.vmem_to_hbm [thread:$0]  %s9138, 4096, %s9136, %s9119, 128, 128, 8
        $region56: #{tpu_custom_call.1} parent=35 // pred_fallthru
          _
        // Predicated region
        $region57: #{tpu_custom_call.1} parent=35 // pred_check
          %p9144 = pneg %p168
        $region58: #{tpu_custom_call.1} parent=35 // pred_check_branch
          %9146 = sbr.rel (%p9144) target = $region60
        $region59: #{tpu_custom_call.1} parent=35 // pred_region
          %s9148 = ssub.s32 4096, 4096
          %9149 = vsyncadd %s9124, %s9148
          %s9150 = smul.addr %s30, 32
          %s9151 = smul.addr %s9150, 128
          %s9152 = scalar_lea.hbm %s5, %s9151
          %s9153 = sshll.u32 %s9127, 4
          %s9154 = int_to_ptr.vmem [resolvable:$true] %s9153
          %9159 = dma.vmem_to_hbm [thread:$0]  %s9154, 4096, %s9152, %s9124, 128, 128, 8
        $region60: #{tpu_custom_call.1} parent=35 // pred_fallthru
          _
      $region36: #{tpu_custom_call.1} parent=5 // pred_fallthru
        _
      %p9160 = scmp.le.s32.totalorder 2, %s25
      // Predicated region
      $region61: #{tpu_custom_call.1} parent=5 // pred_check
        %p9161 = pneg %p9160
      $region62: #{tpu_custom_call.1} parent=5 // pred_check_branch
        %9163 = sbr.rel (%p9161) target = $region64
      $region63: #{tpu_custom_call.1} parent=5 // pred_region
        %s9164 = ssub.s32 %s25, 2
        // Predicated region
        $region65: #{tpu_custom_call.1} parent=63 // pred_check
          %p9165 = pneg %p148
        $region66: #{tpu_custom_call.1} parent=63 // pred_check_branch
          %9167 = sbr.rel (%p9165) target = $region68
        $region67: #{tpu_custom_call.1} parent=63 // pred_region
          %s9168 = sand.u32 %s133, 1
          %s9169 = scalar_lea.sflag [#allocation5], %s9168
          %s9170 = sand.u32 %s133, 1
          %s9171 = smul.addr %s9170, 256
          %s9172 = scalar_lea.vmem [#allocation11], %s9171
          %9173 = dma.done %s9169, 4096
        $region68: #{tpu_custom_call.1} parent=63 // pred_fallthru
          _
        // Predicated region
        $region69: #{tpu_custom_call.1} parent=63 // pred_check
          %p9174 = pneg %p174
        $region70: #{tpu_custom_call.1} parent=63 // pred_check_branch
          %9176 = sbr.rel (%p9174) target = $region72
        $region71: #{tpu_custom_call.1} parent=63 // pred_region
          %s9177 = sand.u32 %s159, 1
          %s9178 = scalar_lea.sflag [#allocation13], %s9177
          %s9179 = sand.u32 %s159, 1
          %s9180 = smul.addr %s9179, 256
          %s9181 = scalar_lea.vmem [#allocation12], %s9180
          %9182 = dma.done %s9178, 4096
        $region72: #{tpu_custom_call.1} parent=63 // pred_fallthru
          _
      $region64: #{tpu_custom_call.1} parent=5 // pred_fallthru
        _
    $region6: #{tpu_custom_call.1} parent=1 // loop_footer
      %s29 = sadd.s32 1, %s25
    $region7: #{tpu_custom_call.1} parent=1 // loop_footer_branch
      %24 = sbr.rel target = $region3
    $region8: #{tpu_custom_call.1} parent=1 // loop_exit
      _
    %9183 = vsyncpa [#allocation4], 1
    %s9184 = scalar_lea.sflag [#allocation4], 1
    %9185 = vsyncpa %s9184, 1
    %9186 = vsyncpa [#allocation7], 1
    %9187 = vsyncpa [#allocation10], 1
    %s9188 = scalar_lea.sflag [#allocation10], 1
    %9189 = vsyncpa %s9188, 1
    %9190 = vsyncpa [#allocation5], 1
    %s9191 = scalar_lea.sflag [#allocation5], 1
    %9192 = vsyncpa %s9191, 1
    %9193 = vsyncpa [#allocation13], 1
    %s9194 = scalar_lea.sflag [#allocation13], 1
    %9195 = vsyncpa %s9194, 1

</llo_original>
